<compile_context>
chip_gen: v6e
topology: v6e:2x2x1
jax: 0.10.0
libtpu: 0.0.40
codegen_flags: <defaults>
</compile_context>

<pallas_src>
import jax
import jax.numpy as jnp
from jax.experimental import pallas as pl
from jax.experimental.pallas import tpu as pltpu


# ----------------------------------------------------------------------------
# Fused tiled matmul + BN-affine (+ residual) (+ ReLU) Pallas kernel.
# ----------------------------------------------------------------------------
def _round_up(x: int, m: int) -> int:
    return ((x + m - 1) // m) * m


def _make_fused_kernel(apply_relu: bool, has_residual: bool):
    if has_residual:
        def kernel(x_ref, w_ref, s_ref, b_ref, r_ref, o_ref, acc_ref):
            @pl.when(pl.program_id(2) == 0)
            def _():
                acc_ref[...] = jnp.zeros_like(acc_ref)

            acc_ref[...] += jnp.dot(x_ref[...], w_ref[...],
                                    preferred_element_type=jnp.float32)

            @pl.when(pl.program_id(2) == pl.num_programs(2) - 1)
            def _():
                out = acc_ref[...] * s_ref[...] + b_ref[...]
                out = out + r_ref[...].astype(jnp.float32)
                if apply_relu:
                    out = jnp.maximum(out, 0.0)
                o_ref[...] = out.astype(o_ref.dtype)
        return kernel

    def kernel(x_ref, w_ref, s_ref, b_ref, o_ref, acc_ref):
        @pl.when(pl.program_id(2) == 0)
        def _():
            acc_ref[...] = jnp.zeros_like(acc_ref)

        acc_ref[...] += jnp.dot(x_ref[...], w_ref[...],
                                preferred_element_type=jnp.float32)

        @pl.when(pl.program_id(2) == pl.num_programs(2) - 1)
        def _():
            out = acc_ref[...] * s_ref[...] + b_ref[...]
            if apply_relu:
                out = jnp.maximum(out, 0.0)
            o_ref[...] = out.astype(o_ref.dtype)
    return kernel


def fused_matmul(x, w, scale, bias, residual=None, relu=True,
                 out_dtype=jnp.bfloat16):
    """relu?( x:(M,K) @ w:(K,N) * scale:(1,N) + bias:(1,N) (+ residual:(M,N)) )."""
    M, K = x.shape
    Kw, N = w.shape
    assert K == Kw, (K, Kw)

    # Tile sizes: lane-dense (multiples of 128 on the lane dims), budgeted well
    # under v7x's 64 MiB physical / 32 MiB scoped VMEM even with 2x buffering.
    tm = min(_round_up(M, 8), 256)
    tn = min(_round_up(N, 128), 256)
    tk = min(_round_up(K, 128), 512)
    Mp, Np, Kp = _round_up(M, tm), _round_up(N, tn), _round_up(K, tk)

    # bf16 inputs at the kernel boundary; f32 accumulation + epilogue inside.
    xb = x.astype(jnp.bfloat16)
    wb = w.astype(jnp.bfloat16)
    if (Mp, Kp) != (M, K):
        xb = jnp.pad(xb, ((0, Mp - M), (0, Kp - K)))
    if (Kp, Np) != (K, N):
        wb = jnp.pad(wb, ((0, Kp - K), (0, Np - N)))
    s = scale.astype(jnp.float32).reshape(1, N)
    b = bias.astype(jnp.float32).reshape(1, N)
    if Np != N:
        s = jnp.pad(s, ((0, 0), (0, Np - N)))
        b = jnp.pad(b, ((0, 0), (0, Np - N)))

    in_specs = [
        pl.BlockSpec((tm, tk), lambda i, j, k: (i, k)),
        pl.BlockSpec((tk, tn), lambda i, j, k: (k, j)),
        pl.BlockSpec((1, tn), lambda i, j, k: (0, j)),
        pl.BlockSpec((1, tn), lambda i, j, k: (0, j)),
    ]
    args = [xb, wb, s, b]
    if residual is not None:
        rb = residual.astype(jnp.bfloat16)
        rM, rN = residual.shape
        if (Mp, Np) != (rM, rN):
            rb = jnp.pad(rb, ((0, Mp - rM), (0, Np - rN)))
        in_specs.append(pl.BlockSpec((tm, tn), lambda i, j, k: (i, j)))
        args.append(rb)

    out = pl.pallas_call(
        _make_fused_kernel(relu, residual is not None),
        out_shape=jax.ShapeDtypeStruct((Mp, Np), out_dtype),
        grid_spec=pltpu.PrefetchScalarGridSpec(
            num_scalar_prefetch=0,
            grid=(Mp // tm, Np // tn, Kp // tk),
            in_specs=in_specs,
            out_specs=pl.BlockSpec((tm, tn), lambda i, j, k: (i, j)),
            scratch_shapes=[pltpu.VMEM((tm, tn), jnp.float32)],
        ),
        compiler_params=pltpu.CompilerParams(
            dimension_semantics=("parallel", "parallel", "arbitrary"),
            vmem_limit_bytes=32 * 1024 * 1024,
        ),
    )(*args)
    return out[:M, :N]


# ----------------------------------------------------------------------------
# Conv1d = im2col (glue, static strides) + fused_matmul (Pallas).
# ----------------------------------------------------------------------------
def conv1d_im2col(x, k: int, stride: int, pad: int):
    """x: (B, L, C) -> patches: (B*L_out, k*C) with row = b*L_out + l,
    column = tap*C + c (tap-major, matching the transposed torch weight)."""
    B, L, C = x.shape
    L_out = (L + 2 * pad - k) // stride + 1
    xp = jnp.pad(x, ((0, 0), (pad, pad), (0, 0)))
    cols = [xp[:, i:i + stride * L_out:stride, :] for i in range(k)]
    patches = jnp.stack(cols, axis=2)            # (B, L_out, k, C)
    return patches.reshape(B * L_out, k * C), L_out


def maxpool1d(x, k=3, stride=2, pad=1):
    """Small op -> plain JAX glue (PyTorch MaxPool1d pads with -inf)."""
    B, L, C = x.shape
    L_out = (L + 2 * pad - k) // stride + 1
    xp = jnp.pad(x, ((0, 0), (pad, pad), (0, 0)), constant_values=-jnp.inf)
    cols = jnp.stack([xp[:, i:i + stride * L_out:stride, :] for i in range(k)],
                     axis=0)
    return jnp.max(cols, axis=0)


# ----------------------------------------------------------------------------
# Parameter / config construction (shapes follow the torch module).
# ----------------------------------------------------------------------------
def make_conv_bn(key, cin, cout, k, eps=1e-5):
    kw, kg, kb = jax.random.split(key, 3)
    # PyTorch Conv1d weight layout (C_out, C_in, k) -> tap-major (k*C_in, C_out)
    w_torch = 0.1 * jax.random.normal(kw, (cout, cin, k), jnp.float32)
    w = jnp.transpose(w_torch, (2, 1, 0)).reshape(k * cin, cout)
    gamma = 1.0 + 0.1 * jax.random.normal(kg, (cout,), jnp.float32)
    beta = 0.1 * jax.random.normal(kb, (cout,), jnp.float32)
    running_mean = jnp.zeros((cout,), jnp.float32)   # eval-mode folded BN
    running_var = jnp.ones((cout,), jnp.float32)
    scale = gamma / jnp.sqrt(running_var + eps)
    bias = beta - running_mean * scale
    return {"w": w, "scale": scale.reshape(1, cout), "bias": bias.reshape(1, cout)}


def make_block(key, cin, cout, stride):
    k1, k2, kd = jax.random.split(key, 3)
    has_down = (stride != 1) or (cin != cout)
    params = {
        "cb1": make_conv_bn(k1, cin, cout, 3),
        "cb2": make_conv_bn(k2, cout, cout, 3),
    }
    if has_down:
        params["down"] = make_conv_bn(kd, cin, cout, 1)
    cfg = {"stride": stride, "cin": cin, "cout": cout, "down": has_down}
    return params, cfg


def make_resnet(key, in_channels, num_layers=2, num_classes=10):
    """Returns (params: arrays-only pytree, config: static Python structure)."""
    num_channels = 64
    keys = jax.random.split(key, 2 + 4 * num_layers)
    params = {"stem": make_conv_bn(keys[0], in_channels, num_channels, 7)}
    layers_p, layers_c = [], []
    cin = num_channels
    ki = 1
    for stage, mult in enumerate([1, 2, 4, 8]):
        cout = num_channels * mult
        stride = 1 if stage == 0 else 2
        bp, bc = make_block(keys[ki], cin, cout, stride)
        ki += 1
        blocks_p, blocks_c = [bp], [bc]
        for _ in range(num_layers - 1):
            bp, bc = make_block(keys[ki], cout, cout, 1)
            ki += 1
            blocks_p.append(bp)
            blocks_c.append(bc)
        layers_p.append(blocks_p)
        layers_c.append(blocks_c)
        cin = cout
    params["layers"] = layers_p
    kfw, kfb = jax.random.split(keys[ki], 2)
    params["fc"] = {
        "w": 0.1 * jax.random.normal(kfw, (num_channels * 8, num_classes), jnp.float32),
        "b": 0.1 * jax.random.normal(kfb, (num_classes,), jnp.float32),
    }
    return params, layers_c


# ----------------------------------------------------------------------------
# Forward pass.
# ----------------------------------------------------------------------------
def residual_block_fwd(x, p, cfg):
    B, L, cin = x.shape
    stride, cout = cfg["stride"], cfg["cout"]
    # conv1 -> bn1 -> relu (one fused Pallas call)
    patches1, L1 = conv1d_im2col(x, 3, stride, 1)
    h = fused_matmul(patches1, p["cb1"]["w"], p["cb1"]["scale"], p["cb1"]["bias"],
                     relu=True)
    h = h.reshape(B, L1, cout)
    # residual path
    if cfg["down"]:
        pd, _ = conv1d_im2col(x, 1, stride, 0)
        res = fused_matmul(pd, p["down"]["w"], p["down"]["scale"],
                           p["down"]["bias"], relu=False)
    else:
        res = x.reshape(B * L, cin)
    # conv2 -> bn2 -> +res -> relu (one fused Pallas call)
    patches2, L2 = conv1d_im2col(h, 3, 1, 1)
    out = fused_matmul(patches2, p["cb2"]["w"], p["cb2"]["scale"], p["cb2"]["bias"],
                       residual=res, relu=True)
    return out.reshape(B, L2, cout)


def resnet_forward(x, params, config):
    # x: (B, L, C_in) channels-last (torch input before its internal permute)
    B = x.shape[0]
    patches, L = conv1d_im2col(x, 7, 2, 3)                 # stem conv k=7 s=2 p=3
    h = fused_matmul(patches, params["stem"]["w"], params["stem"]["scale"],
                     params["stem"]["bias"], relu=True)
    h = h.reshape(B, L, -1)
    h = maxpool1d(h, k=3, stride=2, pad=1)
    for stage_p, stage_c in zip(params["layers"], config):
        for blk_p, blk_c in zip(stage_p, stage_c):
            h = residual_block_fwd(h, blk_p, blk_c)
    h = jnp.mean(h.astype(jnp.float32), axis=1)            # AdaptiveAvgPool1d(1)+flatten
    n_cls = params["fc"]["w"].shape[1]
    out = fused_matmul(h, params["fc"]["w"],
                       jnp.ones((1, n_cls), jnp.float32),
                       params["fc"]["b"].reshape(1, n_cls),
                       relu=False, out_dtype=jnp.float32)
    return out


def build_forward(config):
    # config is static Python structure closed over by the jitted function,
    # so strides / channel counts stay concrete ints during tracing.
    def fwd(x, params):
        return resnet_forward(x, params, config)
    return jax.jit(fwd)


if __name__ == "__main__":
    key = jax.random.PRNGKey(0)
    kx, kp = jax.random.split(key)
    B, L, C_in = 2, 16, 4                      # input_dim = (seq_len=16, in_channels=4)
    x = jax.random.normal(kx, (B, L, C_in), jnp.float32)
    params, config = make_resnet(kp, in_channels=C_in, num_layers=2, num_classes=10)

    forward = build_forward(config)
    out = jax.block_until_ready(forward(x, params))
    assert out.shape == (B, 10), out.shape
    print("KERNEL_OK")
</pallas_src>

<mosaic_0001>
module attributes {stable_mosaic.version = 11 : i64} {
  func.func @kernel(%arg0: i32, %arg1: i32, %arg2: i32, %arg3: memref<16x128xbf16, #tpu.memory_space<vmem>>, %arg4: memref<128x128xbf16, #tpu.memory_space<vmem>>, %arg5: memref<1x128xf32, #tpu.memory_space<vmem>>, %arg6: memref<1x128xf32, #tpu.memory_space<vmem>>, %arg7: memref<16x128xbf16, #tpu.memory_space<vmem>>, %arg8: memref<16x128xf32, #tpu.memory_space<vmem>>) attributes {dimension_semantics = [#tpu.dimension_semantics<parallel>, #tpu.dimension_semantics<parallel>, #tpu.dimension_semantics<arbitrary>], iteration_bounds = array<i64: 1, 1, 1>, scalar_prefetch = 0 : i64, scratch_operands = 1 : i64, tpu.core_type = #tpu.core_type<tc>, window_params = [{transform_indices = @transform_0, window_bounds = array<i64: 16, 128>}, {transform_indices = @transform_1, window_bounds = array<i64: 128, 128>}, {transform_indices = @transform_2, window_bounds = array<i64: 1, 128>}, {transform_indices = @transform_3, window_bounds = array<i64: 1, 128>}, {transform_indices = @transform_4, window_bounds = array<i64: 16, 128>}]} {
    %c0_i32 = arith.constant 0 : i32
    %0 = arith.cmpi eq, %arg2, %c0_i32 : i32
    %1 = arith.extui %0 : i1 to i32
    %c0_i32_0 = arith.constant 0 : i32
    %2 = arith.cmpi ne, %1, %c0_i32_0 : i32
    scf.if %2 {
      %cst_10 = arith.constant 0.000000e+00 : f32
      %12 = vector.broadcast %cst_10 : f32 to vector<16x128xf32>
      %c0_11 = arith.constant 0 : index
      %c0_12 = arith.constant 0 : index
      %13 = vector.load %arg8[%c0_11, %c0_12] : memref<16x128xf32, #tpu.memory_space<vmem>>, vector<16x128xf32>
      tpu.vector_store %arg8[%c0_11, %c0_12], %12 {strides = array<i32>} : memref<16x128xf32, #tpu.memory_space<vmem>>, vector<16x128xf32>,
    } else {
    }
    %c0 = arith.constant 0 : index
    %c0_1 = arith.constant 0 : index
    %3 = vector.load %arg8[%c0, %c0_1] : memref<16x128xf32, #tpu.memory_space<vmem>>, vector<16x128xf32>
    %c0_2 = arith.constant 0 : index
    %c0_3 = arith.constant 0 : index
    %4 = vector.load %arg3[%c0_2, %c0_3] : memref<16x128xbf16, #tpu.memory_space<vmem>>, vector<16x128xbf16>
    %c0_4 = arith.constant 0 : index
    %c0_5 = arith.constant 0 : index
    %5 = vector.load %arg4[%c0_4, %c0_5] : memref<128x128xbf16, #tpu.memory_space<vmem>>, vector<128x128xbf16>
    %cst = arith.constant dense<0.000000e+00> : vector<16x128xf32>
    %6 = tpu.matmul %4, %5, %cst {dimension_numbers = #tpu.dot_dimension_numbers<[1], [0], [0], [1], [0, 0, 1, 1], [], []>} : vector<16x128xbf16>, vector<128x128xbf16>, vector<16x128xf32> -> vector<16x128xf32>
    %7 = arith.addf %3, %6 : vector<16x128xf32>
    %c0_6 = arith.constant 0 : index
    %c0_7 = arith.constant 0 : index
    %8 = vector.load %arg8[%c0_6, %c0_7] : memref<16x128xf32, #tpu.memory_space<vmem>>, vector<16x128xf32>
    tpu.vector_store %arg8[%c0_6, %c0_7], %7 {strides = array<i32>} : memref<16x128xf32, #tpu.memory_space<vmem>>, vector<16x128xf32>,
    %c0_i32_8 = arith.constant 0 : i32
    %9 = arith.cmpi eq, %arg2, %c0_i32_8 : i32
    %10 = arith.extui %9 : i1 to i32
    %c0_i32_9 = arith.constant 0 : i32
    %11 = arith.cmpi ne, %10, %c0_i32_9 : i32
    scf.if %11 {
      %c0_10 = arith.constant 0 : index
      %c0_11 = arith.constant 0 : index
      %12 = vector.load %arg8[%c0_10, %c0_11] : memref<16x128xf32, #tpu.memory_space<vmem>>, vector<16x128xf32>
      %c0_12 = arith.constant 0 : index
      %c0_13 = arith.constant 0 : index
      %13 = vector.load %arg5[%c0_12, %c0_13] : memref<1x128xf32, #tpu.memory_space<vmem>>, vector<1x128xf32>
      %14 = vector.broadcast %13 : vector<1x128xf32> to vector<16x128xf32>
      %15 = arith.mulf %12, %14 : vector<16x128xf32>
      %c0_14 = arith.constant 0 : index
      %c0_15 = arith.constant 0 : index
      %16 = vector.load %arg6[%c0_14, %c0_15] : memref<1x128xf32, #tpu.memory_space<vmem>>, vector<1x128xf32>
      %17 = vector.broadcast %16 : vector<1x128xf32> to vector<16x128xf32>
      %18 = arith.addf %15, %17 : vector<16x128xf32>
      %cst_16 = arith.constant 0.000000e+00 : f32
      %19 = vector.broadcast %cst_16 : f32 to vector<16x128xf32>
      %20 = arith.maximumf %18, %19 : vector<16x128xf32>
      %21 = arith.truncf %20 : vector<16x128xf32> to vector<16x128xbf16>
      %c0_17 = arith.constant 0 : index
      %c0_18 = arith.constant 0 : index
      %22 = vector.load %arg7[%c0_17, %c0_18] : memref<16x128xbf16, #tpu.memory_space<vmem>>, vector<16x128xbf16>
      tpu.vector_store %arg7[%c0_17, %c0_18], %21 {strides = array<i32>} : memref<16x128xbf16, #tpu.memory_space<vmem>>, vector<16x128xbf16>,
    } else {
    }
    return
  }
  func.func @transform_0(%arg0: i32, %arg1: i32, %arg2: i32) -> (i32, i32) {
    %c0_i32 = arith.constant 0 : i32
    return %arg0, %arg2 : i32, i32
  }
  func.func @transform_1(%arg0: i32, %arg1: i32, %arg2: i32) -> (i32, i32) {
    %c0_i32 = arith.constant 0 : i32
    return %arg2, %arg1 : i32, i32
  }
  func.func @transform_2(%arg0: i32, %arg1: i32, %arg2: i32) -> (i32, i32) {
    %c0_i32 = arith.constant 0 : i32
    %c0_i32_0 = arith.constant 0 : i32
    return %c0_i32, %arg1 : i32, i32
  }
  func.func @transform_3(%arg0: i32, %arg1: i32, %arg2: i32) -> (i32, i32) {
    %c0_i32 = arith.constant 0 : i32
    %c0_i32_0 = arith.constant 0 : i32
    return %c0_i32, %arg1 : i32, i32
  }
  func.func @transform_4(%arg0: i32, %arg1: i32, %arg2: i32) -> (i32, i32) {
    %c0_i32 = arith.constant 0 : i32
    return %arg0, %arg1 : i32, i32
  }
}

module attributes {stable_mosaic.version = 11 : i64} {
  func.func @kernel(%arg0: i32, %arg1: i32, %arg2: i32, %arg3: memref<8x256xbf16, #tpu.memory_space<vmem>>, %arg4: memref<256x128xbf16, #tpu.memory_space<vmem>>, %arg5: memref<1x128xf32, #tpu.memory_space<vmem>>, %arg6: memref<1x128xf32, #tpu.memory_space<vmem>>, %arg7: memref<8x128xbf16, #tpu.memory_space<vmem>>, %arg8: memref<8x128xf32, #tpu.memory_space<vmem>>) attributes {dimension_semantics = [#tpu.dimension_semantics<parallel>, #tpu.dimension_semantics<parallel>, #tpu.dimension_semantics<arbitrary>], iteration_bounds = array<i64: 1, 1, 1>, scalar_prefetch = 0 : i64, scratch_operands = 1 : i64, tpu.core_type = #tpu.core_type<tc>, window_params = [{transform_indices = @transform_0, window_bounds = array<i64: 8, 256>}, {transform_indices = @transform_1, window_bounds = array<i64: 256, 128>}, {transform_indices = @transform_2, window_bounds = array<i64: 1, 128>}, {transform_indices = @transform_3, window_bounds = array<i64: 1, 128>}, {transform_indices = @transform_4, window_bounds = array<i64: 8, 128>}]} {
    %c0_i32 = arith.constant 0 : i32
    %0 = arith.cmpi eq, %arg2, %c0_i32 : i32
    %1 = arith.extui %0 : i1 to i32
    %c0_i32_0 = arith.constant 0 : i32
    %2 = arith.cmpi ne, %1, %c0_i32_0 : i32
    scf.if %2 {
      %cst_10 = arith.constant 0.000000e+00 : f32
      %12 = vector.broadcast %cst_10 : f32 to vector<8x128xf32>
      %c0_11 = arith.constant 0 : index
      %c0_12 = arith.constant 0 : index
      %13 = vector.load %arg8[%c0_11, %c0_12] : memref<8x128xf32, #tpu.memory_space<vmem>>, vector<8x128xf32>
      tpu.vector_store %arg8[%c0_11, %c0_12], %12 {strides = array<i32>} : memref<8x128xf32, #tpu.memory_space<vmem>>, vector<8x128xf32>,
    } else {
    }
    %c0 = arith.constant 0 : index
    %c0_1 = arith.constant 0 : index
    %3 = vector.load %arg8[%c0, %c0_1] : memref<8x128xf32, #tpu.memory_space<vmem>>, vector<8x128xf32>
    %c0_2 = arith.constant 0 : index
    %c0_3 = arith.constant 0 : index
    %4 = vector.load %arg3[%c0_2, %c0_3] : memref<8x256xbf16, #tpu.memory_space<vmem>>, vector<8x256xbf16>
    %c0_4 = arith.constant 0 : index
    %c0_5 = arith.constant 0 : index
    %5 = vector.load %arg4[%c0_4, %c0_5] : memref<256x128xbf16, #tpu.memory_space<vmem>>, vector<256x128xbf16>
    %cst = arith.constant dense<0.000000e+00> : vector<8x128xf32>
    %6 = tpu.matmul %4, %5, %cst {dimension_numbers = #tpu.dot_dimension_numbers<[1], [0], [0], [1], [0, 0, 1, 1], [], []>} : vector<8x256xbf16>, vector<256x128xbf16>, vector<8x128xf32> -> vector<8x128xf32>
    %7 = arith.addf %3, %6 : vector<8x128xf32>
    %c0_6 = arith.constant 0 : index
    %c0_7 = arith.constant 0 : index
    %8 = vector.load %arg8[%c0_6, %c0_7] : memref<8x128xf32, #tpu.memory_space<vmem>>, vector<8x128xf32>
    tpu.vector_store %arg8[%c0_6, %c0_7], %7 {strides = array<i32>} : memref<8x128xf32, #tpu.memory_space<vmem>>, vector<8x128xf32>,
    %c0_i32_8 = arith.constant 0 : i32
    %9 = arith.cmpi eq, %arg2, %c0_i32_8 : i32
    %10 = arith.extui %9 : i1 to i32
    %c0_i32_9 = arith.constant 0 : i32
    %11 = arith.cmpi ne, %10, %c0_i32_9 : i32
    scf.if %11 {
      %c0_10 = arith.constant 0 : index
      %c0_11 = arith.constant 0 : index
      %12 = vector.load %arg8[%c0_10, %c0_11] : memref<8x128xf32, #tpu.memory_space<vmem>>, vector<8x128xf32>
      %c0_12 = arith.constant 0 : index
      %c0_13 = arith.constant 0 : index
      %13 = vector.load %arg5[%c0_12, %c0_13] : memref<1x128xf32, #tpu.memory_space<vmem>>, vector<1x128xf32>
      %14 = vector.broadcast %13 : vector<1x128xf32> to vector<8x128xf32>
      %15 = arith.mulf %12, %14 : vector<8x128xf32>
      %c0_14 = arith.constant 0 : index
      %c0_15 = arith.constant 0 : index
      %16 = vector.load %arg6[%c0_14, %c0_15] : memref<1x128xf32, #tpu.memory_space<vmem>>, vector<1x128xf32>
      %17 = vector.broadcast %16 : vector<1x128xf32> to vector<8x128xf32>
      %18 = arith.addf %15, %17 : vector<8x128xf32>
      %cst_16 = arith.constant 0.000000e+00 : f32
      %19 = vector.broadcast %cst_16 : f32 to vector<8x128xf32>
      %20 = arith.maximumf %18, %19 : vector<8x128xf32>
      %21 = arith.truncf %20 : vector<8x128xf32> to vector<8x128xbf16>
      %c0_17 = arith.constant 0 : index
      %c0_18 = arith.constant 0 : index
      %22 = vector.load %arg7[%c0_17, %c0_18] : memref<8x128xbf16, #tpu.memory_space<vmem>>, vector<8x128xbf16>
      tpu.vector_store %arg7[%c0_17, %c0_18], %21 {strides = array<i32>} : memref<8x128xbf16, #tpu.memory_space<vmem>>, vector<8x128xbf16>,
    } else {
    }
    return
  }
  func.func @transform_0(%arg0: i32, %arg1: i32, %arg2: i32) -> (i32, i32) {
    %c0_i32 = arith.constant 0 : i32
    return %arg0, %arg2 : i32, i32
  }
  func.func @transform_1(%arg0: i32, %arg1: i32, %arg2: i32) -> (i32, i32) {
    %c0_i32 = arith.constant 0 : i32
    return %arg2, %arg1 : i32, i32
  }
  func.func @transform_2(%arg0: i32, %arg1: i32, %arg2: i32) -> (i32, i32) {
    %c0_i32 = arith.constant 0 : i32
    %c0_i32_0 = arith.constant 0 : i32
    return %c0_i32, %arg1 : i32, i32
  }
  func.func @transform_3(%arg0: i32, %arg1: i32, %arg2: i32) -> (i32, i32) {
    %c0_i32 = arith.constant 0 : i32
    %c0_i32_0 = arith.constant 0 : i32
    return %c0_i32, %arg1 : i32, i32
  }
  func.func @transform_4(%arg0: i32, %arg1: i32, %arg2: i32) -> (i32, i32) {
    %c0_i32 = arith.constant 0 : i32
    return %arg0, %arg1 : i32, i32
  }
}

module attributes {stable_mosaic.version = 11 : i64} {
  func.func @kernel(%arg0: i32, %arg1: i32, %arg2: i32, %arg3: memref<8x256xbf16, #tpu.memory_space<vmem>>, %arg4: memref<256x128xbf16, #tpu.memory_space<vmem>>, %arg5: memref<1x128xf32, #tpu.memory_space<vmem>>, %arg6: memref<1x128xf32, #tpu.memory_space<vmem>>, %arg7: memref<8x128xbf16, #tpu.memory_space<vmem>>, %arg8: memref<8x128xbf16, #tpu.memory_space<vmem>>, %arg9: memref<8x128xf32, #tpu.memory_space<vmem>>) attributes {dimension_semantics = [#tpu.dimension_semantics<parallel>, #tpu.dimension_semantics<parallel>, #tpu.dimension_semantics<arbitrary>], iteration_bounds = array<i64: 1, 1, 1>, scalar_prefetch = 0 : i64, scratch_operands = 1 : i64, tpu.core_type = #tpu.core_type<tc>, window_params = [{transform_indices = @transform_0, window_bounds = array<i64: 8, 256>}, {transform_indices = @transform_1, window_bounds = array<i64: 256, 128>}, {transform_indices = @transform_2, window_bounds = array<i64: 1, 128>}, {transform_indices = @transform_3, window_bounds = array<i64: 1, 128>}, {transform_indices = @transform_4, window_bounds = array<i64: 8, 128>}, {transform_indices = @transform_5, window_bounds = array<i64: 8, 128>}]} {
    %c0_i32 = arith.constant 0 : i32
    %0 = arith.cmpi eq, %arg2, %c0_i32 : i32
    %1 = arith.extui %0 : i1 to i32
    %c0_i32_0 = arith.constant 0 : i32
    %2 = arith.cmpi ne, %1, %c0_i32_0 : i32
    scf.if %2 {
      %cst_10 = arith.constant 0.000000e+00 : f32
      %12 = vector.broadcast %cst_10 : f32 to vector<8x128xf32>
      %c0_11 = arith.constant 0 : index
      %c0_12 = arith.constant 0 : index
      %13 = vector.load %arg9[%c0_11, %c0_12] : memref<8x128xf32, #tpu.memory_space<vmem>>, vector<8x128xf32>
      tpu.vector_store %arg9[%c0_11, %c0_12], %12 {strides = array<i32>} : memref<8x128xf32, #tpu.memory_space<vmem>>, vector<8x128xf32>,
    } else {
    }
    %c0 = arith.constant 0 : index
    %c0_1 = arith.constant 0 : index
    %3 = vector.load %arg9[%c0, %c0_1] : memref<8x128xf32, #tpu.memory_space<vmem>>, vector<8x128xf32>
    %c0_2 = arith.constant 0 : index
    %c0_3 = arith.constant 0 : index
    %4 = vector.load %arg3[%c0_2, %c0_3] : memref<8x256xbf16, #tpu.memory_space<vmem>>, vector<8x256xbf16>
    %c0_4 = arith.constant 0 : index
    %c0_5 = arith.constant 0 : index
    %5 = vector.load %arg4[%c0_4, %c0_5] : memref<256x128xbf16, #tpu.memory_space<vmem>>, vector<256x128xbf16>
    %cst = arith.constant dense<0.000000e+00> : vector<8x128xf32>
    %6 = tpu.matmul %4, %5, %cst {dimension_numbers = #tpu.dot_dimension_numbers<[1], [0], [0], [1], [0, 0, 1, 1], [], []>} : vector<8x256xbf16>, vector<256x128xbf16>, vector<8x128xf32> -> vector<8x128xf32>
    %7 = arith.addf %3, %6 : vector<8x128xf32>
    %c0_6 = arith.constant 0 : index
    %c0_7 = arith.constant 0 : index
    %8 = vector.load %arg9[%c0_6, %c0_7] : memref<8x128xf32, #tpu.memory_space<vmem>>, vector<8x128xf32>
    tpu.vector_store %arg9[%c0_6, %c0_7], %7 {strides = array<i32>} : memref<8x128xf32, #tpu.memory_space<vmem>>, vector<8x128xf32>,
    %c0_i32_8 = arith.constant 0 : i32
    %9 = arith.cmpi eq, %arg2, %c0_i32_8 : i32
    %10 = arith.extui %9 : i1 to i32
    %c0_i32_9 = arith.constant 0 : i32
    %11 = arith.cmpi ne, %10, %c0_i32_9 : i32
    scf.if %11 {
      %c0_10 = arith.constant 0 : index
      %c0_11 = arith.constant 0 : index
      %12 = vector.load %arg9[%c0_10, %c0_11] : memref<8x128xf32, #tpu.memory_space<vmem>>, vector<8x128xf32>
      %c0_12 = arith.constant 0 : index
      %c0_13 = arith.constant 0 : index
      %13 = vector.load %arg5[%c0_12, %c0_13] : memref<1x128xf32, #tpu.memory_space<vmem>>, vector<1x128xf32>
      %14 = vector.broadcast %13 : vector<1x128xf32> to vector<8x128xf32>
      %15 = arith.mulf %12, %14 : vector<8x128xf32>
      %c0_14 = arith.constant 0 : index
      %c0_15 = arith.constant 0 : index
      %16 = vector.load %arg6[%c0_14, %c0_15] : memref<1x128xf32, #tpu.memory_space<vmem>>, vector<1x128xf32>
      %17 = vector.broadcast %16 : vector<1x128xf32> to vector<8x128xf32>
      %18 = arith.addf %15, %17 : vector<8x128xf32>
      %c0_16 = arith.constant 0 : index
      %c0_17 = arith.constant 0 : index
      %19 = vector.load %arg7[%c0_16, %c0_17] : memref<8x128xbf16, #tpu.memory_space<vmem>>, vector<8x128xbf16>
      %20 = arith.extf %19 : vector<8x128xbf16> to vector<8x128xf32>
      %21 = arith.addf %18, %20 : vector<8x128xf32>
      %cst_18 = arith.constant 0.000000e+00 : f32
      %22 = vector.broadcast %cst_18 : f32 to vector<8x128xf32>
      %23 = arith.maximumf %21, %22 : vector<8x128xf32>
      %24 = arith.truncf %23 : vector<8x128xf32> to vector<8x128xbf16>
      %c0_19 = arith.constant 0 : index
      %c0_20 = arith.constant 0 : index
      %25 = vector.load %arg8[%c0_19, %c0_20] : memref<8x128xbf16, #tpu.memory_space<vmem>>, vector<8x128xbf16>
      tpu.vector_store %arg8[%c0_19, %c0_20], %24 {strides = array<i32>} : memref<8x128xbf16, #tpu.memory_space<vmem>>, vector<8x128xbf16>,
    } else {
    }
    return
  }
  func.func @transform_0(%arg0: i32, %arg1: i32, %arg2: i32) -> (i32, i32) {
    %c0_i32 = arith.constant 0 : i32
    return %arg0, %arg2 : i32, i32
  }
  func.func @transform_1(%arg0: i32, %arg1: i32, %arg2: i32) -> (i32, i32) {
    %c0_i32 = arith.constant 0 : i32
    return %arg2, %arg1 : i32, i32
  }
  func.func @transform_2(%arg0: i32, %arg1: i32, %arg2: i32) -> (i32, i32) {
    %c0_i32 = arith.constant 0 : i32
    %c0_i32_0 = arith.constant 0 : i32
    return %c0_i32, %arg1 : i32, i32
  }
  func.func @transform_3(%arg0: i32, %arg1: i32, %arg2: i32) -> (i32, i32) {
    %c0_i32 = arith.constant 0 : i32
    %c0_i32_0 = arith.constant 0 : i32
    return %c0_i32, %arg1 : i32, i32
  }
  func.func @transform_4(%arg0: i32, %arg1: i32, %arg2: i32) -> (i32, i32) {
    %c0_i32 = arith.constant 0 : i32
    return %arg0, %arg1 : i32, i32
  }
  func.func @transform_5(%arg0: i32, %arg1: i32, %arg2: i32) -> (i32, i32) {
    %c0_i32 = arith.constant 0 : i32
    return %arg0, %arg1 : i32, i32
  }
}

module attributes {stable_mosaic.version = 11 : i64} {
  func.func @kernel(%arg0: i32, %arg1: i32, %arg2: i32, %arg3: memref<8x128xbf16, #tpu.memory_space<vmem>>, %arg4: memref<128x128xbf16, #tpu.memory_space<vmem>>, %arg5: memref<1x128xf32, #tpu.memory_space<vmem>>, %arg6: memref<1x128xf32, #tpu.memory_space<vmem>>, %arg7: memref<8x128xbf16, #tpu.memory_space<vmem>>, %arg8: memref<8x128xf32, #tpu.memory_space<vmem>>) attributes {dimension_semantics = [#tpu.dimension_semantics<parallel>, #tpu.dimension_semantics<parallel>, #tpu.dimension_semantics<arbitrary>], iteration_bounds = array<i64: 1, 1, 1>, scalar_prefetch = 0 : i64, scratch_operands = 1 : i64, tpu.core_type = #tpu.core_type<tc>, window_params = [{transform_indices = @transform_0, window_bounds = array<i64: 8, 128>}, {transform_indices = @transform_1, window_bounds = array<i64: 128, 128>}, {transform_indices = @transform_2, window_bounds = array<i64: 1, 128>}, {transform_indices = @transform_3, window_bounds = array<i64: 1, 128>}, {transform_indices = @transform_4, window_bounds = array<i64: 8, 128>}]} {
    %c0_i32 = arith.constant 0 : i32
    %0 = arith.cmpi eq, %arg2, %c0_i32 : i32
    %1 = arith.extui %0 : i1 to i32
    %c0_i32_0 = arith.constant 0 : i32
    %2 = arith.cmpi ne, %1, %c0_i32_0 : i32
    scf.if %2 {
      %cst_10 = arith.constant 0.000000e+00 : f32
      %12 = vector.broadcast %cst_10 : f32 to vector<8x128xf32>
      %c0_11 = arith.constant 0 : index
      %c0_12 = arith.constant 0 : index
      %13 = vector.load %arg8[%c0_11, %c0_12] : memref<8x128xf32, #tpu.memory_space<vmem>>, vector<8x128xf32>
      tpu.vector_store %arg8[%c0_11, %c0_12], %12 {strides = array<i32>} : memref<8x128xf32, #tpu.memory_space<vmem>>, vector<8x128xf32>,
    } else {
    }
    %c0 = arith.constant 0 : index
    %c0_1 = arith.constant 0 : index
    %3 = vector.load %arg8[%c0, %c0_1] : memref<8x128xf32, #tpu.memory_space<vmem>>, vector<8x128xf32>
    %c0_2 = arith.constant 0 : index
    %c0_3 = arith.constant 0 : index
    %4 = vector.load %arg3[%c0_2, %c0_3] : memref<8x128xbf16, #tpu.memory_space<vmem>>, vector<8x128xbf16>
    %c0_4 = arith.constant 0 : index
    %c0_5 = arith.constant 0 : index
    %5 = vector.load %arg4[%c0_4, %c0_5] : memref<128x128xbf16, #tpu.memory_space<vmem>>, vector<128x128xbf16>
    %cst = arith.constant dense<0.000000e+00> : vector<8x128xf32>
    %6 = tpu.matmul %4, %5, %cst {dimension_numbers = #tpu.dot_dimension_numbers<[1], [0], [0], [1], [0, 0, 1, 1], [], []>} : vector<8x128xbf16>, vector<128x128xbf16>, vector<8x128xf32> -> vector<8x128xf32>
    %7 = arith.addf %3, %6 : vector<8x128xf32>
    %c0_6 = arith.constant 0 : index
    %c0_7 = arith.constant 0 : index
    %8 = vector.load %arg8[%c0_6, %c0_7] : memref<8x128xf32, #tpu.memory_space<vmem>>, vector<8x128xf32>
    tpu.vector_store %arg8[%c0_6, %c0_7], %7 {strides = array<i32>} : memref<8x128xf32, #tpu.memory_space<vmem>>, vector<8x128xf32>,
    %c0_i32_8 = arith.constant 0 : i32
    %9 = arith.cmpi eq, %arg2, %c0_i32_8 : i32
    %10 = arith.extui %9 : i1 to i32
    %c0_i32_9 = arith.constant 0 : i32
    %11 = arith.cmpi ne, %10, %c0_i32_9 : i32
    scf.if %11 {
      %c0_10 = arith.constant 0 : index
      %c0_11 = arith.constant 0 : index
      %12 = vector.load %arg8[%c0_10, %c0_11] : memref<8x128xf32, #tpu.memory_space<vmem>>, vector<8x128xf32>
      %c0_12 = arith.constant 0 : index
      %c0_13 = arith.constant 0 : index
      %13 = vector.load %arg5[%c0_12, %c0_13] : memref<1x128xf32, #tpu.memory_space<vmem>>, vector<1x128xf32>
      %14 = vector.broadcast %13 : vector<1x128xf32> to vector<8x128xf32>
      %15 = arith.mulf %12, %14 : vector<8x128xf32>
      %c0_14 = arith.constant 0 : index
      %c0_15 = arith.constant 0 : index
      %16 = vector.load %arg6[%c0_14, %c0_15] : memref<1x128xf32, #tpu.memory_space<vmem>>, vector<1x128xf32>
      %17 = vector.broadcast %16 : vector<1x128xf32> to vector<8x128xf32>
      %18 = arith.addf %15, %17 : vector<8x128xf32>
      %19 = arith.truncf %18 : vector<8x128xf32> to vector<8x128xbf16>
      %c0_16 = arith.constant 0 : index
      %c0_17 = arith.constant 0 : index
      %20 = vector.load %arg7[%c0_16, %c0_17] : memref<8x128xbf16, #tpu.memory_space<vmem>>, vector<8x128xbf16>
      tpu.vector_store %arg7[%c0_16, %c0_17], %19 {strides = array<i32>} : memref<8x128xbf16, #tpu.memory_space<vmem>>, vector<8x128xbf16>,
    } else {
    }
    return
  }
  func.func @transform_0(%arg0: i32, %arg1: i32, %arg2: i32) -> (i32, i32) {
    %c0_i32 = arith.constant 0 : i32
    return %arg0, %arg2 : i32, i32
  }
  func.func @transform_1(%arg0: i32, %arg1: i32, %arg2: i32) -> (i32, i32) {
    %c0_i32 = arith.constant 0 : i32
    return %arg2, %arg1 : i32, i32
  }
  func.func @transform_2(%arg0: i32, %arg1: i32, %arg2: i32) -> (i32, i32) {
    %c0_i32 = arith.constant 0 : i32
    %c0_i32_0 = arith.constant 0 : i32
    return %c0_i32, %arg1 : i32, i32
  }
  func.func @transform_3(%arg0: i32, %arg1: i32, %arg2: i32) -> (i32, i32) {
    %c0_i32 = arith.constant 0 : i32
    %c0_i32_0 = arith.constant 0 : i32
    return %c0_i32, %arg1 : i32, i32
  }
  func.func @transform_4(%arg0: i32, %arg1: i32, %arg2: i32) -> (i32, i32) {
    %c0_i32 = arith.constant 0 : i32
    return %arg0, %arg1 : i32, i32
  }
}

module attributes {stable_mosaic.version = 11 : i64} {
  func.func @kernel(%arg0: i32, %arg1: i32, %arg2: i32, %arg3: memref<8x384xbf16, #tpu.memory_space<vmem>>, %arg4: memref<384x128xbf16, #tpu.memory_space<vmem>>, %arg5: memref<1x128xf32, #tpu.memory_space<vmem>>, %arg6: memref<1x128xf32, #tpu.memory_space<vmem>>, %arg7: memref<8x128xbf16, #tpu.memory_space<vmem>>, %arg8: memref<8x128xf32, #tpu.memory_space<vmem>>) attributes {dimension_semantics = [#tpu.dimension_semantics<parallel>, #tpu.dimension_semantics<parallel>, #tpu.dimension_semantics<arbitrary>], iteration_bounds = array<i64: 1, 1, 1>, scalar_prefetch = 0 : i64, scratch_operands = 1 : i64, tpu.core_type = #tpu.core_type<tc>, window_params = [{transform_indices = @transform_0, window_bounds = array<i64: 8, 384>}, {transform_indices = @transform_1, window_bounds = array<i64: 384, 128>}, {transform_indices = @transform_2, window_bounds = array<i64: 1, 128>}, {transform_indices = @transform_3, window_bounds = array<i64: 1, 128>}, {transform_indices = @transform_4, window_bounds = array<i64: 8, 128>}]} {
    %c0_i32 = arith.constant 0 : i32
    %0 = arith.cmpi eq, %arg2, %c0_i32 : i32
    %1 = arith.extui %0 : i1 to i32
    %c0_i32_0 = arith.constant 0 : i32
    %2 = arith.cmpi ne, %1, %c0_i32_0 : i32
    scf.if %2 {
      %cst_10 = arith.constant 0.000000e+00 : f32
      %12 = vector.broadcast %cst_10 : f32 to vector<8x128xf32>
      %c0_11 = arith.constant 0 : index
      %c0_12 = arith.constant 0 : index
      %13 = vector.load %arg8[%c0_11, %c0_12] : memref<8x128xf32, #tpu.memory_space<vmem>>, vector<8x128xf32>
      tpu.vector_store %arg8[%c0_11, %c0_12], %12 {strides = array<i32>} : memref<8x128xf32, #tpu.memory_space<vmem>>, vector<8x128xf32>,
    } else {
    }
    %c0 = arith.constant 0 : index
    %c0_1 = arith.constant 0 : index
    %3 = vector.load %arg8[%c0, %c0_1] : memref<8x128xf32, #tpu.memory_space<vmem>>, vector<8x128xf32>
    %c0_2 = arith.constant 0 : index
    %c0_3 = arith.constant 0 : index
    %4 = vector.load %arg3[%c0_2, %c0_3] : memref<8x384xbf16, #tpu.memory_space<vmem>>, vector<8x384xbf16>
    %c0_4 = arith.constant 0 : index
    %c0_5 = arith.constant 0 : index
    %5 = vector.load %arg4[%c0_4, %c0_5] : memref<384x128xbf16, #tpu.memory_space<vmem>>, vector<384x128xbf16>
    %cst = arith.constant dense<0.000000e+00> : vector<8x128xf32>
    %6 = tpu.matmul %4, %5, %cst {dimension_numbers = #tpu.dot_dimension_numbers<[1], [0], [0], [1], [0, 0, 1, 1], [], []>} : vector<8x384xbf16>, vector<384x128xbf16>, vector<8x128xf32> -> vector<8x128xf32>
    %7 = arith.addf %3, %6 : vector<8x128xf32>
    %c0_6 = arith.constant 0 : index
    %c0_7 = arith.constant 0 : index
    %8 = vector.load %arg8[%c0_6, %c0_7] : memref<8x128xf32, #tpu.memory_space<vmem>>, vector<8x128xf32>
    tpu.vector_store %arg8[%c0_6, %c0_7], %7 {strides = array<i32>} : memref<8x128xf32, #tpu.memory_space<vmem>>, vector<8x128xf32>,
    %c0_i32_8 = arith.constant 0 : i32
    %9 = arith.cmpi eq, %arg2, %c0_i32_8 : i32
    %10 = arith.extui %9 : i1 to i32
    %c0_i32_9 = arith.constant 0 : i32
    %11 = arith.cmpi ne, %10, %c0_i32_9 : i32
    scf.if %11 {
      %c0_10 = arith.constant 0 : index
      %c0_11 = arith.constant 0 : index
      %12 = vector.load %arg8[%c0_10, %c0_11] : memref<8x128xf32, #tpu.memory_space<vmem>>, vector<8x128xf32>
      %c0_12 = arith.constant 0 : index
      %c0_13 = arith.constant 0 : index
      %13 = vector.load %arg5[%c0_12, %c0_13] : memref<1x128xf32, #tpu.memory_space<vmem>>, vector<1x128xf32>
      %14 = vector.broadcast %13 : vector<1x128xf32> to vector<8x128xf32>
      %15 = arith.mulf %12, %14 : vector<8x128xf32>
      %c0_14 = arith.constant 0 : index
      %c0_15 = arith.constant 0 : index
      %16 = vector.load %arg6[%c0_14, %c0_15] : memref<1x128xf32, #tpu.memory_space<vmem>>, vector<1x128xf32>
      %17 = vector.broadcast %16 : vector<1x128xf32> to vector<8x128xf32>
      %18 = arith.addf %15, %17 : vector<8x128xf32>
      %cst_16 = arith.constant 0.000000e+00 : f32
      %19 = vector.broadcast %cst_16 : f32 to vector<8x128xf32>
      %20 = arith.maximumf %18, %19 : vector<8x128xf32>
      %21 = arith.truncf %20 : vector<8x128xf32> to vector<8x128xbf16>
      %c0_17 = arith.constant 0 : index
      %c0_18 = arith.constant 0 : index
      %22 = vector.load %arg7[%c0_17, %c0_18] : memref<8x128xbf16, #tpu.memory_space<vmem>>, vector<8x128xbf16>
      tpu.vector_store %arg7[%c0_17, %c0_18], %21 {strides = array<i32>} : memref<8x128xbf16, #tpu.memory_space<vmem>>, vector<8x128xbf16>,
    } else {
    }
    return
  }
  func.func @transform_0(%arg0: i32, %arg1: i32, %arg2: i32) -> (i32, i32) {
    %c0_i32 = arith.constant 0 : i32
    return %arg0, %arg2 : i32, i32
  }
  func.func @transform_1(%arg0: i32, %arg1: i32, %arg2: i32) -> (i32, i32) {
    %c0_i32 = arith.constant 0 : i32
    return %arg2, %arg1 : i32, i32
  }
  func.func @transform_2(%arg0: i32, %arg1: i32, %arg2: i32) -> (i32, i32) {
    %c0_i32 = arith.constant 0 : i32
    %c0_i32_0 = arith.constant 0 : i32
    return %c0_i32, %arg1 : i32, i32
  }
  func.func @transform_3(%arg0: i32, %arg1: i32, %arg2: i32) -> (i32, i32) {
    %c0_i32 = arith.constant 0 : i32
    %c0_i32_0 = arith.constant 0 : i32
    return %c0_i32, %arg1 : i32, i32
  }
  func.func @transform_4(%arg0: i32, %arg1: i32, %arg2: i32) -> (i32, i32) {
    %c0_i32 = arith.constant 0 : i32
    return %arg0, %arg1 : i32, i32
  }
}

module attributes {stable_mosaic.version = 11 : i64} {
  func.func @kernel(%arg0: i32, %arg1: i32, %arg2: i32, %arg3: memref<8x384xbf16, #tpu.memory_space<vmem>>, %arg4: memref<384x128xbf16, #tpu.memory_space<vmem>>, %arg5: memref<1x128xf32, #tpu.memory_space<vmem>>, %arg6: memref<1x128xf32, #tpu.memory_space<vmem>>, %arg7: memref<8x128xbf16, #tpu.memory_space<vmem>>, %arg8: memref<8x128xbf16, #tpu.memory_space<vmem>>, %arg9: memref<8x128xf32, #tpu.memory_space<vmem>>) attributes {dimension_semantics = [#tpu.dimension_semantics<parallel>, #tpu.dimension_semantics<parallel>, #tpu.dimension_semantics<arbitrary>], iteration_bounds = array<i64: 1, 1, 1>, scalar_prefetch = 0 : i64, scratch_operands = 1 : i64, tpu.core_type = #tpu.core_type<tc>, window_params = [{transform_indices = @transform_0, window_bounds = array<i64: 8, 384>}, {transform_indices = @transform_1, window_bounds = array<i64: 384, 128>}, {transform_indices = @transform_2, window_bounds = array<i64: 1, 128>}, {transform_indices = @transform_3, window_bounds = array<i64: 1, 128>}, {transform_indices = @transform_4, window_bounds = array<i64: 8, 128>}, {transform_indices = @transform_5, window_bounds = array<i64: 8, 128>}]} {
    %c0_i32 = arith.constant 0 : i32
    %0 = arith.cmpi eq, %arg2, %c0_i32 : i32
    %1 = arith.extui %0 : i1 to i32
    %c0_i32_0 = arith.constant 0 : i32
    %2 = arith.cmpi ne, %1, %c0_i32_0 : i32
    scf.if %2 {
      %cst_10 = arith.constant 0.000000e+00 : f32
      %12 = vector.broadcast %cst_10 : f32 to vector<8x128xf32>
      %c0_11 = arith.constant 0 : index
      %c0_12 = arith.constant 0 : index
      %13 = vector.load %arg9[%c0_11, %c0_12] : memref<8x128xf32, #tpu.memory_space<vmem>>, vector<8x128xf32>
      tpu.vector_store %arg9[%c0_11, %c0_12], %12 {strides = array<i32>} : memref<8x128xf32, #tpu.memory_space<vmem>>, vector<8x128xf32>,
    } else {
    }
    %c0 = arith.constant 0 : index
    %c0_1 = arith.constant 0 : index
    %3 = vector.load %arg9[%c0, %c0_1] : memref<8x128xf32, #tpu.memory_space<vmem>>, vector<8x128xf32>
    %c0_2 = arith.constant 0 : index
    %c0_3 = arith.constant 0 : index
    %4 = vector.load %arg3[%c0_2, %c0_3] : memref<8x384xbf16, #tpu.memory_space<vmem>>, vector<8x384xbf16>
    %c0_4 = arith.constant 0 : index
    %c0_5 = arith.constant 0 : index
    %5 = vector.load %arg4[%c0_4, %c0_5] : memref<384x128xbf16, #tpu.memory_space<vmem>>, vector<384x128xbf16>
    %cst = arith.constant dense<0.000000e+00> : vector<8x128xf32>
    %6 = tpu.matmul %4, %5, %cst {dimension_numbers = #tpu.dot_dimension_numbers<[1], [0], [0], [1], [0, 0, 1, 1], [], []>} : vector<8x384xbf16>, vector<384x128xbf16>, vector<8x128xf32> -> vector<8x128xf32>
    %7 = arith.addf %3, %6 : vector<8x128xf32>
    %c0_6 = arith.constant 0 : index
    %c0_7 = arith.constant 0 : index
    %8 = vector.load %arg9[%c0_6, %c0_7] : memref<8x128xf32, #tpu.memory_space<vmem>>, vector<8x128xf32>
    tpu.vector_store %arg9[%c0_6, %c0_7], %7 {strides = array<i32>} : memref<8x128xf32, #tpu.memory_space<vmem>>, vector<8x128xf32>,
    %c0_i32_8 = arith.constant 0 : i32
    %9 = arith.cmpi eq, %arg2, %c0_i32_8 : i32
    %10 = arith.extui %9 : i1 to i32
    %c0_i32_9 = arith.constant 0 : i32
    %11 = arith.cmpi ne, %10, %c0_i32_9 : i32
    scf.if %11 {
      %c0_10 = arith.constant 0 : index
      %c0_11 = arith.constant 0 : index
      %12 = vector.load %arg9[%c0_10, %c0_11] : memref<8x128xf32, #tpu.memory_space<vmem>>, vector<8x128xf32>
      %c0_12 = arith.constant 0 : index
      %c0_13 = arith.constant 0 : index
      %13 = vector.load %arg5[%c0_12, %c0_13] : memref<1x128xf32, #tpu.memory_space<vmem>>, vector<1x128xf32>
      %14 = vector.broadcast %13 : vector<1x128xf32> to vector<8x128xf32>
      %15 = arith.mulf %12, %14 : vector<8x128xf32>
      %c0_14 = arith.constant 0 : index
      %c0_15 = arith.constant 0 : index
      %16 = vector.load %arg6[%c0_14, %c0_15] : memref<1x128xf32, #tpu.memory_space<vmem>>, vector<1x128xf32>
      %17 = vector.broadcast %16 : vector<1x128xf32> to vector<8x128xf32>
      %18 = arith.addf %15, %17 : vector<8x128xf32>
      %c0_16 = arith.constant 0 : index
      %c0_17 = arith.constant 0 : index
      %19 = vector.load %arg7[%c0_16, %c0_17] : memref<8x128xbf16, #tpu.memory_space<vmem>>, vector<8x128xbf16>
      %20 = arith.extf %19 : vector<8x128xbf16> to vector<8x128xf32>
      %21 = arith.addf %18, %20 : vector<8x128xf32>
      %cst_18 = arith.constant 0.000000e+00 : f32
      %22 = vector.broadcast %cst_18 : f32 to vector<8x128xf32>
      %23 = arith.maximumf %21, %22 : vector<8x128xf32>
      %24 = arith.truncf %23 : vector<8x128xf32> to vector<8x128xbf16>
      %c0_19 = arith.constant 0 : index
      %c0_20 = arith.constant 0 : index
      %25 = vector.load %arg8[%c0_19, %c0_20] : memref<8x128xbf16, #tpu.memory_space<vmem>>, vector<8x128xbf16>
      tpu.vector_store %arg8[%c0_19, %c0_20], %24 {strides = array<i32>} : memref<8x128xbf16, #tpu.memory_space<vmem>>, vector<8x128xbf16>,
    } else {
    }
    return
  }
  func.func @transform_0(%arg0: i32, %arg1: i32, %arg2: i32) -> (i32, i32) {
    %c0_i32 = arith.constant 0 : i32
    return %arg0, %arg2 : i32, i32
  }
  func.func @transform_1(%arg0: i32, %arg1: i32, %arg2: i32) -> (i32, i32) {
    %c0_i32 = arith.constant 0 : i32
    return %arg2, %arg1 : i32, i32
  }
  func.func @transform_2(%arg0: i32, %arg1: i32, %arg2: i32) -> (i32, i32) {
    %c0_i32 = arith.constant 0 : i32
    %c0_i32_0 = arith.constant 0 : i32
    return %c0_i32, %arg1 : i32, i32
  }
  func.func @transform_3(%arg0: i32, %arg1: i32, %arg2: i32) -> (i32, i32) {
    %c0_i32 = arith.constant 0 : i32
    %c0_i32_0 = arith.constant 0 : i32
    return %c0_i32, %arg1 : i32, i32
  }
  func.func @transform_4(%arg0: i32, %arg1: i32, %arg2: i32) -> (i32, i32) {
    %c0_i32 = arith.constant 0 : i32
    return %arg0, %arg1 : i32, i32
  }
  func.func @transform_5(%arg0: i32, %arg1: i32, %arg2: i32) -> (i32, i32) {
    %c0_i32 = arith.constant 0 : i32
    return %arg0, %arg1 : i32, i32
  }
}

module attributes {stable_mosaic.version = 11 : i64} {
  func.func @kernel(%arg0: i32, %arg1: i32, %arg2: i32, %arg3: memref<8x384xbf16, #tpu.memory_space<vmem>>, %arg4: memref<384x256xbf16, #tpu.memory_space<vmem>>, %arg5: memref<1x256xf32, #tpu.memory_space<vmem>>, %arg6: memref<1x256xf32, #tpu.memory_space<vmem>>, %arg7: memref<8x256xbf16, #tpu.memory_space<vmem>>, %arg8: memref<8x256xf32, #tpu.memory_space<vmem>>) attributes {dimension_semantics = [#tpu.dimension_semantics<parallel>, #tpu.dimension_semantics<parallel>, #tpu.dimension_semantics<arbitrary>], iteration_bounds = array<i64: 1, 1, 1>, scalar_prefetch = 0 : i64, scratch_operands = 1 : i64, tpu.core_type = #tpu.core_type<tc>, window_params = [{transform_indices = @transform_0, window_bounds = array<i64: 8, 384>}, {transform_indices = @transform_1, window_bounds = array<i64: 384, 256>}, {transform_indices = @transform_2, window_bounds = array<i64: 1, 256>}, {transform_indices = @transform_3, window_bounds = array<i64: 1, 256>}, {transform_indices = @transform_4, window_bounds = array<i64: 8, 256>}]} {
    %c0_i32 = arith.constant 0 : i32
    %0 = arith.cmpi eq, %arg2, %c0_i32 : i32
    %1 = arith.extui %0 : i1 to i32
    %c0_i32_0 = arith.constant 0 : i32
    %2 = arith.cmpi ne, %1, %c0_i32_0 : i32
    scf.if %2 {
      %cst_10 = arith.constant 0.000000e+00 : f32
      %12 = vector.broadcast %cst_10 : f32 to vector<8x256xf32>
      %c0_11 = arith.constant 0 : index
      %c0_12 = arith.constant 0 : index
      %13 = vector.load %arg8[%c0_11, %c0_12] : memref<8x256xf32, #tpu.memory_space<vmem>>, vector<8x256xf32>
      tpu.vector_store %arg8[%c0_11, %c0_12], %12 {strides = array<i32>} : memref<8x256xf32, #tpu.memory_space<vmem>>, vector<8x256xf32>,
    } else {
    }
    %c0 = arith.constant 0 : index
    %c0_1 = arith.constant 0 : index
    %3 = vector.load %arg8[%c0, %c0_1] : memref<8x256xf32, #tpu.memory_space<vmem>>, vector<8x256xf32>
    %c0_2 = arith.constant 0 : index
    %c0_3 = arith.constant 0 : index
    %4 = vector.load %arg3[%c0_2, %c0_3] : memref<8x384xbf16, #tpu.memory_space<vmem>>, vector<8x384xbf16>
    %c0_4 = arith.constant 0 : index
    %c0_5 = arith.constant 0 : index
    %5 = vector.load %arg4[%c0_4, %c0_5] : memref<384x256xbf16, #tpu.memory_space<vmem>>, vector<384x256xbf16>
    %cst = arith.constant dense<0.000000e+00> : vector<8x256xf32>
    %6 = tpu.matmul %4, %5, %cst {dimension_numbers = #tpu.dot_dimension_numbers<[1], [0], [0], [1], [0, 0, 1, 1], [], []>} : vector<8x384xbf16>, vector<384x256xbf16>, vector<8x256xf32> -> vector<8x256xf32>
    %7 = arith.addf %3, %6 : vector<8x256xf32>
    %c0_6 = arith.constant 0 : index
    %c0_7 = arith.constant 0 : index
    %8 = vector.load %arg8[%c0_6, %c0_7] : memref<8x256xf32, #tpu.memory_space<vmem>>, vector<8x256xf32>
    tpu.vector_store %arg8[%c0_6, %c0_7], %7 {strides = array<i32>} : memref<8x256xf32, #tpu.memory_space<vmem>>, vector<8x256xf32>,
    %c0_i32_8 = arith.constant 0 : i32
    %9 = arith.cmpi eq, %arg2, %c0_i32_8 : i32
    %10 = arith.extui %9 : i1 to i32
    %c0_i32_9 = arith.constant 0 : i32
    %11 = arith.cmpi ne, %10, %c0_i32_9 : i32
    scf.if %11 {
      %c0_10 = arith.constant 0 : index
      %c0_11 = arith.constant 0 : index
      %12 = vector.load %arg8[%c0_10, %c0_11] : memref<8x256xf32, #tpu.memory_space<vmem>>, vector<8x256xf32>
      %c0_12 = arith.constant 0 : index
      %c0_13 = arith.constant 0 : index
      %13 = vector.load %arg5[%c0_12, %c0_13] : memref<1x256xf32, #tpu.memory_space<vmem>>, vector<1x256xf32>
      %14 = vector.broadcast %13 : vector<1x256xf32> to vector<8x256xf32>
      %15 = arith.mulf %12, %14 : vector<8x256xf32>
      %c0_14 = arith.constant 0 : index
      %c0_15 = arith.constant 0 : index
      %16 = vector.load %arg6[%c0_14, %c0_15] : memref<1x256xf32, #tpu.memory_space<vmem>>, vector<1x256xf32>
      %17 = vector.broadcast %16 : vector<1x256xf32> to vector<8x256xf32>
      %18 = arith.addf %15, %17 : vector<8x256xf32>
      %cst_16 = arith.constant 0.000000e+00 : f32
      %19 = vector.broadcast %cst_16 : f32 to vector<8x256xf32>
      %20 = arith.maximumf %18, %19 : vector<8x256xf32>
      %21 = arith.truncf %20 : vector<8x256xf32> to vector<8x256xbf16>
      %c0_17 = arith.constant 0 : index
      %c0_18 = arith.constant 0 : index
      %22 = vector.load %arg7[%c0_17, %c0_18] : memref<8x256xbf16, #tpu.memory_space<vmem>>, vector<8x256xbf16>
      tpu.vector_store %arg7[%c0_17, %c0_18], %21 {strides = array<i32>} : memref<8x256xbf16, #tpu.memory_space<vmem>>, vector<8x256xbf16>,
    } else {
    }
    return
  }
  func.func @transform_0(%arg0: i32, %arg1: i32, %arg2: i32) -> (i32, i32) {
    %c0_i32 = arith.constant 0 : i32
    return %arg0, %arg2 : i32, i32
  }
  func.func @transform_1(%arg0: i32, %arg1: i32, %arg2: i32) -> (i32, i32) {
    %c0_i32 = arith.constant 0 : i32
    return %arg2, %arg1 : i32, i32
  }
  func.func @transform_2(%arg0: i32, %arg1: i32, %arg2: i32) -> (i32, i32) {
    %c0_i32 = arith.constant 0 : i32
    %c0_i32_0 = arith.constant 0 : i32
    return %c0_i32, %arg1 : i32, i32
  }
  func.func @transform_3(%arg0: i32, %arg1: i32, %arg2: i32) -> (i32, i32) {
    %c0_i32 = arith.constant 0 : i32
    %c0_i32_0 = arith.constant 0 : i32
    return %c0_i32, %arg1 : i32, i32
  }
  func.func @transform_4(%arg0: i32, %arg1: i32, %arg2: i32) -> (i32, i32) {
    %c0_i32 = arith.constant 0 : i32
    return %arg0, %arg1 : i32, i32
  }
}

module attributes {stable_mosaic.version = 11 : i64} {
  func.func @kernel(%arg0: i32, %arg1: i32, %arg2: i32, %arg3: memref<8x128xbf16, #tpu.memory_space<vmem>>, %arg4: memref<128x256xbf16, #tpu.memory_space<vmem>>, %arg5: memref<1x256xf32, #tpu.memory_space<vmem>>, %arg6: memref<1x256xf32, #tpu.memory_space<vmem>>, %arg7: memref<8x256xbf16, #tpu.memory_space<vmem>>, %arg8: memref<8x256xf32, #tpu.memory_space<vmem>>) attributes {dimension_semantics = [#tpu.dimension_semantics<parallel>, #tpu.dimension_semantics<parallel>, #tpu.dimension_semantics<arbitrary>], iteration_bounds = array<i64: 1, 1, 1>, scalar_prefetch = 0 : i64, scratch_operands = 1 : i64, tpu.core_type = #tpu.core_type<tc>, window_params = [{transform_indices = @transform_0, window_bounds = array<i64: 8, 128>}, {transform_indices = @transform_1, window_bounds = array<i64: 128, 256>}, {transform_indices = @transform_2, window_bounds = array<i64: 1, 256>}, {transform_indices = @transform_3, window_bounds = array<i64: 1, 256>}, {transform_indices = @transform_4, window_bounds = array<i64: 8, 256>}]} {
    %c0_i32 = arith.constant 0 : i32
    %0 = arith.cmpi eq, %arg2, %c0_i32 : i32
    %1 = arith.extui %0 : i1 to i32
    %c0_i32_0 = arith.constant 0 : i32
    %2 = arith.cmpi ne, %1, %c0_i32_0 : i32
    scf.if %2 {
      %cst_10 = arith.constant 0.000000e+00 : f32
      %12 = vector.broadcast %cst_10 : f32 to vector<8x256xf32>
      %c0_11 = arith.constant 0 : index
      %c0_12 = arith.constant 0 : index
      %13 = vector.load %arg8[%c0_11, %c0_12] : memref<8x256xf32, #tpu.memory_space<vmem>>, vector<8x256xf32>
      tpu.vector_store %arg8[%c0_11, %c0_12], %12 {strides = array<i32>} : memref<8x256xf32, #tpu.memory_space<vmem>>, vector<8x256xf32>,
    } else {
    }
    %c0 = arith.constant 0 : index
    %c0_1 = arith.constant 0 : index
    %3 = vector.load %arg8[%c0, %c0_1] : memref<8x256xf32, #tpu.memory_space<vmem>>, vector<8x256xf32>
    %c0_2 = arith.constant 0 : index
    %c0_3 = arith.constant 0 : index
    %4 = vector.load %arg3[%c0_2, %c0_3] : memref<8x128xbf16, #tpu.memory_space<vmem>>, vector<8x128xbf16>
    %c0_4 = arith.constant 0 : index
    %c0_5 = arith.constant 0 : index
    %5 = vector.load %arg4[%c0_4, %c0_5] : memref<128x256xbf16, #tpu.memory_space<vmem>>, vector<128x256xbf16>
    %cst = arith.constant dense<0.000000e+00> : vector<8x256xf32>
    %6 = tpu.matmul %4, %5, %cst {dimension_numbers = #tpu.dot_dimension_numbers<[1], [0], [0], [1], [0, 0, 1, 1], [], []>} : vector<8x128xbf16>, vector<128x256xbf16>, vector<8x256xf32> -> vector<8x256xf32>
    %7 = arith.addf %3, %6 : vector<8x256xf32>
    %c0_6 = arith.constant 0 : index
    %c0_7 = arith.constant 0 : index
    %8 = vector.load %arg8[%c0_6, %c0_7] : memref<8x256xf32, #tpu.memory_space<vmem>>, vector<8x256xf32>
    tpu.vector_store %arg8[%c0_6, %c0_7], %7 {strides = array<i32>} : memref<8x256xf32, #tpu.memory_space<vmem>>, vector<8x256xf32>,
    %c0_i32_8 = arith.constant 0 : i32
    %9 = arith.cmpi eq, %arg2, %c0_i32_8 : i32
    %10 = arith.extui %9 : i1 to i32
    %c0_i32_9 = arith.constant 0 : i32
    %11 = arith.cmpi ne, %10, %c0_i32_9 : i32
    scf.if %11 {
      %c0_10 = arith.constant 0 : index
      %c0_11 = arith.constant 0 : index
      %12 = vector.load %arg8[%c0_10, %c0_11] : memref<8x256xf32, #tpu.memory_space<vmem>>, vector<8x256xf32>
      %c0_12 = arith.constant 0 : index
      %c0_13 = arith.constant 0 : index
      %13 = vector.load %arg5[%c0_12, %c0_13] : memref<1x256xf32, #tpu.memory_space<vmem>>, vector<1x256xf32>
      %14 = vector.broadcast %13 : vector<1x256xf32> to vector<8x256xf32>
      %15 = arith.mulf %12, %14 : vector<8x256xf32>
      %c0_14 = arith.constant 0 : index
      %c0_15 = arith.constant 0 : index
      %16 = vector.load %arg6[%c0_14, %c0_15] : memref<1x256xf32, #tpu.memory_space<vmem>>, vector<1x256xf32>
      %17 = vector.broadcast %16 : vector<1x256xf32> to vector<8x256xf32>
      %18 = arith.addf %15, %17 : vector<8x256xf32>
      %19 = arith.truncf %18 : vector<8x256xf32> to vector<8x256xbf16>
      %c0_16 = arith.constant 0 : index
      %c0_17 = arith.constant 0 : index
      %20 = vector.load %arg7[%c0_16, %c0_17] : memref<8x256xbf16, #tpu.memory_space<vmem>>, vector<8x256xbf16>
      tpu.vector_store %arg7[%c0_16, %c0_17], %19 {strides = array<i32>} : memref<8x256xbf16, #tpu.memory_space<vmem>>, vector<8x256xbf16>,
    } else {
    }
    return
  }
  func.func @transform_0(%arg0: i32, %arg1: i32, %arg2: i32) -> (i32, i32) {
    %c0_i32 = arith.constant 0 : i32
    return %arg0, %arg2 : i32, i32
  }
  func.func @transform_1(%arg0: i32, %arg1: i32, %arg2: i32) -> (i32, i32) {
    %c0_i32 = arith.constant 0 : i32
    return %arg2, %arg1 : i32, i32
  }
  func.func @transform_2(%arg0: i32, %arg1: i32, %arg2: i32) -> (i32, i32) {
    %c0_i32 = arith.constant 0 : i32
    %c0_i32_0 = arith.constant 0 : i32
    return %c0_i32, %arg1 : i32, i32
  }
  func.func @transform_3(%arg0: i32, %arg1: i32, %arg2: i32) -> (i32, i32) {
    %c0_i32 = arith.constant 0 : i32
    %c0_i32_0 = arith.constant 0 : i32
    return %c0_i32, %arg1 : i32, i32
  }
  func.func @transform_4(%arg0: i32, %arg1: i32, %arg2: i32) -> (i32, i32) {
    %c0_i32 = arith.constant 0 : i32
    return %arg0, %arg1 : i32, i32
  }
}

module attributes {stable_mosaic.version = 11 : i64} {
  func.func @kernel(%arg0: i32, %arg1: i32, %arg2: i32, %arg3: memref<8x512xbf16, #tpu.memory_space<vmem>>, %arg4: memref<512x256xbf16, #tpu.memory_space<vmem>>, %arg5: memref<1x256xf32, #tpu.memory_space<vmem>>, %arg6: memref<1x256xf32, #tpu.memory_space<vmem>>, %arg7: memref<8x256xbf16, #tpu.memory_space<vmem>>, %arg8: memref<8x256xbf16, #tpu.memory_space<vmem>>, %arg9: memref<8x256xf32, #tpu.memory_space<vmem>>) attributes {dimension_semantics = [#tpu.dimension_semantics<parallel>, #tpu.dimension_semantics<parallel>, #tpu.dimension_semantics<arbitrary>], iteration_bounds = array<i64: 1, 1, 2>, scalar_prefetch = 0 : i64, scratch_operands = 1 : i64, tpu.core_type = #tpu.core_type<tc>, window_params = [{transform_indices = @transform_0, window_bounds = array<i64: 8, 512>}, {transform_indices = @transform_1, window_bounds = array<i64: 512, 256>}, {transform_indices = @transform_2, window_bounds = array<i64: 1, 256>}, {transform_indices = @transform_3, window_bounds = array<i64: 1, 256>}, {transform_indices = @transform_4, window_bounds = array<i64: 8, 256>}, {transform_indices = @transform_5, window_bounds = array<i64: 8, 256>}]} {
    %c0_i32 = arith.constant 0 : i32
    %0 = arith.cmpi eq, %arg2, %c0_i32 : i32
    %1 = arith.extui %0 : i1 to i32
    %c0_i32_0 = arith.constant 0 : i32
    %2 = arith.cmpi ne, %1, %c0_i32_0 : i32
    scf.if %2 {
      %cst_9 = arith.constant 0.000000e+00 : f32
      %12 = vector.broadcast %cst_9 : f32 to vector<8x256xf32>
      %c0_10 = arith.constant 0 : index
      %c0_11 = arith.constant 0 : index
      %13 = vector.load %arg9[%c0_10, %c0_11] : memref<8x256xf32, #tpu.memory_space<vmem>>, vector<8x256xf32>
      tpu.vector_store %arg9[%c0_10, %c0_11], %12 {strides = array<i32>} : memref<8x256xf32, #tpu.memory_space<vmem>>, vector<8x256xf32>,
    } else {
    }
    %c0 = arith.constant 0 : index
    %c0_1 = arith.constant 0 : index
    %3 = vector.load %arg9[%c0, %c0_1] : memref<8x256xf32, #tpu.memory_space<vmem>>, vector<8x256xf32>
    %c0_2 = arith.constant 0 : index
    %c0_3 = arith.constant 0 : index
    %4 = vector.load %arg3[%c0_2, %c0_3] : memref<8x512xbf16, #tpu.memory_space<vmem>>, vector<8x512xbf16>
    %c0_4 = arith.constant 0 : index
    %c0_5 = arith.constant 0 : index
    %5 = vector.load %arg4[%c0_4, %c0_5] : memref<512x256xbf16, #tpu.memory_space<vmem>>, vector<512x256xbf16>
    %cst = arith.constant dense<0.000000e+00> : vector<8x256xf32>
    %6 = tpu.matmul %4, %5, %cst {dimension_numbers = #tpu.dot_dimension_numbers<[1], [0], [0], [1], [0, 0, 1, 1], [], []>} : vector<8x512xbf16>, vector<512x256xbf16>, vector<8x256xf32> -> vector<8x256xf32>
    %7 = arith.addf %3, %6 : vector<8x256xf32>
    %c0_6 = arith.constant 0 : index
    %c0_7 = arith.constant 0 : index
    %8 = vector.load %arg9[%c0_6, %c0_7] : memref<8x256xf32, #tpu.memory_space<vmem>>, vector<8x256xf32>
    tpu.vector_store %arg9[%c0_6, %c0_7], %7 {strides = array<i32>} : memref<8x256xf32, #tpu.memory_space<vmem>>, vector<8x256xf32>,
    %c1_i32 = arith.constant 1 : i32
    %9 = arith.cmpi eq, %arg2, %c1_i32 : i32
    %10 = arith.extui %9 : i1 to i32
    %c0_i32_8 = arith.constant 0 : i32
    %11 = arith.cmpi ne, %10, %c0_i32_8 : i32
    scf.if %11 {
      %c0_9 = arith.constant 0 : index
      %c0_10 = arith.constant 0 : index
      %12 = vector.load %arg9[%c0_9, %c0_10] : memref<8x256xf32, #tpu.memory_space<vmem>>, vector<8x256xf32>
      %c0_11 = arith.constant 0 : index
      %c0_12 = arith.constant 0 : index
      %13 = vector.load %arg5[%c0_11, %c0_12] : memref<1x256xf32, #tpu.memory_space<vmem>>, vector<1x256xf32>
      %14 = vector.broadcast %13 : vector<1x256xf32> to vector<8x256xf32>
      %15 = arith.mulf %12, %14 : vector<8x256xf32>
      %c0_13 = arith.constant 0 : index
      %c0_14 = arith.constant 0 : index
      %16 = vector.load %arg6[%c0_13, %c0_14] : memref<1x256xf32, #tpu.memory_space<vmem>>, vector<1x256xf32>
      %17 = vector.broadcast %16 : vector<1x256xf32> to vector<8x256xf32>
      %18 = arith.addf %15, %17 : vector<8x256xf32>
      %c0_15 = arith.constant 0 : index
      %c0_16 = arith.constant 0 : index
      %19 = vector.load %arg7[%c0_15, %c0_16] : memref<8x256xbf16, #tpu.memory_space<vmem>>, vector<8x256xbf16>
      %20 = arith.extf %19 : vector<8x256xbf16> to vector<8x256xf32>
      %21 = arith.addf %18, %20 : vector<8x256xf32>
      %cst_17 = arith.constant 0.000000e+00 : f32
      %22 = vector.broadcast %cst_17 : f32 to vector<8x256xf32>
      %23 = arith.maximumf %21, %22 : vector<8x256xf32>
      %24 = arith.truncf %23 : vector<8x256xf32> to vector<8x256xbf16>
      %c0_18 = arith.constant 0 : index
      %c0_19 = arith.constant 0 : index
      %25 = vector.load %arg8[%c0_18, %c0_19] : memref<8x256xbf16, #tpu.memory_space<vmem>>, vector<8x256xbf16>
      tpu.vector_store %arg8[%c0_18, %c0_19], %24 {strides = array<i32>} : memref<8x256xbf16, #tpu.memory_space<vmem>>, vector<8x256xbf16>,
    } else {
    }
    return
  }
  func.func @transform_0(%arg0: i32, %arg1: i32, %arg2: i32) -> (i32, i32) {
    %c0_i32 = arith.constant 0 : i32
    return %arg0, %arg2 : i32, i32
  }
  func.func @transform_1(%arg0: i32, %arg1: i32, %arg2: i32) -> (i32, i32) {
    %c0_i32 = arith.constant 0 : i32
    return %arg2, %arg1 : i32, i32
  }
  func.func @transform_2(%arg0: i32, %arg1: i32, %arg2: i32) -> (i32, i32) {
    %c0_i32 = arith.constant 0 : i32
    %c0_i32_0 = arith.constant 0 : i32
    return %c0_i32, %arg1 : i32, i32
  }
  func.func @transform_3(%arg0: i32, %arg1: i32, %arg2: i32) -> (i32, i32) {
    %c0_i32 = arith.constant 0 : i32
    %c0_i32_0 = arith.constant 0 : i32
    return %c0_i32, %arg1 : i32, i32
  }
  func.func @transform_4(%arg0: i32, %arg1: i32, %arg2: i32) -> (i32, i32) {
    %c0_i32 = arith.constant 0 : i32
    return %arg0, %arg1 : i32, i32
  }
  func.func @transform_5(%arg0: i32, %arg1: i32, %arg2: i32) -> (i32, i32) {
    %c0_i32 = arith.constant 0 : i32
    return %arg0, %arg1 : i32, i32
  }
}

module attributes {stable_mosaic.version = 11 : i64} {
  func.func @kernel(%arg0: i32, %arg1: i32, %arg2: i32, %arg3: memref<8x512xbf16, #tpu.memory_space<vmem>>, %arg4: memref<512x256xbf16, #tpu.memory_space<vmem>>, %arg5: memref<1x256xf32, #tpu.memory_space<vmem>>, %arg6: memref<1x256xf32, #tpu.memory_space<vmem>>, %arg7: memref<8x256xbf16, #tpu.memory_space<vmem>>, %arg8: memref<8x256xf32, #tpu.memory_space<vmem>>) attributes {dimension_semantics = [#tpu.dimension_semantics<parallel>, #tpu.dimension_semantics<parallel>, #tpu.dimension_semantics<arbitrary>], iteration_bounds = array<i64: 1, 1, 2>, scalar_prefetch = 0 : i64, scratch_operands = 1 : i64, tpu.core_type = #tpu.core_type<tc>, window_params = [{transform_indices = @transform_0, window_bounds = array<i64: 8, 512>}, {transform_indices = @transform_1, window_bounds = array<i64: 512, 256>}, {transform_indices = @transform_2, window_bounds = array<i64: 1, 256>}, {transform_indices = @transform_3, window_bounds = array<i64: 1, 256>}, {transform_indices = @transform_4, window_bounds = array<i64: 8, 256>}]} {
    %c0_i32 = arith.constant 0 : i32
    %0 = arith.cmpi eq, %arg2, %c0_i32 : i32
    %1 = arith.extui %0 : i1 to i32
    %c0_i32_0 = arith.constant 0 : i32
    %2 = arith.cmpi ne, %1, %c0_i32_0 : i32
    scf.if %2 {
      %cst_9 = arith.constant 0.000000e+00 : f32
      %12 = vector.broadcast %cst_9 : f32 to vector<8x256xf32>
      %c0_10 = arith.constant 0 : index
      %c0_11 = arith.constant 0 : index
      %13 = vector.load %arg8[%c0_10, %c0_11] : memref<8x256xf32, #tpu.memory_space<vmem>>, vector<8x256xf32>
      tpu.vector_store %arg8[%c0_10, %c0_11], %12 {strides = array<i32>} : memref<8x256xf32, #tpu.memory_space<vmem>>, vector<8x256xf32>,
    } else {
    }
    %c0 = arith.constant 0 : index
    %c0_1 = arith.constant 0 : index
    %3 = vector.load %arg8[%c0, %c0_1] : memref<8x256xf32, #tpu.memory_space<vmem>>, vector<8x256xf32>
    %c0_2 = arith.constant 0 : index
    %c0_3 = arith.constant 0 : index
    %4 = vector.load %arg3[%c0_2, %c0_3] : memref<8x512xbf16, #tpu.memory_space<vmem>>, vector<8x512xbf16>
    %c0_4 = arith.constant 0 : index
    %c0_5 = arith.constant 0 : index
    %5 = vector.load %arg4[%c0_4, %c0_5] : memref<512x256xbf16, #tpu.memory_space<vmem>>, vector<512x256xbf16>
    %cst = arith.constant dense<0.000000e+00> : vector<8x256xf32>
    %6 = tpu.matmul %4, %5, %cst {dimension_numbers = #tpu.dot_dimension_numbers<[1], [0], [0], [1], [0, 0, 1, 1], [], []>} : vector<8x512xbf16>, vector<512x256xbf16>, vector<8x256xf32> -> vector<8x256xf32>
    %7 = arith.addf %3, %6 : vector<8x256xf32>
    %c0_6 = arith.constant 0 : index
    %c0_7 = arith.constant 0 : index
    %8 = vector.load %arg8[%c0_6, %c0_7] : memref<8x256xf32, #tpu.memory_space<vmem>>, vector<8x256xf32>
    tpu.vector_store %arg8[%c0_6, %c0_7], %7 {strides = array<i32>} : memref<8x256xf32, #tpu.memory_space<vmem>>, vector<8x256xf32>,
    %c1_i32 = arith.constant 1 : i32
    %9 = arith.cmpi eq, %arg2, %c1_i32 : i32
    %10 = arith.extui %9 : i1 to i32
    %c0_i32_8 = arith.constant 0 : i32
    %11 = arith.cmpi ne, %10, %c0_i32_8 : i32
    scf.if %11 {
      %c0_9 = arith.constant 0 : index
      %c0_10 = arith.constant 0 : index
      %12 = vector.load %arg8[%c0_9, %c0_10] : memref<8x256xf32, #tpu.memory_space<vmem>>, vector<8x256xf32>
      %c0_11 = arith.constant 0 : index
      %c0_12 = arith.constant 0 : index
      %13 = vector.load %arg5[%c0_11, %c0_12] : memref<1x256xf32, #tpu.memory_space<vmem>>, vector<1x256xf32>
      %14 = vector.broadcast %13 : vector<1x256xf32> to vector<8x256xf32>
      %15 = arith.mulf %12, %14 : vector<8x256xf32>
      %c0_13 = arith.constant 0 : index
      %c0_14 = arith.constant 0 : index
      %16 = vector.load %arg6[%c0_13, %c0_14] : memref<1x256xf32, #tpu.memory_space<vmem>>, vector<1x256xf32>
      %17 = vector.broadcast %16 : vector<1x256xf32> to vector<8x256xf32>
      %18 = arith.addf %15, %17 : vector<8x256xf32>
      %cst_15 = arith.constant 0.000000e+00 : f32
      %19 = vector.broadcast %cst_15 : f32 to vector<8x256xf32>
      %20 = arith.maximumf %18, %19 : vector<8x256xf32>
      %21 = arith.truncf %20 : vector<8x256xf32> to vector<8x256xbf16>
      %c0_16 = arith.constant 0 : index
      %c0_17 = arith.constant 0 : index
      %22 = vector.load %arg7[%c0_16, %c0_17] : memref<8x256xbf16, #tpu.memory_space<vmem>>, vector<8x256xbf16>
      tpu.vector_store %arg7[%c0_16, %c0_17], %21 {strides = array<i32>} : memref<8x256xbf16, #tpu.memory_space<vmem>>, vector<8x256xbf16>,
    } else {
    }
    return
  }
  func.func @transform_0(%arg0: i32, %arg1: i32, %arg2: i32) -> (i32, i32) {
    %c0_i32 = arith.constant 0 : i32
    return %arg0, %arg2 : i32, i32
  }
  func.func @transform_1(%arg0: i32, %arg1: i32, %arg2: i32) -> (i32, i32) {
    %c0_i32 = arith.constant 0 : i32
    return %arg2, %arg1 : i32, i32
  }
  func.func @transform_2(%arg0: i32, %arg1: i32, %arg2: i32) -> (i32, i32) {
    %c0_i32 = arith.constant 0 : i32
    %c0_i32_0 = arith.constant 0 : i32
    return %c0_i32, %arg1 : i32, i32
  }
  func.func @transform_3(%arg0: i32, %arg1: i32, %arg2: i32) -> (i32, i32) {
    %c0_i32 = arith.constant 0 : i32
    %c0_i32_0 = arith.constant 0 : i32
    return %c0_i32, %arg1 : i32, i32
  }
  func.func @transform_4(%arg0: i32, %arg1: i32, %arg2: i32) -> (i32, i32) {
    %c0_i32 = arith.constant 0 : i32
    return %arg0, %arg1 : i32, i32
  }
}

module attributes {stable_mosaic.version = 11 : i64} {
  func.func @kernel(%arg0: i32, %arg1: i32, %arg2: i32, %arg3: memref<8x512xbf16, #tpu.memory_space<vmem>>, %arg4: memref<512x256xbf16, #tpu.memory_space<vmem>>, %arg5: memref<1x256xf32, #tpu.memory_space<vmem>>, %arg6: memref<1x256xf32, #tpu.memory_space<vmem>>, %arg7: memref<8x256xbf16, #tpu.memory_space<vmem>>, %arg8: memref<8x256xf32, #tpu.memory_space<vmem>>) attributes {dimension_semantics = [#tpu.dimension_semantics<parallel>, #tpu.dimension_semantics<parallel>, #tpu.dimension_semantics<arbitrary>], iteration_bounds = array<i64: 1, 2, 2>, scalar_prefetch = 0 : i64, scratch_operands = 1 : i64, tpu.core_type = #tpu.core_type<tc>, window_params = [{transform_indices = @transform_0, window_bounds = array<i64: 8, 512>}, {transform_indices = @transform_1, window_bounds = array<i64: 512, 256>}, {transform_indices = @transform_2, window_bounds = array<i64: 1, 256>}, {transform_indices = @transform_3, window_bounds = array<i64: 1, 256>}, {transform_indices = @transform_4, window_bounds = array<i64: 8, 256>}]} {
    %c0_i32 = arith.constant 0 : i32
    %0 = arith.cmpi eq, %arg2, %c0_i32 : i32
    %1 = arith.extui %0 : i1 to i32
    %c0_i32_0 = arith.constant 0 : i32
    %2 = arith.cmpi ne, %1, %c0_i32_0 : i32
    scf.if %2 {
      %cst_9 = arith.constant 0.000000e+00 : f32
      %12 = vector.broadcast %cst_9 : f32 to vector<8x256xf32>
      %c0_10 = arith.constant 0 : index
      %c0_11 = arith.constant 0 : index
      %13 = vector.load %arg8[%c0_10, %c0_11] : memref<8x256xf32, #tpu.memory_space<vmem>>, vector<8x256xf32>
      tpu.vector_store %arg8[%c0_10, %c0_11], %12 {strides = array<i32>} : memref<8x256xf32, #tpu.memory_space<vmem>>, vector<8x256xf32>,
    } else {
    }
    %c0 = arith.constant 0 : index
    %c0_1 = arith.constant 0 : index
    %3 = vector.load %arg8[%c0, %c0_1] : memref<8x256xf32, #tpu.memory_space<vmem>>, vector<8x256xf32>
    %c0_2 = arith.constant 0 : index
    %c0_3 = arith.constant 0 : index
    %4 = vector.load %arg3[%c0_2, %c0_3] : memref<8x512xbf16, #tpu.memory_space<vmem>>, vector<8x512xbf16>
    %c0_4 = arith.constant 0 : index
    %c0_5 = arith.constant 0 : index
    %5 = vector.load %arg4[%c0_4, %c0_5] : memref<512x256xbf16, #tpu.memory_space<vmem>>, vector<512x256xbf16>
    %cst = arith.constant dense<0.000000e+00> : vector<8x256xf32>
    %6 = tpu.matmul %4, %5, %cst {dimension_numbers = #tpu.dot_dimension_numbers<[1], [0], [0], [1], [0, 0, 1, 1], [], []>} : vector<8x512xbf16>, vector<512x256xbf16>, vector<8x256xf32> -> vector<8x256xf32>
    %7 = arith.addf %3, %6 : vector<8x256xf32>
    %c0_6 = arith.constant 0 : index
    %c0_7 = arith.constant 0 : index
    %8 = vector.load %arg8[%c0_6, %c0_7] : memref<8x256xf32, #tpu.memory_space<vmem>>, vector<8x256xf32>
    tpu.vector_store %arg8[%c0_6, %c0_7], %7 {strides = array<i32>} : memref<8x256xf32, #tpu.memory_space<vmem>>, vector<8x256xf32>,
    %c1_i32 = arith.constant 1 : i32
    %9 = arith.cmpi eq, %arg2, %c1_i32 : i32
    %10 = arith.extui %9 : i1 to i32
    %c0_i32_8 = arith.constant 0 : i32
    %11 = arith.cmpi ne, %10, %c0_i32_8 : i32
    scf.if %11 {
      %c0_9 = arith.constant 0 : index
      %c0_10 = arith.constant 0 : index
      %12 = vector.load %arg8[%c0_9, %c0_10] : memref<8x256xf32, #tpu.memory_space<vmem>>, vector<8x256xf32>
      %c0_11 = arith.constant 0 : index
      %c0_12 = arith.constant 0 : index
      %13 = vector.load %arg5[%c0_11, %c0_12] : memref<1x256xf32, #tpu.memory_space<vmem>>, vector<1x256xf32>
      %14 = vector.broadcast %13 : vector<1x256xf32> to vector<8x256xf32>
      %15 = arith.mulf %12, %14 : vector<8x256xf32>
      %c0_13 = arith.constant 0 : index
      %c0_14 = arith.constant 0 : index
      %16 = vector.load %arg6[%c0_13, %c0_14] : memref<1x256xf32, #tpu.memory_space<vmem>>, vector<1x256xf32>
      %17 = vector.broadcast %16 : vector<1x256xf32> to vector<8x256xf32>
      %18 = arith.addf %15, %17 : vector<8x256xf32>
      %cst_15 = arith.constant 0.000000e+00 : f32
      %19 = vector.broadcast %cst_15 : f32 to vector<8x256xf32>
      %20 = arith.maximumf %18, %19 : vector<8x256xf32>
      %21 = arith.truncf %20 : vector<8x256xf32> to vector<8x256xbf16>
      %c0_16 = arith.constant 0 : index
      %c0_17 = arith.constant 0 : index
      %22 = vector.load %arg7[%c0_16, %c0_17] : memref<8x256xbf16, #tpu.memory_space<vmem>>, vector<8x256xbf16>
      tpu.vector_store %arg7[%c0_16, %c0_17], %21 {strides = array<i32>} : memref<8x256xbf16, #tpu.memory_space<vmem>>, vector<8x256xbf16>,
    } else {
    }
    return
  }
  func.func @transform_0(%arg0: i32, %arg1: i32, %arg2: i32) -> (i32, i32) {
    %c0_i32 = arith.constant 0 : i32
    return %arg0, %arg2 : i32, i32
  }
  func.func @transform_1(%arg0: i32, %arg1: i32, %arg2: i32) -> (i32, i32) {
    %c0_i32 = arith.constant 0 : i32
    return %arg2, %arg1 : i32, i32
  }
  func.func @transform_2(%arg0: i32, %arg1: i32, %arg2: i32) -> (i32, i32) {
    %c0_i32 = arith.constant 0 : i32
    %c0_i32_0 = arith.constant 0 : i32
    return %c0_i32, %arg1 : i32, i32
  }
  func.func @transform_3(%arg0: i32, %arg1: i32, %arg2: i32) -> (i32, i32) {
    %c0_i32 = arith.constant 0 : i32
    %c0_i32_0 = arith.constant 0 : i32
    return %c0_i32, %arg1 : i32, i32
  }
  func.func @transform_4(%arg0: i32, %arg1: i32, %arg2: i32) -> (i32, i32) {
    %c0_i32 = arith.constant 0 : i32
    return %arg0, %arg1 : i32, i32
  }
}

module attributes {stable_mosaic.version = 11 : i64} {
  func.func @kernel(%arg0: i32, %arg1: i32, %arg2: i32, %arg3: memref<8x256xbf16, #tpu.memory_space<vmem>>, %arg4: memref<256x256xbf16, #tpu.memory_space<vmem>>, %arg5: memref<1x256xf32, #tpu.memory_space<vmem>>, %arg6: memref<1x256xf32, #tpu.memory_space<vmem>>, %arg7: memref<8x256xbf16, #tpu.memory_space<vmem>>, %arg8: memref<8x256xf32, #tpu.memory_space<vmem>>) attributes {dimension_semantics = [#tpu.dimension_semantics<parallel>, #tpu.dimension_semantics<parallel>, #tpu.dimension_semantics<arbitrary>], iteration_bounds = array<i64: 1, 2, 1>, scalar_prefetch = 0 : i64, scratch_operands = 1 : i64, tpu.core_type = #tpu.core_type<tc>, window_params = [{transform_indices = @transform_0, window_bounds = array<i64: 8, 256>}, {transform_indices = @transform_1, window_bounds = array<i64: 256, 256>}, {transform_indices = @transform_2, window_bounds = array<i64: 1, 256>}, {transform_indices = @transform_3, window_bounds = array<i64: 1, 256>}, {transform_indices = @transform_4, window_bounds = array<i64: 8, 256>}]} {
    %c0_i32 = arith.constant 0 : i32
    %0 = arith.cmpi eq, %arg2, %c0_i32 : i32
    %1 = arith.extui %0 : i1 to i32
    %c0_i32_0 = arith.constant 0 : i32
    %2 = arith.cmpi ne, %1, %c0_i32_0 : i32
    scf.if %2 {
      %cst_10 = arith.constant 0.000000e+00 : f32
      %12 = vector.broadcast %cst_10 : f32 to vector<8x256xf32>
      %c0_11 = arith.constant 0 : index
      %c0_12 = arith.constant 0 : index
      %13 = vector.load %arg8[%c0_11, %c0_12] : memref<8x256xf32, #tpu.memory_space<vmem>>, vector<8x256xf32>
      tpu.vector_store %arg8[%c0_11, %c0_12], %12 {strides = array<i32>} : memref<8x256xf32, #tpu.memory_space<vmem>>, vector<8x256xf32>,
    } else {
    }
    %c0 = arith.constant 0 : index
    %c0_1 = arith.constant 0 : index
    %3 = vector.load %arg8[%c0, %c0_1] : memref<8x256xf32, #tpu.memory_space<vmem>>, vector<8x256xf32>
    %c0_2 = arith.constant 0 : index
    %c0_3 = arith.constant 0 : index
    %4 = vector.load %arg3[%c0_2, %c0_3] : memref<8x256xbf16, #tpu.memory_space<vmem>>, vector<8x256xbf16>
    %c0_4 = arith.constant 0 : index
    %c0_5 = arith.constant 0 : index
    %5 = vector.load %arg4[%c0_4, %c0_5] : memref<256x256xbf16, #tpu.memory_space<vmem>>, vector<256x256xbf16>
    %cst = arith.constant dense<0.000000e+00> : vector<8x256xf32>
    %6 = tpu.matmul %4, %5, %cst {dimension_numbers = #tpu.dot_dimension_numbers<[1], [0], [0], [1], [0, 0, 1, 1], [], []>} : vector<8x256xbf16>, vector<256x256xbf16>, vector<8x256xf32> -> vector<8x256xf32>
    %7 = arith.addf %3, %6 : vector<8x256xf32>
    %c0_6 = arith.constant 0 : index
    %c0_7 = arith.constant 0 : index
    %8 = vector.load %arg8[%c0_6, %c0_7] : memref<8x256xf32, #tpu.memory_space<vmem>>, vector<8x256xf32>
    tpu.vector_store %arg8[%c0_6, %c0_7], %7 {strides = array<i32>} : memref<8x256xf32, #tpu.memory_space<vmem>>, vector<8x256xf32>,
    %c0_i32_8 = arith.constant 0 : i32
    %9 = arith.cmpi eq, %arg2, %c0_i32_8 : i32
    %10 = arith.extui %9 : i1 to i32
    %c0_i32_9 = arith.constant 0 : i32
    %11 = arith.cmpi ne, %10, %c0_i32_9 : i32
    scf.if %11 {
      %c0_10 = arith.constant 0 : index
      %c0_11 = arith.constant 0 : index
      %12 = vector.load %arg8[%c0_10, %c0_11] : memref<8x256xf32, #tpu.memory_space<vmem>>, vector<8x256xf32>
      %c0_12 = arith.constant 0 : index
      %c0_13 = arith.constant 0 : index
      %13 = vector.load %arg5[%c0_12, %c0_13] : memref<1x256xf32, #tpu.memory_space<vmem>>, vector<1x256xf32>
      %14 = vector.broadcast %13 : vector<1x256xf32> to vector<8x256xf32>
      %15 = arith.mulf %12, %14 : vector<8x256xf32>
      %c0_14 = arith.constant 0 : index
      %c0_15 = arith.constant 0 : index
      %16 = vector.load %arg6[%c0_14, %c0_15] : memref<1x256xf32, #tpu.memory_space<vmem>>, vector<1x256xf32>
      %17 = vector.broadcast %16 : vector<1x256xf32> to vector<8x256xf32>
      %18 = arith.addf %15, %17 : vector<8x256xf32>
      %19 = arith.truncf %18 : vector<8x256xf32> to vector<8x256xbf16>
      %c0_16 = arith.constant 0 : index
      %c0_17 = arith.constant 0 : index
      %20 = vector.load %arg7[%c0_16, %c0_17] : memref<8x256xbf16, #tpu.memory_space<vmem>>, vector<8x256xbf16>
      tpu.vector_store %arg7[%c0_16, %c0_17], %19 {strides = array<i32>} : memref<8x256xbf16, #tpu.memory_space<vmem>>, vector<8x256xbf16>,
    } else {
    }
    return
  }
  func.func @transform_0(%arg0: i32, %arg1: i32, %arg2: i32) -> (i32, i32) {
    %c0_i32 = arith.constant 0 : i32
    return %arg0, %arg2 : i32, i32
  }
  func.func @transform_1(%arg0: i32, %arg1: i32, %arg2: i32) -> (i32, i32) {
    %c0_i32 = arith.constant 0 : i32
    return %arg2, %arg1 : i32, i32
  }
  func.func @transform_2(%arg0: i32, %arg1: i32, %arg2: i32) -> (i32, i32) {
    %c0_i32 = arith.constant 0 : i32
    %c0_i32_0 = arith.constant 0 : i32
    return %c0_i32, %arg1 : i32, i32
  }
  func.func @transform_3(%arg0: i32, %arg1: i32, %arg2: i32) -> (i32, i32) {
    %c0_i32 = arith.constant 0 : i32
    %c0_i32_0 = arith.constant 0 : i32
    return %c0_i32, %arg1 : i32, i32
  }
  func.func @transform_4(%arg0: i32, %arg1: i32, %arg2: i32) -> (i32, i32) {
    %c0_i32 = arith.constant 0 : i32
    return %arg0, %arg1 : i32, i32
  }
}

module attributes {stable_mosaic.version = 11 : i64} {
  func.func @kernel(%arg0: i32, %arg1: i32, %arg2: i32, %arg3: memref<8x512xbf16, #tpu.memory_space<vmem>>, %arg4: memref<512x256xbf16, #tpu.memory_space<vmem>>, %arg5: memref<1x256xf32, #tpu.memory_space<vmem>>, %arg6: memref<1x256xf32, #tpu.memory_space<vmem>>, %arg7: memref<8x256xbf16, #tpu.memory_space<vmem>>, %arg8: memref<8x256xbf16, #tpu.memory_space<vmem>>, %arg9: memref<8x256xf32, #tpu.memory_space<vmem>>) attributes {dimension_semantics = [#tpu.dimension_semantics<parallel>, #tpu.dimension_semantics<parallel>, #tpu.dimension_semantics<arbitrary>], iteration_bounds = array<i64: 1, 2, 3>, scalar_prefetch = 0 : i64, scratch_operands = 1 : i64, tpu.core_type = #tpu.core_type<tc>, window_params = [{transform_indices = @transform_0, window_bounds = array<i64: 8, 512>}, {transform_indices = @transform_1, window_bounds = array<i64: 512, 256>}, {transform_indices = @transform_2, window_bounds = array<i64: 1, 256>}, {transform_indices = @transform_3, window_bounds = array<i64: 1, 256>}, {transform_indices = @transform_4, window_bounds = array<i64: 8, 256>}, {transform_indices = @transform_5, window_bounds = array<i64: 8, 256>}]} {
    %c0_i32 = arith.constant 0 : i32
    %0 = arith.cmpi eq, %arg2, %c0_i32 : i32
    %1 = arith.extui %0 : i1 to i32
    %c0_i32_0 = arith.constant 0 : i32
    %2 = arith.cmpi ne, %1, %c0_i32_0 : i32
    scf.if %2 {
      %cst_9 = arith.constant 0.000000e+00 : f32
      %12 = vector.broadcast %cst_9 : f32 to vector<8x256xf32>
      %c0_10 = arith.constant 0 : index
      %c0_11 = arith.constant 0 : index
      %13 = vector.load %arg9[%c0_10, %c0_11] : memref<8x256xf32, #tpu.memory_space<vmem>>, vector<8x256xf32>
      tpu.vector_store %arg9[%c0_10, %c0_11], %12 {strides = array<i32>} : memref<8x256xf32, #tpu.memory_space<vmem>>, vector<8x256xf32>,
    } else {
    }
    %c0 = arith.constant 0 : index
    %c0_1 = arith.constant 0 : index
    %3 = vector.load %arg9[%c0, %c0_1] : memref<8x256xf32, #tpu.memory_space<vmem>>, vector<8x256xf32>
    %c0_2 = arith.constant 0 : index
    %c0_3 = arith.constant 0 : index
    %4 = vector.load %arg3[%c0_2, %c0_3] : memref<8x512xbf16, #tpu.memory_space<vmem>>, vector<8x512xbf16>
    %c0_4 = arith.constant 0 : index
    %c0_5 = arith.constant 0 : index
    %5 = vector.load %arg4[%c0_4, %c0_5] : memref<512x256xbf16, #tpu.memory_space<vmem>>, vector<512x256xbf16>
    %cst = arith.constant dense<0.000000e+00> : vector<8x256xf32>
    %6 = tpu.matmul %4, %5, %cst {dimension_numbers = #tpu.dot_dimension_numbers<[1], [0], [0], [1], [0, 0, 1, 1], [], []>} : vector<8x512xbf16>, vector<512x256xbf16>, vector<8x256xf32> -> vector<8x256xf32>
    %7 = arith.addf %3, %6 : vector<8x256xf32>
    %c0_6 = arith.constant 0 : index
    %c0_7 = arith.constant 0 : index
    %8 = vector.load %arg9[%c0_6, %c0_7] : memref<8x256xf32, #tpu.memory_space<vmem>>, vector<8x256xf32>
    tpu.vector_store %arg9[%c0_6, %c0_7], %7 {strides = array<i32>} : memref<8x256xf32, #tpu.memory_space<vmem>>, vector<8x256xf32>,
    %c2_i32 = arith.constant 2 : i32
    %9 = arith.cmpi eq, %arg2, %c2_i32 : i32
    %10 = arith.extui %9 : i1 to i32
    %c0_i32_8 = arith.constant 0 : i32
    %11 = arith.cmpi ne, %10, %c0_i32_8 : i32
    scf.if %11 {
      %c0_9 = arith.constant 0 : index
      %c0_10 = arith.constant 0 : index
      %12 = vector.load %arg9[%c0_9, %c0_10] : memref<8x256xf32, #tpu.memory_space<vmem>>, vector<8x256xf32>
      %c0_11 = arith.constant 0 : index
      %c0_12 = arith.constant 0 : index
      %13 = vector.load %arg5[%c0_11, %c0_12] : memref<1x256xf32, #tpu.memory_space<vmem>>, vector<1x256xf32>
      %14 = vector.broadcast %13 : vector<1x256xf32> to vector<8x256xf32>
      %15 = arith.mulf %12, %14 : vector<8x256xf32>
      %c0_13 = arith.constant 0 : index
      %c0_14 = arith.constant 0 : index
      %16 = vector.load %arg6[%c0_13, %c0_14] : memref<1x256xf32, #tpu.memory_space<vmem>>, vector<1x256xf32>
      %17 = vector.broadcast %16 : vector<1x256xf32> to vector<8x256xf32>
      %18 = arith.addf %15, %17 : vector<8x256xf32>
      %c0_15 = arith.constant 0 : index
      %c0_16 = arith.constant 0 : index
      %19 = vector.load %arg7[%c0_15, %c0_16] : memref<8x256xbf16, #tpu.memory_space<vmem>>, vector<8x256xbf16>
      %20 = arith.extf %19 : vector<8x256xbf16> to vector<8x256xf32>
      %21 = arith.addf %18, %20 : vector<8x256xf32>
      %cst_17 = arith.constant 0.000000e+00 : f32
      %22 = vector.broadcast %cst_17 : f32 to vector<8x256xf32>
      %23 = arith.maximumf %21, %22 : vector<8x256xf32>
      %24 = arith.truncf %23 : vector<8x256xf32> to vector<8x256xbf16>
      %c0_18 = arith.constant 0 : index
      %c0_19 = arith.constant 0 : index
      %25 = vector.load %arg8[%c0_18, %c0_19] : memref<8x256xbf16, #tpu.memory_space<vmem>>, vector<8x256xbf16>
      tpu.vector_store %arg8[%c0_18, %c0_19], %24 {strides = array<i32>} : memref<8x256xbf16, #tpu.memory_space<vmem>>, vector<8x256xbf16>,
    } else {
    }
    return
  }
  func.func @transform_0(%arg0: i32, %arg1: i32, %arg2: i32) -> (i32, i32) {
    %c0_i32 = arith.constant 0 : i32
    return %arg0, %arg2 : i32, i32
  }
  func.func @transform_1(%arg0: i32, %arg1: i32, %arg2: i32) -> (i32, i32) {
    %c0_i32 = arith.constant 0 : i32
    return %arg2, %arg1 : i32, i32
  }
  func.func @transform_2(%arg0: i32, %arg1: i32, %arg2: i32) -> (i32, i32) {
    %c0_i32 = arith.constant 0 : i32
    %c0_i32_0 = arith.constant 0 : i32
    return %c0_i32, %arg1 : i32, i32
  }
  func.func @transform_3(%arg0: i32, %arg1: i32, %arg2: i32) -> (i32, i32) {
    %c0_i32 = arith.constant 0 : i32
    %c0_i32_0 = arith.constant 0 : i32
    return %c0_i32, %arg1 : i32, i32
  }
  func.func @transform_4(%arg0: i32, %arg1: i32, %arg2: i32) -> (i32, i32) {
    %c0_i32 = arith.constant 0 : i32
    return %arg0, %arg1 : i32, i32
  }
  func.func @transform_5(%arg0: i32, %arg1: i32, %arg2: i32) -> (i32, i32) {
    %c0_i32 = arith.constant 0 : i32
    return %arg0, %arg1 : i32, i32
  }
}

module attributes {stable_mosaic.version = 11 : i64} {
  func.func @kernel(%arg0: i32, %arg1: i32, %arg2: i32, %arg3: memref<8x512xbf16, #tpu.memory_space<vmem>>, %arg4: memref<512x256xbf16, #tpu.memory_space<vmem>>, %arg5: memref<1x256xf32, #tpu.memory_space<vmem>>, %arg6: memref<1x256xf32, #tpu.memory_space<vmem>>, %arg7: memref<8x256xbf16, #tpu.memory_space<vmem>>, %arg8: memref<8x256xf32, #tpu.memory_space<vmem>>) attributes {dimension_semantics = [#tpu.dimension_semantics<parallel>, #tpu.dimension_semantics<parallel>, #tpu.dimension_semantics<arbitrary>], iteration_bounds = array<i64: 1, 2, 3>, scalar_prefetch = 0 : i64, scratch_operands = 1 : i64, tpu.core_type = #tpu.core_type<tc>, window_params = [{transform_indices = @transform_0, window_bounds = array<i64: 8, 512>}, {transform_indices = @transform_1, window_bounds = array<i64: 512, 256>}, {transform_indices = @transform_2, window_bounds = array<i64: 1, 256>}, {transform_indices = @transform_3, window_bounds = array<i64: 1, 256>}, {transform_indices = @transform_4, window_bounds = array<i64: 8, 256>}]} {
    %c0_i32 = arith.constant 0 : i32
    %0 = arith.cmpi eq, %arg2, %c0_i32 : i32
    %1 = arith.extui %0 : i1 to i32
    %c0_i32_0 = arith.constant 0 : i32
    %2 = arith.cmpi ne, %1, %c0_i32_0 : i32
    scf.if %2 {
      %cst_9 = arith.constant 0.000000e+00 : f32
      %12 = vector.broadcast %cst_9 : f32 to vector<8x256xf32>
      %c0_10 = arith.constant 0 : index
      %c0_11 = arith.constant 0 : index
      %13 = vector.load %arg8[%c0_10, %c0_11] : memref<8x256xf32, #tpu.memory_space<vmem>>, vector<8x256xf32>
      tpu.vector_store %arg8[%c0_10, %c0_11], %12 {strides = array<i32>} : memref<8x256xf32, #tpu.memory_space<vmem>>, vector<8x256xf32>,
    } else {
    }
    %c0 = arith.constant 0 : index
    %c0_1 = arith.constant 0 : index
    %3 = vector.load %arg8[%c0, %c0_1] : memref<8x256xf32, #tpu.memory_space<vmem>>, vector<8x256xf32>
    %c0_2 = arith.constant 0 : index
    %c0_3 = arith.constant 0 : index
    %4 = vector.load %arg3[%c0_2, %c0_3] : memref<8x512xbf16, #tpu.memory_space<vmem>>, vector<8x512xbf16>
    %c0_4 = arith.constant 0 : index
    %c0_5 = arith.constant 0 : index
    %5 = vector.load %arg4[%c0_4, %c0_5] : memref<512x256xbf16, #tpu.memory_space<vmem>>, vector<512x256xbf16>
    %cst = arith.constant dense<0.000000e+00> : vector<8x256xf32>
    %6 = tpu.matmul %4, %5, %cst {dimension_numbers = #tpu.dot_dimension_numbers<[1], [0], [0], [1], [0, 0, 1, 1], [], []>} : vector<8x512xbf16>, vector<512x256xbf16>, vector<8x256xf32> -> vector<8x256xf32>
    %7 = arith.addf %3, %6 : vector<8x256xf32>
    %c0_6 = arith.constant 0 : index
    %c0_7 = arith.constant 0 : index
    %8 = vector.load %arg8[%c0_6, %c0_7] : memref<8x256xf32, #tpu.memory_space<vmem>>, vector<8x256xf32>
    tpu.vector_store %arg8[%c0_6, %c0_7], %7 {strides = array<i32>} : memref<8x256xf32, #tpu.memory_space<vmem>>, vector<8x256xf32>,
    %c2_i32 = arith.constant 2 : i32
    %9 = arith.cmpi eq, %arg2, %c2_i32 : i32
    %10 = arith.extui %9 : i1 to i32
    %c0_i32_8 = arith.constant 0 : i32
    %11 = arith.cmpi ne, %10, %c0_i32_8 : i32
    scf.if %11 {
      %c0_9 = arith.constant 0 : index
      %c0_10 = arith.constant 0 : index
      %12 = vector.load %arg8[%c0_9, %c0_10] : memref<8x256xf32, #tpu.memory_space<vmem>>, vector<8x256xf32>
      %c0_11 = arith.constant 0 : index
      %c0_12 = arith.constant 0 : index
      %13 = vector.load %arg5[%c0_11, %c0_12] : memref<1x256xf32, #tpu.memory_space<vmem>>, vector<1x256xf32>
      %14 = vector.broadcast %13 : vector<1x256xf32> to vector<8x256xf32>
      %15 = arith.mulf %12, %14 : vector<8x256xf32>
      %c0_13 = arith.constant 0 : index
      %c0_14 = arith.constant 0 : index
      %16 = vector.load %arg6[%c0_13, %c0_14] : memref<1x256xf32, #tpu.memory_space<vmem>>, vector<1x256xf32>
      %17 = vector.broadcast %16 : vector<1x256xf32> to vector<8x256xf32>
      %18 = arith.addf %15, %17 : vector<8x256xf32>
      %cst_15 = arith.constant 0.000000e+00 : f32
      %19 = vector.broadcast %cst_15 : f32 to vector<8x256xf32>
      %20 = arith.maximumf %18, %19 : vector<8x256xf32>
      %21 = arith.truncf %20 : vector<8x256xf32> to vector<8x256xbf16>
      %c0_16 = arith.constant 0 : index
      %c0_17 = arith.constant 0 : index
      %22 = vector.load %arg7[%c0_16, %c0_17] : memref<8x256xbf16, #tpu.memory_space<vmem>>, vector<8x256xbf16>
      tpu.vector_store %arg7[%c0_16, %c0_17], %21 {strides = array<i32>} : memref<8x256xbf16, #tpu.memory_space<vmem>>, vector<8x256xbf16>,
    } else {
    }
    return
  }
  func.func @transform_0(%arg0: i32, %arg1: i32, %arg2: i32) -> (i32, i32) {
    %c0_i32 = arith.constant 0 : i32
    return %arg0, %arg2 : i32, i32
  }
  func.func @transform_1(%arg0: i32, %arg1: i32, %arg2: i32) -> (i32, i32) {
    %c0_i32 = arith.constant 0 : i32
    return %arg2, %arg1 : i32, i32
  }
  func.func @transform_2(%arg0: i32, %arg1: i32, %arg2: i32) -> (i32, i32) {
    %c0_i32 = arith.constant 0 : i32
    %c0_i32_0 = arith.constant 0 : i32
    return %c0_i32, %arg1 : i32, i32
  }
  func.func @transform_3(%arg0: i32, %arg1: i32, %arg2: i32) -> (i32, i32) {
    %c0_i32 = arith.constant 0 : i32
    %c0_i32_0 = arith.constant 0 : i32
    return %c0_i32, %arg1 : i32, i32
  }
  func.func @transform_4(%arg0: i32, %arg1: i32, %arg2: i32) -> (i32, i32) {
    %c0_i32 = arith.constant 0 : i32
    return %arg0, %arg1 : i32, i32
  }
}

module attributes {stable_mosaic.version = 11 : i64} {
  func.func @kernel(%arg0: i32, %arg1: i32, %arg2: i32, %arg3: memref<8x512xbf16, #tpu.memory_space<vmem>>, %arg4: memref<512x128xbf16, #tpu.memory_space<vmem>>, %arg5: memref<1x128xf32, #tpu.memory_space<vmem>>, %arg6: memref<1x128xf32, #tpu.memory_space<vmem>>, %arg7: memref<8x128xf32, #tpu.memory_space<vmem>>, %arg8: memref<8x128xf32, #tpu.memory_space<vmem>>) attributes {dimension_semantics = [#tpu.dimension_semantics<parallel>, #tpu.dimension_semantics<parallel>, #tpu.dimension_semantics<arbitrary>], iteration_bounds = array<i64: 1, 1, 1>, scalar_prefetch = 0 : i64, scratch_operands = 1 : i64, tpu.core_type = #tpu.core_type<tc>, window_params = [{transform_indices = @transform_0, window_bounds = array<i64: 8, 512>}, {transform_indices = @transform_1, window_bounds = array<i64: 512, 128>}, {transform_indices = @transform_2, window_bounds = array<i64: 1, 128>}, {transform_indices = @transform_3, window_bounds = array<i64: 1, 128>}, {transform_indices = @transform_4, window_bounds = array<i64: 8, 128>}]} {
    %c0_i32 = arith.constant 0 : i32
    %0 = arith.cmpi eq, %arg2, %c0_i32 : i32
    %1 = arith.extui %0 : i1 to i32
    %c0_i32_0 = arith.constant 0 : i32
    %2 = arith.cmpi ne, %1, %c0_i32_0 : i32
    scf.if %2 {
      %cst_10 = arith.constant 0.000000e+00 : f32
      %12 = vector.broadcast %cst_10 : f32 to vector<8x128xf32>
      %c0_11 = arith.constant 0 : index
      %c0_12 = arith.constant 0 : index
      %13 = vector.load %arg8[%c0_11, %c0_12] : memref<8x128xf32, #tpu.memory_space<vmem>>, vector<8x128xf32>
      tpu.vector_store %arg8[%c0_11, %c0_12], %12 {strides = array<i32>} : memref<8x128xf32, #tpu.memory_space<vmem>>, vector<8x128xf32>,
    } else {
    }
    %c0 = arith.constant 0 : index
    %c0_1 = arith.constant 0 : index
    %3 = vector.load %arg8[%c0, %c0_1] : memref<8x128xf32, #tpu.memory_space<vmem>>, vector<8x128xf32>
    %c0_2 = arith.constant 0 : index
    %c0_3 = arith.constant 0 : index
    %4 = vector.load %arg3[%c0_2, %c0_3] : memref<8x512xbf16, #tpu.memory_space<vmem>>, vector<8x512xbf16>
    %c0_4 = arith.constant 0 : index
    %c0_5 = arith.constant 0 : index
    %5 = vector.load %arg4[%c0_4, %c0_5] : memref<512x128xbf16, #tpu.memory_space<vmem>>, vector<512x128xbf16>
    %cst = arith.constant dense<0.000000e+00> : vector<8x128xf32>
    %6 = tpu.matmul %4, %5, %cst {dimension_numbers = #tpu.dot_dimension_numbers<[1], [0], [0], [1], [0, 0, 1, 1], [], []>} : vector<8x512xbf16>, vector<512x128xbf16>, vector<8x128xf32> -> vector<8x128xf32>
    %7 = arith.addf %3, %6 : vector<8x128xf32>
    %c0_6 = arith.constant 0 : index
    %c0_7 = arith.constant 0 : index
    %8 = vector.load %arg8[%c0_6, %c0_7] : memref<8x128xf32, #tpu.memory_space<vmem>>, vector<8x128xf32>
    tpu.vector_store %arg8[%c0_6, %c0_7], %7 {strides = array<i32>} : memref<8x128xf32, #tpu.memory_space<vmem>>, vector<8x128xf32>,
    %c0_i32_8 = arith.constant 0 : i32
    %9 = arith.cmpi eq, %arg2, %c0_i32_8 : i32
    %10 = arith.extui %9 : i1 to i32
    %c0_i32_9 = arith.constant 0 : i32
    %11 = arith.cmpi ne, %10, %c0_i32_9 : i32
    scf.if %11 {
      %c0_10 = arith.constant 0 : index
      %c0_11 = arith.constant 0 : index
      %12 = vector.load %arg8[%c0_10, %c0_11] : memref<8x128xf32, #tpu.memory_space<vmem>>, vector<8x128xf32>
      %c0_12 = arith.constant 0 : index
      %c0_13 = arith.constant 0 : index
      %13 = vector.load %arg5[%c0_12, %c0_13] : memref<1x128xf32, #tpu.memory_space<vmem>>, vector<1x128xf32>
      %14 = vector.broadcast %13 : vector<1x128xf32> to vector<8x128xf32>
      %15 = arith.mulf %12, %14 : vector<8x128xf32>
      %c0_14 = arith.constant 0 : index
      %c0_15 = arith.constant 0 : index
      %16 = vector.load %arg6[%c0_14, %c0_15] : memref<1x128xf32, #tpu.memory_space<vmem>>, vector<1x128xf32>
      %17 = vector.broadcast %16 : vector<1x128xf32> to vector<8x128xf32>
      %18 = arith.addf %15, %17 : vector<8x128xf32>
      %c0_16 = arith.constant 0 : index
      %c0_17 = arith.constant 0 : index
      %19 = vector.load %arg7[%c0_16, %c0_17] : memref<8x128xf32, #tpu.memory_space<vmem>>, vector<8x128xf32>
      tpu.vector_store %arg7[%c0_16, %c0_17], %18 {strides = array<i32>} : memref<8x128xf32, #tpu.memory_space<vmem>>, vector<8x128xf32>,
    } else {
    }
    return
  }
  func.func @transform_0(%arg0: i32, %arg1: i32, %arg2: i32) -> (i32, i32) {
    %c0_i32 = arith.constant 0 : i32
    return %arg0, %arg2 : i32, i32
  }
  func.func @transform_1(%arg0: i32, %arg1: i32, %arg2: i32) -> (i32, i32) {
    %c0_i32 = arith.constant 0 : i32
    return %arg2, %arg1 : i32, i32
  }
  func.func @transform_2(%arg0: i32, %arg1: i32, %arg2: i32) -> (i32, i32) {
    %c0_i32 = arith.constant 0 : i32
    %c0_i32_0 = arith.constant 0 : i32
    return %c0_i32, %arg1 : i32, i32
  }
  func.func @transform_3(%arg0: i32, %arg1: i32, %arg2: i32) -> (i32, i32) {
    %c0_i32 = arith.constant 0 : i32
    %c0_i32_0 = arith.constant 0 : i32
    return %c0_i32, %arg1 : i32, i32
  }
  func.func @transform_4(%arg0: i32, %arg1: i32, %arg2: i32) -> (i32, i32) {
    %c0_i32 = arith.constant 0 : i32
    return %arg0, %arg1 : i32, i32
  }
}

</mosaic_0001>

<llo_original>
// kernel: fwd.22
$region0: #{fwd.22}
  #allocation0 [shape = 'u32[]', space=smem, size = 0x4, offset = 0x4, fixed_abs, tag = 'smem constant byte address 0x4 - core index']
  #allocation1 [shape = 'u32[144,128]{1,0:T(1,128)}', space=vmem, size = 0x12000, scoped, tag = 'internal scratch']
  #allocation2 [shape = 'f32[8,128]{1,0:T(8,128)}', space=vmem, size = 0x1000, scoped, tag = 'scratch operand']
  %s0 = inlined_call_operand.vmem [shape: bf16[8,256], index: 0, kind: input, shape index: {}]
  %s1 = inlined_call_operand.vmem [shape: bf16[256,128], index: 1, kind: input, shape index: {}]
  %s2 = inlined_call_operand.vmem [shape: f32[1,128], index: 2, kind: input, shape index: {}]
  %s3 = inlined_call_operand.vmem [shape: f32[1,128], index: 3, kind: input, shape index: {}]
  %s4 = inlined_call_operand.vmem [shape: bf16[8,128], index: 4, kind: output, shape index: {}]
  %s5 = sld [smem:[#allocation0]]
  $region34: #{fwd.22} parent=0
    _
  %s7 = ssub.s32 1, %s5
  %s8 = scalar_select 0, %s7, %s5
  // Predicated region
  $region2: #{fwd.22} parent=0 // pred_check
    _
  $region3: #{fwd.22} parent=0 // pred_check_branch
    %10 = sbr.rel (0) target = $region5
  $region4: #{fwd.22} parent=0 // pred_region
    _
  $region5: #{fwd.22} parent=0 // pred_fallthru
    _
  // Predicated region
  $region6: #{fwd.22} parent=0 // pred_check
    _
  $region7: #{fwd.22} parent=0 // pred_check_branch
    %12 = sbr.rel (0) target = $region9
  $region8: #{fwd.22} parent=0 // pred_region
    _
  $region9: #{fwd.22} parent=0 // pred_fallthru
    _
  // Predicated region
  $region10: #{fwd.22} parent=0 // pred_check
    _
  $region11: #{fwd.22} parent=0 // pred_check_branch
    %14 = sbr.rel (0) target = $region13
  $region12: #{fwd.22} parent=0 // pred_region
    _
  $region13: #{fwd.22} parent=0 // pred_fallthru
    _
  // Predicated region
  $region14: #{fwd.22} parent=0 // pred_check
    _
  $region15: #{fwd.22} parent=0 // pred_check_branch
    %16 = sbr.rel (0) target = $region17
  $region16: #{fwd.22} parent=0 // pred_region
    _
  $region17: #{fwd.22} parent=0 // pred_fallthru
    _
  %p18 = scmp.eq.s32.totalorder 0, 0
  // Predicated region
  $region18: #{fwd.22} parent=0 // pred_check
    %p19 = pneg %p18
  $region19: #{fwd.22} parent=0 // pred_check_branch
    %21 = sbr.rel (%p19) target = $region21
  $region20: #{fwd.22} parent=0 // pred_region
    %22 = vst [vmem:[#allocation2] sm:$0xff] 0.0
  $region21: #{fwd.22} parent=0 // pred_fallthru
    _
  %v23 = vld [vmem:[#allocation2] sm:$0xff]
  %v24 = vld [vmem:[%s0] sm:$0xff]
  %v25 = vld [vmem:[%s1] sm:$0xf]
  %v26 = vld [vmem:[%s1 + $0x4] sm:$0xf]
  %v27 = vld [vmem:[%s1 + $0x8] sm:$0xf]
  %v28 = vld [vmem:[%s1 + $0xc] sm:$0xf]
  %v29 = vld [vmem:[%s1 + $0x10] sm:$0xf]
  %v30 = vld [vmem:[%s1 + $0x14] sm:$0xf]
  %v31 = vld [vmem:[%s1 + $0x18] sm:$0xf]
  %v32 = vld [vmem:[%s1 + $0x1c] sm:$0xf]
  %v33 = vld [vmem:[%s1 + $0x20] sm:$0xf]
  %v34 = vld [vmem:[%s1 + $0x24] sm:$0xf]
  %v35 = vld [vmem:[%s1 + $0x28] sm:$0xf]
  %v36 = vld [vmem:[%s1 + $0x2c] sm:$0xf]
  %v37 = vld [vmem:[%s1 + $0x30] sm:$0xf]
  %v38 = vld [vmem:[%s1 + $0x34] sm:$0xf]
  %v39 = vld [vmem:[%s1 + $0x38] sm:$0xf]
  %v40 = vld [vmem:[%s1 + $0x3c] sm:$0xf]
  %v41 = vld [vmem:[%s1 + $0x40] sm:$0xf]
  %v42 = vld [vmem:[%s1 + $0x44] sm:$0xf]
  %v43 = vld [vmem:[%s1 + $0x48] sm:$0xf]
  %v44 = vld [vmem:[%s1 + $0x4c] sm:$0xf]
  %v45 = vld [vmem:[%s1 + $0x50] sm:$0xf]
  %v46 = vld [vmem:[%s1 + $0x54] sm:$0xf]
  %v47 = vld [vmem:[%s1 + $0x58] sm:$0xf]
  %v48 = vld [vmem:[%s1 + $0x5c] sm:$0xf]
  %v49 = vld [vmem:[%s1 + $0x60] sm:$0xf]
  %v50 = vld [vmem:[%s1 + $0x64] sm:$0xf]
  %v51 = vld [vmem:[%s1 + $0x68] sm:$0xf]
  %v52 = vld [vmem:[%s1 + $0x6c] sm:$0xf]
  %v53 = vld [vmem:[%s1 + $0x70] sm:$0xf]
  %v54 = vld [vmem:[%s1 + $0x74] sm:$0xf]
  %v55 = vld [vmem:[%s1 + $0x78] sm:$0xf]
  %v56 = vld [vmem:[%s1 + $0x7c] sm:$0xf]
  %v58 = vunpack.c.l.b16 %v24
  %v59 = vunpack.c.h.b16 %v24
  %v60 = vpack.c.b16 %v58, %v58
  %v61 = vpack.c.b16 %v59, %v59
  %v96 = vunpack.c.l.b16 %v25
  %v97 = vunpack.c.l.b16 %v26
  %v98 = vunpack.c.l.b16 %v27
  %v99 = vunpack.c.l.b16 %v28
  %v100 = vunpack.c.l.b16 %v29
  %v101 = vunpack.c.l.b16 %v30
  %v102 = vunpack.c.l.b16 %v31
  %v103 = vunpack.c.l.b16 %v32
  %v104 = vunpack.c.l.b16 %v33
  %v105 = vunpack.c.l.b16 %v34
  %v106 = vunpack.c.l.b16 %v35
  %v107 = vunpack.c.l.b16 %v36
  %v108 = vunpack.c.l.b16 %v37
  %v109 = vunpack.c.l.b16 %v38
  %v110 = vunpack.c.l.b16 %v39
  %v111 = vunpack.c.l.b16 %v40
  %v112 = vunpack.c.l.b16 %v41
  %v113 = vunpack.c.l.b16 %v42
  %v114 = vunpack.c.l.b16 %v43
  %v115 = vunpack.c.l.b16 %v44
  %v116 = vunpack.c.l.b16 %v45
  %v117 = vunpack.c.l.b16 %v46
  %v118 = vunpack.c.l.b16 %v47
  %v119 = vunpack.c.l.b16 %v48
  %v120 = vunpack.c.l.b16 %v49
  %v121 = vunpack.c.l.b16 %v50
  %v122 = vunpack.c.l.b16 %v51
  %v123 = vunpack.c.l.b16 %v52
  %v124 = vunpack.c.l.b16 %v53
  %v125 = vunpack.c.l.b16 %v54
  %v126 = vunpack.c.l.b16 %v55
  %v127 = vunpack.c.l.b16 %v56
  %v128 = vpack.c.b16 %v97, %v96
  %v129 = vpack.c.b16 %v99, %v98
  %v130 = vpack.c.b16 %v101, %v100
  %v131 = vpack.c.b16 %v103, %v102
  %v132 = vpack.c.b16 %v105, %v104
  %v133 = vpack.c.b16 %v107, %v106
  %v134 = vpack.c.b16 %v109, %v108
  %v135 = vpack.c.b16 %v111, %v110
  %v136 = vpack.c.b16 %v113, %v112
  %v137 = vpack.c.b16 %v115, %v114
  %v138 = vpack.c.b16 %v117, %v116
  %v139 = vpack.c.b16 %v119, %v118
  %v140 = vpack.c.b16 %v121, %v120
  %v141 = vpack.c.b16 %v123, %v122
  %v142 = vpack.c.b16 %v125, %v124
  %v143 = vpack.c.b16 %v127, %v126
  %160 = vmatprep.subr.bf16.mxu0 0
  %161 = vmatpush1.bf16.msra.mxu0 %v135
  %162 = vmatprep.subr.bf16.mxu0 0
  %163 = vmatpush1.bf16.msra.mxu0 %v134
  %164 = vmatprep.subr.bf16.mxu0 0
  %165 = vmatpush1.bf16.msra.mxu0 %v133
  %166 = vmatprep.subr.bf16.mxu0 0
  %167 = vmatpush1.bf16.msra.mxu0 %v132
  %168 = vmatprep.subr.bf16.mxu0 0
  %169 = vmatpush1.bf16.msra.mxu0 %v131
  %170 = vmatprep.subr.bf16.mxu0 0
  %171 = vmatpush1.bf16.msra.mxu0 %v130
  %172 = vmatprep.subr.bf16.mxu0 0
  %173 = vmatpush1.bf16.msra.mxu0 %v129
  %174 = vmatprep.subr.bf16.mxu0 0
  %175 = vmatpush1.bf16.msra.mxu0 %v128
  %176 = vmatprep.subr.bf16.mxu0 0
  %177 = vmatpush2.bf16.msra.mxu0 %v143
  %178 = vmatprep.subr.bf16.mxu0 0
  %179 = vmatpush2.bf16.msra.mxu0 %v142
  %180 = vmatprep.subr.bf16.mxu0 0
  %181 = vmatpush2.bf16.msra.mxu0 %v141
  %182 = vmatprep.subr.bf16.mxu0 0
  %183 = vmatpush2.bf16.msra.mxu0 %v140
  %184 = vmatprep.subr.bf16.mxu0 0
  %185 = vmatpush2.bf16.msra.mxu0 %v139
  %186 = vmatprep.subr.bf16.mxu0 0
  %187 = vmatpush2.bf16.msra.mxu0 %v138
  %188 = vmatprep.subr.bf16.mxu0 0
  %189 = vmatpush2.bf16.msra.mxu0 %v137
  %190 = vmatprep.subr.bf16.mxu0 0
  %191 = vmatpush2.bf16.msra.mxu0 %v136
  %192 = vmatprep.mubr.bf16.mxu0 %v61
  %193 = vmatmul.mubr.bf16.gmra.mxu0 %v60
  %v194 = vpop.f32.mrf.mxu0
  %v195 = vadd.f32 0.0, %v194
  %v196 = vpop.f32.mrf.mxu0
  %v197 = vpop.f32.mrf.mxu0
  %v198 = vpop.f32.mrf.mxu0
  %199 = vdwg.mxu0
  %v200 = vadd.f32 %v23, %v195
  %201 = vst [vmem:[#allocation2] sm:$0xff] %v200
  // Predicated region
  $region22: #{fwd.22} parent=0 // pred_check
    %p202 = pneg %p18
  $region23: #{fwd.22} parent=0 // pred_check_branch
    %204 = sbr.rel (%p202) target = $region25
  $region24: #{fwd.22} parent=0 // pred_region
    %v205 = vld [vmem:[#allocation2] sm:$0xff]
    %v206 = vld [vmem:[%s2] sm:$0x1]
    %v208 = vlaneseq
    %v209 = vshrl.u32 %v208, 7
    %v210 = vsub.s32 0, %v209
    %v211 = vrot.slane %v206, %v210
    %v213 = vmul.f32 %v205, %v211
    %v214 = vld [vmem:[%s3] sm:$0x1]
    %v216 = vlaneseq
    %v217 = vshrl.u32 %v216, 7
    %v218 = vsub.s32 0, %v217
    %v219 = vrot.slane %v214, %v218
    %v221 = vadd.f32 %v213, %v219
    %v222 = vmax.f32 %v221, 0.0
    %v223 = vpack.c.bf16 %v222, %v222
    %224 = vst [vmem:[%s4] sm:$0xf] %v223
  $region25: #{fwd.22} parent=0 // pred_fallthru
    _
  // Predicated region
  $region26: #{fwd.22} parent=0 // pred_check
    _
  $region27: #{fwd.22} parent=0 // pred_check_branch
    %226 = sbr.rel (0) target = $region29
  $region28: #{fwd.22} parent=0 // pred_region
    _
  $region29: #{fwd.22} parent=0 // pred_fallthru
    _
  // Predicated region
  $region30: #{fwd.22} parent=0 // pred_check
    _
  $region31: #{fwd.22} parent=0 // pred_check_branch
    %228 = sbr.rel (0) target = $region33
  $region32: #{fwd.22} parent=0 // pred_region
    _
  $region33: #{fwd.22} parent=0 // pred_fallthru
    _

// kernel: fwd.21
$region0: #{fwd.21}
  #allocation0 [shape = 'u32[]', space=smem, size = 0x4, offset = 0x4, fixed_abs, tag = 'smem constant byte address 0x4 - core index']
  #allocation1 [shape = 'u32[144,128]{1,0:T(1,128)}', space=vmem, size = 0x12000, scoped, tag = 'internal scratch']
  #allocation2 [shape = 'f32[16,128]{1,0:T(8,128)}', space=vmem, size = 0x2000, scoped, tag = 'scratch operand']
  %s0 = inlined_call_operand.vmem [shape: bf16[16,128], index: 0, kind: input, shape index: {}]
  %s1 = inlined_call_operand.vmem [shape: bf16[128,128], index: 1, kind: input, shape index: {}]
  %s2 = inlined_call_operand.vmem [shape: f32[1,128], index: 2, kind: input, shape index: {}]
  %s3 = inlined_call_operand.vmem [shape: f32[1,128], index: 3, kind: input, shape index: {}]
  %s4 = inlined_call_operand.vmem [shape: bf16[16,128], index: 4, kind: output, shape index: {}]
  %s5 = sld [smem:[#allocation0]]
  $region34: #{fwd.21} parent=0
    _
  %s7 = ssub.s32 1, %s5
  %s8 = scalar_select 0, %s7, %s5
  // Predicated region
  $region2: #{fwd.21} parent=0 // pred_check
    _
  $region3: #{fwd.21} parent=0 // pred_check_branch
    %10 = sbr.rel (0) target = $region5
  $region4: #{fwd.21} parent=0 // pred_region
    _
  $region5: #{fwd.21} parent=0 // pred_fallthru
    _
  // Predicated region
  $region6: #{fwd.21} parent=0 // pred_check
    _
  $region7: #{fwd.21} parent=0 // pred_check_branch
    %12 = sbr.rel (0) target = $region9
  $region8: #{fwd.21} parent=0 // pred_region
    _
  $region9: #{fwd.21} parent=0 // pred_fallthru
    _
  // Predicated region
  $region10: #{fwd.21} parent=0 // pred_check
    _
  $region11: #{fwd.21} parent=0 // pred_check_branch
    %14 = sbr.rel (0) target = $region13
  $region12: #{fwd.21} parent=0 // pred_region
    _
  $region13: #{fwd.21} parent=0 // pred_fallthru
    _
  // Predicated region
  $region14: #{fwd.21} parent=0 // pred_check
    _
  $region15: #{fwd.21} parent=0 // pred_check_branch
    %16 = sbr.rel (0) target = $region17
  $region16: #{fwd.21} parent=0 // pred_region
    _
  $region17: #{fwd.21} parent=0 // pred_fallthru
    _
  %p18 = scmp.eq.s32.totalorder 0, 0
  // Predicated region
  $region18: #{fwd.21} parent=0 // pred_check
    %p19 = pneg %p18
  $region19: #{fwd.21} parent=0 // pred_check_branch
    %21 = sbr.rel (%p19) target = $region21
  $region20: #{fwd.21} parent=0 // pred_region
    %22 = vst [vmem:[#allocation2] sm:$0xff] 0.0
    %23 = vst [vmem:[#allocation2 + $0x8] sm:$0xff] 0.0
  $region21: #{fwd.21} parent=0 // pred_fallthru
    _
  %v24 = vld [vmem:[#allocation2] sm:$0xff]
  %v25 = vld [vmem:[#allocation2 + $0x8] sm:$0xff]
  %v26 = vld [vmem:[%s0] sm:$0xf]
  %v27 = vld [vmem:[%s0 + $0x4] sm:$0xf]
  %v28 = vld [vmem:[%s1] sm:$0xf]
  %v29 = vld [vmem:[%s1 + $0x4] sm:$0xf]
  %v30 = vld [vmem:[%s1 + $0x8] sm:$0xf]
  %v31 = vld [vmem:[%s1 + $0xc] sm:$0xf]
  %v32 = vld [vmem:[%s1 + $0x10] sm:$0xf]
  %v33 = vld [vmem:[%s1 + $0x14] sm:$0xf]
  %v34 = vld [vmem:[%s1 + $0x18] sm:$0xf]
  %v35 = vld [vmem:[%s1 + $0x1c] sm:$0xf]
  %v36 = vld [vmem:[%s1 + $0x20] sm:$0xf]
  %v37 = vld [vmem:[%s1 + $0x24] sm:$0xf]
  %v38 = vld [vmem:[%s1 + $0x28] sm:$0xf]
  %v39 = vld [vmem:[%s1 + $0x2c] sm:$0xf]
  %v40 = vld [vmem:[%s1 + $0x30] sm:$0xf]
  %v41 = vld [vmem:[%s1 + $0x34] sm:$0xf]
  %v42 = vld [vmem:[%s1 + $0x38] sm:$0xf]
  %v43 = vld [vmem:[%s1 + $0x3c] sm:$0xf]
  %v46 = vunpack.c.l.b16 %v26
  %v47 = vunpack.c.l.b16 %v27
  %v48 = vpack.c.b16 %v47, %v46
  %v66 = vunpack.c.l.b16 %v28
  %v67 = vunpack.c.l.b16 %v29
  %v68 = vunpack.c.l.b16 %v30
  %v69 = vunpack.c.l.b16 %v31
  %v70 = vunpack.c.l.b16 %v32
  %v71 = vunpack.c.l.b16 %v33
  %v72 = vunpack.c.l.b16 %v34
  %v73 = vunpack.c.l.b16 %v35
  %v74 = vunpack.c.l.b16 %v36
  %v75 = vunpack.c.l.b16 %v37
  %v76 = vunpack.c.l.b16 %v38
  %v77 = vunpack.c.l.b16 %v39
  %v78 = vunpack.c.l.b16 %v40
  %v79 = vunpack.c.l.b16 %v41
  %v80 = vunpack.c.l.b16 %v42
  %v81 = vunpack.c.l.b16 %v43
  %v82 = vpack.c.b16 %v67, %v66
  %v83 = vpack.c.b16 %v69, %v68
  %v84 = vpack.c.b16 %v71, %v70
  %v85 = vpack.c.b16 %v73, %v72
  %v86 = vpack.c.b16 %v75, %v74
  %v87 = vpack.c.b16 %v77, %v76
  %v88 = vpack.c.b16 %v79, %v78
  %v89 = vpack.c.b16 %v81, %v80
  %98 = vmatprep.subr.bf16.mxu0 0
  %99 = vmatpush1.bf16.msra.mxu0 %v89
  %100 = vmatprep.subr.bf16.mxu0 0
  %101 = vmatpush1.bf16.msra.mxu0 %v88
  %102 = vmatprep.subr.bf16.mxu0 0
  %103 = vmatpush1.bf16.msra.mxu0 %v87
  %104 = vmatprep.subr.bf16.mxu0 0
  %105 = vmatpush1.bf16.msra.mxu0 %v86
  %106 = vmatprep.subr.bf16.mxu0 0
  %107 = vmatpush1.bf16.msra.mxu0 %v85
  %108 = vmatprep.subr.bf16.mxu0 0
  %109 = vmatpush1.bf16.msra.mxu0 %v84
  %110 = vmatprep.subr.bf16.mxu0 0
  %111 = vmatpush1.bf16.msra.mxu0 %v83
  %112 = vmatprep.subr.bf16.mxu0 0
  %113 = vmatpush1.bf16.msra.mxu0 %v82
  %114 = vmatprep.subr.bf16.mxu0 0
  %115 = vmatpush2.bf16.msra.mxu0 0
  %116 = vmatprep.subr.bf16.mxu0 0
  %117 = vmatpush2.bf16.msra.mxu0 0
  %118 = vmatprep.subr.bf16.mxu0 0
  %119 = vmatpush2.bf16.msra.mxu0 0
  %120 = vmatprep.subr.bf16.mxu0 0
  %121 = vmatpush2.bf16.msra.mxu0 0
  %122 = vmatprep.subr.bf16.mxu0 0
  %123 = vmatpush2.bf16.msra.mxu0 0
  %124 = vmatprep.subr.bf16.mxu0 0
  %125 = vmatpush2.bf16.msra.mxu0 0
  %126 = vmatprep.subr.bf16.mxu0 0
  %127 = vmatpush2.bf16.msra.mxu0 0
  %128 = vmatprep.subr.bf16.mxu0 0
  %129 = vmatpush2.bf16.msra.mxu0 0
  %130 = vmatprep.mubr.bf16.mxu0 0
  %131 = vmatmul.mubr.bf16.gmra.mxu0 %v48
  %v132 = vpop.f32.mrf.mxu0
  %v133 = vadd.f32 0.0, %v132
  %v134 = vpop.f32.mrf.mxu0
  %v135 = vpop.f32.mrf.mxu0
  %v136 = vadd.f32 0.0, %v135
  %v137 = vpop.f32.mrf.mxu0
  %138 = vdwg.mxu0
  %v139 = vadd.f32 %v24, %v133
  %v140 = vadd.f32 %v25, %v136
  %141 = vst [vmem:[#allocation2] sm:$0xff] %v139
  %142 = vst [vmem:[#allocation2 + $0x8] sm:$0xff] %v140
  // Predicated region
  $region22: #{fwd.21} parent=0 // pred_check
    %p143 = pneg %p18
  $region23: #{fwd.21} parent=0 // pred_check_branch
    %145 = sbr.rel (%p143) target = $region25
  $region24: #{fwd.21} parent=0 // pred_region
    %v146 = vld [vmem:[#allocation2] sm:$0xff]
    %v147 = vld [vmem:[#allocation2 + $0x8] sm:$0xff]
    %v148 = vld [vmem:[%s2] sm:$0x1]
    %v150 = vlaneseq
    %v151 = vshrl.u32 %v150, 7
    %v152 = vsub.s32 0, %v151
    %v153 = vrot.slane %v148, %v152
    %v155 = vmul.f32 %v146, %v153
    %v156 = vmul.f32 %v147, %v153
    %v157 = vld [vmem:[%s3] sm:$0x1]
    %v159 = vlaneseq
    %v160 = vshrl.u32 %v159, 7
    %v161 = vsub.s32 0, %v160
    %v162 = vrot.slane %v157, %v161
    %v164 = vadd.f32 %v155, %v162
    %v165 = vadd.f32 %v156, %v162
    %v166 = vmax.f32 %v164, 0.0
    %v167 = vmax.f32 %v165, 0.0
    %v168 = vpack.c.bf16 %v167, %v166
    %v170 = vunpack.c.l.b16 %v168
    %v171 = vunpack.c.h.b16 %v168
    %v172 = vpack.c.b16 %v170, %v170
    %v173 = vpack.c.b16 %v171, %v171
    %176 = vst [vmem:[%s4] sm:$0xf] %v172
    %177 = vst [vmem:[%s4 + $0x4] sm:$0xf] %v173
  $region25: #{fwd.21} parent=0 // pred_fallthru
    _
  // Predicated region
  $region26: #{fwd.21} parent=0 // pred_check
    _
  $region27: #{fwd.21} parent=0 // pred_check_branch
    %179 = sbr.rel (0) target = $region29
  $region28: #{fwd.21} parent=0 // pred_region
    _
  $region29: #{fwd.21} parent=0 // pred_fallthru
    _
  // Predicated region
  $region30: #{fwd.21} parent=0 // pred_check
    _
  $region31: #{fwd.21} parent=0 // pred_check_branch
    %181 = sbr.rel (0) target = $region33
  $region32: #{fwd.21} parent=0 // pred_region
    _
  $region33: #{fwd.21} parent=0 // pred_fallthru
    _

// kernel: fwd.23
$region0: #{fwd.23}
  #allocation0 [shape = 'u32[]', space=smem, size = 0x4, offset = 0x4, fixed_abs, tag = 'smem constant byte address 0x4 - core index']
  #allocation1 [shape = 'u32[144,128]{1,0:T(1,128)}', space=vmem, size = 0x12000, scoped, tag = 'internal scratch']
  #allocation2 [shape = 'f32[8,128]{1,0:T(8,128)}', space=vmem, size = 0x1000, scoped, tag = 'scratch operand']
  %s0 = inlined_call_operand.vmem [shape: bf16[8,256], index: 0, kind: input, shape index: {}]
  %s1 = inlined_call_operand.vmem [shape: bf16[256,128], index: 1, kind: input, shape index: {}]
  %s2 = inlined_call_operand.vmem [shape: f32[1,128], index: 2, kind: input, shape index: {}]
  %s3 = inlined_call_operand.vmem [shape: f32[1,128], index: 3, kind: input, shape index: {}]
  %s4 = inlined_call_operand.vmem [shape: bf16[8,128], index: 4, kind: input, shape index: {}]
  %s5 = inlined_call_operand.vmem [shape: bf16[8,128], index: 5, kind: output, shape index: {}]
  %s6 = sld [smem:[#allocation0]]
  $region38: #{fwd.23} parent=0
    _
  %s8 = ssub.s32 1, %s6
  %s9 = scalar_select 0, %s8, %s6
  // Predicated region
  $region2: #{fwd.23} parent=0 // pred_check
    _
  $region3: #{fwd.23} parent=0 // pred_check_branch
    %11 = sbr.rel (0) target = $region5
  $region4: #{fwd.23} parent=0 // pred_region
    _
  $region5: #{fwd.23} parent=0 // pred_fallthru
    _
  // Predicated region
  $region6: #{fwd.23} parent=0 // pred_check
    _
  $region7: #{fwd.23} parent=0 // pred_check_branch
    %13 = sbr.rel (0) target = $region9
  $region8: #{fwd.23} parent=0 // pred_region
    _
  $region9: #{fwd.23} parent=0 // pred_fallthru
    _
  // Predicated region
  $region10: #{fwd.23} parent=0 // pred_check
    _
  $region11: #{fwd.23} parent=0 // pred_check_branch
    %15 = sbr.rel (0) target = $region13
  $region12: #{fwd.23} parent=0 // pred_region
    _
  $region13: #{fwd.23} parent=0 // pred_fallthru
    _
  // Predicated region
  $region14: #{fwd.23} parent=0 // pred_check
    _
  $region15: #{fwd.23} parent=0 // pred_check_branch
    %17 = sbr.rel (0) target = $region17
  $region16: #{fwd.23} parent=0 // pred_region
    _
  $region17: #{fwd.23} parent=0 // pred_fallthru
    _
  // Predicated region
  $region18: #{fwd.23} parent=0 // pred_check
    _
  $region19: #{fwd.23} parent=0 // pred_check_branch
    %19 = sbr.rel (0) target = $region21
  $region20: #{fwd.23} parent=0 // pred_region
    _
  $region21: #{fwd.23} parent=0 // pred_fallthru
    _
  %p21 = scmp.eq.s32.totalorder 0, 0
  // Predicated region
  $region22: #{fwd.23} parent=0 // pred_check
    %p22 = pneg %p21
  $region23: #{fwd.23} parent=0 // pred_check_branch
    %24 = sbr.rel (%p22) target = $region25
  $region24: #{fwd.23} parent=0 // pred_region
    %25 = vst [vmem:[#allocation2] sm:$0xff] 0.0
  $region25: #{fwd.23} parent=0 // pred_fallthru
    _
  %v26 = vld [vmem:[#allocation2] sm:$0xff]
  %v27 = vld [vmem:[%s0] sm:$0xff]
  %v28 = vld [vmem:[%s1] sm:$0xf]
  %v29 = vld [vmem:[%s1 + $0x4] sm:$0xf]
  %v30 = vld [vmem:[%s1 + $0x8] sm:$0xf]
  %v31 = vld [vmem:[%s1 + $0xc] sm:$0xf]
  %v32 = vld [vmem:[%s1 + $0x10] sm:$0xf]
  %v33 = vld [vmem:[%s1 + $0x14] sm:$0xf]
  %v34 = vld [vmem:[%s1 + $0x18] sm:$0xf]
  %v35 = vld [vmem:[%s1 + $0x1c] sm:$0xf]
  %v36 = vld [vmem:[%s1 + $0x20] sm:$0xf]
  %v37 = vld [vmem:[%s1 + $0x24] sm:$0xf]
  %v38 = vld [vmem:[%s1 + $0x28] sm:$0xf]
  %v39 = vld [vmem:[%s1 + $0x2c] sm:$0xf]
  %v40 = vld [vmem:[%s1 + $0x30] sm:$0xf]
  %v41 = vld [vmem:[%s1 + $0x34] sm:$0xf]
  %v42 = vld [vmem:[%s1 + $0x38] sm:$0xf]
  %v43 = vld [vmem:[%s1 + $0x3c] sm:$0xf]
  %v44 = vld [vmem:[%s1 + $0x40] sm:$0xf]
  %v45 = vld [vmem:[%s1 + $0x44] sm:$0xf]
  %v46 = vld [vmem:[%s1 + $0x48] sm:$0xf]
  %v47 = vld [vmem:[%s1 + $0x4c] sm:$0xf]
  %v48 = vld [vmem:[%s1 + $0x50] sm:$0xf]
  %v49 = vld [vmem:[%s1 + $0x54] sm:$0xf]
  %v50 = vld [vmem:[%s1 + $0x58] sm:$0xf]
  %v51 = vld [vmem:[%s1 + $0x5c] sm:$0xf]
  %v52 = vld [vmem:[%s1 + $0x60] sm:$0xf]
  %v53 = vld [vmem:[%s1 + $0x64] sm:$0xf]
  %v54 = vld [vmem:[%s1 + $0x68] sm:$0xf]
  %v55 = vld [vmem:[%s1 + $0x6c] sm:$0xf]
  %v56 = vld [vmem:[%s1 + $0x70] sm:$0xf]
  %v57 = vld [vmem:[%s1 + $0x74] sm:$0xf]
  %v58 = vld [vmem:[%s1 + $0x78] sm:$0xf]
  %v59 = vld [vmem:[%s1 + $0x7c] sm:$0xf]
  %v61 = vunpack.c.l.b16 %v27
  %v62 = vunpack.c.h.b16 %v27
  %v63 = vpack.c.b16 %v61, %v61
  %v64 = vpack.c.b16 %v62, %v62
  %v99 = vunpack.c.l.b16 %v28
  %v100 = vunpack.c.l.b16 %v29
  %v101 = vunpack.c.l.b16 %v30
  %v102 = vunpack.c.l.b16 %v31
  %v103 = vunpack.c.l.b16 %v32
  %v104 = vunpack.c.l.b16 %v33
  %v105 = vunpack.c.l.b16 %v34
  %v106 = vunpack.c.l.b16 %v35
  %v107 = vunpack.c.l.b16 %v36
  %v108 = vunpack.c.l.b16 %v37
  %v109 = vunpack.c.l.b16 %v38
  %v110 = vunpack.c.l.b16 %v39
  %v111 = vunpack.c.l.b16 %v40
  %v112 = vunpack.c.l.b16 %v41
  %v113 = vunpack.c.l.b16 %v42
  %v114 = vunpack.c.l.b16 %v43
  %v115 = vunpack.c.l.b16 %v44
  %v116 = vunpack.c.l.b16 %v45
  %v117 = vunpack.c.l.b16 %v46
  %v118 = vunpack.c.l.b16 %v47
  %v119 = vunpack.c.l.b16 %v48
  %v120 = vunpack.c.l.b16 %v49
  %v121 = vunpack.c.l.b16 %v50
  %v122 = vunpack.c.l.b16 %v51
  %v123 = vunpack.c.l.b16 %v52
  %v124 = vunpack.c.l.b16 %v53
  %v125 = vunpack.c.l.b16 %v54
  %v126 = vunpack.c.l.b16 %v55
  %v127 = vunpack.c.l.b16 %v56
  %v128 = vunpack.c.l.b16 %v57
  %v129 = vunpack.c.l.b16 %v58
  %v130 = vunpack.c.l.b16 %v59
  %v131 = vpack.c.b16 %v100, %v99
  %v132 = vpack.c.b16 %v102, %v101
  %v133 = vpack.c.b16 %v104, %v103
  %v134 = vpack.c.b16 %v106, %v105
  %v135 = vpack.c.b16 %v108, %v107
  %v136 = vpack.c.b16 %v110, %v109
  %v137 = vpack.c.b16 %v112, %v111
  %v138 = vpack.c.b16 %v114, %v113
  %v139 = vpack.c.b16 %v116, %v115
  %v140 = vpack.c.b16 %v118, %v117
  %v141 = vpack.c.b16 %v120, %v119
  %v142 = vpack.c.b16 %v122, %v121
  %v143 = vpack.c.b16 %v124, %v123
  %v144 = vpack.c.b16 %v126, %v125
  %v145 = vpack.c.b16 %v128, %v127
  %v146 = vpack.c.b16 %v130, %v129
  %163 = vmatprep.subr.bf16.mxu0 0
  %164 = vmatpush1.bf16.msra.mxu0 %v138
  %165 = vmatprep.subr.bf16.mxu0 0
  %166 = vmatpush1.bf16.msra.mxu0 %v137
  %167 = vmatprep.subr.bf16.mxu0 0
  %168 = vmatpush1.bf16.msra.mxu0 %v136
  %169 = vmatprep.subr.bf16.mxu0 0
  %170 = vmatpush1.bf16.msra.mxu0 %v135
  %171 = vmatprep.subr.bf16.mxu0 0
  %172 = vmatpush1.bf16.msra.mxu0 %v134
  %173 = vmatprep.subr.bf16.mxu0 0
  %174 = vmatpush1.bf16.msra.mxu0 %v133
  %175 = vmatprep.subr.bf16.mxu0 0
  %176 = vmatpush1.bf16.msra.mxu0 %v132
  %177 = vmatprep.subr.bf16.mxu0 0
  %178 = vmatpush1.bf16.msra.mxu0 %v131
  %179 = vmatprep.subr.bf16.mxu0 0
  %180 = vmatpush2.bf16.msra.mxu0 %v146
  %181 = vmatprep.subr.bf16.mxu0 0
  %182 = vmatpush2.bf16.msra.mxu0 %v145
  %183 = vmatprep.subr.bf16.mxu0 0
  %184 = vmatpush2.bf16.msra.mxu0 %v144
  %185 = vmatprep.subr.bf16.mxu0 0
  %186 = vmatpush2.bf16.msra.mxu0 %v143
  %187 = vmatprep.subr.bf16.mxu0 0
  %188 = vmatpush2.bf16.msra.mxu0 %v142
  %189 = vmatprep.subr.bf16.mxu0 0
  %190 = vmatpush2.bf16.msra.mxu0 %v141
  %191 = vmatprep.subr.bf16.mxu0 0
  %192 = vmatpush2.bf16.msra.mxu0 %v140
  %193 = vmatprep.subr.bf16.mxu0 0
  %194 = vmatpush2.bf16.msra.mxu0 %v139
  %195 = vmatprep.mubr.bf16.mxu0 %v64
  %196 = vmatmul.mubr.bf16.gmra.mxu0 %v63
  %v197 = vpop.f32.mrf.mxu0
  %v198 = vadd.f32 0.0, %v197
  %v199 = vpop.f32.mrf.mxu0
  %v200 = vpop.f32.mrf.mxu0
  %v201 = vpop.f32.mrf.mxu0
  %202 = vdwg.mxu0
  %v203 = vadd.f32 %v26, %v198
  %204 = vst [vmem:[#allocation2] sm:$0xff] %v203
  // Predicated region
  $region26: #{fwd.23} parent=0 // pred_check
    %p205 = pneg %p21
  $region27: #{fwd.23} parent=0 // pred_check_branch
    %207 = sbr.rel (%p205) target = $region29
  $region28: #{fwd.23} parent=0 // pred_region
    %v208 = vld [vmem:[#allocation2] sm:$0xff]
    %v209 = vld [vmem:[%s2] sm:$0x1]
    %v211 = vlaneseq
    %v212 = vshrl.u32 %v211, 7
    %v213 = vsub.s32 0, %v212
    %v214 = vrot.slane %v209, %v213
    %v216 = vmul.f32 %v208, %v214
    %v217 = vld [vmem:[%s3] sm:$0x1]
    %v219 = vlaneseq
    %v220 = vshrl.u32 %v219, 7
    %v221 = vsub.s32 0, %v220
    %v222 = vrot.slane %v217, %v221
    %v224 = vadd.f32 %v216, %v222
    %v225 = vld [vmem:[%s4] sm:$0xf]
    %v226 = vunpack.c.l.bf16 %v225
    %v227 = vadd.f32 %v224, %v226
    %v228 = vmax.f32 %v227, 0.0
    %v229 = vpack.c.bf16 %v228, %v228
    %230 = vst [vmem:[%s5] sm:$0xf] %v229
  $region29: #{fwd.23} parent=0 // pred_fallthru
    _
  // Predicated region
  $region30: #{fwd.23} parent=0 // pred_check
    _
  $region31: #{fwd.23} parent=0 // pred_check_branch
    %232 = sbr.rel (0) target = $region33
  $region32: #{fwd.23} parent=0 // pred_region
    _
  $region33: #{fwd.23} parent=0 // pred_fallthru
    _
  // Predicated region
  $region34: #{fwd.23} parent=0 // pred_check
    _
  $region35: #{fwd.23} parent=0 // pred_check_branch
    %234 = sbr.rel (0) target = $region37
  $region36: #{fwd.23} parent=0 // pred_region
    _
  $region37: #{fwd.23} parent=0 // pred_fallthru
    _

// kernel: fwd.27
$region0: #{fwd.27}
  #allocation0 [shape = 'u32[]', space=smem, size = 0x4, offset = 0x4, fixed_abs, tag = 'smem constant byte address 0x4 - core index']
  #allocation1 [shape = 'u32[144,128]{1,0:T(1,128)}', space=vmem, size = 0x12000, scoped, tag = 'internal scratch']
  #allocation2 [shape = 'f32[8,128]{1,0:T(8,128)}', space=vmem, size = 0x1000, scoped, tag = 'scratch operand']
  %s0 = inlined_call_operand.vmem [shape: bf16[8,128], index: 0, kind: input, shape index: {}]
  %s1 = inlined_call_operand.vmem [shape: bf16[128,128], index: 1, kind: input, shape index: {}]
  %s2 = inlined_call_operand.vmem [shape: f32[1,128], index: 2, kind: input, shape index: {}]
  %s3 = inlined_call_operand.vmem [shape: f32[1,128], index: 3, kind: input, shape index: {}]
  %s4 = inlined_call_operand.vmem [shape: bf16[8,128], index: 4, kind: output, shape index: {}]
  %s5 = sld [smem:[#allocation0]]
  $region34: #{fwd.27} parent=0
    _
  %s7 = ssub.s32 1, %s5
  %s8 = scalar_select 0, %s7, %s5
  // Predicated region
  $region2: #{fwd.27} parent=0 // pred_check
    _
  $region3: #{fwd.27} parent=0 // pred_check_branch
    %10 = sbr.rel (0) target = $region5
  $region4: #{fwd.27} parent=0 // pred_region
    _
  $region5: #{fwd.27} parent=0 // pred_fallthru
    _
  // Predicated region
  $region6: #{fwd.27} parent=0 // pred_check
    _
  $region7: #{fwd.27} parent=0 // pred_check_branch
    %12 = sbr.rel (0) target = $region9
  $region8: #{fwd.27} parent=0 // pred_region
    _
  $region9: #{fwd.27} parent=0 // pred_fallthru
    _
  // Predicated region
  $region10: #{fwd.27} parent=0 // pred_check
    _
  $region11: #{fwd.27} parent=0 // pred_check_branch
    %14 = sbr.rel (0) target = $region13
  $region12: #{fwd.27} parent=0 // pred_region
    _
  $region13: #{fwd.27} parent=0 // pred_fallthru
    _
  // Predicated region
  $region14: #{fwd.27} parent=0 // pred_check
    _
  $region15: #{fwd.27} parent=0 // pred_check_branch
    %16 = sbr.rel (0) target = $region17
  $region16: #{fwd.27} parent=0 // pred_region
    _
  $region17: #{fwd.27} parent=0 // pred_fallthru
    _
  %p18 = scmp.eq.s32.totalorder 0, 0
  // Predicated region
  $region18: #{fwd.27} parent=0 // pred_check
    %p19 = pneg %p18
  $region19: #{fwd.27} parent=0 // pred_check_branch
    %21 = sbr.rel (%p19) target = $region21
  $region20: #{fwd.27} parent=0 // pred_region
    %22 = vst [vmem:[#allocation2] sm:$0xff] 0.0
  $region21: #{fwd.27} parent=0 // pred_fallthru
    _
  %v23 = vld [vmem:[#allocation2] sm:$0xff]
  %v24 = vld [vmem:[%s0] sm:$0xf]
  %v25 = vld [vmem:[%s1] sm:$0xf]
  %v26 = vld [vmem:[%s1 + $0x4] sm:$0xf]
  %v27 = vld [vmem:[%s1 + $0x8] sm:$0xf]
  %v28 = vld [vmem:[%s1 + $0xc] sm:$0xf]
  %v29 = vld [vmem:[%s1 + $0x10] sm:$0xf]
  %v30 = vld [vmem:[%s1 + $0x14] sm:$0xf]
  %v31 = vld [vmem:[%s1 + $0x18] sm:$0xf]
  %v32 = vld [vmem:[%s1 + $0x1c] sm:$0xf]
  %v33 = vld [vmem:[%s1 + $0x20] sm:$0xf]
  %v34 = vld [vmem:[%s1 + $0x24] sm:$0xf]
  %v35 = vld [vmem:[%s1 + $0x28] sm:$0xf]
  %v36 = vld [vmem:[%s1 + $0x2c] sm:$0xf]
  %v37 = vld [vmem:[%s1 + $0x30] sm:$0xf]
  %v38 = vld [vmem:[%s1 + $0x34] sm:$0xf]
  %v39 = vld [vmem:[%s1 + $0x38] sm:$0xf]
  %v40 = vld [vmem:[%s1 + $0x3c] sm:$0xf]
  %v57 = vunpack.c.l.b16 %v25
  %v58 = vunpack.c.l.b16 %v26
  %v59 = vunpack.c.l.b16 %v27
  %v60 = vunpack.c.l.b16 %v28
  %v61 = vunpack.c.l.b16 %v29
  %v62 = vunpack.c.l.b16 %v30
  %v63 = vunpack.c.l.b16 %v31
  %v64 = vunpack.c.l.b16 %v32
  %v65 = vunpack.c.l.b16 %v33
  %v66 = vunpack.c.l.b16 %v34
  %v67 = vunpack.c.l.b16 %v35
  %v68 = vunpack.c.l.b16 %v36
  %v69 = vunpack.c.l.b16 %v37
  %v70 = vunpack.c.l.b16 %v38
  %v71 = vunpack.c.l.b16 %v39
  %v72 = vunpack.c.l.b16 %v40
  %v73 = vpack.c.b16 %v58, %v57
  %v74 = vpack.c.b16 %v60, %v59
  %v75 = vpack.c.b16 %v62, %v61
  %v76 = vpack.c.b16 %v64, %v63
  %v77 = vpack.c.b16 %v66, %v65
  %v78 = vpack.c.b16 %v68, %v67
  %v79 = vpack.c.b16 %v70, %v69
  %v80 = vpack.c.b16 %v72, %v71
  %89 = vmatprep.subr.bf16.mxu0 0
  %90 = vmatpush1.bf16.msra.mxu0 %v80
  %91 = vmatprep.subr.bf16.mxu0 0
  %92 = vmatpush1.bf16.msra.mxu0 %v79
  %93 = vmatprep.subr.bf16.mxu0 0
  %94 = vmatpush1.bf16.msra.mxu0 %v78
  %95 = vmatprep.subr.bf16.mxu0 0
  %96 = vmatpush1.bf16.msra.mxu0 %v77
  %97 = vmatprep.subr.bf16.mxu0 0
  %98 = vmatpush1.bf16.msra.mxu0 %v76
  %99 = vmatprep.subr.bf16.mxu0 0
  %100 = vmatpush1.bf16.msra.mxu0 %v75
  %101 = vmatprep.subr.bf16.mxu0 0
  %102 = vmatpush1.bf16.msra.mxu0 %v74
  %103 = vmatprep.subr.bf16.mxu0 0
  %104 = vmatpush1.bf16.msra.mxu0 %v73
  %105 = vmatprep.subr.bf16.mxu0 0
  %106 = vmatpush2.bf16.msra.mxu0 0
  %107 = vmatprep.subr.bf16.mxu0 0
  %108 = vmatpush2.bf16.msra.mxu0 0
  %109 = vmatprep.subr.bf16.mxu0 0
  %110 = vmatpush2.bf16.msra.mxu0 0
  %111 = vmatprep.subr.bf16.mxu0 0
  %112 = vmatpush2.bf16.msra.mxu0 0
  %113 = vmatprep.subr.bf16.mxu0 0
  %114 = vmatpush2.bf16.msra.mxu0 0
  %115 = vmatprep.subr.bf16.mxu0 0
  %116 = vmatpush2.bf16.msra.mxu0 0
  %117 = vmatprep.subr.bf16.mxu0 0
  %118 = vmatpush2.bf16.msra.mxu0 0
  %119 = vmatprep.subr.bf16.mxu0 0
  %120 = vmatpush2.bf16.msra.mxu0 0
  %121 = vmatprep.mubr.bf16.mxu0 0
  %122 = vmatmul.mubr.bf16.gmra.mxu0 %v24
  %v123 = vpop.f32.mrf.mxu0
  %v124 = vadd.f32 0.0, %v123
  %v125 = vpop.f32.mrf.mxu0
  %v126 = vpop.f32.mrf.mxu0
  %v127 = vpop.f32.mrf.mxu0
  %128 = vdwg.mxu0
  %v129 = vadd.f32 %v23, %v124
  %130 = vst [vmem:[#allocation2] sm:$0xff] %v129
  // Predicated region
  $region22: #{fwd.27} parent=0 // pred_check
    %p131 = pneg %p18
  $region23: #{fwd.27} parent=0 // pred_check_branch
    %133 = sbr.rel (%p131) target = $region25
  $region24: #{fwd.27} parent=0 // pred_region
    %v134 = vld [vmem:[#allocation2] sm:$0xff]
    %v135 = vld [vmem:[%s2] sm:$0x1]
    %v137 = vlaneseq
    %v138 = vshrl.u32 %v137, 7
    %v139 = vsub.s32 0, %v138
    %v140 = vrot.slane %v135, %v139
    %v142 = vmul.f32 %v134, %v140
    %v143 = vld [vmem:[%s3] sm:$0x1]
    %v145 = vlaneseq
    %v146 = vshrl.u32 %v145, 7
    %v147 = vsub.s32 0, %v146
    %v148 = vrot.slane %v143, %v147
    %v150 = vadd.f32 %v142, %v148
    %v151 = vpack.c.bf16 %v150, %v150
    %152 = vst [vmem:[%s4] sm:$0xf] %v151
  $region25: #{fwd.27} parent=0 // pred_fallthru
    _
  // Predicated region
  $region26: #{fwd.27} parent=0 // pred_check
    _
  $region27: #{fwd.27} parent=0 // pred_check_branch
    %154 = sbr.rel (0) target = $region29
  $region28: #{fwd.27} parent=0 // pred_region
    _
  $region29: #{fwd.27} parent=0 // pred_fallthru
    _
  // Predicated region
  $region30: #{fwd.27} parent=0 // pred_check
    _
  $region31: #{fwd.27} parent=0 // pred_check_branch
    %156 = sbr.rel (0) target = $region33
  $region32: #{fwd.27} parent=0 // pred_region
    _
  $region33: #{fwd.27} parent=0 // pred_fallthru
    _

// kernel: fwd.29
$region0: #{fwd.29}
  #allocation0 [shape = 'u32[]', space=smem, size = 0x4, offset = 0x4, fixed_abs, tag = 'smem constant byte address 0x4 - core index']
  #allocation1 [shape = 'u32[144,128]{1,0:T(1,128)}', space=vmem, size = 0x12000, scoped, tag = 'internal scratch']
  #allocation2 [shape = 'f32[8,128]{1,0:T(8,128)}', space=vmem, size = 0x1000, scoped, tag = 'scratch operand']
  %s0 = inlined_call_operand.vmem [shape: bf16[8,384], index: 0, kind: input, shape index: {}]
  %s1 = inlined_call_operand.vmem [shape: bf16[384,128], index: 1, kind: input, shape index: {}]
  %s2 = inlined_call_operand.vmem [shape: f32[1,128], index: 2, kind: input, shape index: {}]
  %s3 = inlined_call_operand.vmem [shape: f32[1,128], index: 3, kind: input, shape index: {}]
  %s4 = inlined_call_operand.vmem [shape: bf16[8,128], index: 4, kind: output, shape index: {}]
  %s5 = sld [smem:[#allocation0]]
  $region34: #{fwd.29} parent=0
    _
  %s7 = ssub.s32 1, %s5
  %s8 = scalar_select 0, %s7, %s5
  // Predicated region
  $region2: #{fwd.29} parent=0 // pred_check
    _
  $region3: #{fwd.29} parent=0 // pred_check_branch
    %10 = sbr.rel (0) target = $region5
  $region4: #{fwd.29} parent=0 // pred_region
    _
  $region5: #{fwd.29} parent=0 // pred_fallthru
    _
  // Predicated region
  $region6: #{fwd.29} parent=0 // pred_check
    _
  $region7: #{fwd.29} parent=0 // pred_check_branch
    %12 = sbr.rel (0) target = $region9
  $region8: #{fwd.29} parent=0 // pred_region
    _
  $region9: #{fwd.29} parent=0 // pred_fallthru
    _
  // Predicated region
  $region10: #{fwd.29} parent=0 // pred_check
    _
  $region11: #{fwd.29} parent=0 // pred_check_branch
    %14 = sbr.rel (0) target = $region13
  $region12: #{fwd.29} parent=0 // pred_region
    _
  $region13: #{fwd.29} parent=0 // pred_fallthru
    _
  // Predicated region
  $region14: #{fwd.29} parent=0 // pred_check
    _
  $region15: #{fwd.29} parent=0 // pred_check_branch
    %16 = sbr.rel (0) target = $region17
  $region16: #{fwd.29} parent=0 // pred_region
    _
  $region17: #{fwd.29} parent=0 // pred_fallthru
    _
  %p18 = scmp.eq.s32.totalorder 0, 0
  // Predicated region
  $region18: #{fwd.29} parent=0 // pred_check
    %p19 = pneg %p18
  $region19: #{fwd.29} parent=0 // pred_check_branch
    %21 = sbr.rel (%p19) target = $region21
  $region20: #{fwd.29} parent=0 // pred_region
    %22 = vst [vmem:[#allocation2] sm:$0xff] 0.0
  $region21: #{fwd.29} parent=0 // pred_fallthru
    _
  %v23 = vld [vmem:[#allocation2] sm:$0xff]
  %v24 = vld [vmem:[%s0] sm:$0xff]
  %v25 = vld [vmem:[%s0 + $0x8] sm:$0xf]
  %v26 = vld [vmem:[%s1] sm:$0xf]
  %v27 = vld [vmem:[%s1 + $0x4] sm:$0xf]
  %v28 = vld [vmem:[%s1 + $0x8] sm:$0xf]
  %v29 = vld [vmem:[%s1 + $0xc] sm:$0xf]
  %v30 = vld [vmem:[%s1 + $0x10] sm:$0xf]
  %v31 = vld [vmem:[%s1 + $0x14] sm:$0xf]
  %v32 = vld [vmem:[%s1 + $0x18] sm:$0xf]
  %v33 = vld [vmem:[%s1 + $0x1c] sm:$0xf]
  %v34 = vld [vmem:[%s1 + $0x20] sm:$0xf]
  %v35 = vld [vmem:[%s1 + $0x24] sm:$0xf]
  %v36 = vld [vmem:[%s1 + $0x28] sm:$0xf]
  %v37 = vld [vmem:[%s1 + $0x2c] sm:$0xf]
  %v38 = vld [vmem:[%s1 + $0x30] sm:$0xf]
  %v39 = vld [vmem:[%s1 + $0x34] sm:$0xf]
  %v40 = vld [vmem:[%s1 + $0x38] sm:$0xf]
  %v41 = vld [vmem:[%s1 + $0x3c] sm:$0xf]
  %v42 = vld [vmem:[%s1 + $0x40] sm:$0xf]
  %v43 = vld [vmem:[%s1 + $0x44] sm:$0xf]
  %v44 = vld [vmem:[%s1 + $0x48] sm:$0xf]
  %v45 = vld [vmem:[%s1 + $0x4c] sm:$0xf]
  %v46 = vld [vmem:[%s1 + $0x50] sm:$0xf]
  %v47 = vld [vmem:[%s1 + $0x54] sm:$0xf]
  %v48 = vld [vmem:[%s1 + $0x58] sm:$0xf]
  %v49 = vld [vmem:[%s1 + $0x5c] sm:$0xf]
  %v50 = vld [vmem:[%s1 + $0x60] sm:$0xf]
  %v51 = vld [vmem:[%s1 + $0x64] sm:$0xf]
  %v52 = vld [vmem:[%s1 + $0x68] sm:$0xf]
  %v53 = vld [vmem:[%s1 + $0x6c] sm:$0xf]
  %v54 = vld [vmem:[%s1 + $0x70] sm:$0xf]
  %v55 = vld [vmem:[%s1 + $0x74] sm:$0xf]
  %v56 = vld [vmem:[%s1 + $0x78] sm:$0xf]
  %v57 = vld [vmem:[%s1 + $0x7c] sm:$0xf]
  %v58 = vld [vmem:[%s1 + $0x80] sm:$0xf]
  %v59 = vld [vmem:[%s1 + $0x84] sm:$0xf]
  %v60 = vld [vmem:[%s1 + $0x88] sm:$0xf]
  %v61 = vld [vmem:[%s1 + $0x8c] sm:$0xf]
  %v62 = vld [vmem:[%s1 + $0x90] sm:$0xf]
  %v63 = vld [vmem:[%s1 + $0x94] sm:$0xf]
  %v64 = vld [vmem:[%s1 + $0x98] sm:$0xf]
  %v65 = vld [vmem:[%s1 + $0x9c] sm:$0xf]
  %v66 = vld [vmem:[%s1 + $0xa0] sm:$0xf]
  %v67 = vld [vmem:[%s1 + $0xa4] sm:$0xf]
  %v68 = vld [vmem:[%s1 + $0xa8] sm:$0xf]
  %v69 = vld [vmem:[%s1 + $0xac] sm:$0xf]
  %v70 = vld [vmem:[%s1 + $0xb0] sm:$0xf]
  %v71 = vld [vmem:[%s1 + $0xb4] sm:$0xf]
  %v72 = vld [vmem:[%s1 + $0xb8] sm:$0xf]
  %v73 = vld [vmem:[%s1 + $0xbc] sm:$0xf]
  %v76 = vunpack.c.l.b16 %v24
  %v77 = vunpack.c.h.b16 %v24
  %v78 = vunpack.c.l.b16 %v25
  %v79 = vpack.c.b16 %v76, %v76
  %v80 = vpack.c.b16 %v77, %v77
  %v81 = vpack.c.b16 %v78, %v78
  %v133 = vunpack.c.l.b16 %v26
  %v134 = vunpack.c.l.b16 %v27
  %v135 = vunpack.c.l.b16 %v28
  %v136 = vunpack.c.l.b16 %v29
  %v137 = vunpack.c.l.b16 %v30
  %v138 = vunpack.c.l.b16 %v31
  %v139 = vunpack.c.l.b16 %v32
  %v140 = vunpack.c.l.b16 %v33
  %v141 = vunpack.c.l.b16 %v34
  %v142 = vunpack.c.l.b16 %v35
  %v143 = vunpack.c.l.b16 %v36
  %v144 = vunpack.c.l.b16 %v37
  %v145 = vunpack.c.l.b16 %v38
  %v146 = vunpack.c.l.b16 %v39
  %v147 = vunpack.c.l.b16 %v40
  %v148 = vunpack.c.l.b16 %v41
  %v149 = vunpack.c.l.b16 %v42
  %v150 = vunpack.c.l.b16 %v43
  %v151 = vunpack.c.l.b16 %v44
  %v152 = vunpack.c.l.b16 %v45
  %v153 = vunpack.c.l.b16 %v46
  %v154 = vunpack.c.l.b16 %v47
  %v155 = vunpack.c.l.b16 %v48
  %v156 = vunpack.c.l.b16 %v49
  %v157 = vunpack.c.l.b16 %v50
  %v158 = vunpack.c.l.b16 %v51
  %v159 = vunpack.c.l.b16 %v52
  %v160 = vunpack.c.l.b16 %v53
  %v161 = vunpack.c.l.b16 %v54
  %v162 = vunpack.c.l.b16 %v55
  %v163 = vunpack.c.l.b16 %v56
  %v164 = vunpack.c.l.b16 %v57
  %v165 = vunpack.c.l.b16 %v58
  %v166 = vunpack.c.l.b16 %v59
  %v167 = vunpack.c.l.b16 %v60
  %v168 = vunpack.c.l.b16 %v61
  %v169 = vunpack.c.l.b16 %v62
  %v170 = vunpack.c.l.b16 %v63
  %v171 = vunpack.c.l.b16 %v64
  %v172 = vunpack.c.l.b16 %v65
  %v173 = vunpack.c.l.b16 %v66
  %v174 = vunpack.c.l.b16 %v67
  %v175 = vunpack.c.l.b16 %v68
  %v176 = vunpack.c.l.b16 %v69
  %v177 = vunpack.c.l.b16 %v70
  %v178 = vunpack.c.l.b16 %v71
  %v179 = vunpack.c.l.b16 %v72
  %v180 = vunpack.c.l.b16 %v73
  %v181 = vpack.c.b16 %v134, %v133
  %v182 = vpack.c.b16 %v136, %v135
  %v183 = vpack.c.b16 %v138, %v137
  %v184 = vpack.c.b16 %v140, %v139
  %v185 = vpack.c.b16 %v142, %v141
  %v186 = vpack.c.b16 %v144, %v143
  %v187 = vpack.c.b16 %v146, %v145
  %v188 = vpack.c.b16 %v148, %v147
  %v189 = vpack.c.b16 %v150, %v149
  %v190 = vpack.c.b16 %v152, %v151
  %v191 = vpack.c.b16 %v154, %v153
  %v192 = vpack.c.b16 %v156, %v155
  %v193 = vpack.c.b16 %v158, %v157
  %v194 = vpack.c.b16 %v160, %v159
  %v195 = vpack.c.b16 %v162, %v161
  %v196 = vpack.c.b16 %v164, %v163
  %v197 = vpack.c.b16 %v166, %v165
  %v198 = vpack.c.b16 %v168, %v167
  %v199 = vpack.c.b16 %v170, %v169
  %v200 = vpack.c.b16 %v172, %v171
  %v201 = vpack.c.b16 %v174, %v173
  %v202 = vpack.c.b16 %v176, %v175
  %v203 = vpack.c.b16 %v178, %v177
  %v204 = vpack.c.b16 %v180, %v179
  %229 = vmatprep.subr.bf16.mxu0 0
  %230 = vmatpush1.bf16.msra.mxu0 %v188
  %231 = vmatprep.subr.bf16.mxu0 0
  %232 = vmatpush1.bf16.msra.mxu0 %v187
  %233 = vmatprep.subr.bf16.mxu0 0
  %234 = vmatpush1.bf16.msra.mxu0 %v186
  %235 = vmatprep.subr.bf16.mxu0 0
  %236 = vmatpush1.bf16.msra.mxu0 %v185
  %237 = vmatprep.subr.bf16.mxu0 0
  %238 = vmatpush1.bf16.msra.mxu0 %v184
  %239 = vmatprep.subr.bf16.mxu0 0
  %240 = vmatpush1.bf16.msra.mxu0 %v183
  %241 = vmatprep.subr.bf16.mxu0 0
  %242 = vmatpush1.bf16.msra.mxu0 %v182
  %243 = vmatprep.subr.bf16.mxu0 0
  %244 = vmatpush1.bf16.msra.mxu0 %v181
  %245 = vmatprep.subr.bf16.mxu0 0
  %246 = vmatpush2.bf16.msra.mxu0 %v196
  %247 = vmatprep.subr.bf16.mxu0 0
  %248 = vmatpush2.bf16.msra.mxu0 %v195
  %249 = vmatprep.subr.bf16.mxu0 0
  %250 = vmatpush2.bf16.msra.mxu0 %v194
  %251 = vmatprep.subr.bf16.mxu0 0
  %252 = vmatpush2.bf16.msra.mxu0 %v193
  %253 = vmatprep.subr.bf16.mxu0 0
  %254 = vmatpush2.bf16.msra.mxu0 %v192
  %255 = vmatprep.subr.bf16.mxu0 0
  %256 = vmatpush2.bf16.msra.mxu0 %v191
  %257 = vmatprep.subr.bf16.mxu0 0
  %258 = vmatpush2.bf16.msra.mxu0 %v190
  %259 = vmatprep.subr.bf16.mxu0 0
  %260 = vmatpush2.bf16.msra.mxu0 %v189
  %261 = vmatprep.mubr.bf16.mxu0 %v80
  %262 = vmatmul.mubr.bf16.gmra.mxu0 %v79
  %v263 = vpop.f32.mrf.mxu0
  %v264 = vadd.f32 0.0, %v263
  %v265 = vpop.f32.mrf.mxu0
  %v266 = vpop.f32.mrf.mxu0
  %v267 = vpop.f32.mrf.mxu0
  %268 = vdwg.mxu0
  %269 = vmatprep.subr.bf16.mxu0 0
  %270 = vmatpush1.bf16.msra.mxu0 %v204
  %271 = vmatprep.subr.bf16.mxu0 0
  %272 = vmatpush1.bf16.msra.mxu0 %v203
  %273 = vmatprep.subr.bf16.mxu0 0
  %274 = vmatpush1.bf16.msra.mxu0 %v202
  %275 = vmatprep.subr.bf16.mxu0 0
  %276 = vmatpush1.bf16.msra.mxu0 %v201
  %277 = vmatprep.subr.bf16.mxu0 0
  %278 = vmatpush1.bf16.msra.mxu0 %v200
  %279 = vmatprep.subr.bf16.mxu0 0
  %280 = vmatpush1.bf16.msra.mxu0 %v199
  %281 = vmatprep.subr.bf16.mxu0 0
  %282 = vmatpush1.bf16.msra.mxu0 %v198
  %283 = vmatprep.subr.bf16.mxu0 0
  %284 = vmatpush1.bf16.msra.mxu0 %v197
  %285 = vmatprep.subr.bf16.mxu0 0
  %286 = vmatpush2.bf16.msra.mxu0 0
  %287 = vmatprep.subr.bf16.mxu0 0
  %288 = vmatpush2.bf16.msra.mxu0 0
  %289 = vmatprep.subr.bf16.mxu0 0
  %290 = vmatpush2.bf16.msra.mxu0 0
  %291 = vmatprep.subr.bf16.mxu0 0
  %292 = vmatpush2.bf16.msra.mxu0 0
  %293 = vmatprep.subr.bf16.mxu0 0
  %294 = vmatpush2.bf16.msra.mxu0 0
  %295 = vmatprep.subr.bf16.mxu0 0
  %296 = vmatpush2.bf16.msra.mxu0 0
  %297 = vmatprep.subr.bf16.mxu0 0
  %298 = vmatpush2.bf16.msra.mxu0 0
  %299 = vmatprep.subr.bf16.mxu0 0
  %300 = vmatpush2.bf16.msra.mxu0 0
  %301 = vmatprep.mubr.bf16.mxu0 0
  %302 = vmatmul.mubr.bf16.gmra.mxu0 %v81
  %v303 = vpop.f32.mrf.mxu0
  %v304 = vadd.f32 %v264, %v303
  %v305 = vpop.f32.mrf.mxu0
  %v306 = vpop.f32.mrf.mxu0
  %v307 = vpop.f32.mrf.mxu0
  %308 = vdwg.mxu0
  %v309 = vadd.f32 %v23, %v304
  %310 = vst [vmem:[#allocation2] sm:$0xff] %v309
  // Predicated region
  $region22: #{fwd.29} parent=0 // pred_check
    %p311 = pneg %p18
  $region23: #{fwd.29} parent=0 // pred_check_branch
    %313 = sbr.rel (%p311) target = $region25
  $region24: #{fwd.29} parent=0 // pred_region
    %v314 = vld [vmem:[#allocation2] sm:$0xff]
    %v315 = vld [vmem:[%s2] sm:$0x1]
    %v317 = vlaneseq
    %v318 = vshrl.u32 %v317, 7
    %v319 = vsub.s32 0, %v318
    %v320 = vrot.slane %v315, %v319
    %v322 = vmul.f32 %v314, %v320
    %v323 = vld [vmem:[%s3] sm:$0x1]
    %v325 = vlaneseq
    %v326 = vshrl.u32 %v325, 7
    %v327 = vsub.s32 0, %v326
    %v328 = vrot.slane %v323, %v327
    %v330 = vadd.f32 %v322, %v328
    %v331 = vmax.f32 %v330, 0.0
    %v332 = vpack.c.bf16 %v331, %v331
    %333 = vst [vmem:[%s4] sm:$0xf] %v332
  $region25: #{fwd.29} parent=0 // pred_fallthru
    _
  // Predicated region
  $region26: #{fwd.29} parent=0 // pred_check
    _
  $region27: #{fwd.29} parent=0 // pred_check_branch
    %335 = sbr.rel (0) target = $region29
  $region28: #{fwd.29} parent=0 // pred_region
    _
  $region29: #{fwd.29} parent=0 // pred_fallthru
    _
  // Predicated region
  $region30: #{fwd.29} parent=0 // pred_check
    _
  $region31: #{fwd.29} parent=0 // pred_check_branch
    %337 = sbr.rel (0) target = $region33
  $region32: #{fwd.29} parent=0 // pred_region
    _
  $region33: #{fwd.29} parent=0 // pred_fallthru
    _

// kernel: fwd.28
$region0: #{fwd.28}
  #allocation0 [shape = 'u32[]', space=smem, size = 0x4, offset = 0x4, fixed_abs, tag = 'smem constant byte address 0x4 - core index']
  #allocation1 [shape = 'u32[144,128]{1,0:T(1,128)}', space=vmem, size = 0x12000, scoped, tag = 'internal scratch']
  #allocation2 [shape = 'f32[8,128]{1,0:T(8,128)}', space=vmem, size = 0x1000, scoped, tag = 'scratch operand']
  %s0 = inlined_call_operand.vmem [shape: bf16[8,384], index: 0, kind: input, shape index: {}]
  %s1 = inlined_call_operand.vmem [shape: bf16[384,128], index: 1, kind: input, shape index: {}]
  %s2 = inlined_call_operand.vmem [shape: f32[1,128], index: 2, kind: input, shape index: {}]
  %s3 = inlined_call_operand.vmem [shape: f32[1,128], index: 3, kind: input, shape index: {}]
  %s4 = inlined_call_operand.vmem [shape: bf16[8,128], index: 4, kind: input, shape index: {}]
  %s5 = inlined_call_operand.vmem [shape: bf16[8,128], index: 5, kind: output, shape index: {}]
  %s6 = sld [smem:[#allocation0]]
  $region38: #{fwd.28} parent=0
    _
  %s8 = ssub.s32 1, %s6
  %s9 = scalar_select 0, %s8, %s6
  // Predicated region
  $region2: #{fwd.28} parent=0 // pred_check
    _
  $region3: #{fwd.28} parent=0 // pred_check_branch
    %11 = sbr.rel (0) target = $region5
  $region4: #{fwd.28} parent=0 // pred_region
    _
  $region5: #{fwd.28} parent=0 // pred_fallthru
    _
  // Predicated region
  $region6: #{fwd.28} parent=0 // pred_check
    _
  $region7: #{fwd.28} parent=0 // pred_check_branch
    %13 = sbr.rel (0) target = $region9
  $region8: #{fwd.28} parent=0 // pred_region
    _
  $region9: #{fwd.28} parent=0 // pred_fallthru
    _
  // Predicated region
  $region10: #{fwd.28} parent=0 // pred_check
    _
  $region11: #{fwd.28} parent=0 // pred_check_branch
    %15 = sbr.rel (0) target = $region13
  $region12: #{fwd.28} parent=0 // pred_region
    _
  $region13: #{fwd.28} parent=0 // pred_fallthru
    _
  // Predicated region
  $region14: #{fwd.28} parent=0 // pred_check
    _
  $region15: #{fwd.28} parent=0 // pred_check_branch
    %17 = sbr.rel (0) target = $region17
  $region16: #{fwd.28} parent=0 // pred_region
    _
  $region17: #{fwd.28} parent=0 // pred_fallthru
    _
  // Predicated region
  $region18: #{fwd.28} parent=0 // pred_check
    _
  $region19: #{fwd.28} parent=0 // pred_check_branch
    %19 = sbr.rel (0) target = $region21
  $region20: #{fwd.28} parent=0 // pred_region
    _
  $region21: #{fwd.28} parent=0 // pred_fallthru
    _
  %p21 = scmp.eq.s32.totalorder 0, 0
  // Predicated region
  $region22: #{fwd.28} parent=0 // pred_check
    %p22 = pneg %p21
  $region23: #{fwd.28} parent=0 // pred_check_branch
    %24 = sbr.rel (%p22) target = $region25
  $region24: #{fwd.28} parent=0 // pred_region
    %25 = vst [vmem:[#allocation2] sm:$0xff] 0.0
  $region25: #{fwd.28} parent=0 // pred_fallthru
    _
  %v26 = vld [vmem:[#allocation2] sm:$0xff]
  %v27 = vld [vmem:[%s0] sm:$0xff]
  %v28 = vld [vmem:[%s0 + $0x8] sm:$0xf]
  %v29 = vld [vmem:[%s1] sm:$0xf]
  %v30 = vld [vmem:[%s1 + $0x4] sm:$0xf]
  %v31 = vld [vmem:[%s1 + $0x8] sm:$0xf]
  %v32 = vld [vmem:[%s1 + $0xc] sm:$0xf]
  %v33 = vld [vmem:[%s1 + $0x10] sm:$0xf]
  %v34 = vld [vmem:[%s1 + $0x14] sm:$0xf]
  %v35 = vld [vmem:[%s1 + $0x18] sm:$0xf]
  %v36 = vld [vmem:[%s1 + $0x1c] sm:$0xf]
  %v37 = vld [vmem:[%s1 + $0x20] sm:$0xf]
  %v38 = vld [vmem:[%s1 + $0x24] sm:$0xf]
  %v39 = vld [vmem:[%s1 + $0x28] sm:$0xf]
  %v40 = vld [vmem:[%s1 + $0x2c] sm:$0xf]
  %v41 = vld [vmem:[%s1 + $0x30] sm:$0xf]
  %v42 = vld [vmem:[%s1 + $0x34] sm:$0xf]
  %v43 = vld [vmem:[%s1 + $0x38] sm:$0xf]
  %v44 = vld [vmem:[%s1 + $0x3c] sm:$0xf]
  %v45 = vld [vmem:[%s1 + $0x40] sm:$0xf]
  %v46 = vld [vmem:[%s1 + $0x44] sm:$0xf]
  %v47 = vld [vmem:[%s1 + $0x48] sm:$0xf]
  %v48 = vld [vmem:[%s1 + $0x4c] sm:$0xf]
  %v49 = vld [vmem:[%s1 + $0x50] sm:$0xf]
  %v50 = vld [vmem:[%s1 + $0x54] sm:$0xf]
  %v51 = vld [vmem:[%s1 + $0x58] sm:$0xf]
  %v52 = vld [vmem:[%s1 + $0x5c] sm:$0xf]
  %v53 = vld [vmem:[%s1 + $0x60] sm:$0xf]
  %v54 = vld [vmem:[%s1 + $0x64] sm:$0xf]
  %v55 = vld [vmem:[%s1 + $0x68] sm:$0xf]
  %v56 = vld [vmem:[%s1 + $0x6c] sm:$0xf]
  %v57 = vld [vmem:[%s1 + $0x70] sm:$0xf]
  %v58 = vld [vmem:[%s1 + $0x74] sm:$0xf]
  %v59 = vld [vmem:[%s1 + $0x78] sm:$0xf]
  %v60 = vld [vmem:[%s1 + $0x7c] sm:$0xf]
  %v61 = vld [vmem:[%s1 + $0x80] sm:$0xf]
  %v62 = vld [vmem:[%s1 + $0x84] sm:$0xf]
  %v63 = vld [vmem:[%s1 + $0x88] sm:$0xf]
  %v64 = vld [vmem:[%s1 + $0x8c] sm:$0xf]
  %v65 = vld [vmem:[%s1 + $0x90] sm:$0xf]
  %v66 = vld [vmem:[%s1 + $0x94] sm:$0xf]
  %v67 = vld [vmem:[%s1 + $0x98] sm:$0xf]
  %v68 = vld [vmem:[%s1 + $0x9c] sm:$0xf]
  %v69 = vld [vmem:[%s1 + $0xa0] sm:$0xf]
  %v70 = vld [vmem:[%s1 + $0xa4] sm:$0xf]
  %v71 = vld [vmem:[%s1 + $0xa8] sm:$0xf]
  %v72 = vld [vmem:[%s1 + $0xac] sm:$0xf]
  %v73 = vld [vmem:[%s1 + $0xb0] sm:$0xf]
  %v74 = vld [vmem:[%s1 + $0xb4] sm:$0xf]
  %v75 = vld [vmem:[%s1 + $0xb8] sm:$0xf]
  %v76 = vld [vmem:[%s1 + $0xbc] sm:$0xf]
  %v79 = vunpack.c.l.b16 %v27
  %v80 = vunpack.c.h.b16 %v27
  %v81 = vunpack.c.l.b16 %v28
  %v82 = vpack.c.b16 %v79, %v79
  %v83 = vpack.c.b16 %v80, %v80
  %v84 = vpack.c.b16 %v81, %v81
  %v136 = vunpack.c.l.b16 %v29
  %v137 = vunpack.c.l.b16 %v30
  %v138 = vunpack.c.l.b16 %v31
  %v139 = vunpack.c.l.b16 %v32
  %v140 = vunpack.c.l.b16 %v33
  %v141 = vunpack.c.l.b16 %v34
  %v142 = vunpack.c.l.b16 %v35
  %v143 = vunpack.c.l.b16 %v36
  %v144 = vunpack.c.l.b16 %v37
  %v145 = vunpack.c.l.b16 %v38
  %v146 = vunpack.c.l.b16 %v39
  %v147 = vunpack.c.l.b16 %v40
  %v148 = vunpack.c.l.b16 %v41
  %v149 = vunpack.c.l.b16 %v42
  %v150 = vunpack.c.l.b16 %v43
  %v151 = vunpack.c.l.b16 %v44
  %v152 = vunpack.c.l.b16 %v45
  %v153 = vunpack.c.l.b16 %v46
  %v154 = vunpack.c.l.b16 %v47
  %v155 = vunpack.c.l.b16 %v48
  %v156 = vunpack.c.l.b16 %v49
  %v157 = vunpack.c.l.b16 %v50
  %v158 = vunpack.c.l.b16 %v51
  %v159 = vunpack.c.l.b16 %v52
  %v160 = vunpack.c.l.b16 %v53
  %v161 = vunpack.c.l.b16 %v54
  %v162 = vunpack.c.l.b16 %v55
  %v163 = vunpack.c.l.b16 %v56
  %v164 = vunpack.c.l.b16 %v57
  %v165 = vunpack.c.l.b16 %v58
  %v166 = vunpack.c.l.b16 %v59
  %v167 = vunpack.c.l.b16 %v60
  %v168 = vunpack.c.l.b16 %v61
  %v169 = vunpack.c.l.b16 %v62
  %v170 = vunpack.c.l.b16 %v63
  %v171 = vunpack.c.l.b16 %v64
  %v172 = vunpack.c.l.b16 %v65
  %v173 = vunpack.c.l.b16 %v66
  %v174 = vunpack.c.l.b16 %v67
  %v175 = vunpack.c.l.b16 %v68
  %v176 = vunpack.c.l.b16 %v69
  %v177 = vunpack.c.l.b16 %v70
  %v178 = vunpack.c.l.b16 %v71
  %v179 = vunpack.c.l.b16 %v72
  %v180 = vunpack.c.l.b16 %v73
  %v181 = vunpack.c.l.b16 %v74
  %v182 = vunpack.c.l.b16 %v75
  %v183 = vunpack.c.l.b16 %v76
  %v184 = vpack.c.b16 %v137, %v136
  %v185 = vpack.c.b16 %v139, %v138
  %v186 = vpack.c.b16 %v141, %v140
  %v187 = vpack.c.b16 %v143, %v142
  %v188 = vpack.c.b16 %v145, %v144
  %v189 = vpack.c.b16 %v147, %v146
  %v190 = vpack.c.b16 %v149, %v148
  %v191 = vpack.c.b16 %v151, %v150
  %v192 = vpack.c.b16 %v153, %v152
  %v193 = vpack.c.b16 %v155, %v154
  %v194 = vpack.c.b16 %v157, %v156
  %v195 = vpack.c.b16 %v159, %v158
  %v196 = vpack.c.b16 %v161, %v160
  %v197 = vpack.c.b16 %v163, %v162
  %v198 = vpack.c.b16 %v165, %v164
  %v199 = vpack.c.b16 %v167, %v166
  %v200 = vpack.c.b16 %v169, %v168
  %v201 = vpack.c.b16 %v171, %v170
  %v202 = vpack.c.b16 %v173, %v172
  %v203 = vpack.c.b16 %v175, %v174
  %v204 = vpack.c.b16 %v177, %v176
  %v205 = vpack.c.b16 %v179, %v178
  %v206 = vpack.c.b16 %v181, %v180
  %v207 = vpack.c.b16 %v183, %v182
  %232 = vmatprep.subr.bf16.mxu0 0
  %233 = vmatpush1.bf16.msra.mxu0 %v191
  %234 = vmatprep.subr.bf16.mxu0 0
  %235 = vmatpush1.bf16.msra.mxu0 %v190
  %236 = vmatprep.subr.bf16.mxu0 0
  %237 = vmatpush1.bf16.msra.mxu0 %v189
  %238 = vmatprep.subr.bf16.mxu0 0
  %239 = vmatpush1.bf16.msra.mxu0 %v188
  %240 = vmatprep.subr.bf16.mxu0 0
  %241 = vmatpush1.bf16.msra.mxu0 %v187
  %242 = vmatprep.subr.bf16.mxu0 0
  %243 = vmatpush1.bf16.msra.mxu0 %v186
  %244 = vmatprep.subr.bf16.mxu0 0
  %245 = vmatpush1.bf16.msra.mxu0 %v185
  %246 = vmatprep.subr.bf16.mxu0 0
  %247 = vmatpush1.bf16.msra.mxu0 %v184
  %248 = vmatprep.subr.bf16.mxu0 0
  %249 = vmatpush2.bf16.msra.mxu0 %v199
  %250 = vmatprep.subr.bf16.mxu0 0
  %251 = vmatpush2.bf16.msra.mxu0 %v198
  %252 = vmatprep.subr.bf16.mxu0 0
  %253 = vmatpush2.bf16.msra.mxu0 %v197
  %254 = vmatprep.subr.bf16.mxu0 0
  %255 = vmatpush2.bf16.msra.mxu0 %v196
  %256 = vmatprep.subr.bf16.mxu0 0
  %257 = vmatpush2.bf16.msra.mxu0 %v195
  %258 = vmatprep.subr.bf16.mxu0 0
  %259 = vmatpush2.bf16.msra.mxu0 %v194
  %260 = vmatprep.subr.bf16.mxu0 0
  %261 = vmatpush2.bf16.msra.mxu0 %v193
  %262 = vmatprep.subr.bf16.mxu0 0
  %263 = vmatpush2.bf16.msra.mxu0 %v192
  %264 = vmatprep.mubr.bf16.mxu0 %v83
  %265 = vmatmul.mubr.bf16.gmra.mxu0 %v82
  %v266 = vpop.f32.mrf.mxu0
  %v267 = vadd.f32 0.0, %v266
  %v268 = vpop.f32.mrf.mxu0
  %v269 = vpop.f32.mrf.mxu0
  %v270 = vpop.f32.mrf.mxu0
  %271 = vdwg.mxu0
  %272 = vmatprep.subr.bf16.mxu0 0
  %273 = vmatpush1.bf16.msra.mxu0 %v207
  %274 = vmatprep.subr.bf16.mxu0 0
  %275 = vmatpush1.bf16.msra.mxu0 %v206
  %276 = vmatprep.subr.bf16.mxu0 0
  %277 = vmatpush1.bf16.msra.mxu0 %v205
  %278 = vmatprep.subr.bf16.mxu0 0
  %279 = vmatpush1.bf16.msra.mxu0 %v204
  %280 = vmatprep.subr.bf16.mxu0 0
  %281 = vmatpush1.bf16.msra.mxu0 %v203
  %282 = vmatprep.subr.bf16.mxu0 0
  %283 = vmatpush1.bf16.msra.mxu0 %v202
  %284 = vmatprep.subr.bf16.mxu0 0
  %285 = vmatpush1.bf16.msra.mxu0 %v201
  %286 = vmatprep.subr.bf16.mxu0 0
  %287 = vmatpush1.bf16.msra.mxu0 %v200
  %288 = vmatprep.subr.bf16.mxu0 0
  %289 = vmatpush2.bf16.msra.mxu0 0
  %290 = vmatprep.subr.bf16.mxu0 0
  %291 = vmatpush2.bf16.msra.mxu0 0
  %292 = vmatprep.subr.bf16.mxu0 0
  %293 = vmatpush2.bf16.msra.mxu0 0
  %294 = vmatprep.subr.bf16.mxu0 0
  %295 = vmatpush2.bf16.msra.mxu0 0
  %296 = vmatprep.subr.bf16.mxu0 0
  %297 = vmatpush2.bf16.msra.mxu0 0
  %298 = vmatprep.subr.bf16.mxu0 0
  %299 = vmatpush2.bf16.msra.mxu0 0
  %300 = vmatprep.subr.bf16.mxu0 0
  %301 = vmatpush2.bf16.msra.mxu0 0
  %302 = vmatprep.subr.bf16.mxu0 0
  %303 = vmatpush2.bf16.msra.mxu0 0
  %304 = vmatprep.mubr.bf16.mxu0 0
  %305 = vmatmul.mubr.bf16.gmra.mxu0 %v84
  %v306 = vpop.f32.mrf.mxu0
  %v307 = vadd.f32 %v267, %v306
  %v308 = vpop.f32.mrf.mxu0
  %v309 = vpop.f32.mrf.mxu0
  %v310 = vpop.f32.mrf.mxu0
  %311 = vdwg.mxu0
  %v312 = vadd.f32 %v26, %v307
  %313 = vst [vmem:[#allocation2] sm:$0xff] %v312
  // Predicated region
  $region26: #{fwd.28} parent=0 // pred_check
    %p314 = pneg %p21
  $region27: #{fwd.28} parent=0 // pred_check_branch
    %316 = sbr.rel (%p314) target = $region29
  $region28: #{fwd.28} parent=0 // pred_region
    %v317 = vld [vmem:[#allocation2] sm:$0xff]
    %v318 = vld [vmem:[%s2] sm:$0x1]
    %v320 = vlaneseq
    %v321 = vshrl.u32 %v320, 7
    %v322 = vsub.s32 0, %v321
    %v323 = vrot.slane %v318, %v322
    %v325 = vmul.f32 %v317, %v323
    %v326 = vld [vmem:[%s3] sm:$0x1]
    %v328 = vlaneseq
    %v329 = vshrl.u32 %v328, 7
    %v330 = vsub.s32 0, %v329
    %v331 = vrot.slane %v326, %v330
    %v333 = vadd.f32 %v325, %v331
    %v334 = vld [vmem:[%s4] sm:$0xf]
    %v335 = vunpack.c.l.bf16 %v334
    %v336 = vadd.f32 %v333, %v335
    %v337 = vmax.f32 %v336, 0.0
    %v338 = vpack.c.bf16 %v337, %v337
    %339 = vst [vmem:[%s5] sm:$0xf] %v338
  $region29: #{fwd.28} parent=0 // pred_fallthru
    _
  // Predicated region
  $region30: #{fwd.28} parent=0 // pred_check
    _
  $region31: #{fwd.28} parent=0 // pred_check_branch
    %341 = sbr.rel (0) target = $region33
  $region32: #{fwd.28} parent=0 // pred_region
    _
  $region33: #{fwd.28} parent=0 // pred_fallthru
    _
  // Predicated region
  $region34: #{fwd.28} parent=0 // pred_check
    _
  $region35: #{fwd.28} parent=0 // pred_check_branch
    %343 = sbr.rel (0) target = $region37
  $region36: #{fwd.28} parent=0 // pred_region
    _
  $region37: #{fwd.28} parent=0 // pred_fallthru
    _

// kernel: fwd.32
$region0: #{fwd.32}
  #allocation0 [shape = 'u32[]', space=smem, size = 0x4, offset = 0x4, fixed_abs, tag = 'smem constant byte address 0x4 - core index']
  #allocation1 [shape = 'u32[144,128]{1,0:T(1,128)}', space=vmem, size = 0x12000, scoped, tag = 'internal scratch']
  #allocation2 [shape = 'f32[8,256]{1,0:T(8,128)}', space=vmem, size = 0x2000, scoped, tag = 'scratch operand']
  %s0 = inlined_call_operand.vmem [shape: bf16[8,128], index: 0, kind: input, shape index: {}]
  %s1 = inlined_call_operand.vmem [shape: bf16[128,256], index: 1, kind: input, shape index: {}]
  %s2 = inlined_call_operand.vmem [shape: f32[1,256], index: 2, kind: input, shape index: {}]
  %s3 = inlined_call_operand.vmem [shape: f32[1,256], index: 3, kind: input, shape index: {}]
  %s4 = inlined_call_operand.vmem [shape: bf16[8,256], index: 4, kind: output, shape index: {}]
  %s5 = sld [smem:[#allocation0]]
  $region34: #{fwd.32} parent=0
    _
  %s7 = ssub.s32 1, %s5
  %s8 = scalar_select 0, %s7, %s5
  // Predicated region
  $region2: #{fwd.32} parent=0 // pred_check
    _
  $region3: #{fwd.32} parent=0 // pred_check_branch
    %10 = sbr.rel (0) target = $region5
  $region4: #{fwd.32} parent=0 // pred_region
    _
  $region5: #{fwd.32} parent=0 // pred_fallthru
    _
  // Predicated region
  $region6: #{fwd.32} parent=0 // pred_check
    _
  $region7: #{fwd.32} parent=0 // pred_check_branch
    %12 = sbr.rel (0) target = $region9
  $region8: #{fwd.32} parent=0 // pred_region
    _
  $region9: #{fwd.32} parent=0 // pred_fallthru
    _
  // Predicated region
  $region10: #{fwd.32} parent=0 // pred_check
    _
  $region11: #{fwd.32} parent=0 // pred_check_branch
    %14 = sbr.rel (0) target = $region13
  $region12: #{fwd.32} parent=0 // pred_region
    _
  $region13: #{fwd.32} parent=0 // pred_fallthru
    _
  // Predicated region
  $region14: #{fwd.32} parent=0 // pred_check
    _
  $region15: #{fwd.32} parent=0 // pred_check_branch
    %16 = sbr.rel (0) target = $region17
  $region16: #{fwd.32} parent=0 // pred_region
    _
  $region17: #{fwd.32} parent=0 // pred_fallthru
    _
  %p18 = scmp.eq.s32.totalorder 0, 0
  // Predicated region
  $region18: #{fwd.32} parent=0 // pred_check
    %p19 = pneg %p18
  $region19: #{fwd.32} parent=0 // pred_check_branch
    %21 = sbr.rel (%p19) target = $region21
  $region20: #{fwd.32} parent=0 // pred_region
    %22 = vst [vmem:[#allocation2] sm:$0xff] 0.0
    %23 = vst [vmem:[#allocation2 + $0x8] sm:$0xff] 0.0
  $region21: #{fwd.32} parent=0 // pred_fallthru
    _
  %v24 = vld [vmem:[#allocation2] sm:$0xff]
  %v25 = vld [vmem:[#allocation2 + $0x8] sm:$0xff]
  %v26 = vld [vmem:[%s0] sm:$0xf]
  %v27 = vld [vmem:[%s1] sm:$0xff]
  %v28 = vld [vmem:[%s1 + $0x8] sm:$0xff]
  %v29 = vld [vmem:[%s1 + $0x10] sm:$0xff]
  %v30 = vld [vmem:[%s1 + $0x18] sm:$0xff]
  %v31 = vld [vmem:[%s1 + $0x20] sm:$0xff]
  %v32 = vld [vmem:[%s1 + $0x28] sm:$0xff]
  %v33 = vld [vmem:[%s1 + $0x30] sm:$0xff]
  %v34 = vld [vmem:[%s1 + $0x38] sm:$0xff]
  %v35 = vld [vmem:[%s1 + $0x40] sm:$0xff]
  %v36 = vld [vmem:[%s1 + $0x48] sm:$0xff]
  %v37 = vld [vmem:[%s1 + $0x50] sm:$0xff]
  %v38 = vld [vmem:[%s1 + $0x58] sm:$0xff]
  %v39 = vld [vmem:[%s1 + $0x60] sm:$0xff]
  %v40 = vld [vmem:[%s1 + $0x68] sm:$0xff]
  %v41 = vld [vmem:[%s1 + $0x70] sm:$0xff]
  %v42 = vld [vmem:[%s1 + $0x78] sm:$0xff]
  %v59 = vunpack.c.l.b16 %v27
  %v60 = vunpack.c.h.b16 %v27
  %v61 = vunpack.c.l.b16 %v28
  %v62 = vunpack.c.h.b16 %v28
  %v63 = vunpack.c.l.b16 %v29
  %v64 = vunpack.c.h.b16 %v29
  %v65 = vunpack.c.l.b16 %v30
  %v66 = vunpack.c.h.b16 %v30
  %v67 = vunpack.c.l.b16 %v31
  %v68 = vunpack.c.h.b16 %v31
  %v69 = vunpack.c.l.b16 %v32
  %v70 = vunpack.c.h.b16 %v32
  %v71 = vunpack.c.l.b16 %v33
  %v72 = vunpack.c.h.b16 %v33
  %v73 = vunpack.c.l.b16 %v34
  %v74 = vunpack.c.h.b16 %v34
  %v75 = vunpack.c.l.b16 %v35
  %v76 = vunpack.c.h.b16 %v35
  %v77 = vunpack.c.l.b16 %v36
  %v78 = vunpack.c.h.b16 %v36
  %v79 = vunpack.c.l.b16 %v37
  %v80 = vunpack.c.h.b16 %v37
  %v81 = vunpack.c.l.b16 %v38
  %v82 = vunpack.c.h.b16 %v38
  %v83 = vunpack.c.l.b16 %v39
  %v84 = vunpack.c.h.b16 %v39
  %v85 = vunpack.c.l.b16 %v40
  %v86 = vunpack.c.h.b16 %v40
  %v87 = vunpack.c.l.b16 %v41
  %v88 = vunpack.c.h.b16 %v41
  %v89 = vunpack.c.l.b16 %v42
  %v90 = vunpack.c.h.b16 %v42
  %v91 = vpack.c.b16 %v61, %v59
  %v92 = vpack.c.b16 %v62, %v60
  %v93 = vpack.c.b16 %v65, %v63
  %v94 = vpack.c.b16 %v66, %v64
  %v95 = vpack.c.b16 %v69, %v67
  %v96 = vpack.c.b16 %v70, %v68
  %v97 = vpack.c.b16 %v73, %v71
  %v98 = vpack.c.b16 %v74, %v72
  %v99 = vpack.c.b16 %v77, %v75
  %v100 = vpack.c.b16 %v78, %v76
  %v101 = vpack.c.b16 %v81, %v79
  %v102 = vpack.c.b16 %v82, %v80
  %v103 = vpack.c.b16 %v85, %v83
  %v104 = vpack.c.b16 %v86, %v84
  %v105 = vpack.c.b16 %v89, %v87
  %v106 = vpack.c.b16 %v90, %v88
  %123 = vmatprep.subr.bf16.mxu0 %v106
  %124 = vmatpush1.bf16.msra.mxu0 %v105
  %125 = vmatprep.subr.bf16.mxu0 %v104
  %126 = vmatpush1.bf16.msra.mxu0 %v103
  %127 = vmatprep.subr.bf16.mxu0 %v102
  %128 = vmatpush1.bf16.msra.mxu0 %v101
  %129 = vmatprep.subr.bf16.mxu0 %v100
  %130 = vmatpush1.bf16.msra.mxu0 %v99
  %131 = vmatprep.subr.bf16.mxu0 %v98
  %132 = vmatpush1.bf16.msra.mxu0 %v97
  %133 = vmatprep.subr.bf16.mxu0 %v96
  %134 = vmatpush1.bf16.msra.mxu0 %v95
  %135 = vmatprep.subr.bf16.mxu0 %v94
  %136 = vmatpush1.bf16.msra.mxu0 %v93
  %137 = vmatprep.subr.bf16.mxu0 %v92
  %138 = vmatpush1.bf16.msra.mxu0 %v91
  %139 = vmatprep.subr.bf16.mxu0 0
  %140 = vmatpush2.bf16.msra.mxu0 0
  %141 = vmatprep.subr.bf16.mxu0 0
  %142 = vmatpush2.bf16.msra.mxu0 0
  %143 = vmatprep.subr.bf16.mxu0 0
  %144 = vmatpush2.bf16.msra.mxu0 0
  %145 = vmatprep.subr.bf16.mxu0 0
  %146 = vmatpush2.bf16.msra.mxu0 0
  %147 = vmatprep.subr.bf16.mxu0 0
  %148 = vmatpush2.bf16.msra.mxu0 0
  %149 = vmatprep.subr.bf16.mxu0 0
  %150 = vmatpush2.bf16.msra.mxu0 0
  %151 = vmatprep.subr.bf16.mxu0 0
  %152 = vmatpush2.bf16.msra.mxu0 0
  %153 = vmatprep.subr.bf16.mxu0 0
  %154 = vmatpush2.bf16.msra.mxu0 0
  %155 = vmatprep.mubr.bf16.mxu0 0
  %156 = vmatmul.mubr.bf16.gmra.mxu0 %v26
  %v157 = vpop.f32.mrf.mxu0
  %v158 = vadd.f32 0.0, %v157
  %v159 = vpop.f32.mrf.mxu0
  %v160 = vadd.f32 0.0, %v159
  %v161 = vpop.f32.mrf.mxu0
  %v162 = vpop.f32.mrf.mxu0
  %163 = vdwg.mxu0
  %v164 = vadd.f32 %v24, %v158
  %v165 = vadd.f32 %v25, %v160
  %166 = vst [vmem:[#allocation2] sm:$0xff] %v164
  %167 = vst [vmem:[#allocation2 + $0x8] sm:$0xff] %v165
  // Predicated region
  $region22: #{fwd.32} parent=0 // pred_check
    %p168 = pneg %p18
  $region23: #{fwd.32} parent=0 // pred_check_branch
    %170 = sbr.rel (%p168) target = $region25
  $region24: #{fwd.32} parent=0 // pred_region
    %v171 = vld [vmem:[#allocation2] sm:$0xff]
    %v172 = vld [vmem:[#allocation2 + $0x8] sm:$0xff]
    %v173 = vld [vmem:[%s2] sm:$0x3]
    %v175 = vlaneseq
    %v176 = vshrl.u32 %v175, 7
    %v177 = vsub.s32 0, %v176
    %v178 = vrot.slane %v173, %v177
    %v179 = vlaneseq
    %v180 = vshrl.u32 %v179, 7
    %v181 = vsub.s32 1, %v180
    %v182 = vrot.slane %v173, %v181
    %v185 = vmul.f32 %v171, %v178
    %v186 = vmul.f32 %v172, %v182
    %v187 = vld [vmem:[%s3] sm:$0x3]
    %v189 = vlaneseq
    %v190 = vshrl.u32 %v189, 7
    %v191 = vsub.s32 0, %v190
    %v192 = vrot.slane %v187, %v191
    %v193 = vlaneseq
    %v194 = vshrl.u32 %v193, 7
    %v195 = vsub.s32 1, %v194
    %v196 = vrot.slane %v187, %v195
    %v199 = vadd.f32 %v185, %v192
    %v200 = vadd.f32 %v186, %v196
    %v201 = vpack.c.bf16 %v199, %v199
    %v202 = vpack.c.bf16 %v200, %v200
    %v205 = vunpack.c.l.b16 %v201
    %v206 = vunpack.c.l.b16 %v202
    %v207 = vpack.c.b16 %v206, %v205
    %209 = vst [vmem:[%s4] sm:$0xff] %v207
  $region25: #{fwd.32} parent=0 // pred_fallthru
    _
  // Predicated region
  $region26: #{fwd.32} parent=0 // pred_check
    _
  $region27: #{fwd.32} parent=0 // pred_check_branch
    %211 = sbr.rel (0) target = $region29
  $region28: #{fwd.32} parent=0 // pred_region
    _
  $region29: #{fwd.32} parent=0 // pred_fallthru
    _
  // Predicated region
  $region30: #{fwd.32} parent=0 // pred_check
    _
  $region31: #{fwd.32} parent=0 // pred_check_branch
    %213 = sbr.rel (0) target = $region33
  $region32: #{fwd.32} parent=0 // pred_region
    _
  $region33: #{fwd.32} parent=0 // pred_fallthru
    _

// kernel: fwd.31
$region0: #{fwd.31}
  #allocation0 [shape = 'u32[]', space=smem, size = 0x4, offset = 0x4, fixed_abs, tag = 'smem constant byte address 0x4 - core index']
  #allocation1 [shape = 'u32[144,128]{1,0:T(1,128)}', space=vmem, size = 0x12000, scoped, tag = 'internal scratch']
  #allocation2 [shape = 'f32[8,256]{1,0:T(8,128)}', space=vmem, size = 0x2000, scoped, tag = 'scratch operand']
  %s0 = inlined_call_operand.vmem [shape: bf16[8,384], index: 0, kind: input, shape index: {}]
  %s1 = inlined_call_operand.vmem [shape: bf16[384,256], index: 1, kind: input, shape index: {}]
  %s2 = inlined_call_operand.vmem [shape: f32[1,256], index: 2, kind: input, shape index: {}]
  %s3 = inlined_call_operand.vmem [shape: f32[1,256], index: 3, kind: input, shape index: {}]
  %s4 = inlined_call_operand.vmem [shape: bf16[8,256], index: 4, kind: output, shape index: {}]
  %s5 = sld [smem:[#allocation0]]
  $region34: #{fwd.31} parent=0
    _
  %s7 = ssub.s32 1, %s5
  %s8 = scalar_select 0, %s7, %s5
  // Predicated region
  $region2: #{fwd.31} parent=0 // pred_check
    _
  $region3: #{fwd.31} parent=0 // pred_check_branch
    %10 = sbr.rel (0) target = $region5
  $region4: #{fwd.31} parent=0 // pred_region
    _
  $region5: #{fwd.31} parent=0 // pred_fallthru
    _
  // Predicated region
  $region6: #{fwd.31} parent=0 // pred_check
    _
  $region7: #{fwd.31} parent=0 // pred_check_branch
    %12 = sbr.rel (0) target = $region9
  $region8: #{fwd.31} parent=0 // pred_region
    _
  $region9: #{fwd.31} parent=0 // pred_fallthru
    _
  // Predicated region
  $region10: #{fwd.31} parent=0 // pred_check
    _
  $region11: #{fwd.31} parent=0 // pred_check_branch
    %14 = sbr.rel (0) target = $region13
  $region12: #{fwd.31} parent=0 // pred_region
    _
  $region13: #{fwd.31} parent=0 // pred_fallthru
    _
  // Predicated region
  $region14: #{fwd.31} parent=0 // pred_check
    _
  $region15: #{fwd.31} parent=0 // pred_check_branch
    %16 = sbr.rel (0) target = $region17
  $region16: #{fwd.31} parent=0 // pred_region
    _
  $region17: #{fwd.31} parent=0 // pred_fallthru
    _
  %p18 = scmp.eq.s32.totalorder 0, 0
  // Predicated region
  $region18: #{fwd.31} parent=0 // pred_check
    %p19 = pneg %p18
  $region19: #{fwd.31} parent=0 // pred_check_branch
    %21 = sbr.rel (%p19) target = $region21
  $region20: #{fwd.31} parent=0 // pred_region
    %22 = vst [vmem:[#allocation2] sm:$0xff] 0.0
    %23 = vst [vmem:[#allocation2 + $0x8] sm:$0xff] 0.0
  $region21: #{fwd.31} parent=0 // pred_fallthru
    _
  %v24 = vld [vmem:[#allocation2] sm:$0xff]
  %v25 = vld [vmem:[#allocation2 + $0x8] sm:$0xff]
  %v26 = vld [vmem:[%s0] sm:$0xff]
  %v27 = vld [vmem:[%s0 + $0x8] sm:$0xf]
  %v28 = vld [vmem:[%s1] sm:$0xff]
  %v29 = vld [vmem:[%s1 + $0x8] sm:$0xff]
  %v30 = vld [vmem:[%s1 + $0x10] sm:$0xff]
  %v31 = vld [vmem:[%s1 + $0x18] sm:$0xff]
  %v32 = vld [vmem:[%s1 + $0x20] sm:$0xff]
  %v33 = vld [vmem:[%s1 + $0x28] sm:$0xff]
  %v34 = vld [vmem:[%s1 + $0x30] sm:$0xff]
  %v35 = vld [vmem:[%s1 + $0x38] sm:$0xff]
  %v36 = vld [vmem:[%s1 + $0x40] sm:$0xff]
  %v37 = vld [vmem:[%s1 + $0x48] sm:$0xff]
  %v38 = vld [vmem:[%s1 + $0x50] sm:$0xff]
  %v39 = vld [vmem:[%s1 + $0x58] sm:$0xff]
  %v40 = vld [vmem:[%s1 + $0x60] sm:$0xff]
  %v41 = vld [vmem:[%s1 + $0x68] sm:$0xff]
  %v42 = vld [vmem:[%s1 + $0x70] sm:$0xff]
  %v43 = vld [vmem:[%s1 + $0x78] sm:$0xff]
  %v44 = vld [vmem:[%s1 + $0x80] sm:$0xff]
  %v45 = vld [vmem:[%s1 + $0x88] sm:$0xff]
  %v46 = vld [vmem:[%s1 + $0x90] sm:$0xff]
  %v47 = vld [vmem:[%s1 + $0x98] sm:$0xff]
  %v48 = vld [vmem:[%s1 + $0xa0] sm:$0xff]
  %v49 = vld [vmem:[%s1 + $0xa8] sm:$0xff]
  %v50 = vld [vmem:[%s1 + $0xb0] sm:$0xff]
  %v51 = vld [vmem:[%s1 + $0xb8] sm:$0xff]
  %v52 = vld [vmem:[%s1 + $0xc0] sm:$0xff]
  %v53 = vld [vmem:[%s1 + $0xc8] sm:$0xff]
  %v54 = vld [vmem:[%s1 + $0xd0] sm:$0xff]
  %v55 = vld [vmem:[%s1 + $0xd8] sm:$0xff]
  %v56 = vld [vmem:[%s1 + $0xe0] sm:$0xff]
  %v57 = vld [vmem:[%s1 + $0xe8] sm:$0xff]
  %v58 = vld [vmem:[%s1 + $0xf0] sm:$0xff]
  %v59 = vld [vmem:[%s1 + $0xf8] sm:$0xff]
  %v60 = vld [vmem:[%s1 + $0x100] sm:$0xff]
  %v61 = vld [vmem:[%s1 + $0x108] sm:$0xff]
  %v62 = vld [vmem:[%s1 + $0x110] sm:$0xff]
  %v63 = vld [vmem:[%s1 + $0x118] sm:$0xff]
  %v64 = vld [vmem:[%s1 + $0x120] sm:$0xff]
  %v65 = vld [vmem:[%s1 + $0x128] sm:$0xff]
  %v66 = vld [vmem:[%s1 + $0x130] sm:$0xff]
  %v67 = vld [vmem:[%s1 + $0x138] sm:$0xff]
  %v68 = vld [vmem:[%s1 + $0x140] sm:$0xff]
  %v69 = vld [vmem:[%s1 + $0x148] sm:$0xff]
  %v70 = vld [vmem:[%s1 + $0x150] sm:$0xff]
  %v71 = vld [vmem:[%s1 + $0x158] sm:$0xff]
  %v72 = vld [vmem:[%s1 + $0x160] sm:$0xff]
  %v73 = vld [vmem:[%s1 + $0x168] sm:$0xff]
  %v74 = vld [vmem:[%s1 + $0x170] sm:$0xff]
  %v75 = vld [vmem:[%s1 + $0x178] sm:$0xff]
  %v78 = vunpack.c.l.b16 %v26
  %v79 = vunpack.c.h.b16 %v26
  %v80 = vunpack.c.l.b16 %v27
  %v81 = vpack.c.b16 %v78, %v78
  %v82 = vpack.c.b16 %v79, %v79
  %v83 = vpack.c.b16 %v80, %v80
  %v135 = vunpack.c.l.b16 %v28
  %v136 = vunpack.c.h.b16 %v28
  %v137 = vunpack.c.l.b16 %v29
  %v138 = vunpack.c.h.b16 %v29
  %v139 = vunpack.c.l.b16 %v30
  %v140 = vunpack.c.h.b16 %v30
  %v141 = vunpack.c.l.b16 %v31
  %v142 = vunpack.c.h.b16 %v31
  %v143 = vunpack.c.l.b16 %v32
  %v144 = vunpack.c.h.b16 %v32
  %v145 = vunpack.c.l.b16 %v33
  %v146 = vunpack.c.h.b16 %v33
  %v147 = vunpack.c.l.b16 %v34
  %v148 = vunpack.c.h.b16 %v34
  %v149 = vunpack.c.l.b16 %v35
  %v150 = vunpack.c.h.b16 %v35
  %v151 = vunpack.c.l.b16 %v36
  %v152 = vunpack.c.h.b16 %v36
  %v153 = vunpack.c.l.b16 %v37
  %v154 = vunpack.c.h.b16 %v37
  %v155 = vunpack.c.l.b16 %v38
  %v156 = vunpack.c.h.b16 %v38
  %v157 = vunpack.c.l.b16 %v39
  %v158 = vunpack.c.h.b16 %v39
  %v159 = vunpack.c.l.b16 %v40
  %v160 = vunpack.c.h.b16 %v40
  %v161 = vunpack.c.l.b16 %v41
  %v162 = vunpack.c.h.b16 %v41
  %v163 = vunpack.c.l.b16 %v42
  %v164 = vunpack.c.h.b16 %v42
  %v165 = vunpack.c.l.b16 %v43
  %v166 = vunpack.c.h.b16 %v43
  %v167 = vunpack.c.l.b16 %v44
  %v168 = vunpack.c.h.b16 %v44
  %v169 = vunpack.c.l.b16 %v45
  %v170 = vunpack.c.h.b16 %v45
  %v171 = vunpack.c.l.b16 %v46
  %v172 = vunpack.c.h.b16 %v46
  %v173 = vunpack.c.l.b16 %v47
  %v174 = vunpack.c.h.b16 %v47
  %v175 = vunpack.c.l.b16 %v48
  %v176 = vunpack.c.h.b16 %v48
  %v177 = vunpack.c.l.b16 %v49
  %v178 = vunpack.c.h.b16 %v49
  %v179 = vunpack.c.l.b16 %v50
  %v180 = vunpack.c.h.b16 %v50
  %v181 = vunpack.c.l.b16 %v51
  %v182 = vunpack.c.h.b16 %v51
  %v183 = vunpack.c.l.b16 %v52
  %v184 = vunpack.c.h.b16 %v52
  %v185 = vunpack.c.l.b16 %v53
  %v186 = vunpack.c.h.b16 %v53
  %v187 = vunpack.c.l.b16 %v54
  %v188 = vunpack.c.h.b16 %v54
  %v189 = vunpack.c.l.b16 %v55
  %v190 = vunpack.c.h.b16 %v55
  %v191 = vunpack.c.l.b16 %v56
  %v192 = vunpack.c.h.b16 %v56
  %v193 = vunpack.c.l.b16 %v57
  %v194 = vunpack.c.h.b16 %v57
  %v195 = vunpack.c.l.b16 %v58
  %v196 = vunpack.c.h.b16 %v58
  %v197 = vunpack.c.l.b16 %v59
  %v198 = vunpack.c.h.b16 %v59
  %v199 = vunpack.c.l.b16 %v60
  %v200 = vunpack.c.h.b16 %v60
  %v201 = vunpack.c.l.b16 %v61
  %v202 = vunpack.c.h.b16 %v61
  %v203 = vunpack.c.l.b16 %v62
  %v204 = vunpack.c.h.b16 %v62
  %v205 = vunpack.c.l.b16 %v63
  %v206 = vunpack.c.h.b16 %v63
  %v207 = vunpack.c.l.b16 %v64
  %v208 = vunpack.c.h.b16 %v64
  %v209 = vunpack.c.l.b16 %v65
  %v210 = vunpack.c.h.b16 %v65
  %v211 = vunpack.c.l.b16 %v66
  %v212 = vunpack.c.h.b16 %v66
  %v213 = vunpack.c.l.b16 %v67
  %v214 = vunpack.c.h.b16 %v67
  %v215 = vunpack.c.l.b16 %v68
  %v216 = vunpack.c.h.b16 %v68
  %v217 = vunpack.c.l.b16 %v69
  %v218 = vunpack.c.h.b16 %v69
  %v219 = vunpack.c.l.b16 %v70
  %v220 = vunpack.c.h.b16 %v70
  %v221 = vunpack.c.l.b16 %v71
  %v222 = vunpack.c.h.b16 %v71
  %v223 = vunpack.c.l.b16 %v72
  %v224 = vunpack.c.h.b16 %v72
  %v225 = vunpack.c.l.b16 %v73
  %v226 = vunpack.c.h.b16 %v73
  %v227 = vunpack.c.l.b16 %v74
  %v228 = vunpack.c.h.b16 %v74
  %v229 = vunpack.c.l.b16 %v75
  %v230 = vunpack.c.h.b16 %v75
  %v231 = vpack.c.b16 %v137, %v135
  %v232 = vpack.c.b16 %v138, %v136
  %v233 = vpack.c.b16 %v141, %v139
  %v234 = vpack.c.b16 %v142, %v140
  %v235 = vpack.c.b16 %v145, %v143
  %v236 = vpack.c.b16 %v146, %v144
  %v237 = vpack.c.b16 %v149, %v147
  %v238 = vpack.c.b16 %v150, %v148
  %v239 = vpack.c.b16 %v153, %v151
  %v240 = vpack.c.b16 %v154, %v152
  %v241 = vpack.c.b16 %v157, %v155
  %v242 = vpack.c.b16 %v158, %v156
  %v243 = vpack.c.b16 %v161, %v159
  %v244 = vpack.c.b16 %v162, %v160
  %v245 = vpack.c.b16 %v165, %v163
  %v246 = vpack.c.b16 %v166, %v164
  %v247 = vpack.c.b16 %v169, %v167
  %v248 = vpack.c.b16 %v170, %v168
  %v249 = vpack.c.b16 %v173, %v171
  %v250 = vpack.c.b16 %v174, %v172
  %v251 = vpack.c.b16 %v177, %v175
  %v252 = vpack.c.b16 %v178, %v176
  %v253 = vpack.c.b16 %v181, %v179
  %v254 = vpack.c.b16 %v182, %v180
  %v255 = vpack.c.b16 %v185, %v183
  %v256 = vpack.c.b16 %v186, %v184
  %v257 = vpack.c.b16 %v189, %v187
  %v258 = vpack.c.b16 %v190, %v188
  %v259 = vpack.c.b16 %v193, %v191
  %v260 = vpack.c.b16 %v194, %v192
  %v261 = vpack.c.b16 %v197, %v195
  %v262 = vpack.c.b16 %v198, %v196
  %v263 = vpack.c.b16 %v201, %v199
  %v264 = vpack.c.b16 %v202, %v200
  %v265 = vpack.c.b16 %v205, %v203
  %v266 = vpack.c.b16 %v206, %v204
  %v267 = vpack.c.b16 %v209, %v207
  %v268 = vpack.c.b16 %v210, %v208
  %v269 = vpack.c.b16 %v213, %v211
  %v270 = vpack.c.b16 %v214, %v212
  %v271 = vpack.c.b16 %v217, %v215
  %v272 = vpack.c.b16 %v218, %v216
  %v273 = vpack.c.b16 %v221, %v219
  %v274 = vpack.c.b16 %v222, %v220
  %v275 = vpack.c.b16 %v225, %v223
  %v276 = vpack.c.b16 %v226, %v224
  %v277 = vpack.c.b16 %v229, %v227
  %v278 = vpack.c.b16 %v230, %v228
  %327 = vmatprep.subr.bf16.mxu0 %v246
  %328 = vmatpush1.bf16.msra.mxu0 %v245
  %329 = vmatprep.subr.bf16.mxu0 %v244
  %330 = vmatpush1.bf16.msra.mxu0 %v243
  %331 = vmatprep.subr.bf16.mxu0 %v242
  %332 = vmatpush1.bf16.msra.mxu0 %v241
  %333 = vmatprep.subr.bf16.mxu0 %v240
  %334 = vmatpush1.bf16.msra.mxu0 %v239
  %335 = vmatprep.subr.bf16.mxu0 %v238
  %336 = vmatpush1.bf16.msra.mxu0 %v237
  %337 = vmatprep.subr.bf16.mxu0 %v236
  %338 = vmatpush1.bf16.msra.mxu0 %v235
  %339 = vmatprep.subr.bf16.mxu0 %v234
  %340 = vmatpush1.bf16.msra.mxu0 %v233
  %341 = vmatprep.subr.bf16.mxu0 %v232
  %342 = vmatpush1.bf16.msra.mxu0 %v231
  %343 = vmatprep.subr.bf16.mxu0 %v262
  %344 = vmatpush2.bf16.msra.mxu0 %v261
  %345 = vmatprep.subr.bf16.mxu0 %v260
  %346 = vmatpush2.bf16.msra.mxu0 %v259
  %347 = vmatprep.subr.bf16.mxu0 %v258
  %348 = vmatpush2.bf16.msra.mxu0 %v257
  %349 = vmatprep.subr.bf16.mxu0 %v256
  %350 = vmatpush2.bf16.msra.mxu0 %v255
  %351 = vmatprep.subr.bf16.mxu0 %v254
  %352 = vmatpush2.bf16.msra.mxu0 %v253
  %353 = vmatprep.subr.bf16.mxu0 %v252
  %354 = vmatpush2.bf16.msra.mxu0 %v251
  %355 = vmatprep.subr.bf16.mxu0 %v250
  %356 = vmatpush2.bf16.msra.mxu0 %v249
  %357 = vmatprep.subr.bf16.mxu0 %v248
  %358 = vmatpush2.bf16.msra.mxu0 %v247
  %359 = vmatprep.mubr.bf16.mxu0 %v82
  %360 = vmatmul.mubr.bf16.gmra.mxu0 %v81
  %v361 = vpop.f32.mrf.mxu0
  %v362 = vadd.f32 0.0, %v361
  %v363 = vpop.f32.mrf.mxu0
  %v364 = vadd.f32 0.0, %v363
  %v365 = vpop.f32.mrf.mxu0
  %v366 = vpop.f32.mrf.mxu0
  %367 = vdwg.mxu0
  %368 = vmatprep.subr.bf16.mxu0 %v278
  %369 = vmatpush1.bf16.msra.mxu0 %v277
  %370 = vmatprep.subr.bf16.mxu0 %v276
  %371 = vmatpush1.bf16.msra.mxu0 %v275
  %372 = vmatprep.subr.bf16.mxu0 %v274
  %373 = vmatpush1.bf16.msra.mxu0 %v273
  %374 = vmatprep.subr.bf16.mxu0 %v272
  %375 = vmatpush1.bf16.msra.mxu0 %v271
  %376 = vmatprep.subr.bf16.mxu0 %v270
  %377 = vmatpush1.bf16.msra.mxu0 %v269
  %378 = vmatprep.subr.bf16.mxu0 %v268
  %379 = vmatpush1.bf16.msra.mxu0 %v267
  %380 = vmatprep.subr.bf16.mxu0 %v266
  %381 = vmatpush1.bf16.msra.mxu0 %v265
  %382 = vmatprep.subr.bf16.mxu0 %v264
  %383 = vmatpush1.bf16.msra.mxu0 %v263
  %384 = vmatprep.subr.bf16.mxu0 0
  %385 = vmatpush2.bf16.msra.mxu0 0
  %386 = vmatprep.subr.bf16.mxu0 0
  %387 = vmatpush2.bf16.msra.mxu0 0
  %388 = vmatprep.subr.bf16.mxu0 0
  %389 = vmatpush2.bf16.msra.mxu0 0
  %390 = vmatprep.subr.bf16.mxu0 0
  %391 = vmatpush2.bf16.msra.mxu0 0
  %392 = vmatprep.subr.bf16.mxu0 0
  %393 = vmatpush2.bf16.msra.mxu0 0
  %394 = vmatprep.subr.bf16.mxu0 0
  %395 = vmatpush2.bf16.msra.mxu0 0
  %396 = vmatprep.subr.bf16.mxu0 0
  %397 = vmatpush2.bf16.msra.mxu0 0
  %398 = vmatprep.subr.bf16.mxu0 0
  %399 = vmatpush2.bf16.msra.mxu0 0
  %400 = vmatprep.mubr.bf16.mxu0 0
  %401 = vmatmul.mubr.bf16.gmra.mxu0 %v83
  %v402 = vpop.f32.mrf.mxu0
  %v403 = vadd.f32 %v362, %v402
  %v404 = vpop.f32.mrf.mxu0
  %v405 = vadd.f32 %v364, %v404
  %v406 = vpop.f32.mrf.mxu0
  %v407 = vpop.f32.mrf.mxu0
  %408 = vdwg.mxu0
  %v409 = vadd.f32 %v24, %v403
  %v410 = vadd.f32 %v25, %v405
  %411 = vst [vmem:[#allocation2] sm:$0xff] %v409
  %412 = vst [vmem:[#allocation2 + $0x8] sm:$0xff] %v410
  // Predicated region
  $region22: #{fwd.31} parent=0 // pred_check
    %p413 = pneg %p18
  $region23: #{fwd.31} parent=0 // pred_check_branch
    %415 = sbr.rel (%p413) target = $region25
  $region24: #{fwd.31} parent=0 // pred_region
    %v416 = vld [vmem:[#allocation2] sm:$0xff]
    %v417 = vld [vmem:[#allocation2 + $0x8] sm:$0xff]
    %v418 = vld [vmem:[%s2] sm:$0x3]
    %v420 = vlaneseq
    %v421 = vshrl.u32 %v420, 7
    %v422 = vsub.s32 0, %v421
    %v423 = vrot.slane %v418, %v422
    %v424 = vlaneseq
    %v425 = vshrl.u32 %v424, 7
    %v426 = vsub.s32 1, %v425
    %v427 = vrot.slane %v418, %v426
    %v430 = vmul.f32 %v416, %v423
    %v431 = vmul.f32 %v417, %v427
    %v432 = vld [vmem:[%s3] sm:$0x3]
    %v434 = vlaneseq
    %v435 = vshrl.u32 %v434, 7
    %v436 = vsub.s32 0, %v435
    %v437 = vrot.slane %v432, %v436
    %v438 = vlaneseq
    %v439 = vshrl.u32 %v438, 7
    %v440 = vsub.s32 1, %v439
    %v441 = vrot.slane %v432, %v440
    %v444 = vadd.f32 %v430, %v437
    %v445 = vadd.f32 %v431, %v441
    %v446 = vmax.f32 %v444, 0.0
    %v447 = vmax.f32 %v445, 0.0
    %v448 = vpack.c.bf16 %v446, %v446
    %v449 = vpack.c.bf16 %v447, %v447
    %v452 = vunpack.c.l.b16 %v448
    %v453 = vunpack.c.l.b16 %v449
    %v454 = vpack.c.b16 %v453, %v452
    %456 = vst [vmem:[%s4] sm:$0xff] %v454
  $region25: #{fwd.31} parent=0 // pred_fallthru
    _
  // Predicated region
  $region26: #{fwd.31} parent=0 // pred_check
    _
  $region27: #{fwd.31} parent=0 // pred_check_branch
    %458 = sbr.rel (0) target = $region29
  $region28: #{fwd.31} parent=0 // pred_region
    _
  $region29: #{fwd.31} parent=0 // pred_fallthru
    _
  // Predicated region
  $region30: #{fwd.31} parent=0 // pred_check
    _
  $region31: #{fwd.31} parent=0 // pred_check_branch
    %460 = sbr.rel (0) target = $region33
  $region32: #{fwd.31} parent=0 // pred_region
    _
  $region33: #{fwd.31} parent=0 // pred_fallthru
    _

// kernel: fwd.33
$region0: #{fwd.33}
  #allocation0 [shape = 'u32[]', space=smem, size = 0x4, offset = 0x4, fixed_abs, tag = 'smem constant byte address 0x4 - core index']
  #allocation1 [shape = 'u32[144,128]{1,0:T(1,128)}', space=vmem, size = 0x12000, scoped, tag = 'internal scratch']
  #allocation2 [shape = 'f32[8,256]{1,0:T(8,128)}', space=vmem, size = 0x2000, scoped, tag = 'scratch operand']
  %s0 = inlined_call_operand.vmem [shape: bf16[8,1024], index: 0, kind: input, shape index: {}]
  %s1 = inlined_call_operand.vmem [shape: bf16[1024,256], index: 1, kind: input, shape index: {}]
  %s2 = inlined_call_operand.vmem [shape: f32[1,256], index: 2, kind: input, shape index: {}]
  %s3 = inlined_call_operand.vmem [shape: f32[1,256], index: 3, kind: input, shape index: {}]
  %s4 = inlined_call_operand.vmem [shape: bf16[8,256], index: 4, kind: input, shape index: {}]
  %s5 = inlined_call_operand.vmem [shape: bf16[8,256], index: 5, kind: output, shape index: {}]
  %s6 = sld [smem:[#allocation0]]
  $region61: #{fwd.33} parent=0
    _
  %s8 = ssub.s32 1, %s6
  %s9 = scalar_select 0, %s8, %s6
  loop: start=0, step=1, limit=4
  $region2: #{fwd.33} parent=0 // loop_pre_header
    _
  $region3: #{fwd.33} parent=0 // loop_header
    %s11 = sphi 0, %s15
    %p12 = scmp.ge.s32.totalorder %s11, 4
    %s18 = sphi 0, %s37
    %s19 = sphi 0, %s33
    %s20 = sphi 0, %s29
    %s21 = sphi 0, %s18
    %s22 = sphi 0, %s19
    %s23 = sphi 0, %s20
    %s24 = sphi 0, %s21
    %s25 = sphi 0, %s22
    %s26 = sphi 0, %s23
    %s42 = sphi 0, %s44
    %s45 = sphi 0, %s42
    %s46 = sphi 0, %s45
    %s62 = sphi 0, %s46
    %s70 = sphi 0, %s72
    %s73 = sphi 0, %s70
    %s74 = sphi 0, %s73
    %s90 = sphi 0, %s74
    %s96 = sphi 0, %s98
    %s99 = sphi 0, %s96
    %s100 = sphi 0, %s99
    %s116 = sphi 0, %s100
    %s122 = sphi 0, %s124
    %s125 = sphi 0, %s122
    %s126 = sphi 0, %s125
    %s142 = sphi 0, %s126
    %s150 = sphi 0, %s152
    %s153 = sphi 0, %s150
    %s154 = sphi 0, %s153
    %s170 = sphi 0, %s154
    %s178 = sphi 0, %s180
    %s181 = sphi 0, %s178
    %s182 = sphi 0, %s181
    %s198 = sphi 0, %s182
  $region4: #{fwd.33} parent=0 // loop_header_branch
    %14 = sbr.rel (%p12) target = $region8
  $region5: #{fwd.33} parent=0 // loop_body
    %s16 = ssub.s32 %s11, 1
    %s17 = ssub.s32 %s11, 2
    %s27 = sadd.s32 1, %s20
    %p28 = scmp.ge.s32.totalorder %s27, 2
    %s29 = scalar_select %p28, 0, %s27
    %s30 = sadd.s32 1, %s19
    %s31 = scalar_select %p28, %s30, %s19
    %p32 = scmp.ge.s32.totalorder %s31, 1
    %s33 = scalar_select %p32, 0, %s31
    %s34 = sadd.s32 1, %s18
    %s35 = scalar_select %p32, %s34, %s18
    %p36 = scmp.ge.s32.totalorder %s35, 1
    %s37 = scalar_select %p36, 0, %s35
    %s38 = ssub.s32 %s18, %s37
    %s39 = ssub.s32 %s20, %s29
    %s40 = sor.u32 %s38, %s39
    %p41 = scmp.eq.s32.totalorder %s40, 0
    %s43 = sadd.s32 %s42, 1
    %s44 = scalar_select %p41, %s42, %s43
    %p47 = pneg %p41
    %p48 = scmp.eq.s32.totalorder %s11, 1
    %p49 = por %p47, %p48
    %p50 = scmp.ne.s32.totalorder %s42, %s45
    %p51 = scmp.eq.s32.totalorder %s11, 0
    %p52 = por %p50, %p51
    %p53 = scmp.ne.s32.totalorder %s42, %s45
    %p54 = scmp.eq.s32.totalorder %s16, 1
    %p55 = por %p53, %p54
    %p56 = scmp.ne.s32.totalorder %s45, %s46
    %p57 = scmp.eq.s32.totalorder %s16, 0
    %p58 = por %p56, %p57
    %p59 = scmp.ne.s32.totalorder %s45, %s46
    %p60 = scmp.eq.s32.totalorder %s17, 1
    %p61 = por %p59, %p60
    %p63 = scmp.ne.s32.totalorder %s46, %s62
    %p64 = scmp.eq.s32.totalorder %s17, 0
    %p65 = por %p63, %p64
    %s66 = ssub.s32 %s20, %s29
    %s67 = ssub.s32 %s19, %s33
    %s68 = sor.u32 %s66, %s67
    %p69 = scmp.eq.s32.totalorder %s68, 0
    %s71 = sadd.s32 %s70, 1
    %s72 = scalar_select %p69, %s70, %s71
    %p75 = pneg %p69
    %p76 = scmp.eq.s32.totalorder %s11, 1
    %p77 = por %p75, %p76
    %p78 = scmp.ne.s32.totalorder %s70, %s73
    %p79 = scmp.eq.s32.totalorder %s11, 0
    %p80 = por %p78, %p79
    %p81 = scmp.ne.s32.totalorder %s70, %s73
    %p82 = scmp.eq.s32.totalorder %s16, 1
    %p83 = por %p81, %p82
    %p84 = scmp.ne.s32.totalorder %s73, %s74
    %p85 = scmp.eq.s32.totalorder %s16, 0
    %p86 = por %p84, %p85
    %p87 = scmp.ne.s32.totalorder %s73, %s74
    %p88 = scmp.eq.s32.totalorder %s17, 1
    %p89 = por %p87, %p88
    %p91 = scmp.ne.s32.totalorder %s74, %s90
    %p92 = scmp.eq.s32.totalorder %s17, 0
    %p93 = por %p91, %p92
    %s94 = ssub.s32 %s19, %s33
    %p95 = scmp.eq.s32.totalorder %s94, 0
    %s97 = sadd.s32 %s96, 1
    %s98 = scalar_select %p95, %s96, %s97
    %p101 = pneg %p95
    %p102 = scmp.eq.s32.totalorder %s11, 1
    %p103 = por %p101, %p102
    %p104 = scmp.ne.s32.totalorder %s96, %s99
    %p105 = scmp.eq.s32.totalorder %s11, 0
    %p106 = por %p104, %p105
    %p107 = scmp.ne.s32.totalorder %s96, %s99
    %p108 = scmp.eq.s32.totalorder %s16, 1
    %p109 = por %p107, %p108
    %p110 = scmp.ne.s32.totalorder %s99, %s100
    %p111 = scmp.eq.s32.totalorder %s16, 0
    %p112 = por %p110, %p111
    %p113 = scmp.ne.s32.totalorder %s99, %s100
    %p114 = scmp.eq.s32.totalorder %s17, 1
    %p115 = por %p113, %p114
    %p117 = scmp.ne.s32.totalorder %s100, %s116
    %p118 = scmp.eq.s32.totalorder %s17, 0
    %p119 = por %p117, %p118
    %s120 = ssub.s32 %s19, %s33
    %p121 = scmp.eq.s32.totalorder %s120, 0
    %s123 = sadd.s32 %s122, 1
    %s124 = scalar_select %p121, %s122, %s123
    %p127 = pneg %p121
    %p128 = scmp.eq.s32.totalorder %s11, 1
    %p129 = por %p127, %p128
    %p130 = scmp.ne.s32.totalorder %s122, %s125
    %p131 = scmp.eq.s32.totalorder %s11, 0
    %p132 = por %p130, %p131
    %p133 = scmp.ne.s32.totalorder %s122, %s125
    %p134 = scmp.eq.s32.totalorder %s16, 1
    %p135 = por %p133, %p134
    %p136 = scmp.ne.s32.totalorder %s125, %s126
    %p137 = scmp.eq.s32.totalorder %s16, 0
    %p138 = por %p136, %p137
    %p139 = scmp.ne.s32.totalorder %s125, %s126
    %p140 = scmp.eq.s32.totalorder %s17, 1
    %p141 = por %p139, %p140
    %p143 = scmp.ne.s32.totalorder %s126, %s142
    %p144 = scmp.eq.s32.totalorder %s17, 0
    %p145 = por %p143, %p144
    %s146 = ssub.s32 %s18, %s37
    %s147 = ssub.s32 %s19, %s33
    %s148 = sor.u32 %s146, %s147
    %p149 = scmp.eq.s32.totalorder %s148, 0
    %s151 = sadd.s32 %s150, 1
    %s152 = scalar_select %p149, %s150, %s151
    %p155 = pneg %p149
    %p156 = scmp.eq.s32.totalorder %s11, 1
    %p157 = por %p155, %p156
    %p158 = scmp.ne.s32.totalorder %s150, %s153
    %p159 = scmp.eq.s32.totalorder %s11, 0
    %p160 = por %p158, %p159
    %p161 = scmp.ne.s32.totalorder %s150, %s153
    %p162 = scmp.eq.s32.totalorder %s16, 1
    %p163 = por %p161, %p162
    %p164 = scmp.ne.s32.totalorder %s153, %s154
    %p165 = scmp.eq.s32.totalorder %s16, 0
    %p166 = por %p164, %p165
    %p167 = scmp.ne.s32.totalorder %s153, %s154
    %p168 = scmp.eq.s32.totalorder %s17, 1
    %p169 = por %p167, %p168
    %p171 = scmp.ne.s32.totalorder %s154, %s170
    %p172 = scmp.eq.s32.totalorder %s17, 0
    %p173 = por %p171, %p172
    %s174 = ssub.s32 %s18, %s37
    %s175 = ssub.s32 %s19, %s33
    %s176 = sor.u32 %s174, %s175
    %p177 = scmp.eq.s32.totalorder %s176, 0
    %s179 = sadd.s32 %s178, 1
    %s180 = scalar_select %p177, %s178, %s179
    %p183 = pneg %p177
    %p184 = scmp.eq.s32.totalorder %s11, 1
    %p185 = por %p183, %p184
    %p186 = scmp.ne.s32.totalorder %s178, %s181
    %p187 = scmp.eq.s32.totalorder %s11, 0
    %p188 = por %p186, %p187
    %p189 = scmp.ne.s32.totalorder %s178, %s181
    %p190 = scmp.eq.s32.totalorder %s16, 1
    %p191 = por %p189, %p190
    %p192 = scmp.ne.s32.totalorder %s181, %s182
    %p193 = scmp.eq.s32.totalorder %s16, 0
    %p194 = por %p192, %p193
    %p195 = scmp.ne.s32.totalorder %s181, %s182
    %p196 = scmp.eq.s32.totalorder %s17, 1
    %p197 = por %p195, %p196
    %p199 = scmp.ne.s32.totalorder %s182, %s198
    %p200 = scmp.eq.s32.totalorder %s17, 0
    %p201 = por %p199, %p200
    %p202 = scmp.le.s32.totalorder 1, %s11
    %p203 = scmp.lt.s32.totalorder %s11, 3
    %p204 = pnand %p202, %p203
    %p205 = pneg %p204
    // Predicated region
    $region9: #{fwd.33} parent=5 // pred_check
      _
    $region10: #{fwd.33} parent=5 // pred_check_branch
      %207 = sbr.rel (%p204) target = $region12
    $region11: #{fwd.33} parent=5 // pred_region
      %s208 = ssub.s32 %s11, 1
      // Predicated region
      $region13: #{fwd.33} parent=11 // pred_check
        %p209 = pneg %p112
      $region14: #{fwd.33} parent=11 // pred_check_branch
        %211 = sbr.rel (%p209) target = $region16
      $region15: #{fwd.33} parent=11 // pred_region
        %s212 = smul.u32 2, %s22
        %p213 = scmp.lt.s32.totalorder %s212, 1
        %s214 = scalar_select %p213, %s212, 1
        %s215 = scalar_lea.vmem %s2, %s214
        %s216 = smul.u32 2, %s22
      $region16: #{fwd.33} parent=11 // pred_fallthru
        _
      // Predicated region
      $region17: #{fwd.33} parent=11 // pred_check
        %p217 = pneg %p138
      $region18: #{fwd.33} parent=11 // pred_check_branch
        %219 = sbr.rel (%p217) target = $region20
      $region19: #{fwd.33} parent=11 // pred_region
        %s220 = smul.u32 2, %s22
        %p221 = scmp.lt.s32.totalorder %s220, 1
        %s222 = scalar_select %p221, %s220, 1
        %s223 = scalar_lea.vmem %s3, %s222
        %s224 = smul.u32 2, %s22
      $region20: #{fwd.33} parent=11 // pred_fallthru
        _
      // Predicated region
      $region21: #{fwd.33} parent=11 // pred_check
        %p225 = pneg %p166
      $region22: #{fwd.33} parent=11 // pred_check_branch
        %227 = sbr.rel (%p225) target = $region24
      $region23: #{fwd.33} parent=11 // pred_region
        %s228 = smul.u32 2, %s22
        %p229 = scmp.lt.s32.totalorder %s21, 0
        %s230 = scalar_select %p229, %s21, 0
        %p231 = scmp.lt.s32.totalorder %s228, 1
        %s232 = scalar_select %p231, %s228, 1
        %s233 = smul.addr %s230, 2
        %s234 = sadd.s32 %s232, %s233
        %s235 = smul.addr %s234, 4
        %s236 = scalar_lea.vmem %s4, %s235
        %s237 = smul.u32 2, %s22
      $region24: #{fwd.33} parent=11 // pred_fallthru
        _
    $region12: #{fwd.33} parent=5 // pred_fallthru
      _
    %p238 = scmp.lt.s32.totalorder %s11, 2
    // Predicated region
    $region25: #{fwd.33} parent=5 // pred_check
      %p239 = pneg %p238
    $region26: #{fwd.33} parent=5 // pred_check_branch
      %241 = sbr.rel (%p239) target = $region28
    $region27: #{fwd.33} parent=5 // pred_region
      // Predicated region
      $region29: #{fwd.33} parent=27 // pred_check
        %p242 = pneg %p52
      $region30: #{fwd.33} parent=27 // pred_check_branch
        %244 = sbr.rel (%p242) target = $region32
      $region31: #{fwd.33} parent=27 // pred_region
        %s245 = smul.u32 4, %s20
        %p246 = scmp.lt.s32.totalorder %s18, 0
        %s247 = scalar_select %p246, %s18, 0
        %p248 = scmp.lt.s32.totalorder %s245, 7
        %s249 = scalar_select %p248, %s245, 7
        %s250 = smul.addr %s247, 8
        %s251 = sadd.s32 %s249, %s250
        %s252 = smul.addr %s251, 4
        %s253 = scalar_lea.vmem %s0, %s252
        %s254 = smul.u32 4, %s20
      $region32: #{fwd.33} parent=27 // pred_fallthru
        _
      // Predicated region
      $region33: #{fwd.33} parent=27 // pred_check
        %p255 = pneg %p80
      $region34: #{fwd.33} parent=27 // pred_check_branch
        %257 = sbr.rel (%p255) target = $region36
      $region35: #{fwd.33} parent=27 // pred_region
        %s258 = smul.u32 64, %s20
        %s259 = smul.u32 2, %s19
        %p260 = scmp.lt.s32.totalorder %s258, 127
        %s261 = scalar_select %p260, %s258, 127
        %p262 = scmp.lt.s32.totalorder %s259, 1
        %s263 = scalar_select %p262, %s259, 1
        %s264 = smul.addr %s261, 2
        %s265 = sadd.s32 %s263, %s264
        %s266 = smul.addr %s265, 4
        %s267 = scalar_lea.vmem %s1, %s266
        %s268 = smul.u32 64, %s20
        %s269 = smul.u32 2, %s19
      $region36: #{fwd.33} parent=27 // pred_fallthru
        _
    $region28: #{fwd.33} parent=5 // pred_fallthru
      _
    %p270 = scmp.le.s32.totalorder 1, %s11
    %p271 = scmp.lt.s32.totalorder %s11, 3
    %p272 = pnand %p270, %p271
    %p273 = pneg %p272
    // Predicated region
    $region37: #{fwd.33} parent=5 // pred_check
      _
    $region38: #{fwd.33} parent=5 // pred_check_branch
      %275 = sbr.rel (%p272) target = $region40
    $region39: #{fwd.33} parent=5 // pred_region
      %s276 = ssub.s32 %s11, 1
      %s277 = smul.u32 4, %s23
      %p278 = scmp.lt.s32.totalorder %s21, 0
      %s279 = scalar_select %p278, %s21, 0
      %p280 = scmp.lt.s32.totalorder %s277, 7
      %s281 = scalar_select %p280, %s277, 7
      %s282 = smul.addr %s279, 8
      %s283 = sadd.s32 %s281, %s282
      %s284 = smul.addr %s283, 4
      %s285 = scalar_lea.vmem %s0, %s284
      %p286 = pneg %p58
      %p287 = pneg %p55
      %s288 = smul.u32 64, %s23
      %s289 = smul.u32 2, %s22
      %p290 = scmp.lt.s32.totalorder %s288, 127
      %s291 = scalar_select %p290, %s288, 127
      %p292 = scmp.lt.s32.totalorder %s289, 1
      %s293 = scalar_select %p292, %s289, 1
      %s294 = smul.addr %s291, 2
      %s295 = sadd.s32 %s293, %s294
      %s296 = smul.addr %s295, 4
      %s297 = scalar_lea.vmem %s1, %s296
      %p298 = pneg %p86
      %p299 = pneg %p83
      %s300 = smul.u32 2, %s22
      %p301 = scmp.lt.s32.totalorder %s300, 1
      %s302 = scalar_select %p301, %s300, 1
      %s303 = scalar_lea.vmem %s2, %s302
      %p304 = pneg %p112
      %p305 = pneg %p109
      %s306 = smul.u32 2, %s22
      %p307 = scmp.lt.s32.totalorder %s306, 1
      %s308 = scalar_select %p307, %s306, 1
      %s309 = scalar_lea.vmem %s3, %s308
      %p310 = pneg %p138
      %p311 = pneg %p135
      %s312 = smul.u32 2, %s22
      %p313 = scmp.lt.s32.totalorder %s21, 0
      %s314 = scalar_select %p313, %s21, 0
      %p315 = scmp.lt.s32.totalorder %s312, 1
      %s316 = scalar_select %p315, %s312, 1
      %s317 = smul.addr %s314, 2
      %s318 = sadd.s32 %s316, %s317
      %s319 = smul.addr %s318, 4
      %s320 = scalar_lea.vmem %s4, %s319
      %p321 = pneg %p166
      %p322 = pneg %p163
      %p323 = pneg %p194
      %p324 = pneg %p191
      %s325 = smul.u32 2, %s22
      %p326 = scmp.lt.s32.totalorder %s21, 0
      %s327 = scalar_select %p326, %s21, 0
      %p328 = scmp.lt.s32.totalorder %s325, 1
      %s329 = scalar_select %p328, %s325, 1
      %s330 = smul.addr %s327, 2
      %s331 = sadd.s32 %s329, %s330
      %s332 = smul.addr %s331, 4
      %s333 = scalar_lea.vmem %s5, %s332
      %s334 = smul.u32 4, %s23
      %p335 = scmp.lt.s32.totalorder %s21, 0
      %s336 = scalar_select %p335, %s21, 0
      %p337 = scmp.lt.s32.totalorder %s334, 7
      %s338 = scalar_select %p337, %s334, 7
      %s339 = smul.addr %s336, 8
      %s340 = sadd.s32 %s338, %s339
      %s341 = smul.addr %s340, 4
      %s342 = scalar_lea.vmem %s0, %s341
      %s343 = smul.u32 4, %s23
      %s344 = smul.u32 64, %s23
      %s345 = smul.u32 2, %s22
      %p346 = scmp.lt.s32.totalorder %s344, 127
      %s347 = scalar_select %p346, %s344, 127
      %p348 = scmp.lt.s32.totalorder %s345, 1
      %s349 = scalar_select %p348, %s345, 1
      %s350 = smul.addr %s347, 2
      %s351 = sadd.s32 %s349, %s350
      %s352 = smul.addr %s351, 4
      %s353 = scalar_lea.vmem %s1, %s352
      %s354 = smul.u32 64, %s23
      %s355 = smul.u32 2, %s22
      %s356 = smul.u32 2, %s22
      %p357 = scmp.lt.s32.totalorder %s356, 1
      %s358 = scalar_select %p357, %s356, 1
      %s359 = scalar_lea.vmem %s2, %s358
      %s360 = smul.u32 2, %s22
      %s361 = smul.u32 2, %s22
      %p362 = scmp.lt.s32.totalorder %s361, 1
      %s363 = scalar_select %p362, %s361, 1
      %s364 = scalar_lea.vmem %s3, %s363
      %s365 = smul.u32 2, %s22
      %s366 = smul.u32 2, %s22
      %p367 = scmp.lt.s32.totalorder %s21, 0
      %s368 = scalar_select %p367, %s21, 0
      %p369 = scmp.lt.s32.totalorder %s366, 1
      %s370 = scalar_select %p369, %s366, 1
      %s371 = smul.addr %s368, 2
      %s372 = sadd.s32 %s370, %s371
      %s373 = smul.addr %s372, 4
      %s374 = scalar_lea.vmem %s4, %s373
      %s375 = smul.u32 2, %s22
      %s376 = smul.u32 2, %s22
      %p377 = scmp.lt.s32.totalorder %s21, 0
      %s378 = scalar_select %p377, %s21, 0
      %p379 = scmp.lt.s32.totalorder %s376, 1
      %s380 = scalar_select %p379, %s376, 1
      %s381 = smul.addr %s378, 2
      %s382 = sadd.s32 %s380, %s381
      %s383 = smul.addr %s382, 4
      %s384 = scalar_lea.vmem %s5, %s383
      %s385 = smul.u32 2, %s22
      %p386 = scmp.eq.s32.totalorder %s23, 0
      // Predicated region
      $region41: #{fwd.33} parent=39 // pred_check
        %p387 = pneg %p386
      $region42: #{fwd.33} parent=39 // pred_check_branch
        %389 = sbr.rel (%p387) target = $region44
      $region43: #{fwd.33} parent=39 // pred_region
        %390 = vst [vmem:[#allocation2] sm:$0xff] 0.0
        %391 = vst [vmem:[#allocation2 + $0x8] sm:$0xff] 0.0
      $region44: #{fwd.33} parent=39 // pred_fallthru
        _
      %v392 = vld [vmem:[#allocation2] sm:$0xff]
      %v393 = vld [vmem:[#allocation2 + $0x8] sm:$0xff]
      %v394 = vld [vmem:[%s342] sm:$0xff]
      %v395 = vld [vmem:[%s342 + $0x8] sm:$0xff]
      %v396 = vld [vmem:[%s353] sm:$0xff]
      %v397 = vld [vmem:[%s353 + $0x8] sm:$0xff]
      %v398 = vld [vmem:[%s353 + $0x10] sm:$0xff]
      %v399 = vld [vmem:[%s353 + $0x18] sm:$0xff]
      %v400 = vld [vmem:[%s353 + $0x20] sm:$0xff]
      %v401 = vld [vmem:[%s353 + $0x28] sm:$0xff]
      %v402 = vld [vmem:[%s353 + $0x30] sm:$0xff]
      %v403 = vld [vmem:[%s353 + $0x38] sm:$0xff]
      %v404 = vld [vmem:[%s353 + $0x40] sm:$0xff]
      %v405 = vld [vmem:[%s353 + $0x48] sm:$0xff]
      %v406 = vld [vmem:[%s353 + $0x50] sm:$0xff]
      %v407 = vld [vmem:[%s353 + $0x58] sm:$0xff]
      %v408 = vld [vmem:[%s353 + $0x60] sm:$0xff]
      %v409 = vld [vmem:[%s353 + $0x68] sm:$0xff]
      %v410 = vld [vmem:[%s353 + $0x70] sm:$0xff]
      %v411 = vld [vmem:[%s353 + $0x78] sm:$0xff]
      %v412 = vld [vmem:[%s353 + $0x80] sm:$0xff]
      %v413 = vld [vmem:[%s353 + $0x88] sm:$0xff]
      %v414 = vld [vmem:[%s353 + $0x90] sm:$0xff]
      %v415 = vld [vmem:[%s353 + $0x98] sm:$0xff]
      %v416 = vld [vmem:[%s353 + $0xa0] sm:$0xff]
      %v417 = vld [vmem:[%s353 + $0xa8] sm:$0xff]
      %v418 = vld [vmem:[%s353 + $0xb0] sm:$0xff]
      %v419 = vld [vmem:[%s353 + $0xb8] sm:$0xff]
      %v420 = vld [vmem:[%s353 + $0xc0] sm:$0xff]
      %v421 = vld [vmem:[%s353 + $0xc8] sm:$0xff]
      %v422 = vld [vmem:[%s353 + $0xd0] sm:$0xff]
      %v423 = vld [vmem:[%s353 + $0xd8] sm:$0xff]
      %v424 = vld [vmem:[%s353 + $0xe0] sm:$0xff]
      %v425 = vld [vmem:[%s353 + $0xe8] sm:$0xff]
      %v426 = vld [vmem:[%s353 + $0xf0] sm:$0xff]
      %v427 = vld [vmem:[%s353 + $0xf8] sm:$0xff]
      %v428 = vld [vmem:[%s353 + $0x100] sm:$0xff]
      %v429 = vld [vmem:[%s353 + $0x108] sm:$0xff]
      %v430 = vld [vmem:[%s353 + $0x110] sm:$0xff]
      %v431 = vld [vmem:[%s353 + $0x118] sm:$0xff]
      %v432 = vld [vmem:[%s353 + $0x120] sm:$0xff]
      %v433 = vld [vmem:[%s353 + $0x128] sm:$0xff]
      %v434 = vld [vmem:[%s353 + $0x130] sm:$0xff]
      %v435 = vld [vmem:[%s353 + $0x138] sm:$0xff]
      %v436 = vld [vmem:[%s353 + $0x140] sm:$0xff]
      %v437 = vld [vmem:[%s353 + $0x148] sm:$0xff]
      %v438 = vld [vmem:[%s353 + $0x150] sm:$0xff]
      %v439 = vld [vmem:[%s353 + $0x158] sm:$0xff]
      %v440 = vld [vmem:[%s353 + $0x160] sm:$0xff]
      %v441 = vld [vmem:[%s353 + $0x168] sm:$0xff]
      %v442 = vld [vmem:[%s353 + $0x170] sm:$0xff]
      %v443 = vld [vmem:[%s353 + $0x178] sm:$0xff]
      %v444 = vld [vmem:[%s353 + $0x180] sm:$0xff]
      %v445 = vld [vmem:[%s353 + $0x188] sm:$0xff]
      %v446 = vld [vmem:[%s353 + $0x190] sm:$0xff]
      %v447 = vld [vmem:[%s353 + $0x198] sm:$0xff]
      %v448 = vld [vmem:[%s353 + $0x1a0] sm:$0xff]
      %v449 = vld [vmem:[%s353 + $0x1a8] sm:$0xff]
      %v450 = vld [vmem:[%s353 + $0x1b0] sm:$0xff]
      %v451 = vld [vmem:[%s353 + $0x1b8] sm:$0xff]
      %v452 = vld [vmem:[%s353 + $0x1c0] sm:$0xff]
      %v453 = vld [vmem:[%s353 + $0x1c8] sm:$0xff]
      %v454 = vld [vmem:[%s353 + $0x1d0] sm:$0xff]
      %v455 = vld [vmem:[%s353 + $0x1d8] sm:$0xff]
      %v456 = vld [vmem:[%s353 + $0x1e0] sm:$0xff]
      %v457 = vld [vmem:[%s353 + $0x1e8] sm:$0xff]
      %v458 = vld [vmem:[%s353 + $0x1f0] sm:$0xff]
      %v459 = vld [vmem:[%s353 + $0x1f8] sm:$0xff]
      %v462 = vunpack.c.l.b16 %v394
      %v463 = vunpack.c.h.b16 %v394
      %v464 = vunpack.c.l.b16 %v395
      %v465 = vunpack.c.h.b16 %v395
      %v466 = vpack.c.b16 %v462, %v462
      %v467 = vpack.c.b16 %v463, %v463
      %v468 = vpack.c.b16 %v464, %v464
      %v469 = vpack.c.b16 %v465, %v465
      %v538 = vunpack.c.l.b16 %v396
      %v539 = vunpack.c.h.b16 %v396
      %v540 = vunpack.c.l.b16 %v397
      %v541 = vunpack.c.h.b16 %v397
      %v542 = vunpack.c.l.b16 %v398
      %v543 = vunpack.c.h.b16 %v398
      %v544 = vunpack.c.l.b16 %v399
      %v545 = vunpack.c.h.b16 %v399
      %v546 = vunpack.c.l.b16 %v400
      %v547 = vunpack.c.h.b16 %v400
      %v548 = vunpack.c.l.b16 %v401
      %v549 = vunpack.c.h.b16 %v401
      %v550 = vunpack.c.l.b16 %v402
      %v551 = vunpack.c.h.b16 %v402
      %v552 = vunpack.c.l.b16 %v403
      %v553 = vunpack.c.h.b16 %v403
      %v554 = vunpack.c.l.b16 %v404
      %v555 = vunpack.c.h.b16 %v404
      %v556 = vunpack.c.l.b16 %v405
      %v557 = vunpack.c.h.b16 %v405
      %v558 = vunpack.c.l.b16 %v406
      %v559 = vunpack.c.h.b16 %v406
      %v560 = vunpack.c.l.b16 %v407
      %v561 = vunpack.c.h.b16 %v407
      %v562 = vunpack.c.l.b16 %v408
      %v563 = vunpack.c.h.b16 %v408
      %v564 = vunpack.c.l.b16 %v409
      %v565 = vunpack.c.h.b16 %v409
      %v566 = vunpack.c.l.b16 %v410
      %v567 = vunpack.c.h.b16 %v410
      %v568 = vunpack.c.l.b16 %v411
      %v569 = vunpack.c.h.b16 %v411
      %v570 = vunpack.c.l.b16 %v412
      %v571 = vunpack.c.h.b16 %v412
      %v572 = vunpack.c.l.b16 %v413
      %v573 = vunpack.c.h.b16 %v413
      %v574 = vunpack.c.l.b16 %v414
      %v575 = vunpack.c.h.b16 %v414
      %v576 = vunpack.c.l.b16 %v415
      %v577 = vunpack.c.h.b16 %v415
      %v578 = vunpack.c.l.b16 %v416
      %v579 = vunpack.c.h.b16 %v416
      %v580 = vunpack.c.l.b16 %v417
      %v581 = vunpack.c.h.b16 %v417
      %v582 = vunpack.c.l.b16 %v418
      %v583 = vunpack.c.h.b16 %v418
      %v584 = vunpack.c.l.b16 %v419
      %v585 = vunpack.c.h.b16 %v419
      %v586 = vunpack.c.l.b16 %v420
      %v587 = vunpack.c.h.b16 %v420
      %v588 = vunpack.c.l.b16 %v421
      %v589 = vunpack.c.h.b16 %v421
      %v590 = vunpack.c.l.b16 %v422
      %v591 = vunpack.c.h.b16 %v422
      %v592 = vunpack.c.l.b16 %v423
      %v593 = vunpack.c.h.b16 %v423
      %v594 = vunpack.c.l.b16 %v424
      %v595 = vunpack.c.h.b16 %v424
      %v596 = vunpack.c.l.b16 %v425
      %v597 = vunpack.c.h.b16 %v425
      %v598 = vunpack.c.l.b16 %v426
      %v599 = vunpack.c.h.b16 %v426
      %v600 = vunpack.c.l.b16 %v427
      %v601 = vunpack.c.h.b16 %v427
      %v602 = vunpack.c.l.b16 %v428
      %v603 = vunpack.c.h.b16 %v428
      %v604 = vunpack.c.l.b16 %v429
      %v605 = vunpack.c.h.b16 %v429
      %v606 = vunpack.c.l.b16 %v430
      %v607 = vunpack.c.h.b16 %v430
      %v608 = vunpack.c.l.b16 %v431
      %v609 = vunpack.c.h.b16 %v431
      %v610 = vunpack.c.l.b16 %v432
      %v611 = vunpack.c.h.b16 %v432
      %v612 = vunpack.c.l.b16 %v433
      %v613 = vunpack.c.h.b16 %v433
      %v614 = vunpack.c.l.b16 %v434
      %v615 = vunpack.c.h.b16 %v434
      %v616 = vunpack.c.l.b16 %v435
      %v617 = vunpack.c.h.b16 %v435
      %v618 = vunpack.c.l.b16 %v436
      %v619 = vunpack.c.h.b16 %v436
      %v620 = vunpack.c.l.b16 %v437
      %v621 = vunpack.c.h.b16 %v437
      %v622 = vunpack.c.l.b16 %v438
      %v623 = vunpack.c.h.b16 %v438
      %v624 = vunpack.c.l.b16 %v439
      %v625 = vunpack.c.h.b16 %v439
      %v626 = vunpack.c.l.b16 %v440
      %v627 = vunpack.c.h.b16 %v440
      %v628 = vunpack.c.l.b16 %v441
      %v629 = vunpack.c.h.b16 %v441
      %v630 = vunpack.c.l.b16 %v442
      %v631 = vunpack.c.h.b16 %v442
      %v632 = vunpack.c.l.b16 %v443
      %v633 = vunpack.c.h.b16 %v443
      %v634 = vunpack.c.l.b16 %v444
      %v635 = vunpack.c.h.b16 %v444
      %v636 = vunpack.c.l.b16 %v445
      %v637 = vunpack.c.h.b16 %v445
      %v638 = vunpack.c.l.b16 %v446
      %v639 = vunpack.c.h.b16 %v446
      %v640 = vunpack.c.l.b16 %v447
      %v641 = vunpack.c.h.b16 %v447
      %v642 = vunpack.c.l.b16 %v448
      %v643 = vunpack.c.h.b16 %v448
      %v644 = vunpack.c.l.b16 %v449
      %v645 = vunpack.c.h.b16 %v449
      %v646 = vunpack.c.l.b16 %v450
      %v647 = vunpack.c.h.b16 %v450
      %v648 = vunpack.c.l.b16 %v451
      %v649 = vunpack.c.h.b16 %v451
      %v650 = vunpack.c.l.b16 %v452
      %v651 = vunpack.c.h.b16 %v452
      %v652 = vunpack.c.l.b16 %v453
      %v653 = vunpack.c.h.b16 %v453
      %v654 = vunpack.c.l.b16 %v454
      %v655 = vunpack.c.h.b16 %v454
      %v656 = vunpack.c.l.b16 %v455
      %v657 = vunpack.c.h.b16 %v455
      %v658 = vunpack.c.l.b16 %v456
      %v659 = vunpack.c.h.b16 %v456
      %v660 = vunpack.c.l.b16 %v457
      %v661 = vunpack.c.h.b16 %v457
      %v662 = vunpack.c.l.b16 %v458
      %v663 = vunpack.c.h.b16 %v458
      %v664 = vunpack.c.l.b16 %v459
      %v665 = vunpack.c.h.b16 %v459
      %v666 = vpack.c.b16 %v540, %v538
      %v667 = vpack.c.b16 %v541, %v539
      %v668 = vpack.c.b16 %v544, %v542
      %v669 = vpack.c.b16 %v545, %v543
      %v670 = vpack.c.b16 %v548, %v546
      %v671 = vpack.c.b16 %v549, %v547
      %v672 = vpack.c.b16 %v552, %v550
      %v673 = vpack.c.b16 %v553, %v551
      %v674 = vpack.c.b16 %v556, %v554
      %v675 = vpack.c.b16 %v557, %v555
      %v676 = vpack.c.b16 %v560, %v558
      %v677 = vpack.c.b16 %v561, %v559
      %v678 = vpack.c.b16 %v564, %v562
      %v679 = vpack.c.b16 %v565, %v563
      %v680 = vpack.c.b16 %v568, %v566
      %v681 = vpack.c.b16 %v569, %v567
      %v682 = vpack.c.b16 %v572, %v570
      %v683 = vpack.c.b16 %v573, %v571
      %v684 = vpack.c.b16 %v576, %v574
      %v685 = vpack.c.b16 %v577, %v575
      %v686 = vpack.c.b16 %v580, %v578
      %v687 = vpack.c.b16 %v581, %v579
      %v688 = vpack.c.b16 %v584, %v582
      %v689 = vpack.c.b16 %v585, %v583
      %v690 = vpack.c.b16 %v588, %v586
      %v691 = vpack.c.b16 %v589, %v587
      %v692 = vpack.c.b16 %v592, %v590
      %v693 = vpack.c.b16 %v593, %v591
      %v694 = vpack.c.b16 %v596, %v594
      %v695 = vpack.c.b16 %v597, %v595
      %v696 = vpack.c.b16 %v600, %v598
      %v697 = vpack.c.b16 %v601, %v599
      %v698 = vpack.c.b16 %v604, %v602
      %v699 = vpack.c.b16 %v605, %v603
      %v700 = vpack.c.b16 %v608, %v606
      %v701 = vpack.c.b16 %v609, %v607
      %v702 = vpack.c.b16 %v612, %v610
      %v703 = vpack.c.b16 %v613, %v611
      %v704 = vpack.c.b16 %v616, %v614
      %v705 = vpack.c.b16 %v617, %v615
      %v706 = vpack.c.b16 %v620, %v618
      %v707 = vpack.c.b16 %v621, %v619
      %v708 = vpack.c.b16 %v624, %v622
      %v709 = vpack.c.b16 %v625, %v623
      %v710 = vpack.c.b16 %v628, %v626
      %v711 = vpack.c.b16 %v629, %v627
      %v712 = vpack.c.b16 %v632, %v630
      %v713 = vpack.c.b16 %v633, %v631
      %v714 = vpack.c.b16 %v636, %v634
      %v715 = vpack.c.b16 %v637, %v635
      %v716 = vpack.c.b16 %v640, %v638
      %v717 = vpack.c.b16 %v641, %v639
      %v718 = vpack.c.b16 %v644, %v642
      %v719 = vpack.c.b16 %v645, %v643
      %v720 = vpack.c.b16 %v648, %v646
      %v721 = vpack.c.b16 %v649, %v647
      %v722 = vpack.c.b16 %v652, %v650
      %v723 = vpack.c.b16 %v653, %v651
      %v724 = vpack.c.b16 %v656, %v654
      %v725 = vpack.c.b16 %v657, %v655
      %v726 = vpack.c.b16 %v660, %v658
      %v727 = vpack.c.b16 %v661, %v659
      %v728 = vpack.c.b16 %v664, %v662
      %v729 = vpack.c.b16 %v665, %v663
      %794 = vmatprep.subr.bf16.mxu0 %v681
      %795 = vmatpush1.bf16.msra.mxu0 %v680
      %796 = vmatprep.subr.bf16.mxu0 %v679
      %797 = vmatpush1.bf16.msra.mxu0 %v678
      %798 = vmatprep.subr.bf16.mxu0 %v677
      %799 = vmatpush1.bf16.msra.mxu0 %v676
      %800 = vmatprep.subr.bf16.mxu0 %v675
      %801 = vmatpush1.bf16.msra.mxu0 %v674
      %802 = vmatprep.subr.bf16.mxu0 %v673
      %803 = vmatpush1.bf16.msra.mxu0 %v672
      %804 = vmatprep.subr.bf16.mxu0 %v671
      %805 = vmatpush1.bf16.msra.mxu0 %v670
      %806 = vmatprep.subr.bf16.mxu0 %v669
      %807 = vmatpush1.bf16.msra.mxu0 %v668
      %808 = vmatprep.subr.bf16.mxu0 %v667
      %809 = vmatpush1.bf16.msra.mxu0 %v666
      %810 = vmatprep.subr.bf16.mxu0 %v697
      %811 = vmatpush2.bf16.msra.mxu0 %v696
      %812 = vmatprep.subr.bf16.mxu0 %v695
      %813 = vmatpush2.bf16.msra.mxu0 %v694
      %814 = vmatprep.subr.bf16.mxu0 %v693
      %815 = vmatpush2.bf16.msra.mxu0 %v692
      %816 = vmatprep.subr.bf16.mxu0 %v691
      %817 = vmatpush2.bf16.msra.mxu0 %v690
      %818 = vmatprep.subr.bf16.mxu0 %v689
      %819 = vmatpush2.bf16.msra.mxu0 %v688
      %820 = vmatprep.subr.bf16.mxu0 %v687
      %821 = vmatpush2.bf16.msra.mxu0 %v686
      %822 = vmatprep.subr.bf16.mxu0 %v685
      %823 = vmatpush2.bf16.msra.mxu0 %v684
      %824 = vmatprep.subr.bf16.mxu0 %v683
      %825 = vmatpush2.bf16.msra.mxu0 %v682
      %826 = vmatprep.mubr.bf16.mxu0 %v467
      %827 = vmatmul.mubr.bf16.gmra.mxu0 %v466
      %v828 = vpop.f32.mrf.mxu0
      %v829 = vadd.f32 0.0, %v828
      %v830 = vpop.f32.mrf.mxu0
      %v831 = vadd.f32 0.0, %v830
      %v832 = vpop.f32.mrf.mxu0
      %v833 = vpop.f32.mrf.mxu0
      %834 = vdwg.mxu0
      %835 = vmatprep.subr.bf16.mxu0 %v713
      %836 = vmatpush1.bf16.msra.mxu0 %v712
      %837 = vmatprep.subr.bf16.mxu0 %v711
      %838 = vmatpush1.bf16.msra.mxu0 %v710
      %839 = vmatprep.subr.bf16.mxu0 %v709
      %840 = vmatpush1.bf16.msra.mxu0 %v708
      %841 = vmatprep.subr.bf16.mxu0 %v707
      %842 = vmatpush1.bf16.msra.mxu0 %v706
      %843 = vmatprep.subr.bf16.mxu0 %v705
      %844 = vmatpush1.bf16.msra.mxu0 %v704
      %845 = vmatprep.subr.bf16.mxu0 %v703
      %846 = vmatpush1.bf16.msra.mxu0 %v702
      %847 = vmatprep.subr.bf16.mxu0 %v701
      %848 = vmatpush1.bf16.msra.mxu0 %v700
      %849 = vmatprep.subr.bf16.mxu0 %v699
      %850 = vmatpush1.bf16.msra.mxu0 %v698
      %851 = vmatprep.subr.bf16.mxu0 %v729
      %852 = vmatpush2.bf16.msra.mxu0 %v728
      %853 = vmatprep.subr.bf16.mxu0 %v727
      %854 = vmatpush2.bf16.msra.mxu0 %v726
      %855 = vmatprep.subr.bf16.mxu0 %v725
      %856 = vmatpush2.bf16.msra.mxu0 %v724
      %857 = vmatprep.subr.bf16.mxu0 %v723
      %858 = vmatpush2.bf16.msra.mxu0 %v722
      %859 = vmatprep.subr.bf16.mxu0 %v721
      %860 = vmatpush2.bf16.msra.mxu0 %v720
      %861 = vmatprep.subr.bf16.mxu0 %v719
      %862 = vmatpush2.bf16.msra.mxu0 %v718
      %863 = vmatprep.subr.bf16.mxu0 %v717
      %864 = vmatpush2.bf16.msra.mxu0 %v716
      %865 = vmatprep.subr.bf16.mxu0 %v715
      %866 = vmatpush2.bf16.msra.mxu0 %v714
      %867 = vmatprep.mubr.bf16.mxu0 %v469
      %868 = vmatmul.mubr.bf16.gmra.mxu0 %v468
      %v869 = vpop.f32.mrf.mxu0
      %v870 = vadd.f32 %v829, %v869
      %v871 = vpop.f32.mrf.mxu0
      %v872 = vadd.f32 %v831, %v871
      %v873 = vpop.f32.mrf.mxu0
      %v874 = vpop.f32.mrf.mxu0
      %875 = vdwg.mxu0
      %v876 = vadd.f32 %v392, %v870
      %v877 = vadd.f32 %v393, %v872
      %878 = vst [vmem:[#allocation2] sm:$0xff] %v876
      %879 = vst [vmem:[#allocation2 + $0x8] sm:$0xff] %v877
      %p880 = scmp.eq.s32.totalorder %s23, 1
      // Predicated region
      $region45: #{fwd.33} parent=39 // pred_check
        %p881 = pneg %p880
      $region46: #{fwd.33} parent=39 // pred_check_branch
        %883 = sbr.rel (%p881) target = $region48
      $region47: #{fwd.33} parent=39 // pred_region
        %v884 = vld [vmem:[#allocation2] sm:$0xff]
        %v885 = vld [vmem:[#allocation2 + $0x8] sm:$0xff]
        %v886 = vld [vmem:[%s359] sm:$0x3]
        %v888 = vlaneseq
        %v889 = vshrl.u32 %v888, 7
        %v890 = vsub.s32 0, %v889
        %v891 = vrot.slane %v886, %v890
        %v892 = vlaneseq
        %v893 = vshrl.u32 %v892, 7
        %v894 = vsub.s32 1, %v893
        %v895 = vrot.slane %v886, %v894
        %v898 = vmul.f32 %v884, %v891
        %v899 = vmul.f32 %v885, %v895
        %v900 = vld [vmem:[%s364] sm:$0x3]
        %v902 = vlaneseq
        %v903 = vshrl.u32 %v902, 7
        %v904 = vsub.s32 0, %v903
        %v905 = vrot.slane %v900, %v904
        %v906 = vlaneseq
        %v907 = vshrl.u32 %v906, 7
        %v908 = vsub.s32 1, %v907
        %v909 = vrot.slane %v900, %v908
        %v912 = vadd.f32 %v898, %v905
        %v913 = vadd.f32 %v899, %v909
        %v914 = vld [vmem:[%s374] sm:$0xff]
        %v915 = vunpack.c.l.bf16 %v914
        %v916 = vunpack.c.h.bf16 %v914
        %v917 = vadd.f32 %v912, %v915
        %v918 = vadd.f32 %v913, %v916
        %v919 = vmax.f32 %v917, 0.0
        %v920 = vmax.f32 %v918, 0.0
        %v921 = vpack.c.bf16 %v919, %v919
        %v922 = vpack.c.bf16 %v920, %v920
        %v925 = vunpack.c.l.b16 %v921
        %v926 = vunpack.c.l.b16 %v922
        %v927 = vpack.c.b16 %v926, %v925
        %929 = vst [vmem:[%s384] sm:$0xff] %v927
      $region48: #{fwd.33} parent=39 // pred_fallthru
        _
      %s930 = smul.u32 2, %s22
      %p931 = scmp.lt.s32.totalorder %s21, 0
      %s932 = scalar_select %p931, %s21, 0
      %p933 = scmp.lt.s32.totalorder %s930, 1
      %s934 = scalar_select %p933, %s930, 1
      %s935 = smul.addr %s932, 2
      %s936 = sadd.s32 %s934, %s935
      %s937 = smul.addr %s936, 4
      %s938 = scalar_lea.vmem %s5, %s937
      // Predicated region
      $region49: #{fwd.33} parent=39 // pred_check
        %p939 = pneg %p191
      $region50: #{fwd.33} parent=39 // pred_check_branch
        %941 = sbr.rel (%p939) target = $region52
      $region51: #{fwd.33} parent=39 // pred_region
        %s942 = smul.u32 2, %s22
      $region52: #{fwd.33} parent=39 // pred_fallthru
        _
      // Predicated region
      $region53: #{fwd.33} parent=39 // pred_check
        %p943 = pneg %p191
      $region54: #{fwd.33} parent=39 // pred_check_branch
        %945 = sbr.rel (%p943) target = $region56
      $region55: #{fwd.33} parent=39 // pred_region
        %s946 = smul.u32 2, %s22
        %p947 = scmp.lt.s32.totalorder %s21, 0
        %s948 = scalar_select %p947, %s21, 0
        %p949 = scmp.lt.s32.totalorder %s946, 1
        %s950 = scalar_select %p949, %s946, 1
        %s951 = smul.addr %s948, 2
        %s952 = sadd.s32 %s950, %s951
        %s953 = smul.addr %s952, 4
        %s954 = scalar_lea.vmem %s5, %s953
      $region56: #{fwd.33} parent=39 // pred_fallthru
        _
    $region40: #{fwd.33} parent=5 // pred_fallthru
      _
    %p955 = scmp.le.s32.totalorder 2, %s11
    // Predicated region
    $region57: #{fwd.33} parent=5 // pred_check
      %p956 = pneg %p955
    $region58: #{fwd.33} parent=5 // pred_check_branch
      %958 = sbr.rel (%p956) target = $region60
    $region59: #{fwd.33} parent=5 // pred_region
      %s959 = ssub.s32 %s11, 2
    $region60: #{fwd.33} parent=5 // pred_fallthru
      _
  $region6: #{fwd.33} parent=0 // loop_footer
    %s15 = sadd.s32 1, %s11
  $region7: #{fwd.33} parent=0 // loop_footer_branch
    %10 = sbr.rel target = $region3
  $region8: #{fwd.33} parent=0 // loop_exit
    _

// kernel: fwd.34
$region0: #{fwd.34}
  #allocation0 [shape = 'u32[]', space=smem, size = 0x4, offset = 0x4, fixed_abs, tag = 'smem constant byte address 0x4 - core index']
  #allocation1 [shape = 'u32[144,128]{1,0:T(1,128)}', space=vmem, size = 0x12000, scoped, tag = 'internal scratch']
  #allocation2 [shape = 'f32[8,256]{1,0:T(8,128)}', space=vmem, size = 0x2000, scoped, tag = 'scratch operand']
  %s0 = inlined_call_operand.vmem [shape: bf16[8,1024], index: 0, kind: input, shape index: {}]
  %s1 = inlined_call_operand.vmem [shape: bf16[1024,256], index: 1, kind: input, shape index: {}]
  %s2 = inlined_call_operand.vmem [shape: f32[1,256], index: 2, kind: input, shape index: {}]
  %s3 = inlined_call_operand.vmem [shape: f32[1,256], index: 3, kind: input, shape index: {}]
  %s4 = inlined_call_operand.vmem [shape: bf16[8,256], index: 4, kind: output, shape index: {}]
  %s5 = sld [smem:[#allocation0]]
  $region57: #{fwd.34} parent=0
    _
  %s7 = ssub.s32 1, %s5
  %s8 = scalar_select 0, %s7, %s5
  loop: start=0, step=1, limit=4
  $region2: #{fwd.34} parent=0 // loop_pre_header
    _
  $region3: #{fwd.34} parent=0 // loop_header
    %s10 = sphi 0, %s14
    %p11 = scmp.ge.s32.totalorder %s10, 4
    %s17 = sphi 0, %s36
    %s18 = sphi 0, %s32
    %s19 = sphi 0, %s28
    %s20 = sphi 0, %s17
    %s21 = sphi 0, %s18
    %s22 = sphi 0, %s19
    %s23 = sphi 0, %s20
    %s24 = sphi 0, %s21
    %s25 = sphi 0, %s22
    %s41 = sphi 0, %s43
    %s44 = sphi 0, %s41
    %s45 = sphi 0, %s44
    %s61 = sphi 0, %s45
    %s69 = sphi 0, %s71
    %s72 = sphi 0, %s69
    %s73 = sphi 0, %s72
    %s89 = sphi 0, %s73
    %s95 = sphi 0, %s97
    %s98 = sphi 0, %s95
    %s99 = sphi 0, %s98
    %s115 = sphi 0, %s99
    %s121 = sphi 0, %s123
    %s124 = sphi 0, %s121
    %s125 = sphi 0, %s124
    %s141 = sphi 0, %s125
    %s149 = sphi 0, %s151
    %s152 = sphi 0, %s149
    %s153 = sphi 0, %s152
    %s169 = sphi 0, %s153
  $region4: #{fwd.34} parent=0 // loop_header_branch
    %13 = sbr.rel (%p11) target = $region8
  $region5: #{fwd.34} parent=0 // loop_body
    %s15 = ssub.s32 %s10, 1
    %s16 = ssub.s32 %s10, 2
    %s26 = sadd.s32 1, %s19
    %p27 = scmp.ge.s32.totalorder %s26, 2
    %s28 = scalar_select %p27, 0, %s26
    %s29 = sadd.s32 1, %s18
    %s30 = scalar_select %p27, %s29, %s18
    %p31 = scmp.ge.s32.totalorder %s30, 1
    %s32 = scalar_select %p31, 0, %s30
    %s33 = sadd.s32 1, %s17
    %s34 = scalar_select %p31, %s33, %s17
    %p35 = scmp.ge.s32.totalorder %s34, 1
    %s36 = scalar_select %p35, 0, %s34
    %s37 = ssub.s32 %s17, %s36
    %s38 = ssub.s32 %s19, %s28
    %s39 = sor.u32 %s37, %s38
    %p40 = scmp.eq.s32.totalorder %s39, 0
    %s42 = sadd.s32 %s41, 1
    %s43 = scalar_select %p40, %s41, %s42
    %p46 = pneg %p40
    %p47 = scmp.eq.s32.totalorder %s10, 1
    %p48 = por %p46, %p47
    %p49 = scmp.ne.s32.totalorder %s41, %s44
    %p50 = scmp.eq.s32.totalorder %s10, 0
    %p51 = por %p49, %p50
    %p52 = scmp.ne.s32.totalorder %s41, %s44
    %p53 = scmp.eq.s32.totalorder %s15, 1
    %p54 = por %p52, %p53
    %p55 = scmp.ne.s32.totalorder %s44, %s45
    %p56 = scmp.eq.s32.totalorder %s15, 0
    %p57 = por %p55, %p56
    %p58 = scmp.ne.s32.totalorder %s44, %s45
    %p59 = scmp.eq.s32.totalorder %s16, 1
    %p60 = por %p58, %p59
    %p62 = scmp.ne.s32.totalorder %s45, %s61
    %p63 = scmp.eq.s32.totalorder %s16, 0
    %p64 = por %p62, %p63
    %s65 = ssub.s32 %s19, %s28
    %s66 = ssub.s32 %s18, %s32
    %s67 = sor.u32 %s65, %s66
    %p68 = scmp.eq.s32.totalorder %s67, 0
    %s70 = sadd.s32 %s69, 1
    %s71 = scalar_select %p68, %s69, %s70
    %p74 = pneg %p68
    %p75 = scmp.eq.s32.totalorder %s10, 1
    %p76 = por %p74, %p75
    %p77 = scmp.ne.s32.totalorder %s69, %s72
    %p78 = scmp.eq.s32.totalorder %s10, 0
    %p79 = por %p77, %p78
    %p80 = scmp.ne.s32.totalorder %s69, %s72
    %p81 = scmp.eq.s32.totalorder %s15, 1
    %p82 = por %p80, %p81
    %p83 = scmp.ne.s32.totalorder %s72, %s73
    %p84 = scmp.eq.s32.totalorder %s15, 0
    %p85 = por %p83, %p84
    %p86 = scmp.ne.s32.totalorder %s72, %s73
    %p87 = scmp.eq.s32.totalorder %s16, 1
    %p88 = por %p86, %p87
    %p90 = scmp.ne.s32.totalorder %s73, %s89
    %p91 = scmp.eq.s32.totalorder %s16, 0
    %p92 = por %p90, %p91
    %s93 = ssub.s32 %s18, %s32
    %p94 = scmp.eq.s32.totalorder %s93, 0
    %s96 = sadd.s32 %s95, 1
    %s97 = scalar_select %p94, %s95, %s96
    %p100 = pneg %p94
    %p101 = scmp.eq.s32.totalorder %s10, 1
    %p102 = por %p100, %p101
    %p103 = scmp.ne.s32.totalorder %s95, %s98
    %p104 = scmp.eq.s32.totalorder %s10, 0
    %p105 = por %p103, %p104
    %p106 = scmp.ne.s32.totalorder %s95, %s98
    %p107 = scmp.eq.s32.totalorder %s15, 1
    %p108 = por %p106, %p107
    %p109 = scmp.ne.s32.totalorder %s98, %s99
    %p110 = scmp.eq.s32.totalorder %s15, 0
    %p111 = por %p109, %p110
    %p112 = scmp.ne.s32.totalorder %s98, %s99
    %p113 = scmp.eq.s32.totalorder %s16, 1
    %p114 = por %p112, %p113
    %p116 = scmp.ne.s32.totalorder %s99, %s115
    %p117 = scmp.eq.s32.totalorder %s16, 0
    %p118 = por %p116, %p117
    %s119 = ssub.s32 %s18, %s32
    %p120 = scmp.eq.s32.totalorder %s119, 0
    %s122 = sadd.s32 %s121, 1
    %s123 = scalar_select %p120, %s121, %s122
    %p126 = pneg %p120
    %p127 = scmp.eq.s32.totalorder %s10, 1
    %p128 = por %p126, %p127
    %p129 = scmp.ne.s32.totalorder %s121, %s124
    %p130 = scmp.eq.s32.totalorder %s10, 0
    %p131 = por %p129, %p130
    %p132 = scmp.ne.s32.totalorder %s121, %s124
    %p133 = scmp.eq.s32.totalorder %s15, 1
    %p134 = por %p132, %p133
    %p135 = scmp.ne.s32.totalorder %s124, %s125
    %p136 = scmp.eq.s32.totalorder %s15, 0
    %p137 = por %p135, %p136
    %p138 = scmp.ne.s32.totalorder %s124, %s125
    %p139 = scmp.eq.s32.totalorder %s16, 1
    %p140 = por %p138, %p139
    %p142 = scmp.ne.s32.totalorder %s125, %s141
    %p143 = scmp.eq.s32.totalorder %s16, 0
    %p144 = por %p142, %p143
    %s145 = ssub.s32 %s17, %s36
    %s146 = ssub.s32 %s18, %s32
    %s147 = sor.u32 %s145, %s146
    %p148 = scmp.eq.s32.totalorder %s147, 0
    %s150 = sadd.s32 %s149, 1
    %s151 = scalar_select %p148, %s149, %s150
    %p154 = pneg %p148
    %p155 = scmp.eq.s32.totalorder %s10, 1
    %p156 = por %p154, %p155
    %p157 = scmp.ne.s32.totalorder %s149, %s152
    %p158 = scmp.eq.s32.totalorder %s10, 0
    %p159 = por %p157, %p158
    %p160 = scmp.ne.s32.totalorder %s149, %s152
    %p161 = scmp.eq.s32.totalorder %s15, 1
    %p162 = por %p160, %p161
    %p163 = scmp.ne.s32.totalorder %s152, %s153
    %p164 = scmp.eq.s32.totalorder %s15, 0
    %p165 = por %p163, %p164
    %p166 = scmp.ne.s32.totalorder %s152, %s153
    %p167 = scmp.eq.s32.totalorder %s16, 1
    %p168 = por %p166, %p167
    %p170 = scmp.ne.s32.totalorder %s153, %s169
    %p171 = scmp.eq.s32.totalorder %s16, 0
    %p172 = por %p170, %p171
    %p173 = scmp.le.s32.totalorder 1, %s10
    %p174 = scmp.lt.s32.totalorder %s10, 3
    %p175 = pnand %p173, %p174
    %p176 = pneg %p175
    // Predicated region
    $region9: #{fwd.34} parent=5 // pred_check
      _
    $region10: #{fwd.34} parent=5 // pred_check_branch
      %178 = sbr.rel (%p175) target = $region12
    $region11: #{fwd.34} parent=5 // pred_region
      %s179 = ssub.s32 %s10, 1
      // Predicated region
      $region13: #{fwd.34} parent=11 // pred_check
        %p180 = pneg %p111
      $region14: #{fwd.34} parent=11 // pred_check_branch
        %182 = sbr.rel (%p180) target = $region16
      $region15: #{fwd.34} parent=11 // pred_region
        %s183 = smul.u32 2, %s21
        %p184 = scmp.lt.s32.totalorder %s183, 1
        %s185 = scalar_select %p184, %s183, 1
        %s186 = scalar_lea.vmem %s2, %s185
        %s187 = smul.u32 2, %s21
      $region16: #{fwd.34} parent=11 // pred_fallthru
        _
      // Predicated region
      $region17: #{fwd.34} parent=11 // pred_check
        %p188 = pneg %p137
      $region18: #{fwd.34} parent=11 // pred_check_branch
        %190 = sbr.rel (%p188) target = $region20
      $region19: #{fwd.34} parent=11 // pred_region
        %s191 = smul.u32 2, %s21
        %p192 = scmp.lt.s32.totalorder %s191, 1
        %s193 = scalar_select %p192, %s191, 1
        %s194 = scalar_lea.vmem %s3, %s193
        %s195 = smul.u32 2, %s21
      $region20: #{fwd.34} parent=11 // pred_fallthru
        _
    $region12: #{fwd.34} parent=5 // pred_fallthru
      _
    %p196 = scmp.lt.s32.totalorder %s10, 2
    // Predicated region
    $region21: #{fwd.34} parent=5 // pred_check
      %p197 = pneg %p196
    $region22: #{fwd.34} parent=5 // pred_check_branch
      %199 = sbr.rel (%p197) target = $region24
    $region23: #{fwd.34} parent=5 // pred_region
      // Predicated region
      $region25: #{fwd.34} parent=23 // pred_check
        %p200 = pneg %p51
      $region26: #{fwd.34} parent=23 // pred_check_branch
        %202 = sbr.rel (%p200) target = $region28
      $region27: #{fwd.34} parent=23 // pred_region
        %s203 = smul.u32 4, %s19
        %p204 = scmp.lt.s32.totalorder %s17, 0
        %s205 = scalar_select %p204, %s17, 0
        %p206 = scmp.lt.s32.totalorder %s203, 7
        %s207 = scalar_select %p206, %s203, 7
        %s208 = smul.addr %s205, 8
        %s209 = sadd.s32 %s207, %s208
        %s210 = smul.addr %s209, 4
        %s211 = scalar_lea.vmem %s0, %s210
        %s212 = smul.u32 4, %s19
      $region28: #{fwd.34} parent=23 // pred_fallthru
        _
      // Predicated region
      $region29: #{fwd.34} parent=23 // pred_check
        %p213 = pneg %p79
      $region30: #{fwd.34} parent=23 // pred_check_branch
        %215 = sbr.rel (%p213) target = $region32
      $region31: #{fwd.34} parent=23 // pred_region
        %s216 = smul.u32 64, %s19
        %s217 = smul.u32 2, %s18
        %p218 = scmp.lt.s32.totalorder %s216, 127
        %s219 = scalar_select %p218, %s216, 127
        %p220 = scmp.lt.s32.totalorder %s217, 1
        %s221 = scalar_select %p220, %s217, 1
        %s222 = smul.addr %s219, 2
        %s223 = sadd.s32 %s221, %s222
        %s224 = smul.addr %s223, 4
        %s225 = scalar_lea.vmem %s1, %s224
        %s226 = smul.u32 64, %s19
        %s227 = smul.u32 2, %s18
      $region32: #{fwd.34} parent=23 // pred_fallthru
        _
    $region24: #{fwd.34} parent=5 // pred_fallthru
      _
    %p228 = scmp.le.s32.totalorder 1, %s10
    %p229 = scmp.lt.s32.totalorder %s10, 3
    %p230 = pnand %p228, %p229
    %p231 = pneg %p230
    // Predicated region
    $region33: #{fwd.34} parent=5 // pred_check
      _
    $region34: #{fwd.34} parent=5 // pred_check_branch
      %233 = sbr.rel (%p230) target = $region36
    $region35: #{fwd.34} parent=5 // pred_region
      %s234 = ssub.s32 %s10, 1
      %s235 = smul.u32 4, %s22
      %p236 = scmp.lt.s32.totalorder %s20, 0
      %s237 = scalar_select %p236, %s20, 0
      %p238 = scmp.lt.s32.totalorder %s235, 7
      %s239 = scalar_select %p238, %s235, 7
      %s240 = smul.addr %s237, 8
      %s241 = sadd.s32 %s239, %s240
      %s242 = smul.addr %s241, 4
      %s243 = scalar_lea.vmem %s0, %s242
      %p244 = pneg %p57
      %p245 = pneg %p54
      %s246 = smul.u32 64, %s22
      %s247 = smul.u32 2, %s21
      %p248 = scmp.lt.s32.totalorder %s246, 127
      %s249 = scalar_select %p248, %s246, 127
      %p250 = scmp.lt.s32.totalorder %s247, 1
      %s251 = scalar_select %p250, %s247, 1
      %s252 = smul.addr %s249, 2
      %s253 = sadd.s32 %s251, %s252
      %s254 = smul.addr %s253, 4
      %s255 = scalar_lea.vmem %s1, %s254
      %p256 = pneg %p85
      %p257 = pneg %p82
      %s258 = smul.u32 2, %s21
      %p259 = scmp.lt.s32.totalorder %s258, 1
      %s260 = scalar_select %p259, %s258, 1
      %s261 = scalar_lea.vmem %s2, %s260
      %p262 = pneg %p111
      %p263 = pneg %p108
      %s264 = smul.u32 2, %s21
      %p265 = scmp.lt.s32.totalorder %s264, 1
      %s266 = scalar_select %p265, %s264, 1
      %s267 = scalar_lea.vmem %s3, %s266
      %p268 = pneg %p137
      %p269 = pneg %p134
      %p270 = pneg %p165
      %p271 = pneg %p162
      %s272 = smul.u32 2, %s21
      %p273 = scmp.lt.s32.totalorder %s20, 0
      %s274 = scalar_select %p273, %s20, 0
      %p275 = scmp.lt.s32.totalorder %s272, 1
      %s276 = scalar_select %p275, %s272, 1
      %s277 = smul.addr %s274, 2
      %s278 = sadd.s32 %s276, %s277
      %s279 = smul.addr %s278, 4
      %s280 = scalar_lea.vmem %s4, %s279
      %s281 = smul.u32 4, %s22
      %p282 = scmp.lt.s32.totalorder %s20, 0
      %s283 = scalar_select %p282, %s20, 0
      %p284 = scmp.lt.s32.totalorder %s281, 7
      %s285 = scalar_select %p284, %s281, 7
      %s286 = smul.addr %s283, 8
      %s287 = sadd.s32 %s285, %s286
      %s288 = smul.addr %s287, 4
      %s289 = scalar_lea.vmem %s0, %s288
      %s290 = smul.u32 4, %s22
      %s291 = smul.u32 64, %s22
      %s292 = smul.u32 2, %s21
      %p293 = scmp.lt.s32.totalorder %s291, 127
      %s294 = scalar_select %p293, %s291, 127
      %p295 = scmp.lt.s32.totalorder %s292, 1
      %s296 = scalar_select %p295, %s292, 1
      %s297 = smul.addr %s294, 2
      %s298 = sadd.s32 %s296, %s297
      %s299 = smul.addr %s298, 4
      %s300 = scalar_lea.vmem %s1, %s299
      %s301 = smul.u32 64, %s22
      %s302 = smul.u32 2, %s21
      %s303 = smul.u32 2, %s21
      %p304 = scmp.lt.s32.totalorder %s303, 1
      %s305 = scalar_select %p304, %s303, 1
      %s306 = scalar_lea.vmem %s2, %s305
      %s307 = smul.u32 2, %s21
      %s308 = smul.u32 2, %s21
      %p309 = scmp.lt.s32.totalorder %s308, 1
      %s310 = scalar_select %p309, %s308, 1
      %s311 = scalar_lea.vmem %s3, %s310
      %s312 = smul.u32 2, %s21
      %s313 = smul.u32 2, %s21
      %p314 = scmp.lt.s32.totalorder %s20, 0
      %s315 = scalar_select %p314, %s20, 0
      %p316 = scmp.lt.s32.totalorder %s313, 1
      %s317 = scalar_select %p316, %s313, 1
      %s318 = smul.addr %s315, 2
      %s319 = sadd.s32 %s317, %s318
      %s320 = smul.addr %s319, 4
      %s321 = scalar_lea.vmem %s4, %s320
      %s322 = smul.u32 2, %s21
      %p323 = scmp.eq.s32.totalorder %s22, 0
      // Predicated region
      $region37: #{fwd.34} parent=35 // pred_check
        %p324 = pneg %p323
      $region38: #{fwd.34} parent=35 // pred_check_branch
        %326 = sbr.rel (%p324) target = $region40
      $region39: #{fwd.34} parent=35 // pred_region
        %327 = vst [vmem:[#allocation2] sm:$0xff] 0.0
        %328 = vst [vmem:[#allocation2 + $0x8] sm:$0xff] 0.0
      $region40: #{fwd.34} parent=35 // pred_fallthru
        _
      %v329 = vld [vmem:[#allocation2] sm:$0xff]
      %v330 = vld [vmem:[#allocation2 + $0x8] sm:$0xff]
      %v331 = vld [vmem:[%s289] sm:$0xff]
      %v332 = vld [vmem:[%s289 + $0x8] sm:$0xff]
      %v333 = vld [vmem:[%s300] sm:$0xff]
      %v334 = vld [vmem:[%s300 + $0x8] sm:$0xff]
      %v335 = vld [vmem:[%s300 + $0x10] sm:$0xff]
      %v336 = vld [vmem:[%s300 + $0x18] sm:$0xff]
      %v337 = vld [vmem:[%s300 + $0x20] sm:$0xff]
      %v338 = vld [vmem:[%s300 + $0x28] sm:$0xff]
      %v339 = vld [vmem:[%s300 + $0x30] sm:$0xff]
      %v340 = vld [vmem:[%s300 + $0x38] sm:$0xff]
      %v341 = vld [vmem:[%s300 + $0x40] sm:$0xff]
      %v342 = vld [vmem:[%s300 + $0x48] sm:$0xff]
      %v343 = vld [vmem:[%s300 + $0x50] sm:$0xff]
      %v344 = vld [vmem:[%s300 + $0x58] sm:$0xff]
      %v345 = vld [vmem:[%s300 + $0x60] sm:$0xff]
      %v346 = vld [vmem:[%s300 + $0x68] sm:$0xff]
      %v347 = vld [vmem:[%s300 + $0x70] sm:$0xff]
      %v348 = vld [vmem:[%s300 + $0x78] sm:$0xff]
      %v349 = vld [vmem:[%s300 + $0x80] sm:$0xff]
      %v350 = vld [vmem:[%s300 + $0x88] sm:$0xff]
      %v351 = vld [vmem:[%s300 + $0x90] sm:$0xff]
      %v352 = vld [vmem:[%s300 + $0x98] sm:$0xff]
      %v353 = vld [vmem:[%s300 + $0xa0] sm:$0xff]
      %v354 = vld [vmem:[%s300 + $0xa8] sm:$0xff]
      %v355 = vld [vmem:[%s300 + $0xb0] sm:$0xff]
      %v356 = vld [vmem:[%s300 + $0xb8] sm:$0xff]
      %v357 = vld [vmem:[%s300 + $0xc0] sm:$0xff]
      %v358 = vld [vmem:[%s300 + $0xc8] sm:$0xff]
      %v359 = vld [vmem:[%s300 + $0xd0] sm:$0xff]
      %v360 = vld [vmem:[%s300 + $0xd8] sm:$0xff]
      %v361 = vld [vmem:[%s300 + $0xe0] sm:$0xff]
      %v362 = vld [vmem:[%s300 + $0xe8] sm:$0xff]
      %v363 = vld [vmem:[%s300 + $0xf0] sm:$0xff]
      %v364 = vld [vmem:[%s300 + $0xf8] sm:$0xff]
      %v365 = vld [vmem:[%s300 + $0x100] sm:$0xff]
      %v366 = vld [vmem:[%s300 + $0x108] sm:$0xff]
      %v367 = vld [vmem:[%s300 + $0x110] sm:$0xff]
      %v368 = vld [vmem:[%s300 + $0x118] sm:$0xff]
      %v369 = vld [vmem:[%s300 + $0x120] sm:$0xff]
      %v370 = vld [vmem:[%s300 + $0x128] sm:$0xff]
      %v371 = vld [vmem:[%s300 + $0x130] sm:$0xff]
      %v372 = vld [vmem:[%s300 + $0x138] sm:$0xff]
      %v373 = vld [vmem:[%s300 + $0x140] sm:$0xff]
      %v374 = vld [vmem:[%s300 + $0x148] sm:$0xff]
      %v375 = vld [vmem:[%s300 + $0x150] sm:$0xff]
      %v376 = vld [vmem:[%s300 + $0x158] sm:$0xff]
      %v377 = vld [vmem:[%s300 + $0x160] sm:$0xff]
      %v378 = vld [vmem:[%s300 + $0x168] sm:$0xff]
      %v379 = vld [vmem:[%s300 + $0x170] sm:$0xff]
      %v380 = vld [vmem:[%s300 + $0x178] sm:$0xff]
      %v381 = vld [vmem:[%s300 + $0x180] sm:$0xff]
      %v382 = vld [vmem:[%s300 + $0x188] sm:$0xff]
      %v383 = vld [vmem:[%s300 + $0x190] sm:$0xff]
      %v384 = vld [vmem:[%s300 + $0x198] sm:$0xff]
      %v385 = vld [vmem:[%s300 + $0x1a0] sm:$0xff]
      %v386 = vld [vmem:[%s300 + $0x1a8] sm:$0xff]
      %v387 = vld [vmem:[%s300 + $0x1b0] sm:$0xff]
      %v388 = vld [vmem:[%s300 + $0x1b8] sm:$0xff]
      %v389 = vld [vmem:[%s300 + $0x1c0] sm:$0xff]
      %v390 = vld [vmem:[%s300 + $0x1c8] sm:$0xff]
      %v391 = vld [vmem:[%s300 + $0x1d0] sm:$0xff]
      %v392 = vld [vmem:[%s300 + $0x1d8] sm:$0xff]
      %v393 = vld [vmem:[%s300 + $0x1e0] sm:$0xff]
      %v394 = vld [vmem:[%s300 + $0x1e8] sm:$0xff]
      %v395 = vld [vmem:[%s300 + $0x1f0] sm:$0xff]
      %v396 = vld [vmem:[%s300 + $0x1f8] sm:$0xff]
      %v399 = vunpack.c.l.b16 %v331
      %v400 = vunpack.c.h.b16 %v331
      %v401 = vunpack.c.l.b16 %v332
      %v402 = vunpack.c.h.b16 %v332
      %v403 = vpack.c.b16 %v399, %v399
      %v404 = vpack.c.b16 %v400, %v400
      %v405 = vpack.c.b16 %v401, %v401
      %v406 = vpack.c.b16 %v402, %v402
      %v475 = vunpack.c.l.b16 %v333
      %v476 = vunpack.c.h.b16 %v333
      %v477 = vunpack.c.l.b16 %v334
      %v478 = vunpack.c.h.b16 %v334
      %v479 = vunpack.c.l.b16 %v335
      %v480 = vunpack.c.h.b16 %v335
      %v481 = vunpack.c.l.b16 %v336
      %v482 = vunpack.c.h.b16 %v336
      %v483 = vunpack.c.l.b16 %v337
      %v484 = vunpack.c.h.b16 %v337
      %v485 = vunpack.c.l.b16 %v338
      %v486 = vunpack.c.h.b16 %v338
      %v487 = vunpack.c.l.b16 %v339
      %v488 = vunpack.c.h.b16 %v339
      %v489 = vunpack.c.l.b16 %v340
      %v490 = vunpack.c.h.b16 %v340
      %v491 = vunpack.c.l.b16 %v341
      %v492 = vunpack.c.h.b16 %v341
      %v493 = vunpack.c.l.b16 %v342
      %v494 = vunpack.c.h.b16 %v342
      %v495 = vunpack.c.l.b16 %v343
      %v496 = vunpack.c.h.b16 %v343
      %v497 = vunpack.c.l.b16 %v344
      %v498 = vunpack.c.h.b16 %v344
      %v499 = vunpack.c.l.b16 %v345
      %v500 = vunpack.c.h.b16 %v345
      %v501 = vunpack.c.l.b16 %v346
      %v502 = vunpack.c.h.b16 %v346
      %v503 = vunpack.c.l.b16 %v347
      %v504 = vunpack.c.h.b16 %v347
      %v505 = vunpack.c.l.b16 %v348
      %v506 = vunpack.c.h.b16 %v348
      %v507 = vunpack.c.l.b16 %v349
      %v508 = vunpack.c.h.b16 %v349
      %v509 = vunpack.c.l.b16 %v350
      %v510 = vunpack.c.h.b16 %v350
      %v511 = vunpack.c.l.b16 %v351
      %v512 = vunpack.c.h.b16 %v351
      %v513 = vunpack.c.l.b16 %v352
      %v514 = vunpack.c.h.b16 %v352
      %v515 = vunpack.c.l.b16 %v353
      %v516 = vunpack.c.h.b16 %v353
      %v517 = vunpack.c.l.b16 %v354
      %v518 = vunpack.c.h.b16 %v354
      %v519 = vunpack.c.l.b16 %v355
      %v520 = vunpack.c.h.b16 %v355
      %v521 = vunpack.c.l.b16 %v356
      %v522 = vunpack.c.h.b16 %v356
      %v523 = vunpack.c.l.b16 %v357
      %v524 = vunpack.c.h.b16 %v357
      %v525 = vunpack.c.l.b16 %v358
      %v526 = vunpack.c.h.b16 %v358
      %v527 = vunpack.c.l.b16 %v359
      %v528 = vunpack.c.h.b16 %v359
      %v529 = vunpack.c.l.b16 %v360
      %v530 = vunpack.c.h.b16 %v360
      %v531 = vunpack.c.l.b16 %v361
      %v532 = vunpack.c.h.b16 %v361
      %v533 = vunpack.c.l.b16 %v362
      %v534 = vunpack.c.h.b16 %v362
      %v535 = vunpack.c.l.b16 %v363
      %v536 = vunpack.c.h.b16 %v363
      %v537 = vunpack.c.l.b16 %v364
      %v538 = vunpack.c.h.b16 %v364
      %v539 = vunpack.c.l.b16 %v365
      %v540 = vunpack.c.h.b16 %v365
      %v541 = vunpack.c.l.b16 %v366
      %v542 = vunpack.c.h.b16 %v366
      %v543 = vunpack.c.l.b16 %v367
      %v544 = vunpack.c.h.b16 %v367
      %v545 = vunpack.c.l.b16 %v368
      %v546 = vunpack.c.h.b16 %v368
      %v547 = vunpack.c.l.b16 %v369
      %v548 = vunpack.c.h.b16 %v369
      %v549 = vunpack.c.l.b16 %v370
      %v550 = vunpack.c.h.b16 %v370
      %v551 = vunpack.c.l.b16 %v371
      %v552 = vunpack.c.h.b16 %v371
      %v553 = vunpack.c.l.b16 %v372
      %v554 = vunpack.c.h.b16 %v372
      %v555 = vunpack.c.l.b16 %v373
      %v556 = vunpack.c.h.b16 %v373
      %v557 = vunpack.c.l.b16 %v374
      %v558 = vunpack.c.h.b16 %v374
      %v559 = vunpack.c.l.b16 %v375
      %v560 = vunpack.c.h.b16 %v375
      %v561 = vunpack.c.l.b16 %v376
      %v562 = vunpack.c.h.b16 %v376
      %v563 = vunpack.c.l.b16 %v377
      %v564 = vunpack.c.h.b16 %v377
      %v565 = vunpack.c.l.b16 %v378
      %v566 = vunpack.c.h.b16 %v378
      %v567 = vunpack.c.l.b16 %v379
      %v568 = vunpack.c.h.b16 %v379
      %v569 = vunpack.c.l.b16 %v380
      %v570 = vunpack.c.h.b16 %v380
      %v571 = vunpack.c.l.b16 %v381
      %v572 = vunpack.c.h.b16 %v381
      %v573 = vunpack.c.l.b16 %v382
      %v574 = vunpack.c.h.b16 %v382
      %v575 = vunpack.c.l.b16 %v383
      %v576 = vunpack.c.h.b16 %v383
      %v577 = vunpack.c.l.b16 %v384
      %v578 = vunpack.c.h.b16 %v384
      %v579 = vunpack.c.l.b16 %v385
      %v580 = vunpack.c.h.b16 %v385
      %v581 = vunpack.c.l.b16 %v386
      %v582 = vunpack.c.h.b16 %v386
      %v583 = vunpack.c.l.b16 %v387
      %v584 = vunpack.c.h.b16 %v387
      %v585 = vunpack.c.l.b16 %v388
      %v586 = vunpack.c.h.b16 %v388
      %v587 = vunpack.c.l.b16 %v389
      %v588 = vunpack.c.h.b16 %v389
      %v589 = vunpack.c.l.b16 %v390
      %v590 = vunpack.c.h.b16 %v390
      %v591 = vunpack.c.l.b16 %v391
      %v592 = vunpack.c.h.b16 %v391
      %v593 = vunpack.c.l.b16 %v392
      %v594 = vunpack.c.h.b16 %v392
      %v595 = vunpack.c.l.b16 %v393
      %v596 = vunpack.c.h.b16 %v393
      %v597 = vunpack.c.l.b16 %v394
      %v598 = vunpack.c.h.b16 %v394
      %v599 = vunpack.c.l.b16 %v395
      %v600 = vunpack.c.h.b16 %v395
      %v601 = vunpack.c.l.b16 %v396
      %v602 = vunpack.c.h.b16 %v396
      %v603 = vpack.c.b16 %v477, %v475
      %v604 = vpack.c.b16 %v478, %v476
      %v605 = vpack.c.b16 %v481, %v479
      %v606 = vpack.c.b16 %v482, %v480
      %v607 = vpack.c.b16 %v485, %v483
      %v608 = vpack.c.b16 %v486, %v484
      %v609 = vpack.c.b16 %v489, %v487
      %v610 = vpack.c.b16 %v490, %v488
      %v611 = vpack.c.b16 %v493, %v491
      %v612 = vpack.c.b16 %v494, %v492
      %v613 = vpack.c.b16 %v497, %v495
      %v614 = vpack.c.b16 %v498, %v496
      %v615 = vpack.c.b16 %v501, %v499
      %v616 = vpack.c.b16 %v502, %v500
      %v617 = vpack.c.b16 %v505, %v503
      %v618 = vpack.c.b16 %v506, %v504
      %v619 = vpack.c.b16 %v509, %v507
      %v620 = vpack.c.b16 %v510, %v508
      %v621 = vpack.c.b16 %v513, %v511
      %v622 = vpack.c.b16 %v514, %v512
      %v623 = vpack.c.b16 %v517, %v515
      %v624 = vpack.c.b16 %v518, %v516
      %v625 = vpack.c.b16 %v521, %v519
      %v626 = vpack.c.b16 %v522, %v520
      %v627 = vpack.c.b16 %v525, %v523
      %v628 = vpack.c.b16 %v526, %v524
      %v629 = vpack.c.b16 %v529, %v527
      %v630 = vpack.c.b16 %v530, %v528
      %v631 = vpack.c.b16 %v533, %v531
      %v632 = vpack.c.b16 %v534, %v532
      %v633 = vpack.c.b16 %v537, %v535
      %v634 = vpack.c.b16 %v538, %v536
      %v635 = vpack.c.b16 %v541, %v539
      %v636 = vpack.c.b16 %v542, %v540
      %v637 = vpack.c.b16 %v545, %v543
      %v638 = vpack.c.b16 %v546, %v544
      %v639 = vpack.c.b16 %v549, %v547
      %v640 = vpack.c.b16 %v550, %v548
      %v641 = vpack.c.b16 %v553, %v551
      %v642 = vpack.c.b16 %v554, %v552
      %v643 = vpack.c.b16 %v557, %v555
      %v644 = vpack.c.b16 %v558, %v556
      %v645 = vpack.c.b16 %v561, %v559
      %v646 = vpack.c.b16 %v562, %v560
      %v647 = vpack.c.b16 %v565, %v563
      %v648 = vpack.c.b16 %v566, %v564
      %v649 = vpack.c.b16 %v569, %v567
      %v650 = vpack.c.b16 %v570, %v568
      %v651 = vpack.c.b16 %v573, %v571
      %v652 = vpack.c.b16 %v574, %v572
      %v653 = vpack.c.b16 %v577, %v575
      %v654 = vpack.c.b16 %v578, %v576
      %v655 = vpack.c.b16 %v581, %v579
      %v656 = vpack.c.b16 %v582, %v580
      %v657 = vpack.c.b16 %v585, %v583
      %v658 = vpack.c.b16 %v586, %v584
      %v659 = vpack.c.b16 %v589, %v587
      %v660 = vpack.c.b16 %v590, %v588
      %v661 = vpack.c.b16 %v593, %v591
      %v662 = vpack.c.b16 %v594, %v592
      %v663 = vpack.c.b16 %v597, %v595
      %v664 = vpack.c.b16 %v598, %v596
      %v665 = vpack.c.b16 %v601, %v599
      %v666 = vpack.c.b16 %v602, %v600
      %731 = vmatprep.subr.bf16.mxu0 %v618
      %732 = vmatpush1.bf16.msra.mxu0 %v617
      %733 = vmatprep.subr.bf16.mxu0 %v616
      %734 = vmatpush1.bf16.msra.mxu0 %v615
      %735 = vmatprep.subr.bf16.mxu0 %v614
      %736 = vmatpush1.bf16.msra.mxu0 %v613
      %737 = vmatprep.subr.bf16.mxu0 %v612
      %738 = vmatpush1.bf16.msra.mxu0 %v611
      %739 = vmatprep.subr.bf16.mxu0 %v610
      %740 = vmatpush1.bf16.msra.mxu0 %v609
      %741 = vmatprep.subr.bf16.mxu0 %v608
      %742 = vmatpush1.bf16.msra.mxu0 %v607
      %743 = vmatprep.subr.bf16.mxu0 %v606
      %744 = vmatpush1.bf16.msra.mxu0 %v605
      %745 = vmatprep.subr.bf16.mxu0 %v604
      %746 = vmatpush1.bf16.msra.mxu0 %v603
      %747 = vmatprep.subr.bf16.mxu0 %v634
      %748 = vmatpush2.bf16.msra.mxu0 %v633
      %749 = vmatprep.subr.bf16.mxu0 %v632
      %750 = vmatpush2.bf16.msra.mxu0 %v631
      %751 = vmatprep.subr.bf16.mxu0 %v630
      %752 = vmatpush2.bf16.msra.mxu0 %v629
      %753 = vmatprep.subr.bf16.mxu0 %v628
      %754 = vmatpush2.bf16.msra.mxu0 %v627
      %755 = vmatprep.subr.bf16.mxu0 %v626
      %756 = vmatpush2.bf16.msra.mxu0 %v625
      %757 = vmatprep.subr.bf16.mxu0 %v624
      %758 = vmatpush2.bf16.msra.mxu0 %v623
      %759 = vmatprep.subr.bf16.mxu0 %v622
      %760 = vmatpush2.bf16.msra.mxu0 %v621
      %761 = vmatprep.subr.bf16.mxu0 %v620
      %762 = vmatpush2.bf16.msra.mxu0 %v619
      %763 = vmatprep.mubr.bf16.mxu0 %v404
      %764 = vmatmul.mubr.bf16.gmra.mxu0 %v403
      %v765 = vpop.f32.mrf.mxu0
      %v766 = vadd.f32 0.0, %v765
      %v767 = vpop.f32.mrf.mxu0
      %v768 = vadd.f32 0.0, %v767
      %v769 = vpop.f32.mrf.mxu0
      %v770 = vpop.f32.mrf.mxu0
      %771 = vdwg.mxu0
      %772 = vmatprep.subr.bf16.mxu0 %v650
      %773 = vmatpush1.bf16.msra.mxu0 %v649
      %774 = vmatprep.subr.bf16.mxu0 %v648
      %775 = vmatpush1.bf16.msra.mxu0 %v647
      %776 = vmatprep.subr.bf16.mxu0 %v646
      %777 = vmatpush1.bf16.msra.mxu0 %v645
      %778 = vmatprep.subr.bf16.mxu0 %v644
      %779 = vmatpush1.bf16.msra.mxu0 %v643
      %780 = vmatprep.subr.bf16.mxu0 %v642
      %781 = vmatpush1.bf16.msra.mxu0 %v641
      %782 = vmatprep.subr.bf16.mxu0 %v640
      %783 = vmatpush1.bf16.msra.mxu0 %v639
      %784 = vmatprep.subr.bf16.mxu0 %v638
      %785 = vmatpush1.bf16.msra.mxu0 %v637
      %786 = vmatprep.subr.bf16.mxu0 %v636
      %787 = vmatpush1.bf16.msra.mxu0 %v635
      %788 = vmatprep.subr.bf16.mxu0 %v666
      %789 = vmatpush2.bf16.msra.mxu0 %v665
      %790 = vmatprep.subr.bf16.mxu0 %v664
      %791 = vmatpush2.bf16.msra.mxu0 %v663
      %792 = vmatprep.subr.bf16.mxu0 %v662
      %793 = vmatpush2.bf16.msra.mxu0 %v661
      %794 = vmatprep.subr.bf16.mxu0 %v660
      %795 = vmatpush2.bf16.msra.mxu0 %v659
      %796 = vmatprep.subr.bf16.mxu0 %v658
      %797 = vmatpush2.bf16.msra.mxu0 %v657
      %798 = vmatprep.subr.bf16.mxu0 %v656
      %799 = vmatpush2.bf16.msra.mxu0 %v655
      %800 = vmatprep.subr.bf16.mxu0 %v654
      %801 = vmatpush2.bf16.msra.mxu0 %v653
      %802 = vmatprep.subr.bf16.mxu0 %v652
      %803 = vmatpush2.bf16.msra.mxu0 %v651
      %804 = vmatprep.mubr.bf16.mxu0 %v406
      %805 = vmatmul.mubr.bf16.gmra.mxu0 %v405
      %v806 = vpop.f32.mrf.mxu0
      %v807 = vadd.f32 %v766, %v806
      %v808 = vpop.f32.mrf.mxu0
      %v809 = vadd.f32 %v768, %v808
      %v810 = vpop.f32.mrf.mxu0
      %v811 = vpop.f32.mrf.mxu0
      %812 = vdwg.mxu0
      %v813 = vadd.f32 %v329, %v807
      %v814 = vadd.f32 %v330, %v809
      %815 = vst [vmem:[#allocation2] sm:$0xff] %v813
      %816 = vst [vmem:[#allocation2 + $0x8] sm:$0xff] %v814
      %p817 = scmp.eq.s32.totalorder %s22, 1
      // Predicated region
      $region41: #{fwd.34} parent=35 // pred_check
        %p818 = pneg %p817
      $region42: #{fwd.34} parent=35 // pred_check_branch
        %820 = sbr.rel (%p818) target = $region44
      $region43: #{fwd.34} parent=35 // pred_region
        %v821 = vld [vmem:[#allocation2] sm:$0xff]
        %v822 = vld [vmem:[#allocation2 + $0x8] sm:$0xff]
        %v823 = vld [vmem:[%s306] sm:$0x3]
        %v825 = vlaneseq
        %v826 = vshrl.u32 %v825, 7
        %v827 = vsub.s32 0, %v826
        %v828 = vrot.slane %v823, %v827
        %v829 = vlaneseq
        %v830 = vshrl.u32 %v829, 7
        %v831 = vsub.s32 1, %v830
        %v832 = vrot.slane %v823, %v831
        %v835 = vmul.f32 %v821, %v828
        %v836 = vmul.f32 %v822, %v832
        %v837 = vld [vmem:[%s311] sm:$0x3]
        %v839 = vlaneseq
        %v840 = vshrl.u32 %v839, 7
        %v841 = vsub.s32 0, %v840
        %v842 = vrot.slane %v837, %v841
        %v843 = vlaneseq
        %v844 = vshrl.u32 %v843, 7
        %v845 = vsub.s32 1, %v844
        %v846 = vrot.slane %v837, %v845
        %v849 = vadd.f32 %v835, %v842
        %v850 = vadd.f32 %v836, %v846
        %v851 = vmax.f32 %v849, 0.0
        %v852 = vmax.f32 %v850, 0.0
        %v853 = vpack.c.bf16 %v851, %v851
        %v854 = vpack.c.bf16 %v852, %v852
        %v857 = vunpack.c.l.b16 %v853
        %v858 = vunpack.c.l.b16 %v854
        %v859 = vpack.c.b16 %v858, %v857
        %861 = vst [vmem:[%s321] sm:$0xff] %v859
      $region44: #{fwd.34} parent=35 // pred_fallthru
        _
      %s862 = smul.u32 2, %s21
      %p863 = scmp.lt.s32.totalorder %s20, 0
      %s864 = scalar_select %p863, %s20, 0
      %p865 = scmp.lt.s32.totalorder %s862, 1
      %s866 = scalar_select %p865, %s862, 1
      %s867 = smul.addr %s864, 2
      %s868 = sadd.s32 %s866, %s867
      %s869 = smul.addr %s868, 4
      %s870 = scalar_lea.vmem %s4, %s869
      // Predicated region
      $region45: #{fwd.34} parent=35 // pred_check
        %p871 = pneg %p162
      $region46: #{fwd.34} parent=35 // pred_check_branch
        %873 = sbr.rel (%p871) target = $region48
      $region47: #{fwd.34} parent=35 // pred_region
        %s874 = smul.u32 2, %s21
      $region48: #{fwd.34} parent=35 // pred_fallthru
        _
      // Predicated region
      $region49: #{fwd.34} parent=35 // pred_check
        %p875 = pneg %p162
      $region50: #{fwd.34} parent=35 // pred_check_branch
        %877 = sbr.rel (%p875) target = $region52
      $region51: #{fwd.34} parent=35 // pred_region
        %s878 = smul.u32 2, %s21
        %p879 = scmp.lt.s32.totalorder %s20, 0
        %s880 = scalar_select %p879, %s20, 0
        %p881 = scmp.lt.s32.totalorder %s878, 1
        %s882 = scalar_select %p881, %s878, 1
        %s883 = smul.addr %s880, 2
        %s884 = sadd.s32 %s882, %s883
        %s885 = smul.addr %s884, 4
        %s886 = scalar_lea.vmem %s4, %s885
      $region52: #{fwd.34} parent=35 // pred_fallthru
        _
    $region36: #{fwd.34} parent=5 // pred_fallthru
      _
    %p887 = scmp.le.s32.totalorder 2, %s10
    // Predicated region
    $region53: #{fwd.34} parent=5 // pred_check
      %p888 = pneg %p887
    $region54: #{fwd.34} parent=5 // pred_check_branch
      %890 = sbr.rel (%p888) target = $region56
    $region55: #{fwd.34} parent=5 // pred_region
      %s891 = ssub.s32 %s10, 2
    $region56: #{fwd.34} parent=5 // pred_fallthru
      _
  $region6: #{fwd.34} parent=0 // loop_footer
    %s14 = sadd.s32 1, %s10
  $region7: #{fwd.34} parent=0 // loop_footer_branch
    %9 = sbr.rel target = $region3
  $region8: #{fwd.34} parent=0 // loop_exit
    _

// kernel: fwd.36
$region0: #{fwd.36}
  #allocation0 [shape = 'u32[]', space=smem, size = 0x4, offset = 0x4, fixed_abs, tag = 'smem constant byte address 0x4 - core index']
  #allocation1 [shape = 'u32[144,128]{1,0:T(1,128)}', space=vmem, size = 0x12000, scoped, tag = 'internal scratch']
  #allocation2 [shape = 'f32[8,256]{1,0:T(8,128)}', space=vmem, size = 0x2000, scoped, tag = 'scratch operand']
  %s0 = inlined_call_operand.vmem [shape: bf16[8,1024], index: 0, kind: input, shape index: {}]
  %s1 = inlined_call_operand.vmem [shape: bf16[1024,512], index: 1, kind: input, shape index: {}]
  %s2 = inlined_call_operand.vmem [shape: f32[1,512], index: 2, kind: input, shape index: {}]
  %s3 = inlined_call_operand.vmem [shape: f32[1,512], index: 3, kind: input, shape index: {}]
  %s4 = inlined_call_operand.vmem [shape: bf16[8,512], index: 4, kind: output, shape index: {}]
  %s5 = sld [smem:[#allocation0]]
  $region95: #{fwd.36} parent=0
    _
  %s7 = ssub.s32 1, %s5
  %s8 = scalar_select 0, %s7, %s5
  $region1: #{fwd.36} parent=0
    #allocation3 [shape = 'u8[524288]{0}', space=vmem, size = 0x80000, scoped, tag = 'input window, operand 1']
    loop: start=0, step=1, limit=6
    $region2: #{fwd.36} parent=1 // loop_pre_header
      _
    $region3: #{fwd.36} parent=1 // loop_header
      %s10 = sphi 0, %s14
      %p11 = scmp.ge.s32.totalorder %s10, 6
      %s17 = sphi 0, %s36
      %s18 = sphi 0, %s32
      %s19 = sphi 0, %s28
      %s20 = sphi 0, %s17
      %s21 = sphi 0, %s18
      %s22 = sphi 0, %s19
      %s23 = sphi 0, %s20
      %s24 = sphi 0, %s21
      %s25 = sphi 0, %s22
      %s41 = sphi 0, %s43
      %s44 = sphi 0, %s41
      %s45 = sphi 0, %s44
      %s61 = sphi 0, %s45
      %s69 = sphi 0, %s71
      %s72 = sphi 0, %s69
      %s73 = sphi 0, %s72
      %s89 = sphi 0, %s73
      %s95 = sphi 0, %s97
      %s98 = sphi 0, %s95
      %s99 = sphi 0, %s98
      %s115 = sphi 0, %s99
      %s121 = sphi 0, %s123
      %s124 = sphi 0, %s121
      %s125 = sphi 0, %s124
      %s141 = sphi 0, %s125
      %s149 = sphi 0, %s151
      %s152 = sphi 0, %s149
      %s153 = sphi 0, %s152
      %s169 = sphi 0, %s153
    $region4: #{fwd.36} parent=1 // loop_header_branch
      %13 = sbr.rel (%p11) target = $region8
    $region5: #{fwd.36} parent=1 // loop_body
      %s15 = ssub.s32 %s10, 1
      %s16 = ssub.s32 %s10, 2
      %s26 = sadd.s32 1, %s19
      %p27 = scmp.ge.s32.totalorder %s26, 2
      %s28 = scalar_select %p27, 0, %s26
      %s29 = sadd.s32 1, %s18
      %s30 = scalar_select %p27, %s29, %s18
      %p31 = scmp.ge.s32.totalorder %s30, 2
      %s32 = scalar_select %p31, 0, %s30
      %s33 = sadd.s32 1, %s17
      %s34 = scalar_select %p31, %s33, %s17
      %p35 = scmp.ge.s32.totalorder %s34, 1
      %s36 = scalar_select %p35, 0, %s34
      %s37 = ssub.s32 %s17, %s36
      %s38 = ssub.s32 %s19, %s28
      %s39 = sor.u32 %s37, %s38
      %p40 = scmp.eq.s32.totalorder %s39, 0
      %s42 = sadd.s32 %s41, 1
      %s43 = scalar_select %p40, %s41, %s42
      %p46 = pneg %p40
      %p47 = scmp.eq.s32.totalorder %s10, 3
      %p48 = por %p46, %p47
      %p49 = scmp.ne.s32.totalorder %s41, %s44
      %p50 = scmp.eq.s32.totalorder %s10, 0
      %p51 = por %p49, %p50
      %p52 = scmp.ne.s32.totalorder %s41, %s44
      %p53 = scmp.eq.s32.totalorder %s15, 3
      %p54 = por %p52, %p53
      %p55 = scmp.ne.s32.totalorder %s44, %s45
      %p56 = scmp.eq.s32.totalorder %s15, 0
      %p57 = por %p55, %p56
      %p58 = scmp.ne.s32.totalorder %s44, %s45
      %p59 = scmp.eq.s32.totalorder %s16, 3
      %p60 = por %p58, %p59
      %p62 = scmp.ne.s32.totalorder %s45, %s61
      %p63 = scmp.eq.s32.totalorder %s16, 0
      %p64 = por %p62, %p63
      %s65 = ssub.s32 %s19, %s28
      %s66 = ssub.s32 %s18, %s32
      %s67 = sor.u32 %s65, %s66
      %p68 = scmp.eq.s32.totalorder %s67, 0
      %s70 = sadd.s32 %s69, 1
      %s71 = scalar_select %p68, %s69, %s70
      %p74 = pneg %p68
      %p75 = scmp.eq.s32.totalorder %s10, 3
      %p76 = por %p74, %p75
      %p77 = scmp.ne.s32.totalorder %s69, %s72
      %p78 = scmp.eq.s32.totalorder %s10, 0
      %p79 = por %p77, %p78
      %p80 = scmp.ne.s32.totalorder %s69, %s72
      %p81 = scmp.eq.s32.totalorder %s15, 3
      %p82 = por %p80, %p81
      %p83 = scmp.ne.s32.totalorder %s72, %s73
      %p84 = scmp.eq.s32.totalorder %s15, 0
      %p85 = por %p83, %p84
      %p86 = scmp.ne.s32.totalorder %s72, %s73
      %p87 = scmp.eq.s32.totalorder %s16, 3
      %p88 = por %p86, %p87
      %p90 = scmp.ne.s32.totalorder %s73, %s89
      %p91 = scmp.eq.s32.totalorder %s16, 0
      %p92 = por %p90, %p91
      %s93 = ssub.s32 %s18, %s32
      %p94 = scmp.eq.s32.totalorder %s93, 0
      %s96 = sadd.s32 %s95, 1
      %s97 = scalar_select %p94, %s95, %s96
      %p100 = pneg %p94
      %p101 = scmp.eq.s32.totalorder %s10, 3
      %p102 = por %p100, %p101
      %p103 = scmp.ne.s32.totalorder %s95, %s98
      %p104 = scmp.eq.s32.totalorder %s10, 0
      %p105 = por %p103, %p104
      %p106 = scmp.ne.s32.totalorder %s95, %s98
      %p107 = scmp.eq.s32.totalorder %s15, 3
      %p108 = por %p106, %p107
      %p109 = scmp.ne.s32.totalorder %s98, %s99
      %p110 = scmp.eq.s32.totalorder %s15, 0
      %p111 = por %p109, %p110
      %p112 = scmp.ne.s32.totalorder %s98, %s99
      %p113 = scmp.eq.s32.totalorder %s16, 3
      %p114 = por %p112, %p113
      %p116 = scmp.ne.s32.totalorder %s99, %s115
      %p117 = scmp.eq.s32.totalorder %s16, 0
      %p118 = por %p116, %p117
      %s119 = ssub.s32 %s18, %s32
      %p120 = scmp.eq.s32.totalorder %s119, 0
      %s122 = sadd.s32 %s121, 1
      %s123 = scalar_select %p120, %s121, %s122
      %p126 = pneg %p120
      %p127 = scmp.eq.s32.totalorder %s10, 3
      %p128 = por %p126, %p127
      %p129 = scmp.ne.s32.totalorder %s121, %s124
      %p130 = scmp.eq.s32.totalorder %s10, 0
      %p131 = por %p129, %p130
      %p132 = scmp.ne.s32.totalorder %s121, %s124
      %p133 = scmp.eq.s32.totalorder %s15, 3
      %p134 = por %p132, %p133
      %p135 = scmp.ne.s32.totalorder %s124, %s125
      %p136 = scmp.eq.s32.totalorder %s15, 0
      %p137 = por %p135, %p136
      %p138 = scmp.ne.s32.totalorder %s124, %s125
      %p139 = scmp.eq.s32.totalorder %s16, 3
      %p140 = por %p138, %p139
      %p142 = scmp.ne.s32.totalorder %s125, %s141
      %p143 = scmp.eq.s32.totalorder %s16, 0
      %p144 = por %p142, %p143
      %s145 = ssub.s32 %s17, %s36
      %s146 = ssub.s32 %s18, %s32
      %s147 = sor.u32 %s145, %s146
      %p148 = scmp.eq.s32.totalorder %s147, 0
      %s150 = sadd.s32 %s149, 1
      %s151 = scalar_select %p148, %s149, %s150
      %p154 = pneg %p148
      %p155 = scmp.eq.s32.totalorder %s10, 3
      %p156 = por %p154, %p155
      %p157 = scmp.ne.s32.totalorder %s149, %s152
      %p158 = scmp.eq.s32.totalorder %s10, 0
      %p159 = por %p157, %p158
      %p160 = scmp.ne.s32.totalorder %s149, %s152
      %p161 = scmp.eq.s32.totalorder %s15, 3
      %p162 = por %p160, %p161
      %p163 = scmp.ne.s32.totalorder %s152, %s153
      %p164 = scmp.eq.s32.totalorder %s15, 0
      %p165 = por %p163, %p164
      %p166 = scmp.ne.s32.totalorder %s152, %s153
      %p167 = scmp.eq.s32.totalorder %s16, 3
      %p168 = por %p166, %p167
      %p170 = scmp.ne.s32.totalorder %s153, %s169
      %p171 = scmp.eq.s32.totalorder %s16, 0
      %p172 = por %p170, %p171
      %p173 = scmp.le.s32.totalorder 1, %s10
      %p174 = scmp.lt.s32.totalorder %s10, 5
      %p175 = pnand %p173, %p174
      %p176 = pneg %p175
      // Predicated region
      $region9: #{fwd.36} parent=5 // pred_check
        _
      $region10: #{fwd.36} parent=5 // pred_check_branch
        %178 = sbr.rel (%p175) target = $region12
      $region11: #{fwd.36} parent=5 // pred_region
        %s179 = ssub.s32 %s10, 1
      $region12: #{fwd.36} parent=5 // pred_fallthru
        _
      %p180 = scmp.lt.s32.totalorder %s10, 4
      // Predicated region
      $region13: #{fwd.36} parent=5 // pred_check
        %p181 = pneg %p180
      $region14: #{fwd.36} parent=5 // pred_check_branch
        %183 = sbr.rel (%p181) target = $region16
      $region15: #{fwd.36} parent=5 // pred_region
        // Predicated region
        $region17: #{fwd.36} parent=15 // pred_check
          %p184 = pneg %p51
        $region18: #{fwd.36} parent=15 // pred_check_branch
          %186 = sbr.rel (%p184) target = $region20
        $region19: #{fwd.36} parent=15 // pred_region
          %s187 = smul.u32 4, %s19
          %p188 = scmp.lt.s32.totalorder %s17, 0
          %s189 = scalar_select %p188, %s17, 0
          %p190 = scmp.lt.s32.totalorder %s187, 7
          %s191 = scalar_select %p190, %s187, 7
          %s192 = smul.addr %s189, 8
          %s193 = sadd.s32 %s191, %s192
          %s194 = smul.addr %s193, 4
          %s195 = scalar_lea.vmem %s0, %s194
          %s196 = smul.u32 4, %s19
        $region20: #{fwd.36} parent=15 // pred_fallthru
          _
        // Predicated region
        $region21: #{fwd.36} parent=15 // pred_check
          %p197 = pneg %p79
        $region22: #{fwd.36} parent=15 // pred_check_branch
          %199 = sbr.rel (%p197) target = $region24
        $region23: #{fwd.36} parent=15 // pred_region
          %s200 = sand.u32 %s69, 1
          %s201 = sand.u32 %s69, 1
          %s202 = smul.addr %s201, 512
          %s203 = scalar_lea.vmem [#allocation3], %s202
          %s204 = smul.u32 64, %s19
          %s205 = smul.u32 2, %s18
          %s206 = smul.addr %s204, 4
          %s207 = sadd.s32 %s205, %s206
          %s208 = smul.addr %s207, 4
          %s209 = scalar_lea.vmem %s1, %s208
          // Predicated region
          $region25: #{fwd.36} parent=23 // pred_check
            _
          $region26: #{fwd.36} parent=23 // pred_check_branch
            %211 = sbr.rel (0) target = $region28
          $region27: #{fwd.36} parent=23 // pred_region
            // Predicated region
            $region29: #{fwd.36} parent=27 // pred_check
              _
            $region30: #{fwd.36} parent=27 // pred_check_branch
              %213 = sbr.rel (0) target = $region32
            $region31: #{fwd.36} parent=27 // pred_region
              // Predicated region
              $region44: #{fwd.36} parent=31 // pred_check
                _
              $region45: #{fwd.36} parent=31 // pred_check_branch
                %355 = sbr.rel (0) target = $region47
              $region46: #{fwd.36} parent=31 // pred_region
                loop: start=0, step=1, limit=1
                $region48: #{fwd.36} parent=46 // loop_pre_header
                  _
                $region49: #{fwd.36} parent=46 // loop_header
                  %s357 = sphi 0, %s361
                  %p358 = scmp.ge.s32.totalorder %s357, 1
                  %s362 = sphi %s209, %s209
                  %s363 = sphi %s203, %s203
                $region50: #{fwd.36} parent=46 // loop_header_branch
                  %360 = sbr.rel (%p358) target = $region54
                $region51: #{fwd.36} parent=46 // loop_body
                  %v364 = vld [vmem:[%s362] sm:$0xff]
                  %365 = vst [vmem:[%s363] sm:$0xff] %v364
                  %v366 = vld [vmem:[%s362 + $0x10] sm:$0xff]
                  %367 = vst [vmem:[%s363 + $0x8] sm:$0xff] %v366
                  %v368 = vld [vmem:[%s362 + $0x20] sm:$0xff]
                  %369 = vst [vmem:[%s363 + $0x10] sm:$0xff] %v368
                  %v370 = vld [vmem:[%s362 + $0x30] sm:$0xff]
                  %371 = vst [vmem:[%s363 + $0x18] sm:$0xff] %v370
                  %v372 = vld [vmem:[%s362 + $0x40] sm:$0xff]
                  %373 = vst [vmem:[%s363 + $0x20] sm:$0xff] %v372
                  %v374 = vld [vmem:[%s362 + $0x50] sm:$0xff]
                  %375 = vst [vmem:[%s363 + $0x28] sm:$0xff] %v374
                  %v376 = vld [vmem:[%s362 + $0x60] sm:$0xff]
                  %377 = vst [vmem:[%s363 + $0x30] sm:$0xff] %v376
                  %v378 = vld [vmem:[%s362 + $0x70] sm:$0xff]
                  %379 = vst [vmem:[%s363 + $0x38] sm:$0xff] %v378
                  %v380 = vld [vmem:[%s362 + $0x80] sm:$0xff]
                  %381 = vst [vmem:[%s363 + $0x40] sm:$0xff] %v380
                  %v382 = vld [vmem:[%s362 + $0x90] sm:$0xff]
                  %383 = vst [vmem:[%s363 + $0x48] sm:$0xff] %v382
                  %v384 = vld [vmem:[%s362 + $0xa0] sm:$0xff]
                  %385 = vst [vmem:[%s363 + $0x50] sm:$0xff] %v384
                  %v386 = vld [vmem:[%s362 + $0xb0] sm:$0xff]
                  %387 = vst [vmem:[%s363 + $0x58] sm:$0xff] %v386
                  %v388 = vld [vmem:[%s362 + $0xc0] sm:$0xff]
                  %389 = vst [vmem:[%s363 + $0x60] sm:$0xff] %v388
                  %v390 = vld [vmem:[%s362 + $0xd0] sm:$0xff]
                  %391 = vst [vmem:[%s363 + $0x68] sm:$0xff] %v390
                  %v392 = vld [vmem:[%s362 + $0xe0] sm:$0xff]
                  %393 = vst [vmem:[%s363 + $0x70] sm:$0xff] %v392
                  %v394 = vld [vmem:[%s362 + $0xf0] sm:$0xff]
                  %395 = vst [vmem:[%s363 + $0x78] sm:$0xff] %v394
                  %v396 = vld [vmem:[%s362 + $0x100] sm:$0xff]
                  %397 = vst [vmem:[%s363 + $0x80] sm:$0xff] %v396
                  %v398 = vld [vmem:[%s362 + $0x110] sm:$0xff]
                  %399 = vst [vmem:[%s363 + $0x88] sm:$0xff] %v398
                  %v400 = vld [vmem:[%s362 + $0x120] sm:$0xff]
                  %401 = vst [vmem:[%s363 + $0x90] sm:$0xff] %v400
                  %v402 = vld [vmem:[%s362 + $0x130] sm:$0xff]
                  %403 = vst [vmem:[%s363 + $0x98] sm:$0xff] %v402
                  %v404 = vld [vmem:[%s362 + $0x140] sm:$0xff]
                  %405 = vst [vmem:[%s363 + $0xa0] sm:$0xff] %v404
                  %v406 = vld [vmem:[%s362 + $0x150] sm:$0xff]
                  %407 = vst [vmem:[%s363 + $0xa8] sm:$0xff] %v406
                  %v408 = vld [vmem:[%s362 + $0x160] sm:$0xff]
                  %409 = vst [vmem:[%s363 + $0xb0] sm:$0xff] %v408
                  %v410 = vld [vmem:[%s362 + $0x170] sm:$0xff]
                  %411 = vst [vmem:[%s363 + $0xb8] sm:$0xff] %v410
                  %v412 = vld [vmem:[%s362 + $0x180] sm:$0xff]
                  %413 = vst [vmem:[%s363 + $0xc0] sm:$0xff] %v412
                  %v414 = vld [vmem:[%s362 + $0x190] sm:$0xff]
                  %415 = vst [vmem:[%s363 + $0xc8] sm:$0xff] %v414
                  %v416 = vld [vmem:[%s362 + $0x1a0] sm:$0xff]
                  %417 = vst [vmem:[%s363 + $0xd0] sm:$0xff] %v416
                  %v418 = vld [vmem:[%s362 + $0x1b0] sm:$0xff]
                  %419 = vst [vmem:[%s363 + $0xd8] sm:$0xff] %v418
                  %v420 = vld [vmem:[%s362 + $0x1c0] sm:$0xff]
                  %421 = vst [vmem:[%s363 + $0xe0] sm:$0xff] %v420
                  %v422 = vld [vmem:[%s362 + $0x1d0] sm:$0xff]
                  %423 = vst [vmem:[%s363 + $0xe8] sm:$0xff] %v422
                  %v424 = vld [vmem:[%s362 + $0x1e0] sm:$0xff]
                  %425 = vst [vmem:[%s363 + $0xf0] sm:$0xff] %v424
                  %v426 = vld [vmem:[%s362 + $0x1f0] sm:$0xff]
                  %427 = vst [vmem:[%s363 + $0xf8] sm:$0xff] %v426
                  %v428 = vld [vmem:[%s362 + $0x200] sm:$0xff]
                  %429 = vst [vmem:[%s363 + $0x100] sm:$0xff] %v428
                  %v430 = vld [vmem:[%s362 + $0x210] sm:$0xff]
                  %431 = vst [vmem:[%s363 + $0x108] sm:$0xff] %v430
                  %v432 = vld [vmem:[%s362 + $0x220] sm:$0xff]
                  %433 = vst [vmem:[%s363 + $0x110] sm:$0xff] %v432
                  %v434 = vld [vmem:[%s362 + $0x230] sm:$0xff]
                  %435 = vst [vmem:[%s363 + $0x118] sm:$0xff] %v434
                  %v436 = vld [vmem:[%s362 + $0x240] sm:$0xff]
                  %437 = vst [vmem:[%s363 + $0x120] sm:$0xff] %v436
                  %v438 = vld [vmem:[%s362 + $0x250] sm:$0xff]
                  %439 = vst [vmem:[%s363 + $0x128] sm:$0xff] %v438
                  %v440 = vld [vmem:[%s362 + $0x260] sm:$0xff]
                  %441 = vst [vmem:[%s363 + $0x130] sm:$0xff] %v440
                  %v442 = vld [vmem:[%s362 + $0x270] sm:$0xff]
                  %443 = vst [vmem:[%s363 + $0x138] sm:$0xff] %v442
                  %v444 = vld [vmem:[%s362 + $0x280] sm:$0xff]
                  %445 = vst [vmem:[%s363 + $0x140] sm:$0xff] %v444
                  %v446 = vld [vmem:[%s362 + $0x290] sm:$0xff]
                  %447 = vst [vmem:[%s363 + $0x148] sm:$0xff] %v446
                  %v448 = vld [vmem:[%s362 + $0x2a0] sm:$0xff]
                  %449 = vst [vmem:[%s363 + $0x150] sm:$0xff] %v448
                  %v450 = vld [vmem:[%s362 + $0x2b0] sm:$0xff]
                  %451 = vst [vmem:[%s363 + $0x158] sm:$0xff] %v450
                  %v452 = vld [vmem:[%s362 + $0x2c0] sm:$0xff]
                  %453 = vst [vmem:[%s363 + $0x160] sm:$0xff] %v452
                  %v454 = vld [vmem:[%s362 + $0x2d0] sm:$0xff]
                  %455 = vst [vmem:[%s363 + $0x168] sm:$0xff] %v454
                  %v456 = vld [vmem:[%s362 + $0x2e0] sm:$0xff]
                  %457 = vst [vmem:[%s363 + $0x170] sm:$0xff] %v456
                  %v458 = vld [vmem:[%s362 + $0x2f0] sm:$0xff]
                  %459 = vst [vmem:[%s363 + $0x178] sm:$0xff] %v458
                  %v460 = vld [vmem:[%s362 + $0x300] sm:$0xff]
                  %461 = vst [vmem:[%s363 + $0x180] sm:$0xff] %v460
                  %v462 = vld [vmem:[%s362 + $0x310] sm:$0xff]
                  %463 = vst [vmem:[%s363 + $0x188] sm:$0xff] %v462
                  %v464 = vld [vmem:[%s362 + $0x320] sm:$0xff]
                  %465 = vst [vmem:[%s363 + $0x190] sm:$0xff] %v464
                  %v466 = vld [vmem:[%s362 + $0x330] sm:$0xff]
                  %467 = vst [vmem:[%s363 + $0x198] sm:$0xff] %v466
                  %v468 = vld [vmem:[%s362 + $0x340] sm:$0xff]
                  %469 = vst [vmem:[%s363 + $0x1a0] sm:$0xff] %v468
                  %v470 = vld [vmem:[%s362 + $0x350] sm:$0xff]
                  %471 = vst [vmem:[%s363 + $0x1a8] sm:$0xff] %v470
                  %v472 = vld [vmem:[%s362 + $0x360] sm:$0xff]
                  %473 = vst [vmem:[%s363 + $0x1b0] sm:$0xff] %v472
                  %v474 = vld [vmem:[%s362 + $0x370] sm:$0xff]
                  %475 = vst [vmem:[%s363 + $0x1b8] sm:$0xff] %v474
                  %v476 = vld [vmem:[%s362 + $0x380] sm:$0xff]
                  %477 = vst [vmem:[%s363 + $0x1c0] sm:$0xff] %v476
                  %v478 = vld [vmem:[%s362 + $0x390] sm:$0xff]
                  %479 = vst [vmem:[%s363 + $0x1c8] sm:$0xff] %v478
                  %v480 = vld [vmem:[%s362 + $0x3a0] sm:$0xff]
                  %481 = vst [vmem:[%s363 + $0x1d0] sm:$0xff] %v480
                  %v482 = vld [vmem:[%s362 + $0x3b0] sm:$0xff]
                  %483 = vst [vmem:[%s363 + $0x1d8] sm:$0xff] %v482
                  %v484 = vld [vmem:[%s362 + $0x3c0] sm:$0xff]
                  %485 = vst [vmem:[%s363 + $0x1e0] sm:$0xff] %v484
                  %v486 = vld [vmem:[%s362 + $0x3d0] sm:$0xff]
                  %487 = vst [vmem:[%s363 + $0x1e8] sm:$0xff] %v486
                  %v488 = vld [vmem:[%s362 + $0x3e0] sm:$0xff]
                  %489 = vst [vmem:[%s363 + $0x1f0] sm:$0xff] %v488
                  %v490 = vld [vmem:[%s362 + $0x3f0] sm:$0xff]
                  %491 = vst [vmem:[%s363 + $0x1f8] sm:$0xff] %v490
                $region52: #{fwd.36} parent=46 // loop_footer
                  %s361 = sadd.s32 1, %s357
                $region53: #{fwd.36} parent=46 // loop_footer_branch
                  %356 = sbr.rel target = $region49
                $region54: #{fwd.36} parent=46 // loop_exit
                  _
              $region47: #{fwd.36} parent=31 // pred_fallthru
                _
              // Predicated region
              $region55: #{fwd.36} parent=31 // pred_check
                _
              $region56: #{fwd.36} parent=31 // pred_check_branch
                %493 = sbr.rel target = $region58
              $region57: #{fwd.36} parent=31 // pred_region
                _
              $region58: #{fwd.36} parent=31 // pred_fallthru
                _
            $region32: #{fwd.36} parent=27 // pred_fallthru
              _
            // Predicated region
            $region33: #{fwd.36} parent=27 // pred_check
              _
            $region34: #{fwd.36} parent=27 // pred_check_branch
              %215 = sbr.rel target = $region36
            $region35: #{fwd.36} parent=27 // pred_region
              %s217 = ssub.s32 256, 1
              loop: start=0, step=1, limit=1
              $region37: #{fwd.36} parent=35 // loop_pre_header
                _
              $region38: #{fwd.36} parent=35 // loop_header
                %s219 = sphi 0, %s223
                %p220 = scmp.ge.s32.totalorder %s219, 1
                %s224 = sphi %s209, %s209
                %s225 = sphi %s203, %s203
              $region39: #{fwd.36} parent=35 // loop_header_branch
                %222 = sbr.rel (%p220) target = $region43
              $region40: #{fwd.36} parent=35 // loop_body
                %v226 = vld [vmem:[%s224] sm:%s217]
                %227 = vst [vmem:[%s225] sm:%s217] %v226
                %v228 = vld [vmem:[%s224 + $0x10] sm:%s217]
                %229 = vst [vmem:[%s225 + $0x8] sm:%s217] %v228
                %v230 = vld [vmem:[%s224 + $0x20] sm:%s217]
                %231 = vst [vmem:[%s225 + $0x10] sm:%s217] %v230
                %v232 = vld [vmem:[%s224 + $0x30] sm:%s217]
                %233 = vst [vmem:[%s225 + $0x18] sm:%s217] %v232
                %v234 = vld [vmem:[%s224 + $0x40] sm:%s217]
                %235 = vst [vmem:[%s225 + $0x20] sm:%s217] %v234
                %v236 = vld [vmem:[%s224 + $0x50] sm:%s217]
                %237 = vst [vmem:[%s225 + $0x28] sm:%s217] %v236
                %v238 = vld [vmem:[%s224 + $0x60] sm:%s217]
                %239 = vst [vmem:[%s225 + $0x30] sm:%s217] %v238
                %v240 = vld [vmem:[%s224 + $0x70] sm:%s217]
                %241 = vst [vmem:[%s225 + $0x38] sm:%s217] %v240
                %v242 = vld [vmem:[%s224 + $0x80] sm:%s217]
                %243 = vst [vmem:[%s225 + $0x40] sm:%s217] %v242
                %v244 = vld [vmem:[%s224 + $0x90] sm:%s217]
                %245 = vst [vmem:[%s225 + $0x48] sm:%s217] %v244
                %v246 = vld [vmem:[%s224 + $0xa0] sm:%s217]
                %247 = vst [vmem:[%s225 + $0x50] sm:%s217] %v246
                %v248 = vld [vmem:[%s224 + $0xb0] sm:%s217]
                %249 = vst [vmem:[%s225 + $0x58] sm:%s217] %v248
                %v250 = vld [vmem:[%s224 + $0xc0] sm:%s217]
                %251 = vst [vmem:[%s225 + $0x60] sm:%s217] %v250
                %v252 = vld [vmem:[%s224 + $0xd0] sm:%s217]
                %253 = vst [vmem:[%s225 + $0x68] sm:%s217] %v252
                %v254 = vld [vmem:[%s224 + $0xe0] sm:%s217]
                %255 = vst [vmem:[%s225 + $0x70] sm:%s217] %v254
                %v256 = vld [vmem:[%s224 + $0xf0] sm:%s217]
                %257 = vst [vmem:[%s225 + $0x78] sm:%s217] %v256
                %v258 = vld [vmem:[%s224 + $0x100] sm:%s217]
                %259 = vst [vmem:[%s225 + $0x80] sm:%s217] %v258
                %v260 = vld [vmem:[%s224 + $0x110] sm:%s217]
                %261 = vst [vmem:[%s225 + $0x88] sm:%s217] %v260
                %v262 = vld [vmem:[%s224 + $0x120] sm:%s217]
                %263 = vst [vmem:[%s225 + $0x90] sm:%s217] %v262
                %v264 = vld [vmem:[%s224 + $0x130] sm:%s217]
                %265 = vst [vmem:[%s225 + $0x98] sm:%s217] %v264
                %v266 = vld [vmem:[%s224 + $0x140] sm:%s217]
                %267 = vst [vmem:[%s225 + $0xa0] sm:%s217] %v266
                %v268 = vld [vmem:[%s224 + $0x150] sm:%s217]
                %269 = vst [vmem:[%s225 + $0xa8] sm:%s217] %v268
                %v270 = vld [vmem:[%s224 + $0x160] sm:%s217]
                %271 = vst [vmem:[%s225 + $0xb0] sm:%s217] %v270
                %v272 = vld [vmem:[%s224 + $0x170] sm:%s217]
                %273 = vst [vmem:[%s225 + $0xb8] sm:%s217] %v272
                %v274 = vld [vmem:[%s224 + $0x180] sm:%s217]
                %275 = vst [vmem:[%s225 + $0xc0] sm:%s217] %v274
                %v276 = vld [vmem:[%s224 + $0x190] sm:%s217]
                %277 = vst [vmem:[%s225 + $0xc8] sm:%s217] %v276
                %v278 = vld [vmem:[%s224 + $0x1a0] sm:%s217]
                %279 = vst [vmem:[%s225 + $0xd0] sm:%s217] %v278
                %v280 = vld [vmem:[%s224 + $0x1b0] sm:%s217]
                %281 = vst [vmem:[%s225 + $0xd8] sm:%s217] %v280
                %v282 = vld [vmem:[%s224 + $0x1c0] sm:%s217]
                %283 = vst [vmem:[%s225 + $0xe0] sm:%s217] %v282
                %v284 = vld [vmem:[%s224 + $0x1d0] sm:%s217]
                %285 = vst [vmem:[%s225 + $0xe8] sm:%s217] %v284
                %v286 = vld [vmem:[%s224 + $0x1e0] sm:%s217]
                %287 = vst [vmem:[%s225 + $0xf0] sm:%s217] %v286
                %v288 = vld [vmem:[%s224 + $0x1f0] sm:%s217]
                %289 = vst [vmem:[%s225 + $0xf8] sm:%s217] %v288
                %v290 = vld [vmem:[%s224 + $0x200] sm:%s217]
                %291 = vst [vmem:[%s225 + $0x100] sm:%s217] %v290
                %v292 = vld [vmem:[%s224 + $0x210] sm:%s217]
                %293 = vst [vmem:[%s225 + $0x108] sm:%s217] %v292
                %v294 = vld [vmem:[%s224 + $0x220] sm:%s217]
                %295 = vst [vmem:[%s225 + $0x110] sm:%s217] %v294
                %v296 = vld [vmem:[%s224 + $0x230] sm:%s217]
                %297 = vst [vmem:[%s225 + $0x118] sm:%s217] %v296
                %v298 = vld [vmem:[%s224 + $0x240] sm:%s217]
                %299 = vst [vmem:[%s225 + $0x120] sm:%s217] %v298
                %v300 = vld [vmem:[%s224 + $0x250] sm:%s217]
                %301 = vst [vmem:[%s225 + $0x128] sm:%s217] %v300
                %v302 = vld [vmem:[%s224 + $0x260] sm:%s217]
                %303 = vst [vmem:[%s225 + $0x130] sm:%s217] %v302
                %v304 = vld [vmem:[%s224 + $0x270] sm:%s217]
                %305 = vst [vmem:[%s225 + $0x138] sm:%s217] %v304
                %v306 = vld [vmem:[%s224 + $0x280] sm:%s217]
                %307 = vst [vmem:[%s225 + $0x140] sm:%s217] %v306
                %v308 = vld [vmem:[%s224 + $0x290] sm:%s217]
                %309 = vst [vmem:[%s225 + $0x148] sm:%s217] %v308
                %v310 = vld [vmem:[%s224 + $0x2a0] sm:%s217]
                %311 = vst [vmem:[%s225 + $0x150] sm:%s217] %v310
                %v312 = vld [vmem:[%s224 + $0x2b0] sm:%s217]
                %313 = vst [vmem:[%s225 + $0x158] sm:%s217] %v312
                %v314 = vld [vmem:[%s224 + $0x2c0] sm:%s217]
                %315 = vst [vmem:[%s225 + $0x160] sm:%s217] %v314
                %v316 = vld [vmem:[%s224 + $0x2d0] sm:%s217]
                %317 = vst [vmem:[%s225 + $0x168] sm:%s217] %v316
                %v318 = vld [vmem:[%s224 + $0x2e0] sm:%s217]
                %319 = vst [vmem:[%s225 + $0x170] sm:%s217] %v318
                %v320 = vld [vmem:[%s224 + $0x2f0] sm:%s217]
                %321 = vst [vmem:[%s225 + $0x178] sm:%s217] %v320
                %v322 = vld [vmem:[%s224 + $0x300] sm:%s217]
                %323 = vst [vmem:[%s225 + $0x180] sm:%s217] %v322
                %v324 = vld [vmem:[%s224 + $0x310] sm:%s217]
                %325 = vst [vmem:[%s225 + $0x188] sm:%s217] %v324
                %v326 = vld [vmem:[%s224 + $0x320] sm:%s217]
                %327 = vst [vmem:[%s225 + $0x190] sm:%s217] %v326
                %v328 = vld [vmem:[%s224 + $0x330] sm:%s217]
                %329 = vst [vmem:[%s225 + $0x198] sm:%s217] %v328
                %v330 = vld [vmem:[%s224 + $0x340] sm:%s217]
                %331 = vst [vmem:[%s225 + $0x1a0] sm:%s217] %v330
                %v332 = vld [vmem:[%s224 + $0x350] sm:%s217]
                %333 = vst [vmem:[%s225 + $0x1a8] sm:%s217] %v332
                %v334 = vld [vmem:[%s224 + $0x360] sm:%s217]
                %335 = vst [vmem:[%s225 + $0x1b0] sm:%s217] %v334
                %v336 = vld [vmem:[%s224 + $0x370] sm:%s217]
                %337 = vst [vmem:[%s225 + $0x1b8] sm:%s217] %v336
                %v338 = vld [vmem:[%s224 + $0x380] sm:%s217]
                %339 = vst [vmem:[%s225 + $0x1c0] sm:%s217] %v338
                %v340 = vld [vmem:[%s224 + $0x390] sm:%s217]
                %341 = vst [vmem:[%s225 + $0x1c8] sm:%s217] %v340
                %v342 = vld [vmem:[%s224 + $0x3a0] sm:%s217]
                %343 = vst [vmem:[%s225 + $0x1d0] sm:%s217] %v342
                %v344 = vld [vmem:[%s224 + $0x3b0] sm:%s217]
                %345 = vst [vmem:[%s225 + $0x1d8] sm:%s217] %v344
                %v346 = vld [vmem:[%s224 + $0x3c0] sm:%s217]
                %347 = vst [vmem:[%s225 + $0x1e0] sm:%s217] %v346
                %v348 = vld [vmem:[%s224 + $0x3d0] sm:%s217]
                %349 = vst [vmem:[%s225 + $0x1e8] sm:%s217] %v348
                %v350 = vld [vmem:[%s224 + $0x3e0] sm:%s217]
                %351 = vst [vmem:[%s225 + $0x1f0] sm:%s217] %v350
                %v352 = vld [vmem:[%s224 + $0x3f0] sm:%s217]
                %353 = vst [vmem:[%s225 + $0x1f8] sm:%s217] %v352
              $region41: #{fwd.36} parent=35 // loop_footer
                %s223 = sadd.s32 1, %s219
              $region42: #{fwd.36} parent=35 // loop_footer_branch
                %218 = sbr.rel target = $region38
              $region43: #{fwd.36} parent=35 // loop_exit
                _
            $region36: #{fwd.36} parent=27 // pred_fallthru
              _
          $region28: #{fwd.36} parent=23 // pred_fallthru
            _
          %494 = vnop
        $region24: #{fwd.36} parent=15 // pred_fallthru
          _
        // Predicated region
        $region59: #{fwd.36} parent=15 // pred_check
          %p495 = pneg %p105
        $region60: #{fwd.36} parent=15 // pred_check_branch
          %497 = sbr.rel (%p495) target = $region62
        $region61: #{fwd.36} parent=15 // pred_region
          %s498 = smul.u32 2, %s18
          %p499 = scmp.lt.s32.totalorder %s498, 3
          %s500 = scalar_select %p499, %s498, 3
          %s501 = scalar_lea.vmem %s2, %s500
          %s502 = smul.u32 2, %s18
        $region62: #{fwd.36} parent=15 // pred_fallthru
          _
        // Predicated region
        $region63: #{fwd.36} parent=15 // pred_check
          %p503 = pneg %p131
        $region64: #{fwd.36} parent=15 // pred_check_branch
          %505 = sbr.rel (%p503) target = $region66
        $region65: #{fwd.36} parent=15 // pred_region
          %s506 = smul.u32 2, %s18
          %p507 = scmp.lt.s32.totalorder %s506, 3
          %s508 = scalar_select %p507, %s506, 3
          %s509 = scalar_lea.vmem %s3, %s508
          %s510 = smul.u32 2, %s18
        $region66: #{fwd.36} parent=15 // pred_fallthru
          _
      $region16: #{fwd.36} parent=5 // pred_fallthru
        _
      %p511 = scmp.le.s32.totalorder 1, %s10
      %p512 = scmp.lt.s32.totalorder %s10, 5
      %p513 = pnand %p511, %p512
      %p514 = pneg %p513
      // Predicated region
      $region67: #{fwd.36} parent=5 // pred_check
        _
      $region68: #{fwd.36} parent=5 // pred_check_branch
        %516 = sbr.rel (%p513) target = $region70
      $region69: #{fwd.36} parent=5 // pred_region
        %s517 = ssub.s32 %s10, 1
        %s518 = sand.u32 %s72, 1
        %s519 = sand.u32 %s72, 1
        %s520 = smul.addr %s519, 512
        %s521 = scalar_lea.vmem [#allocation3], %s520
        // Predicated region
        $region71: #{fwd.36} parent=69 // pred_check
          %p522 = pneg %p85
        $region72: #{fwd.36} parent=69 // pred_check_branch
          %524 = sbr.rel (%p522) target = $region74
        $region73: #{fwd.36} parent=69 // pred_region
          _
        $region74: #{fwd.36} parent=69 // pred_fallthru
          _
        %s525 = smul.u32 4, %s22
        %p526 = scmp.lt.s32.totalorder %s20, 0
        %s527 = scalar_select %p526, %s20, 0
        %p528 = scmp.lt.s32.totalorder %s525, 7
        %s529 = scalar_select %p528, %s525, 7
        %s530 = smul.addr %s527, 8
        %s531 = sadd.s32 %s529, %s530
        %s532 = smul.addr %s531, 4
        %s533 = scalar_lea.vmem %s0, %s532
        %p534 = pneg %p57
        %p535 = pneg %p54
        %s536 = sand.u32 %s72, 1
        %s537 = sand.u32 %s72, 1
        %s538 = smul.addr %s537, 512
        %s539 = scalar_lea.vmem [#allocation3], %s538
        %p540 = pneg %p85
        %p541 = pneg %p82
        %s542 = smul.u32 2, %s21
        %p543 = scmp.lt.s32.totalorder %s542, 3
        %s544 = scalar_select %p543, %s542, 3
        %s545 = scalar_lea.vmem %s2, %s544
        %p546 = pneg %p111
        %p547 = pneg %p108
        %s548 = smul.u32 2, %s21
        %p549 = scmp.lt.s32.totalorder %s548, 3
        %s550 = scalar_select %p549, %s548, 3
        %s551 = scalar_lea.vmem %s3, %s550
        %p552 = pneg %p137
        %p553 = pneg %p134
        %p554 = pneg %p165
        %p555 = pneg %p162
        %s556 = smul.u32 2, %s21
        %p557 = scmp.lt.s32.totalorder %s20, 0
        %s558 = scalar_select %p557, %s20, 0
        %p559 = scmp.lt.s32.totalorder %s556, 3
        %s560 = scalar_select %p559, %s556, 3
        %s561 = smul.addr %s558, 4
        %s562 = sadd.s32 %s560, %s561
        %s563 = smul.addr %s562, 4
        %s564 = scalar_lea.vmem %s4, %s563
        %s565 = smul.u32 4, %s22
        %p566 = scmp.lt.s32.totalorder %s20, 0
        %s567 = scalar_select %p566, %s20, 0
        %p568 = scmp.lt.s32.totalorder %s565, 7
        %s569 = scalar_select %p568, %s565, 7
        %s570 = smul.addr %s567, 8
        %s571 = sadd.s32 %s569, %s570
        %s572 = smul.addr %s571, 4
        %s573 = scalar_lea.vmem %s0, %s572
        %s574 = smul.u32 4, %s22
        %s575 = smul.u32 64, %s22
        %s576 = smul.u32 2, %s21
        %s577 = smul.u32 2, %s21
        %p578 = scmp.lt.s32.totalorder %s577, 3
        %s579 = scalar_select %p578, %s577, 3
        %s580 = scalar_lea.vmem %s2, %s579
        %s581 = smul.u32 2, %s21
        %s582 = smul.u32 2, %s21
        %p583 = scmp.lt.s32.totalorder %s582, 3
        %s584 = scalar_select %p583, %s582, 3
        %s585 = scalar_lea.vmem %s3, %s584
        %s586 = smul.u32 2, %s21
        %s587 = smul.u32 2, %s21
        %p588 = scmp.lt.s32.totalorder %s20, 0
        %s589 = scalar_select %p588, %s20, 0
        %p590 = scmp.lt.s32.totalorder %s587, 3
        %s591 = scalar_select %p590, %s587, 3
        %s592 = smul.addr %s589, 4
        %s593 = sadd.s32 %s591, %s592
        %s594 = smul.addr %s593, 4
        %s595 = scalar_lea.vmem %s4, %s594
        %s596 = smul.u32 2, %s21
        %p597 = scmp.eq.s32.totalorder %s22, 0
        // Predicated region
        $region75: #{fwd.36} parent=69 // pred_check
          %p598 = pneg %p597
        $region76: #{fwd.36} parent=69 // pred_check_branch
          %600 = sbr.rel (%p598) target = $region78
        $region77: #{fwd.36} parent=69 // pred_region
          %601 = vst [vmem:[#allocation2] sm:$0xff] 0.0
          %602 = vst [vmem:[#allocation2 + $0x8] sm:$0xff] 0.0
        $region78: #{fwd.36} parent=69 // pred_fallthru
          _
        %v603 = vld [vmem:[#allocation2] sm:$0xff]
        %v604 = vld [vmem:[#allocation2 + $0x8] sm:$0xff]
        %v605 = vld [vmem:[%s573] sm:$0xff]
        %v606 = vld [vmem:[%s573 + $0x8] sm:$0xff]
        %v607 = vld [vmem:[%s521] sm:$0xff]
        %v608 = vld [vmem:[%s521 + $0x8] sm:$0xff]
        %v609 = vld [vmem:[%s521 + $0x10] sm:$0xff]
        %v610 = vld [vmem:[%s521 + $0x18] sm:$0xff]
        %v611 = vld [vmem:[%s521 + $0x20] sm:$0xff]
        %v612 = vld [vmem:[%s521 + $0x28] sm:$0xff]
        %v613 = vld [vmem:[%s521 + $0x30] sm:$0xff]
        %v614 = vld [vmem:[%s521 + $0x38] sm:$0xff]
        %v615 = vld [vmem:[%s521 + $0x40] sm:$0xff]
        %v616 = vld [vmem:[%s521 + $0x48] sm:$0xff]
        %v617 = vld [vmem:[%s521 + $0x50] sm:$0xff]
        %v618 = vld [vmem:[%s521 + $0x58] sm:$0xff]
        %v619 = vld [vmem:[%s521 + $0x60] sm:$0xff]
        %v620 = vld [vmem:[%s521 + $0x68] sm:$0xff]
        %v621 = vld [vmem:[%s521 + $0x70] sm:$0xff]
        %v622 = vld [vmem:[%s521 + $0x78] sm:$0xff]
        %v623 = vld [vmem:[%s521 + $0x80] sm:$0xff]
        %v624 = vld [vmem:[%s521 + $0x88] sm:$0xff]
        %v625 = vld [vmem:[%s521 + $0x90] sm:$0xff]
        %v626 = vld [vmem:[%s521 + $0x98] sm:$0xff]
        %v627 = vld [vmem:[%s521 + $0xa0] sm:$0xff]
        %v628 = vld [vmem:[%s521 + $0xa8] sm:$0xff]
        %v629 = vld [vmem:[%s521 + $0xb0] sm:$0xff]
        %v630 = vld [vmem:[%s521 + $0xb8] sm:$0xff]
        %v631 = vld [vmem:[%s521 + $0xc0] sm:$0xff]
        %v632 = vld [vmem:[%s521 + $0xc8] sm:$0xff]
        %v633 = vld [vmem:[%s521 + $0xd0] sm:$0xff]
        %v634 = vld [vmem:[%s521 + $0xd8] sm:$0xff]
        %v635 = vld [vmem:[%s521 + $0xe0] sm:$0xff]
        %v636 = vld [vmem:[%s521 + $0xe8] sm:$0xff]
        %v637 = vld [vmem:[%s521 + $0xf0] sm:$0xff]
        %v638 = vld [vmem:[%s521 + $0xf8] sm:$0xff]
        %v639 = vld [vmem:[%s521 + $0x100] sm:$0xff]
        %v640 = vld [vmem:[%s521 + $0x108] sm:$0xff]
        %v641 = vld [vmem:[%s521 + $0x110] sm:$0xff]
        %v642 = vld [vmem:[%s521 + $0x118] sm:$0xff]
        %v643 = vld [vmem:[%s521 + $0x120] sm:$0xff]
        %v644 = vld [vmem:[%s521 + $0x128] sm:$0xff]
        %v645 = vld [vmem:[%s521 + $0x130] sm:$0xff]
        %v646 = vld [vmem:[%s521 + $0x138] sm:$0xff]
        %v647 = vld [vmem:[%s521 + $0x140] sm:$0xff]
        %v648 = vld [vmem:[%s521 + $0x148] sm:$0xff]
        %v649 = vld [vmem:[%s521 + $0x150] sm:$0xff]
        %v650 = vld [vmem:[%s521 + $0x158] sm:$0xff]
        %v651 = vld [vmem:[%s521 + $0x160] sm:$0xff]
        %v652 = vld [vmem:[%s521 + $0x168] sm:$0xff]
        %v653 = vld [vmem:[%s521 + $0x170] sm:$0xff]
        %v654 = vld [vmem:[%s521 + $0x178] sm:$0xff]
        %v655 = vld [vmem:[%s521 + $0x180] sm:$0xff]
        %v656 = vld [vmem:[%s521 + $0x188] sm:$0xff]
        %v657 = vld [vmem:[%s521 + $0x190] sm:$0xff]
        %v658 = vld [vmem:[%s521 + $0x198] sm:$0xff]
        %v659 = vld [vmem:[%s521 + $0x1a0] sm:$0xff]
        %v660 = vld [vmem:[%s521 + $0x1a8] sm:$0xff]
        %v661 = vld [vmem:[%s521 + $0x1b0] sm:$0xff]
        %v662 = vld [vmem:[%s521 + $0x1b8] sm:$0xff]
        %v663 = vld [vmem:[%s521 + $0x1c0] sm:$0xff]
        %v664 = vld [vmem:[%s521 + $0x1c8] sm:$0xff]
        %v665 = vld [vmem:[%s521 + $0x1d0] sm:$0xff]
        %v666 = vld [vmem:[%s521 + $0x1d8] sm:$0xff]
        %v667 = vld [vmem:[%s521 + $0x1e0] sm:$0xff]
        %v668 = vld [vmem:[%s521 + $0x1e8] sm:$0xff]
        %v669 = vld [vmem:[%s521 + $0x1f0] sm:$0xff]
        %v670 = vld [vmem:[%s521 + $0x1f8] sm:$0xff]
        %v673 = vunpack.c.l.b16 %v605
        %v674 = vunpack.c.h.b16 %v605
        %v675 = vunpack.c.l.b16 %v606
        %v676 = vunpack.c.h.b16 %v606
        %v677 = vpack.c.b16 %v673, %v673
        %v678 = vpack.c.b16 %v674, %v674
        %v679 = vpack.c.b16 %v675, %v675
        %v680 = vpack.c.b16 %v676, %v676
        %v749 = vunpack.c.l.b16 %v607
        %v750 = vunpack.c.h.b16 %v607
        %v751 = vunpack.c.l.b16 %v608
        %v752 = vunpack.c.h.b16 %v608
        %v753 = vunpack.c.l.b16 %v609
        %v754 = vunpack.c.h.b16 %v609
        %v755 = vunpack.c.l.b16 %v610
        %v756 = vunpack.c.h.b16 %v610
        %v757 = vunpack.c.l.b16 %v611
        %v758 = vunpack.c.h.b16 %v611
        %v759 = vunpack.c.l.b16 %v612
        %v760 = vunpack.c.h.b16 %v612
        %v761 = vunpack.c.l.b16 %v613
        %v762 = vunpack.c.h.b16 %v613
        %v763 = vunpack.c.l.b16 %v614
        %v764 = vunpack.c.h.b16 %v614
        %v765 = vunpack.c.l.b16 %v615
        %v766 = vunpack.c.h.b16 %v615
        %v767 = vunpack.c.l.b16 %v616
        %v768 = vunpack.c.h.b16 %v616
        %v769 = vunpack.c.l.b16 %v617
        %v770 = vunpack.c.h.b16 %v617
        %v771 = vunpack.c.l.b16 %v618
        %v772 = vunpack.c.h.b16 %v618
        %v773 = vunpack.c.l.b16 %v619
        %v774 = vunpack.c.h.b16 %v619
        %v775 = vunpack.c.l.b16 %v620
        %v776 = vunpack.c.h.b16 %v620
        %v777 = vunpack.c.l.b16 %v621
        %v778 = vunpack.c.h.b16 %v621
        %v779 = vunpack.c.l.b16 %v622
        %v780 = vunpack.c.h.b16 %v622
        %v781 = vunpack.c.l.b16 %v623
        %v782 = vunpack.c.h.b16 %v623
        %v783 = vunpack.c.l.b16 %v624
        %v784 = vunpack.c.h.b16 %v624
        %v785 = vunpack.c.l.b16 %v625
        %v786 = vunpack.c.h.b16 %v625
        %v787 = vunpack.c.l.b16 %v626
        %v788 = vunpack.c.h.b16 %v626
        %v789 = vunpack.c.l.b16 %v627
        %v790 = vunpack.c.h.b16 %v627
        %v791 = vunpack.c.l.b16 %v628
        %v792 = vunpack.c.h.b16 %v628
        %v793 = vunpack.c.l.b16 %v629
        %v794 = vunpack.c.h.b16 %v629
        %v795 = vunpack.c.l.b16 %v630
        %v796 = vunpack.c.h.b16 %v630
        %v797 = vunpack.c.l.b16 %v631
        %v798 = vunpack.c.h.b16 %v631
        %v799 = vunpack.c.l.b16 %v632
        %v800 = vunpack.c.h.b16 %v632
        %v801 = vunpack.c.l.b16 %v633
        %v802 = vunpack.c.h.b16 %v633
        %v803 = vunpack.c.l.b16 %v634
        %v804 = vunpack.c.h.b16 %v634
        %v805 = vunpack.c.l.b16 %v635
        %v806 = vunpack.c.h.b16 %v635
        %v807 = vunpack.c.l.b16 %v636
        %v808 = vunpack.c.h.b16 %v636
        %v809 = vunpack.c.l.b16 %v637
        %v810 = vunpack.c.h.b16 %v637
        %v811 = vunpack.c.l.b16 %v638
        %v812 = vunpack.c.h.b16 %v638
        %v813 = vunpack.c.l.b16 %v639
        %v814 = vunpack.c.h.b16 %v639
        %v815 = vunpack.c.l.b16 %v640
        %v816 = vunpack.c.h.b16 %v640
        %v817 = vunpack.c.l.b16 %v641
        %v818 = vunpack.c.h.b16 %v641
        %v819 = vunpack.c.l.b16 %v642
        %v820 = vunpack.c.h.b16 %v642
        %v821 = vunpack.c.l.b16 %v643
        %v822 = vunpack.c.h.b16 %v643
        %v823 = vunpack.c.l.b16 %v644
        %v824 = vunpack.c.h.b16 %v644
        %v825 = vunpack.c.l.b16 %v645
        %v826 = vunpack.c.h.b16 %v645
        %v827 = vunpack.c.l.b16 %v646
        %v828 = vunpack.c.h.b16 %v646
        %v829 = vunpack.c.l.b16 %v647
        %v830 = vunpack.c.h.b16 %v647
        %v831 = vunpack.c.l.b16 %v648
        %v832 = vunpack.c.h.b16 %v648
        %v833 = vunpack.c.l.b16 %v649
        %v834 = vunpack.c.h.b16 %v649
        %v835 = vunpack.c.l.b16 %v650
        %v836 = vunpack.c.h.b16 %v650
        %v837 = vunpack.c.l.b16 %v651
        %v838 = vunpack.c.h.b16 %v651
        %v839 = vunpack.c.l.b16 %v652
        %v840 = vunpack.c.h.b16 %v652
        %v841 = vunpack.c.l.b16 %v653
        %v842 = vunpack.c.h.b16 %v653
        %v843 = vunpack.c.l.b16 %v654
        %v844 = vunpack.c.h.b16 %v654
        %v845 = vunpack.c.l.b16 %v655
        %v846 = vunpack.c.h.b16 %v655
        %v847 = vunpack.c.l.b16 %v656
        %v848 = vunpack.c.h.b16 %v656
        %v849 = vunpack.c.l.b16 %v657
        %v850 = vunpack.c.h.b16 %v657
        %v851 = vunpack.c.l.b16 %v658
        %v852 = vunpack.c.h.b16 %v658
        %v853 = vunpack.c.l.b16 %v659
        %v854 = vunpack.c.h.b16 %v659
        %v855 = vunpack.c.l.b16 %v660
        %v856 = vunpack.c.h.b16 %v660
        %v857 = vunpack.c.l.b16 %v661
        %v858 = vunpack.c.h.b16 %v661
        %v859 = vunpack.c.l.b16 %v662
        %v860 = vunpack.c.h.b16 %v662
        %v861 = vunpack.c.l.b16 %v663
        %v862 = vunpack.c.h.b16 %v663
        %v863 = vunpack.c.l.b16 %v664
        %v864 = vunpack.c.h.b16 %v664
        %v865 = vunpack.c.l.b16 %v665
        %v866 = vunpack.c.h.b16 %v665
        %v867 = vunpack.c.l.b16 %v666
        %v868 = vunpack.c.h.b16 %v666
        %v869 = vunpack.c.l.b16 %v667
        %v870 = vunpack.c.h.b16 %v667
        %v871 = vunpack.c.l.b16 %v668
        %v872 = vunpack.c.h.b16 %v668
        %v873 = vunpack.c.l.b16 %v669
        %v874 = vunpack.c.h.b16 %v669
        %v875 = vunpack.c.l.b16 %v670
        %v876 = vunpack.c.h.b16 %v670
        %v877 = vpack.c.b16 %v751, %v749
        %v878 = vpack.c.b16 %v752, %v750
        %v879 = vpack.c.b16 %v755, %v753
        %v880 = vpack.c.b16 %v756, %v754
        %v881 = vpack.c.b16 %v759, %v757
        %v882 = vpack.c.b16 %v760, %v758
        %v883 = vpack.c.b16 %v763, %v761
        %v884 = vpack.c.b16 %v764, %v762
        %v885 = vpack.c.b16 %v767, %v765
        %v886 = vpack.c.b16 %v768, %v766
        %v887 = vpack.c.b16 %v771, %v769
        %v888 = vpack.c.b16 %v772, %v770
        %v889 = vpack.c.b16 %v775, %v773
        %v890 = vpack.c.b16 %v776, %v774
        %v891 = vpack.c.b16 %v779, %v777
        %v892 = vpack.c.b16 %v780, %v778
        %v893 = vpack.c.b16 %v783, %v781
        %v894 = vpack.c.b16 %v784, %v782
        %v895 = vpack.c.b16 %v787, %v785
        %v896 = vpack.c.b16 %v788, %v786
        %v897 = vpack.c.b16 %v791, %v789
        %v898 = vpack.c.b16 %v792, %v790
        %v899 = vpack.c.b16 %v795, %v793
        %v900 = vpack.c.b16 %v796, %v794
        %v901 = vpack.c.b16 %v799, %v797
        %v902 = vpack.c.b16 %v800, %v798
        %v903 = vpack.c.b16 %v803, %v801
        %v904 = vpack.c.b16 %v804, %v802
        %v905 = vpack.c.b16 %v807, %v805
        %v906 = vpack.c.b16 %v808, %v806
        %v907 = vpack.c.b16 %v811, %v809
        %v908 = vpack.c.b16 %v812, %v810
        %v909 = vpack.c.b16 %v815, %v813
        %v910 = vpack.c.b16 %v816, %v814
        %v911 = vpack.c.b16 %v819, %v817
        %v912 = vpack.c.b16 %v820, %v818
        %v913 = vpack.c.b16 %v823, %v821
        %v914 = vpack.c.b16 %v824, %v822
        %v915 = vpack.c.b16 %v827, %v825
        %v916 = vpack.c.b16 %v828, %v826
        %v917 = vpack.c.b16 %v831, %v829
        %v918 = vpack.c.b16 %v832, %v830
        %v919 = vpack.c.b16 %v835, %v833
        %v920 = vpack.c.b16 %v836, %v834
        %v921 = vpack.c.b16 %v839, %v837
        %v922 = vpack.c.b16 %v840, %v838
        %v923 = vpack.c.b16 %v843, %v841
        %v924 = vpack.c.b16 %v844, %v842
        %v925 = vpack.c.b16 %v847, %v845
        %v926 = vpack.c.b16 %v848, %v846
        %v927 = vpack.c.b16 %v851, %v849
        %v928 = vpack.c.b16 %v852, %v850
        %v929 = vpack.c.b16 %v855, %v853
        %v930 = vpack.c.b16 %v856, %v854
        %v931 = vpack.c.b16 %v859, %v857
        %v932 = vpack.c.b16 %v860, %v858
        %v933 = vpack.c.b16 %v863, %v861
        %v934 = vpack.c.b16 %v864, %v862
        %v935 = vpack.c.b16 %v867, %v865
        %v936 = vpack.c.b16 %v868, %v866
        %v937 = vpack.c.b16 %v871, %v869
        %v938 = vpack.c.b16 %v872, %v870
        %v939 = vpack.c.b16 %v875, %v873
        %v940 = vpack.c.b16 %v876, %v874
        %1005 = vmatprep.subr.bf16.mxu0 %v892
        %1006 = vmatpush1.bf16.msra.mxu0 %v891
        %1007 = vmatprep.subr.bf16.mxu0 %v890
        %1008 = vmatpush1.bf16.msra.mxu0 %v889
        %1009 = vmatprep.subr.bf16.mxu0 %v888
        %1010 = vmatpush1.bf16.msra.mxu0 %v887
        %1011 = vmatprep.subr.bf16.mxu0 %v886
        %1012 = vmatpush1.bf16.msra.mxu0 %v885
        %1013 = vmatprep.subr.bf16.mxu0 %v884
        %1014 = vmatpush1.bf16.msra.mxu0 %v883
        %1015 = vmatprep.subr.bf16.mxu0 %v882
        %1016 = vmatpush1.bf16.msra.mxu0 %v881
        %1017 = vmatprep.subr.bf16.mxu0 %v880
        %1018 = vmatpush1.bf16.msra.mxu0 %v879
        %1019 = vmatprep.subr.bf16.mxu0 %v878
        %1020 = vmatpush1.bf16.msra.mxu0 %v877
        %1021 = vmatprep.subr.bf16.mxu0 %v908
        %1022 = vmatpush2.bf16.msra.mxu0 %v907
        %1023 = vmatprep.subr.bf16.mxu0 %v906
        %1024 = vmatpush2.bf16.msra.mxu0 %v905
        %1025 = vmatprep.subr.bf16.mxu0 %v904
        %1026 = vmatpush2.bf16.msra.mxu0 %v903
        %1027 = vmatprep.subr.bf16.mxu0 %v902
        %1028 = vmatpush2.bf16.msra.mxu0 %v901
        %1029 = vmatprep.subr.bf16.mxu0 %v900
        %1030 = vmatpush2.bf16.msra.mxu0 %v899
        %1031 = vmatprep.subr.bf16.mxu0 %v898
        %1032 = vmatpush2.bf16.msra.mxu0 %v897
        %1033 = vmatprep.subr.bf16.mxu0 %v896
        %1034 = vmatpush2.bf16.msra.mxu0 %v895
        %1035 = vmatprep.subr.bf16.mxu0 %v894
        %1036 = vmatpush2.bf16.msra.mxu0 %v893
        %1037 = vmatprep.mubr.bf16.mxu0 %v678
        %1038 = vmatmul.mubr.bf16.gmra.mxu0 %v677
        %v1039 = vpop.f32.mrf.mxu0
        %v1040 = vadd.f32 0.0, %v1039
        %v1041 = vpop.f32.mrf.mxu0
        %v1042 = vadd.f32 0.0, %v1041
        %v1043 = vpop.f32.mrf.mxu0
        %v1044 = vpop.f32.mrf.mxu0
        %1045 = vdwg.mxu0
        %1046 = vmatprep.subr.bf16.mxu0 %v924
        %1047 = vmatpush1.bf16.msra.mxu0 %v923
        %1048 = vmatprep.subr.bf16.mxu0 %v922
        %1049 = vmatpush1.bf16.msra.mxu0 %v921
        %1050 = vmatprep.subr.bf16.mxu0 %v920
        %1051 = vmatpush1.bf16.msra.mxu0 %v919
        %1052 = vmatprep.subr.bf16.mxu0 %v918
        %1053 = vmatpush1.bf16.msra.mxu0 %v917
        %1054 = vmatprep.subr.bf16.mxu0 %v916
        %1055 = vmatpush1.bf16.msra.mxu0 %v915
        %1056 = vmatprep.subr.bf16.mxu0 %v914
        %1057 = vmatpush1.bf16.msra.mxu0 %v913
        %1058 = vmatprep.subr.bf16.mxu0 %v912
        %1059 = vmatpush1.bf16.msra.mxu0 %v911
        %1060 = vmatprep.subr.bf16.mxu0 %v910
        %1061 = vmatpush1.bf16.msra.mxu0 %v909
        %1062 = vmatprep.subr.bf16.mxu0 %v940
        %1063 = vmatpush2.bf16.msra.mxu0 %v939
        %1064 = vmatprep.subr.bf16.mxu0 %v938
        %1065 = vmatpush2.bf16.msra.mxu0 %v937
        %1066 = vmatprep.subr.bf16.mxu0 %v936
        %1067 = vmatpush2.bf16.msra.mxu0 %v935
        %1068 = vmatprep.subr.bf16.mxu0 %v934
        %1069 = vmatpush2.bf16.msra.mxu0 %v933
        %1070 = vmatprep.subr.bf16.mxu0 %v932
        %1071 = vmatpush2.bf16.msra.mxu0 %v931
        %1072 = vmatprep.subr.bf16.mxu0 %v930
        %1073 = vmatpush2.bf16.msra.mxu0 %v929
        %1074 = vmatprep.subr.bf16.mxu0 %v928
        %1075 = vmatpush2.bf16.msra.mxu0 %v927
        %1076 = vmatprep.subr.bf16.mxu0 %v926
        %1077 = vmatpush2.bf16.msra.mxu0 %v925
        %1078 = vmatprep.mubr.bf16.mxu0 %v680
        %1079 = vmatmul.mubr.bf16.gmra.mxu0 %v679
        %v1080 = vpop.f32.mrf.mxu0
        %v1081 = vadd.f32 %v1040, %v1080
        %v1082 = vpop.f32.mrf.mxu0
        %v1083 = vadd.f32 %v1042, %v1082
        %v1084 = vpop.f32.mrf.mxu0
        %v1085 = vpop.f32.mrf.mxu0
        %1086 = vdwg.mxu0
        %v1087 = vadd.f32 %v603, %v1081
        %v1088 = vadd.f32 %v604, %v1083
        %1089 = vst [vmem:[#allocation2] sm:$0xff] %v1087
        %1090 = vst [vmem:[#allocation2 + $0x8] sm:$0xff] %v1088
        %p1091 = scmp.eq.s32.totalorder %s22, 1
        // Predicated region
        $region79: #{fwd.36} parent=69 // pred_check
          %p1092 = pneg %p1091
        $region80: #{fwd.36} parent=69 // pred_check_branch
          %1094 = sbr.rel (%p1092) target = $region82
        $region81: #{fwd.36} parent=69 // pred_region
          %v1095 = vld [vmem:[#allocation2] sm:$0xff]
          %v1096 = vld [vmem:[#allocation2 + $0x8] sm:$0xff]
          %v1097 = vld [vmem:[%s580] sm:$0x3]
          %v1099 = vlaneseq
          %v1100 = vshrl.u32 %v1099, 7
          %v1101 = vsub.s32 0, %v1100
          %v1102 = vrot.slane %v1097, %v1101
          %v1103 = vlaneseq
          %v1104 = vshrl.u32 %v1103, 7
          %v1105 = vsub.s32 1, %v1104
          %v1106 = vrot.slane %v1097, %v1105
          %v1109 = vmul.f32 %v1095, %v1102
          %v1110 = vmul.f32 %v1096, %v1106
          %v1111 = vld [vmem:[%s585] sm:$0x3]
          %v1113 = vlaneseq
          %v1114 = vshrl.u32 %v1113, 7
          %v1115 = vsub.s32 0, %v1114
          %v1116 = vrot.slane %v1111, %v1115
          %v1117 = vlaneseq
          %v1118 = vshrl.u32 %v1117, 7
          %v1119 = vsub.s32 1, %v1118
          %v1120 = vrot.slane %v1111, %v1119
          %v1123 = vadd.f32 %v1109, %v1116
          %v1124 = vadd.f32 %v1110, %v1120
          %v1125 = vmax.f32 %v1123, 0.0
          %v1126 = vmax.f32 %v1124, 0.0
          %v1127 = vpack.c.bf16 %v1125, %v1125
          %v1128 = vpack.c.bf16 %v1126, %v1126
          %v1131 = vunpack.c.l.b16 %v1127
          %v1132 = vunpack.c.l.b16 %v1128
          %v1133 = vpack.c.b16 %v1132, %v1131
          %1135 = vst [vmem:[%s595] sm:$0xff] %v1133
        $region82: #{fwd.36} parent=69 // pred_fallthru
          _
        %s1136 = smul.u32 2, %s21
        %p1137 = scmp.lt.s32.totalorder %s20, 0
        %s1138 = scalar_select %p1137, %s20, 0
        %p1139 = scmp.lt.s32.totalorder %s1136, 3
        %s1140 = scalar_select %p1139, %s1136, 3
        %s1141 = smul.addr %s1138, 4
        %s1142 = sadd.s32 %s1140, %s1141
        %s1143 = smul.addr %s1142, 4
        %s1144 = scalar_lea.vmem %s4, %s1143
        // Predicated region
        $region83: #{fwd.36} parent=69 // pred_check
          %p1145 = pneg %p162
        $region84: #{fwd.36} parent=69 // pred_check_branch
          %1147 = sbr.rel (%p1145) target = $region86
        $region85: #{fwd.36} parent=69 // pred_region
          %s1148 = smul.u32 2, %s21
        $region86: #{fwd.36} parent=69 // pred_fallthru
          _
      $region70: #{fwd.36} parent=5 // pred_fallthru
        _
      %p1149 = scmp.le.s32.totalorder 2, %s10
      // Predicated region
      $region87: #{fwd.36} parent=5 // pred_check
        %p1150 = pneg %p1149
      $region88: #{fwd.36} parent=5 // pred_check_branch
        %1152 = sbr.rel (%p1150) target = $region90
      $region89: #{fwd.36} parent=5 // pred_region
        %s1153 = ssub.s32 %s10, 2
        // Predicated region
        $region91: #{fwd.36} parent=89 // pred_check
          %p1154 = pneg %p168
        $region92: #{fwd.36} parent=89 // pred_check_branch
          %1156 = sbr.rel (%p1154) target = $region94
        $region93: #{fwd.36} parent=89 // pred_region
          %s1157 = smul.u32 2, %s24
          %p1158 = scmp.lt.s32.totalorder %s23, 0
          %s1159 = scalar_select %p1158, %s23, 0
          %p1160 = scmp.lt.s32.totalorder %s1157, 3
          %s1161 = scalar_select %p1160, %s1157, 3
          %s1162 = smul.addr %s1159, 4
          %s1163 = sadd.s32 %s1161, %s1162
          %s1164 = smul.addr %s1163, 4
          %s1165 = scalar_lea.vmem %s4, %s1164
        $region94: #{fwd.36} parent=89 // pred_fallthru
          _
      $region90: #{fwd.36} parent=5 // pred_fallthru
        _
    $region6: #{fwd.36} parent=1 // loop_footer
      %s14 = sadd.s32 1, %s10
    $region7: #{fwd.36} parent=1 // loop_footer_branch
      %9 = sbr.rel target = $region3
    $region8: #{fwd.36} parent=1 // loop_exit
      _

// kernel: fwd.37
$region0: #{fwd.37}
  #allocation0 [shape = 'u32[]', space=smem, size = 0x4, offset = 0x4, fixed_abs, tag = 'smem constant byte address 0x4 - core index']
  #allocation1 [shape = 'u32[144,128]{1,0:T(1,128)}', space=vmem, size = 0x12000, scoped, tag = 'internal scratch']
  #allocation2 [shape = 'f32[8,256]{1,0:T(8,128)}', space=vmem, size = 0x2000, scoped, tag = 'scratch operand']
  %s0 = inlined_call_operand.vmem [shape: bf16[8,256], index: 0, kind: input, shape index: {}]
  %s1 = inlined_call_operand.vmem [shape: bf16[256,512], index: 1, kind: input, shape index: {}]
  %s2 = inlined_call_operand.vmem [shape: f32[1,512], index: 2, kind: input, shape index: {}]
  %s3 = inlined_call_operand.vmem [shape: f32[1,512], index: 3, kind: input, shape index: {}]
  %s4 = inlined_call_operand.vmem [shape: bf16[8,512], index: 4, kind: output, shape index: {}]
  %s5 = sld [smem:[#allocation0]]
  $region95: #{fwd.37} parent=0
    _
  %s7 = ssub.s32 1, %s5
  %s8 = scalar_select 0, %s7, %s5
  $region1: #{fwd.37} parent=0
    #allocation3 [shape = 'u8[262144]{0}', space=vmem, size = 0x40000, scoped, tag = 'input window, operand 1']
    loop: start=0, step=1, limit=4
    $region2: #{fwd.37} parent=1 // loop_pre_header
      _
    $region3: #{fwd.37} parent=1 // loop_header
      %s10 = sphi 0, %s14
      %p11 = scmp.ge.s32.totalorder %s10, 4
      %s17 = sphi 0, %s36
      %s18 = sphi 0, %s32
      %s19 = sphi 0, %s28
      %s20 = sphi 0, %s17
      %s21 = sphi 0, %s18
      %s22 = sphi 0, %s19
      %s23 = sphi 0, %s20
      %s24 = sphi 0, %s21
      %s25 = sphi 0, %s22
      %s41 = sphi 0, %s43
      %s44 = sphi 0, %s41
      %s45 = sphi 0, %s44
      %s61 = sphi 0, %s45
      %s69 = sphi 0, %s71
      %s72 = sphi 0, %s69
      %s73 = sphi 0, %s72
      %s89 = sphi 0, %s73
      %s95 = sphi 0, %s97
      %s98 = sphi 0, %s95
      %s99 = sphi 0, %s98
      %s115 = sphi 0, %s99
      %s121 = sphi 0, %s123
      %s124 = sphi 0, %s121
      %s125 = sphi 0, %s124
      %s141 = sphi 0, %s125
      %s149 = sphi 0, %s151
      %s152 = sphi 0, %s149
      %s153 = sphi 0, %s152
      %s169 = sphi 0, %s153
    $region4: #{fwd.37} parent=1 // loop_header_branch
      %13 = sbr.rel (%p11) target = $region8
    $region5: #{fwd.37} parent=1 // loop_body
      %s15 = ssub.s32 %s10, 1
      %s16 = ssub.s32 %s10, 2
      %s26 = sadd.s32 1, %s19
      %p27 = scmp.ge.s32.totalorder %s26, 1
      %s28 = scalar_select %p27, 0, %s26
      %s29 = sadd.s32 1, %s18
      %s30 = scalar_select %p27, %s29, %s18
      %p31 = scmp.ge.s32.totalorder %s30, 2
      %s32 = scalar_select %p31, 0, %s30
      %s33 = sadd.s32 1, %s17
      %s34 = scalar_select %p31, %s33, %s17
      %p35 = scmp.ge.s32.totalorder %s34, 1
      %s36 = scalar_select %p35, 0, %s34
      %s37 = ssub.s32 %s17, %s36
      %s38 = ssub.s32 %s19, %s28
      %s39 = sor.u32 %s37, %s38
      %p40 = scmp.eq.s32.totalorder %s39, 0
      %s42 = sadd.s32 %s41, 1
      %s43 = scalar_select %p40, %s41, %s42
      %p46 = pneg %p40
      %p47 = scmp.eq.s32.totalorder %s10, 1
      %p48 = por %p46, %p47
      %p49 = scmp.ne.s32.totalorder %s41, %s44
      %p50 = scmp.eq.s32.totalorder %s10, 0
      %p51 = por %p49, %p50
      %p52 = scmp.ne.s32.totalorder %s41, %s44
      %p53 = scmp.eq.s32.totalorder %s15, 1
      %p54 = por %p52, %p53
      %p55 = scmp.ne.s32.totalorder %s44, %s45
      %p56 = scmp.eq.s32.totalorder %s15, 0
      %p57 = por %p55, %p56
      %p58 = scmp.ne.s32.totalorder %s44, %s45
      %p59 = scmp.eq.s32.totalorder %s16, 1
      %p60 = por %p58, %p59
      %p62 = scmp.ne.s32.totalorder %s45, %s61
      %p63 = scmp.eq.s32.totalorder %s16, 0
      %p64 = por %p62, %p63
      %s65 = ssub.s32 %s19, %s28
      %s66 = ssub.s32 %s18, %s32
      %s67 = sor.u32 %s65, %s66
      %p68 = scmp.eq.s32.totalorder %s67, 0
      %s70 = sadd.s32 %s69, 1
      %s71 = scalar_select %p68, %s69, %s70
      %p74 = pneg %p68
      %p75 = scmp.eq.s32.totalorder %s10, 1
      %p76 = por %p74, %p75
      %p77 = scmp.ne.s32.totalorder %s69, %s72
      %p78 = scmp.eq.s32.totalorder %s10, 0
      %p79 = por %p77, %p78
      %p80 = scmp.ne.s32.totalorder %s69, %s72
      %p81 = scmp.eq.s32.totalorder %s15, 1
      %p82 = por %p80, %p81
      %p83 = scmp.ne.s32.totalorder %s72, %s73
      %p84 = scmp.eq.s32.totalorder %s15, 0
      %p85 = por %p83, %p84
      %p86 = scmp.ne.s32.totalorder %s72, %s73
      %p87 = scmp.eq.s32.totalorder %s16, 1
      %p88 = por %p86, %p87
      %p90 = scmp.ne.s32.totalorder %s73, %s89
      %p91 = scmp.eq.s32.totalorder %s16, 0
      %p92 = por %p90, %p91
      %s93 = ssub.s32 %s18, %s32
      %p94 = scmp.eq.s32.totalorder %s93, 0
      %s96 = sadd.s32 %s95, 1
      %s97 = scalar_select %p94, %s95, %s96
      %p100 = pneg %p94
      %p101 = scmp.eq.s32.totalorder %s10, 1
      %p102 = por %p100, %p101
      %p103 = scmp.ne.s32.totalorder %s95, %s98
      %p104 = scmp.eq.s32.totalorder %s10, 0
      %p105 = por %p103, %p104
      %p106 = scmp.ne.s32.totalorder %s95, %s98
      %p107 = scmp.eq.s32.totalorder %s15, 1
      %p108 = por %p106, %p107
      %p109 = scmp.ne.s32.totalorder %s98, %s99
      %p110 = scmp.eq.s32.totalorder %s15, 0
      %p111 = por %p109, %p110
      %p112 = scmp.ne.s32.totalorder %s98, %s99
      %p113 = scmp.eq.s32.totalorder %s16, 1
      %p114 = por %p112, %p113
      %p116 = scmp.ne.s32.totalorder %s99, %s115
      %p117 = scmp.eq.s32.totalorder %s16, 0
      %p118 = por %p116, %p117
      %s119 = ssub.s32 %s18, %s32
      %p120 = scmp.eq.s32.totalorder %s119, 0
      %s122 = sadd.s32 %s121, 1
      %s123 = scalar_select %p120, %s121, %s122
      %p126 = pneg %p120
      %p127 = scmp.eq.s32.totalorder %s10, 1
      %p128 = por %p126, %p127
      %p129 = scmp.ne.s32.totalorder %s121, %s124
      %p130 = scmp.eq.s32.totalorder %s10, 0
      %p131 = por %p129, %p130
      %p132 = scmp.ne.s32.totalorder %s121, %s124
      %p133 = scmp.eq.s32.totalorder %s15, 1
      %p134 = por %p132, %p133
      %p135 = scmp.ne.s32.totalorder %s124, %s125
      %p136 = scmp.eq.s32.totalorder %s15, 0
      %p137 = por %p135, %p136
      %p138 = scmp.ne.s32.totalorder %s124, %s125
      %p139 = scmp.eq.s32.totalorder %s16, 1
      %p140 = por %p138, %p139
      %p142 = scmp.ne.s32.totalorder %s125, %s141
      %p143 = scmp.eq.s32.totalorder %s16, 0
      %p144 = por %p142, %p143
      %s145 = ssub.s32 %s17, %s36
      %s146 = ssub.s32 %s18, %s32
      %s147 = sor.u32 %s145, %s146
      %p148 = scmp.eq.s32.totalorder %s147, 0
      %s150 = sadd.s32 %s149, 1
      %s151 = scalar_select %p148, %s149, %s150
      %p154 = pneg %p148
      %p155 = scmp.eq.s32.totalorder %s10, 1
      %p156 = por %p154, %p155
      %p157 = scmp.ne.s32.totalorder %s149, %s152
      %p158 = scmp.eq.s32.totalorder %s10, 0
      %p159 = por %p157, %p158
      %p160 = scmp.ne.s32.totalorder %s149, %s152
      %p161 = scmp.eq.s32.totalorder %s15, 1
      %p162 = por %p160, %p161
      %p163 = scmp.ne.s32.totalorder %s152, %s153
      %p164 = scmp.eq.s32.totalorder %s15, 0
      %p165 = por %p163, %p164
      %p166 = scmp.ne.s32.totalorder %s152, %s153
      %p167 = scmp.eq.s32.totalorder %s16, 1
      %p168 = por %p166, %p167
      %p170 = scmp.ne.s32.totalorder %s153, %s169
      %p171 = scmp.eq.s32.totalorder %s16, 0
      %p172 = por %p170, %p171
      %p173 = scmp.le.s32.totalorder 1, %s10
      %p174 = scmp.lt.s32.totalorder %s10, 3
      %p175 = pnand %p173, %p174
      %p176 = pneg %p175
      // Predicated region
      $region9: #{fwd.37} parent=5 // pred_check
        _
      $region10: #{fwd.37} parent=5 // pred_check_branch
        %178 = sbr.rel (%p175) target = $region12
      $region11: #{fwd.37} parent=5 // pred_region
        %s179 = ssub.s32 %s10, 1
        // Predicated region
        $region13: #{fwd.37} parent=11 // pred_check
          %p180 = pneg %p57
        $region14: #{fwd.37} parent=11 // pred_check_branch
          %182 = sbr.rel (%p180) target = $region16
        $region15: #{fwd.37} parent=11 // pred_region
          %s183 = smul.u32 2, %s22
          %p184 = scmp.lt.s32.totalorder %s20, 0
          %s185 = scalar_select %p184, %s20, 0
          %p186 = scmp.lt.s32.totalorder %s183, 1
          %s187 = scalar_select %p186, %s183, 1
          %s188 = smul.addr %s185, 2
          %s189 = sadd.s32 %s187, %s188
          %s190 = smul.addr %s189, 4
          %s191 = scalar_lea.vmem %s0, %s190
          %s192 = smul.u32 2, %s22
        $region16: #{fwd.37} parent=11 // pred_fallthru
          _
      $region12: #{fwd.37} parent=5 // pred_fallthru
        _
      %p193 = scmp.lt.s32.totalorder %s10, 2
      // Predicated region
      $region17: #{fwd.37} parent=5 // pred_check
        %p194 = pneg %p193
      $region18: #{fwd.37} parent=5 // pred_check_branch
        %196 = sbr.rel (%p194) target = $region20
      $region19: #{fwd.37} parent=5 // pred_region
        // Predicated region
        $region21: #{fwd.37} parent=19 // pred_check
          %p197 = pneg %p79
        $region22: #{fwd.37} parent=19 // pred_check_branch
          %199 = sbr.rel (%p197) target = $region24
        $region23: #{fwd.37} parent=19 // pred_region
          %s200 = sand.u32 %s69, 1
          %s201 = sand.u32 %s69, 1
          %s202 = smul.addr %s201, 256
          %s203 = scalar_lea.vmem [#allocation3], %s202
          %s204 = smul.u32 32, %s19
          %s205 = smul.u32 2, %s18
          %s206 = smul.addr %s204, 4
          %s207 = sadd.s32 %s205, %s206
          %s208 = smul.addr %s207, 4
          %s209 = scalar_lea.vmem %s1, %s208
          // Predicated region
          $region25: #{fwd.37} parent=23 // pred_check
            _
          $region26: #{fwd.37} parent=23 // pred_check_branch
            %211 = sbr.rel (0) target = $region28
          $region27: #{fwd.37} parent=23 // pred_region
            // Predicated region
            $region29: #{fwd.37} parent=27 // pred_check
              _
            $region30: #{fwd.37} parent=27 // pred_check_branch
              %213 = sbr.rel (0) target = $region32
            $region31: #{fwd.37} parent=27 // pred_region
              // Predicated region
              $region44: #{fwd.37} parent=31 // pred_check
                _
              $region45: #{fwd.37} parent=31 // pred_check_branch
                %291 = sbr.rel (0) target = $region47
              $region46: #{fwd.37} parent=31 // pred_region
                loop: start=0, step=1, limit=1
                $region48: #{fwd.37} parent=46 // loop_pre_header
                  _
                $region49: #{fwd.37} parent=46 // loop_header
                  %s293 = sphi 0, %s297
                  %p294 = scmp.ge.s32.totalorder %s293, 1
                  %s298 = sphi %s209, %s209
                  %s299 = sphi %s203, %s203
                $region50: #{fwd.37} parent=46 // loop_header_branch
                  %296 = sbr.rel (%p294) target = $region54
                $region51: #{fwd.37} parent=46 // loop_body
                  %v300 = vld [vmem:[%s298] sm:$0xff]
                  %301 = vst [vmem:[%s299] sm:$0xff] %v300
                  %v302 = vld [vmem:[%s298 + $0x10] sm:$0xff]
                  %303 = vst [vmem:[%s299 + $0x8] sm:$0xff] %v302
                  %v304 = vld [vmem:[%s298 + $0x20] sm:$0xff]
                  %305 = vst [vmem:[%s299 + $0x10] sm:$0xff] %v304
                  %v306 = vld [vmem:[%s298 + $0x30] sm:$0xff]
                  %307 = vst [vmem:[%s299 + $0x18] sm:$0xff] %v306
                  %v308 = vld [vmem:[%s298 + $0x40] sm:$0xff]
                  %309 = vst [vmem:[%s299 + $0x20] sm:$0xff] %v308
                  %v310 = vld [vmem:[%s298 + $0x50] sm:$0xff]
                  %311 = vst [vmem:[%s299 + $0x28] sm:$0xff] %v310
                  %v312 = vld [vmem:[%s298 + $0x60] sm:$0xff]
                  %313 = vst [vmem:[%s299 + $0x30] sm:$0xff] %v312
                  %v314 = vld [vmem:[%s298 + $0x70] sm:$0xff]
                  %315 = vst [vmem:[%s299 + $0x38] sm:$0xff] %v314
                  %v316 = vld [vmem:[%s298 + $0x80] sm:$0xff]
                  %317 = vst [vmem:[%s299 + $0x40] sm:$0xff] %v316
                  %v318 = vld [vmem:[%s298 + $0x90] sm:$0xff]
                  %319 = vst [vmem:[%s299 + $0x48] sm:$0xff] %v318
                  %v320 = vld [vmem:[%s298 + $0xa0] sm:$0xff]
                  %321 = vst [vmem:[%s299 + $0x50] sm:$0xff] %v320
                  %v322 = vld [vmem:[%s298 + $0xb0] sm:$0xff]
                  %323 = vst [vmem:[%s299 + $0x58] sm:$0xff] %v322
                  %v324 = vld [vmem:[%s298 + $0xc0] sm:$0xff]
                  %325 = vst [vmem:[%s299 + $0x60] sm:$0xff] %v324
                  %v326 = vld [vmem:[%s298 + $0xd0] sm:$0xff]
                  %327 = vst [vmem:[%s299 + $0x68] sm:$0xff] %v326
                  %v328 = vld [vmem:[%s298 + $0xe0] sm:$0xff]
                  %329 = vst [vmem:[%s299 + $0x70] sm:$0xff] %v328
                  %v330 = vld [vmem:[%s298 + $0xf0] sm:$0xff]
                  %331 = vst [vmem:[%s299 + $0x78] sm:$0xff] %v330
                  %v332 = vld [vmem:[%s298 + $0x100] sm:$0xff]
                  %333 = vst [vmem:[%s299 + $0x80] sm:$0xff] %v332
                  %v334 = vld [vmem:[%s298 + $0x110] sm:$0xff]
                  %335 = vst [vmem:[%s299 + $0x88] sm:$0xff] %v334
                  %v336 = vld [vmem:[%s298 + $0x120] sm:$0xff]
                  %337 = vst [vmem:[%s299 + $0x90] sm:$0xff] %v336
                  %v338 = vld [vmem:[%s298 + $0x130] sm:$0xff]
                  %339 = vst [vmem:[%s299 + $0x98] sm:$0xff] %v338
                  %v340 = vld [vmem:[%s298 + $0x140] sm:$0xff]
                  %341 = vst [vmem:[%s299 + $0xa0] sm:$0xff] %v340
                  %v342 = vld [vmem:[%s298 + $0x150] sm:$0xff]
                  %343 = vst [vmem:[%s299 + $0xa8] sm:$0xff] %v342
                  %v344 = vld [vmem:[%s298 + $0x160] sm:$0xff]
                  %345 = vst [vmem:[%s299 + $0xb0] sm:$0xff] %v344
                  %v346 = vld [vmem:[%s298 + $0x170] sm:$0xff]
                  %347 = vst [vmem:[%s299 + $0xb8] sm:$0xff] %v346
                  %v348 = vld [vmem:[%s298 + $0x180] sm:$0xff]
                  %349 = vst [vmem:[%s299 + $0xc0] sm:$0xff] %v348
                  %v350 = vld [vmem:[%s298 + $0x190] sm:$0xff]
                  %351 = vst [vmem:[%s299 + $0xc8] sm:$0xff] %v350
                  %v352 = vld [vmem:[%s298 + $0x1a0] sm:$0xff]
                  %353 = vst [vmem:[%s299 + $0xd0] sm:$0xff] %v352
                  %v354 = vld [vmem:[%s298 + $0x1b0] sm:$0xff]
                  %355 = vst [vmem:[%s299 + $0xd8] sm:$0xff] %v354
                  %v356 = vld [vmem:[%s298 + $0x1c0] sm:$0xff]
                  %357 = vst [vmem:[%s299 + $0xe0] sm:$0xff] %v356
                  %v358 = vld [vmem:[%s298 + $0x1d0] sm:$0xff]
                  %359 = vst [vmem:[%s299 + $0xe8] sm:$0xff] %v358
                  %v360 = vld [vmem:[%s298 + $0x1e0] sm:$0xff]
                  %361 = vst [vmem:[%s299 + $0xf0] sm:$0xff] %v360
                  %v362 = vld [vmem:[%s298 + $0x1f0] sm:$0xff]
                  %363 = vst [vmem:[%s299 + $0xf8] sm:$0xff] %v362
                $region52: #{fwd.37} parent=46 // loop_footer
                  %s297 = sadd.s32 1, %s293
                $region53: #{fwd.37} parent=46 // loop_footer_branch
                  %292 = sbr.rel target = $region49
                $region54: #{fwd.37} parent=46 // loop_exit
                  _
              $region47: #{fwd.37} parent=31 // pred_fallthru
                _
              // Predicated region
              $region55: #{fwd.37} parent=31 // pred_check
                _
              $region56: #{fwd.37} parent=31 // pred_check_branch
                %365 = sbr.rel target = $region58
              $region57: #{fwd.37} parent=31 // pred_region
                _
              $region58: #{fwd.37} parent=31 // pred_fallthru
                _
            $region32: #{fwd.37} parent=27 // pred_fallthru
              _
            // Predicated region
            $region33: #{fwd.37} parent=27 // pred_check
              _
            $region34: #{fwd.37} parent=27 // pred_check_branch
              %215 = sbr.rel target = $region36
            $region35: #{fwd.37} parent=27 // pred_region
              %s217 = ssub.s32 256, 1
              loop: start=0, step=1, limit=1
              $region37: #{fwd.37} parent=35 // loop_pre_header
                _
              $region38: #{fwd.37} parent=35 // loop_header
                %s219 = sphi 0, %s223
                %p220 = scmp.ge.s32.totalorder %s219, 1
                %s224 = sphi %s209, %s209
                %s225 = sphi %s203, %s203
              $region39: #{fwd.37} parent=35 // loop_header_branch
                %222 = sbr.rel (%p220) target = $region43
              $region40: #{fwd.37} parent=35 // loop_body
                %v226 = vld [vmem:[%s224] sm:%s217]
                %227 = vst [vmem:[%s225] sm:%s217] %v226
                %v228 = vld [vmem:[%s224 + $0x10] sm:%s217]
                %229 = vst [vmem:[%s225 + $0x8] sm:%s217] %v228
                %v230 = vld [vmem:[%s224 + $0x20] sm:%s217]
                %231 = vst [vmem:[%s225 + $0x10] sm:%s217] %v230
                %v232 = vld [vmem:[%s224 + $0x30] sm:%s217]
                %233 = vst [vmem:[%s225 + $0x18] sm:%s217] %v232
                %v234 = vld [vmem:[%s224 + $0x40] sm:%s217]
                %235 = vst [vmem:[%s225 + $0x20] sm:%s217] %v234
                %v236 = vld [vmem:[%s224 + $0x50] sm:%s217]
                %237 = vst [vmem:[%s225 + $0x28] sm:%s217] %v236
                %v238 = vld [vmem:[%s224 + $0x60] sm:%s217]
                %239 = vst [vmem:[%s225 + $0x30] sm:%s217] %v238
                %v240 = vld [vmem:[%s224 + $0x70] sm:%s217]
                %241 = vst [vmem:[%s225 + $0x38] sm:%s217] %v240
                %v242 = vld [vmem:[%s224 + $0x80] sm:%s217]
                %243 = vst [vmem:[%s225 + $0x40] sm:%s217] %v242
                %v244 = vld [vmem:[%s224 + $0x90] sm:%s217]
                %245 = vst [vmem:[%s225 + $0x48] sm:%s217] %v244
                %v246 = vld [vmem:[%s224 + $0xa0] sm:%s217]
                %247 = vst [vmem:[%s225 + $0x50] sm:%s217] %v246
                %v248 = vld [vmem:[%s224 + $0xb0] sm:%s217]
                %249 = vst [vmem:[%s225 + $0x58] sm:%s217] %v248
                %v250 = vld [vmem:[%s224 + $0xc0] sm:%s217]
                %251 = vst [vmem:[%s225 + $0x60] sm:%s217] %v250
                %v252 = vld [vmem:[%s224 + $0xd0] sm:%s217]
                %253 = vst [vmem:[%s225 + $0x68] sm:%s217] %v252
                %v254 = vld [vmem:[%s224 + $0xe0] sm:%s217]
                %255 = vst [vmem:[%s225 + $0x70] sm:%s217] %v254
                %v256 = vld [vmem:[%s224 + $0xf0] sm:%s217]
                %257 = vst [vmem:[%s225 + $0x78] sm:%s217] %v256
                %v258 = vld [vmem:[%s224 + $0x100] sm:%s217]
                %259 = vst [vmem:[%s225 + $0x80] sm:%s217] %v258
                %v260 = vld [vmem:[%s224 + $0x110] sm:%s217]
                %261 = vst [vmem:[%s225 + $0x88] sm:%s217] %v260
                %v262 = vld [vmem:[%s224 + $0x120] sm:%s217]
                %263 = vst [vmem:[%s225 + $0x90] sm:%s217] %v262
                %v264 = vld [vmem:[%s224 + $0x130] sm:%s217]
                %265 = vst [vmem:[%s225 + $0x98] sm:%s217] %v264
                %v266 = vld [vmem:[%s224 + $0x140] sm:%s217]
                %267 = vst [vmem:[%s225 + $0xa0] sm:%s217] %v266
                %v268 = vld [vmem:[%s224 + $0x150] sm:%s217]
                %269 = vst [vmem:[%s225 + $0xa8] sm:%s217] %v268
                %v270 = vld [vmem:[%s224 + $0x160] sm:%s217]
                %271 = vst [vmem:[%s225 + $0xb0] sm:%s217] %v270
                %v272 = vld [vmem:[%s224 + $0x170] sm:%s217]
                %273 = vst [vmem:[%s225 + $0xb8] sm:%s217] %v272
                %v274 = vld [vmem:[%s224 + $0x180] sm:%s217]
                %275 = vst [vmem:[%s225 + $0xc0] sm:%s217] %v274
                %v276 = vld [vmem:[%s224 + $0x190] sm:%s217]
                %277 = vst [vmem:[%s225 + $0xc8] sm:%s217] %v276
                %v278 = vld [vmem:[%s224 + $0x1a0] sm:%s217]
                %279 = vst [vmem:[%s225 + $0xd0] sm:%s217] %v278
                %v280 = vld [vmem:[%s224 + $0x1b0] sm:%s217]
                %281 = vst [vmem:[%s225 + $0xd8] sm:%s217] %v280
                %v282 = vld [vmem:[%s224 + $0x1c0] sm:%s217]
                %283 = vst [vmem:[%s225 + $0xe0] sm:%s217] %v282
                %v284 = vld [vmem:[%s224 + $0x1d0] sm:%s217]
                %285 = vst [vmem:[%s225 + $0xe8] sm:%s217] %v284
                %v286 = vld [vmem:[%s224 + $0x1e0] sm:%s217]
                %287 = vst [vmem:[%s225 + $0xf0] sm:%s217] %v286
                %v288 = vld [vmem:[%s224 + $0x1f0] sm:%s217]
                %289 = vst [vmem:[%s225 + $0xf8] sm:%s217] %v288
              $region41: #{fwd.37} parent=35 // loop_footer
                %s223 = sadd.s32 1, %s219
              $region42: #{fwd.37} parent=35 // loop_footer_branch
                %218 = sbr.rel target = $region38
              $region43: #{fwd.37} parent=35 // loop_exit
                _
            $region36: #{fwd.37} parent=27 // pred_fallthru
              _
          $region28: #{fwd.37} parent=23 // pred_fallthru
            _
          %366 = vnop
        $region24: #{fwd.37} parent=19 // pred_fallthru
          _
        // Predicated region
        $region59: #{fwd.37} parent=19 // pred_check
          %p367 = pneg %p105
        $region60: #{fwd.37} parent=19 // pred_check_branch
          %369 = sbr.rel (%p367) target = $region62
        $region61: #{fwd.37} parent=19 // pred_region
          %s370 = smul.u32 2, %s18
          %p371 = scmp.lt.s32.totalorder %s370, 3
          %s372 = scalar_select %p371, %s370, 3
          %s373 = scalar_lea.vmem %s2, %s372
          %s374 = smul.u32 2, %s18
        $region62: #{fwd.37} parent=19 // pred_fallthru
          _
        // Predicated region
        $region63: #{fwd.37} parent=19 // pred_check
          %p375 = pneg %p131
        $region64: #{fwd.37} parent=19 // pred_check_branch
          %377 = sbr.rel (%p375) target = $region66
        $region65: #{fwd.37} parent=19 // pred_region
          %s378 = smul.u32 2, %s18
          %p379 = scmp.lt.s32.totalorder %s378, 3
          %s380 = scalar_select %p379, %s378, 3
          %s381 = scalar_lea.vmem %s3, %s380
          %s382 = smul.u32 2, %s18
        $region66: #{fwd.37} parent=19 // pred_fallthru
          _
      $region20: #{fwd.37} parent=5 // pred_fallthru
        _
      %p383 = scmp.le.s32.totalorder 1, %s10
      %p384 = scmp.lt.s32.totalorder %s10, 3
      %p385 = pnand %p383, %p384
      %p386 = pneg %p385
      // Predicated region
      $region67: #{fwd.37} parent=5 // pred_check
        _
      $region68: #{fwd.37} parent=5 // pred_check_branch
        %388 = sbr.rel (%p385) target = $region70
      $region69: #{fwd.37} parent=5 // pred_region
        %s389 = ssub.s32 %s10, 1
        %s390 = sand.u32 %s72, 1
        %s391 = sand.u32 %s72, 1
        %s392 = smul.addr %s391, 256
        %s393 = scalar_lea.vmem [#allocation3], %s392
        // Predicated region
        $region71: #{fwd.37} parent=69 // pred_check
          %p394 = pneg %p85
        $region72: #{fwd.37} parent=69 // pred_check_branch
          %396 = sbr.rel (%p394) target = $region74
        $region73: #{fwd.37} parent=69 // pred_region
          _
        $region74: #{fwd.37} parent=69 // pred_fallthru
          _
        %s397 = smul.u32 2, %s22
        %p398 = scmp.lt.s32.totalorder %s20, 0
        %s399 = scalar_select %p398, %s20, 0
        %p400 = scmp.lt.s32.totalorder %s397, 1
        %s401 = scalar_select %p400, %s397, 1
        %s402 = smul.addr %s399, 2
        %s403 = sadd.s32 %s401, %s402
        %s404 = smul.addr %s403, 4
        %s405 = scalar_lea.vmem %s0, %s404
        %p406 = pneg %p57
        %p407 = pneg %p54
        %s408 = sand.u32 %s72, 1
        %s409 = sand.u32 %s72, 1
        %s410 = smul.addr %s409, 256
        %s411 = scalar_lea.vmem [#allocation3], %s410
        %p412 = pneg %p85
        %p413 = pneg %p82
        %s414 = smul.u32 2, %s21
        %p415 = scmp.lt.s32.totalorder %s414, 3
        %s416 = scalar_select %p415, %s414, 3
        %s417 = scalar_lea.vmem %s2, %s416
        %p418 = pneg %p111
        %p419 = pneg %p108
        %s420 = smul.u32 2, %s21
        %p421 = scmp.lt.s32.totalorder %s420, 3
        %s422 = scalar_select %p421, %s420, 3
        %s423 = scalar_lea.vmem %s3, %s422
        %p424 = pneg %p137
        %p425 = pneg %p134
        %p426 = pneg %p165
        %p427 = pneg %p162
        %s428 = smul.u32 2, %s21
        %p429 = scmp.lt.s32.totalorder %s20, 0
        %s430 = scalar_select %p429, %s20, 0
        %p431 = scmp.lt.s32.totalorder %s428, 3
        %s432 = scalar_select %p431, %s428, 3
        %s433 = smul.addr %s430, 4
        %s434 = sadd.s32 %s432, %s433
        %s435 = smul.addr %s434, 4
        %s436 = scalar_lea.vmem %s4, %s435
        %s437 = smul.u32 2, %s22
        %p438 = scmp.lt.s32.totalorder %s20, 0
        %s439 = scalar_select %p438, %s20, 0
        %p440 = scmp.lt.s32.totalorder %s437, 1
        %s441 = scalar_select %p440, %s437, 1
        %s442 = smul.addr %s439, 2
        %s443 = sadd.s32 %s441, %s442
        %s444 = smul.addr %s443, 4
        %s445 = scalar_lea.vmem %s0, %s444
        %s446 = smul.u32 2, %s22
        %s447 = smul.u32 32, %s22
        %s448 = smul.u32 2, %s21
        %s449 = smul.u32 2, %s21
        %p450 = scmp.lt.s32.totalorder %s449, 3
        %s451 = scalar_select %p450, %s449, 3
        %s452 = scalar_lea.vmem %s2, %s451
        %s453 = smul.u32 2, %s21
        %s454 = smul.u32 2, %s21
        %p455 = scmp.lt.s32.totalorder %s454, 3
        %s456 = scalar_select %p455, %s454, 3
        %s457 = scalar_lea.vmem %s3, %s456
        %s458 = smul.u32 2, %s21
        %s459 = smul.u32 2, %s21
        %p460 = scmp.lt.s32.totalorder %s20, 0
        %s461 = scalar_select %p460, %s20, 0
        %p462 = scmp.lt.s32.totalorder %s459, 3
        %s463 = scalar_select %p462, %s459, 3
        %s464 = smul.addr %s461, 4
        %s465 = sadd.s32 %s463, %s464
        %s466 = smul.addr %s465, 4
        %s467 = scalar_lea.vmem %s4, %s466
        %s468 = smul.u32 2, %s21
        %p469 = scmp.eq.s32.totalorder %s22, 0
        // Predicated region
        $region75: #{fwd.37} parent=69 // pred_check
          %p470 = pneg %p469
        $region76: #{fwd.37} parent=69 // pred_check_branch
          %472 = sbr.rel (%p470) target = $region78
        $region77: #{fwd.37} parent=69 // pred_region
          %473 = vst [vmem:[#allocation2] sm:$0xff] 0.0
          %474 = vst [vmem:[#allocation2 + $0x8] sm:$0xff] 0.0
        $region78: #{fwd.37} parent=69 // pred_fallthru
          _
        %v475 = vld [vmem:[#allocation2] sm:$0xff]
        %v476 = vld [vmem:[#allocation2 + $0x8] sm:$0xff]
        %v477 = vld [vmem:[%s445] sm:$0xff]
        %v478 = vld [vmem:[%s393] sm:$0xff]
        %v479 = vld [vmem:[%s393 + $0x8] sm:$0xff]
        %v480 = vld [vmem:[%s393 + $0x10] sm:$0xff]
        %v481 = vld [vmem:[%s393 + $0x18] sm:$0xff]
        %v482 = vld [vmem:[%s393 + $0x20] sm:$0xff]
        %v483 = vld [vmem:[%s393 + $0x28] sm:$0xff]
        %v484 = vld [vmem:[%s393 + $0x30] sm:$0xff]
        %v485 = vld [vmem:[%s393 + $0x38] sm:$0xff]
        %v486 = vld [vmem:[%s393 + $0x40] sm:$0xff]
        %v487 = vld [vmem:[%s393 + $0x48] sm:$0xff]
        %v488 = vld [vmem:[%s393 + $0x50] sm:$0xff]
        %v489 = vld [vmem:[%s393 + $0x58] sm:$0xff]
        %v490 = vld [vmem:[%s393 + $0x60] sm:$0xff]
        %v491 = vld [vmem:[%s393 + $0x68] sm:$0xff]
        %v492 = vld [vmem:[%s393 + $0x70] sm:$0xff]
        %v493 = vld [vmem:[%s393 + $0x78] sm:$0xff]
        %v494 = vld [vmem:[%s393 + $0x80] sm:$0xff]
        %v495 = vld [vmem:[%s393 + $0x88] sm:$0xff]
        %v496 = vld [vmem:[%s393 + $0x90] sm:$0xff]
        %v497 = vld [vmem:[%s393 + $0x98] sm:$0xff]
        %v498 = vld [vmem:[%s393 + $0xa0] sm:$0xff]
        %v499 = vld [vmem:[%s393 + $0xa8] sm:$0xff]
        %v500 = vld [vmem:[%s393 + $0xb0] sm:$0xff]
        %v501 = vld [vmem:[%s393 + $0xb8] sm:$0xff]
        %v502 = vld [vmem:[%s393 + $0xc0] sm:$0xff]
        %v503 = vld [vmem:[%s393 + $0xc8] sm:$0xff]
        %v504 = vld [vmem:[%s393 + $0xd0] sm:$0xff]
        %v505 = vld [vmem:[%s393 + $0xd8] sm:$0xff]
        %v506 = vld [vmem:[%s393 + $0xe0] sm:$0xff]
        %v507 = vld [vmem:[%s393 + $0xe8] sm:$0xff]
        %v508 = vld [vmem:[%s393 + $0xf0] sm:$0xff]
        %v509 = vld [vmem:[%s393 + $0xf8] sm:$0xff]
        %v511 = vunpack.c.l.b16 %v477
        %v512 = vunpack.c.h.b16 %v477
        %v513 = vpack.c.b16 %v511, %v511
        %v514 = vpack.c.b16 %v512, %v512
        %v549 = vunpack.c.l.b16 %v478
        %v550 = vunpack.c.h.b16 %v478
        %v551 = vunpack.c.l.b16 %v479
        %v552 = vunpack.c.h.b16 %v479
        %v553 = vunpack.c.l.b16 %v480
        %v554 = vunpack.c.h.b16 %v480
        %v555 = vunpack.c.l.b16 %v481
        %v556 = vunpack.c.h.b16 %v481
        %v557 = vunpack.c.l.b16 %v482
        %v558 = vunpack.c.h.b16 %v482
        %v559 = vunpack.c.l.b16 %v483
        %v560 = vunpack.c.h.b16 %v483
        %v561 = vunpack.c.l.b16 %v484
        %v562 = vunpack.c.h.b16 %v484
        %v563 = vunpack.c.l.b16 %v485
        %v564 = vunpack.c.h.b16 %v485
        %v565 = vunpack.c.l.b16 %v486
        %v566 = vunpack.c.h.b16 %v486
        %v567 = vunpack.c.l.b16 %v487
        %v568 = vunpack.c.h.b16 %v487
        %v569 = vunpack.c.l.b16 %v488
        %v570 = vunpack.c.h.b16 %v488
        %v571 = vunpack.c.l.b16 %v489
        %v572 = vunpack.c.h.b16 %v489
        %v573 = vunpack.c.l.b16 %v490
        %v574 = vunpack.c.h.b16 %v490
        %v575 = vunpack.c.l.b16 %v491
        %v576 = vunpack.c.h.b16 %v491
        %v577 = vunpack.c.l.b16 %v492
        %v578 = vunpack.c.h.b16 %v492
        %v579 = vunpack.c.l.b16 %v493
        %v580 = vunpack.c.h.b16 %v493
        %v581 = vunpack.c.l.b16 %v494
        %v582 = vunpack.c.h.b16 %v494
        %v583 = vunpack.c.l.b16 %v495
        %v584 = vunpack.c.h.b16 %v495
        %v585 = vunpack.c.l.b16 %v496
        %v586 = vunpack.c.h.b16 %v496
        %v587 = vunpack.c.l.b16 %v497
        %v588 = vunpack.c.h.b16 %v497
        %v589 = vunpack.c.l.b16 %v498
        %v590 = vunpack.c.h.b16 %v498
        %v591 = vunpack.c.l.b16 %v499
        %v592 = vunpack.c.h.b16 %v499
        %v593 = vunpack.c.l.b16 %v500
        %v594 = vunpack.c.h.b16 %v500
        %v595 = vunpack.c.l.b16 %v501
        %v596 = vunpack.c.h.b16 %v501
        %v597 = vunpack.c.l.b16 %v502
        %v598 = vunpack.c.h.b16 %v502
        %v599 = vunpack.c.l.b16 %v503
        %v600 = vunpack.c.h.b16 %v503
        %v601 = vunpack.c.l.b16 %v504
        %v602 = vunpack.c.h.b16 %v504
        %v603 = vunpack.c.l.b16 %v505
        %v604 = vunpack.c.h.b16 %v505
        %v605 = vunpack.c.l.b16 %v506
        %v606 = vunpack.c.h.b16 %v506
        %v607 = vunpack.c.l.b16 %v507
        %v608 = vunpack.c.h.b16 %v507
        %v609 = vunpack.c.l.b16 %v508
        %v610 = vunpack.c.h.b16 %v508
        %v611 = vunpack.c.l.b16 %v509
        %v612 = vunpack.c.h.b16 %v509
        %v613 = vpack.c.b16 %v551, %v549
        %v614 = vpack.c.b16 %v552, %v550
        %v615 = vpack.c.b16 %v555, %v553
        %v616 = vpack.c.b16 %v556, %v554
        %v617 = vpack.c.b16 %v559, %v557
        %v618 = vpack.c.b16 %v560, %v558
        %v619 = vpack.c.b16 %v563, %v561
        %v620 = vpack.c.b16 %v564, %v562
        %v621 = vpack.c.b16 %v567, %v565
        %v622 = vpack.c.b16 %v568, %v566
        %v623 = vpack.c.b16 %v571, %v569
        %v624 = vpack.c.b16 %v572, %v570
        %v625 = vpack.c.b16 %v575, %v573
        %v626 = vpack.c.b16 %v576, %v574
        %v627 = vpack.c.b16 %v579, %v577
        %v628 = vpack.c.b16 %v580, %v578
        %v629 = vpack.c.b16 %v583, %v581
        %v630 = vpack.c.b16 %v584, %v582
        %v631 = vpack.c.b16 %v587, %v585
        %v632 = vpack.c.b16 %v588, %v586
        %v633 = vpack.c.b16 %v591, %v589
        %v634 = vpack.c.b16 %v592, %v590
        %v635 = vpack.c.b16 %v595, %v593
        %v636 = vpack.c.b16 %v596, %v594
        %v637 = vpack.c.b16 %v599, %v597
        %v638 = vpack.c.b16 %v600, %v598
        %v639 = vpack.c.b16 %v603, %v601
        %v640 = vpack.c.b16 %v604, %v602
        %v641 = vpack.c.b16 %v607, %v605
        %v642 = vpack.c.b16 %v608, %v606
        %v643 = vpack.c.b16 %v611, %v609
        %v644 = vpack.c.b16 %v612, %v610
        %677 = vmatprep.subr.bf16.mxu0 %v628
        %678 = vmatpush1.bf16.msra.mxu0 %v627
        %679 = vmatprep.subr.bf16.mxu0 %v626
        %680 = vmatpush1.bf16.msra.mxu0 %v625
        %681 = vmatprep.subr.bf16.mxu0 %v624
        %682 = vmatpush1.bf16.msra.mxu0 %v623
        %683 = vmatprep.subr.bf16.mxu0 %v622
        %684 = vmatpush1.bf16.msra.mxu0 %v621
        %685 = vmatprep.subr.bf16.mxu0 %v620
        %686 = vmatpush1.bf16.msra.mxu0 %v619
        %687 = vmatprep.subr.bf16.mxu0 %v618
        %688 = vmatpush1.bf16.msra.mxu0 %v617
        %689 = vmatprep.subr.bf16.mxu0 %v616
        %690 = vmatpush1.bf16.msra.mxu0 %v615
        %691 = vmatprep.subr.bf16.mxu0 %v614
        %692 = vmatpush1.bf16.msra.mxu0 %v613
        %693 = vmatprep.subr.bf16.mxu0 %v644
        %694 = vmatpush2.bf16.msra.mxu0 %v643
        %695 = vmatprep.subr.bf16.mxu0 %v642
        %696 = vmatpush2.bf16.msra.mxu0 %v641
        %697 = vmatprep.subr.bf16.mxu0 %v640
        %698 = vmatpush2.bf16.msra.mxu0 %v639
        %699 = vmatprep.subr.bf16.mxu0 %v638
        %700 = vmatpush2.bf16.msra.mxu0 %v637
        %701 = vmatprep.subr.bf16.mxu0 %v636
        %702 = vmatpush2.bf16.msra.mxu0 %v635
        %703 = vmatprep.subr.bf16.mxu0 %v634
        %704 = vmatpush2.bf16.msra.mxu0 %v633
        %705 = vmatprep.subr.bf16.mxu0 %v632
        %706 = vmatpush2.bf16.msra.mxu0 %v631
        %707 = vmatprep.subr.bf16.mxu0 %v630
        %708 = vmatpush2.bf16.msra.mxu0 %v629
        %709 = vmatprep.mubr.bf16.mxu0 %v514
        %710 = vmatmul.mubr.bf16.gmra.mxu0 %v513
        %v711 = vpop.f32.mrf.mxu0
        %v712 = vadd.f32 0.0, %v711
        %v713 = vpop.f32.mrf.mxu0
        %v714 = vadd.f32 0.0, %v713
        %v715 = vpop.f32.mrf.mxu0
        %v716 = vpop.f32.mrf.mxu0
        %717 = vdwg.mxu0
        %v718 = vadd.f32 %v475, %v712
        %v719 = vadd.f32 %v476, %v714
        %720 = vst [vmem:[#allocation2] sm:$0xff] %v718
        %721 = vst [vmem:[#allocation2 + $0x8] sm:$0xff] %v719
        // Predicated region
        $region79: #{fwd.37} parent=69 // pred_check
          %p722 = pneg %p469
        $region80: #{fwd.37} parent=69 // pred_check_branch
          %724 = sbr.rel (%p722) target = $region82
        $region81: #{fwd.37} parent=69 // pred_region
          %v725 = vld [vmem:[#allocation2] sm:$0xff]
          %v726 = vld [vmem:[#allocation2 + $0x8] sm:$0xff]
          %v727 = vld [vmem:[%s452] sm:$0x3]
          %v729 = vlaneseq
          %v730 = vshrl.u32 %v729, 7
          %v731 = vsub.s32 0, %v730
          %v732 = vrot.slane %v727, %v731
          %v733 = vlaneseq
          %v734 = vshrl.u32 %v733, 7
          %v735 = vsub.s32 1, %v734
          %v736 = vrot.slane %v727, %v735
          %v739 = vmul.f32 %v725, %v732
          %v740 = vmul.f32 %v726, %v736
          %v741 = vld [vmem:[%s457] sm:$0x3]
          %v743 = vlaneseq
          %v744 = vshrl.u32 %v743, 7
          %v745 = vsub.s32 0, %v744
          %v746 = vrot.slane %v741, %v745
          %v747 = vlaneseq
          %v748 = vshrl.u32 %v747, 7
          %v749 = vsub.s32 1, %v748
          %v750 = vrot.slane %v741, %v749
          %v753 = vadd.f32 %v739, %v746
          %v754 = vadd.f32 %v740, %v750
          %v755 = vpack.c.bf16 %v753, %v753
          %v756 = vpack.c.bf16 %v754, %v754
          %v759 = vunpack.c.l.b16 %v755
          %v760 = vunpack.c.l.b16 %v756
          %v761 = vpack.c.b16 %v760, %v759
          %763 = vst [vmem:[%s467] sm:$0xff] %v761
        $region82: #{fwd.37} parent=69 // pred_fallthru
          _
        %s764 = smul.u32 2, %s21
        %p765 = scmp.lt.s32.totalorder %s20, 0
        %s766 = scalar_select %p765, %s20, 0
        %p767 = scmp.lt.s32.totalorder %s764, 3
        %s768 = scalar_select %p767, %s764, 3
        %s769 = smul.addr %s766, 4
        %s770 = sadd.s32 %s768, %s769
        %s771 = smul.addr %s770, 4
        %s772 = scalar_lea.vmem %s4, %s771
        // Predicated region
        $region83: #{fwd.37} parent=69 // pred_check
          %p773 = pneg %p162
        $region84: #{fwd.37} parent=69 // pred_check_branch
          %775 = sbr.rel (%p773) target = $region86
        $region85: #{fwd.37} parent=69 // pred_region
          %s776 = smul.u32 2, %s21
        $region86: #{fwd.37} parent=69 // pred_fallthru
          _
      $region70: #{fwd.37} parent=5 // pred_fallthru
        _
      %p777 = scmp.le.s32.totalorder 2, %s10
      // Predicated region
      $region87: #{fwd.37} parent=5 // pred_check
        %p778 = pneg %p777
      $region88: #{fwd.37} parent=5 // pred_check_branch
        %780 = sbr.rel (%p778) target = $region90
      $region89: #{fwd.37} parent=5 // pred_region
        %s781 = ssub.s32 %s10, 2
        // Predicated region
        $region91: #{fwd.37} parent=89 // pred_check
          %p782 = pneg %p168
        $region92: #{fwd.37} parent=89 // pred_check_branch
          %784 = sbr.rel (%p782) target = $region94
        $region93: #{fwd.37} parent=89 // pred_region
          %s785 = smul.u32 2, %s24
          %p786 = scmp.lt.s32.totalorder %s23, 0
          %s787 = scalar_select %p786, %s23, 0
          %p788 = scmp.lt.s32.totalorder %s785, 3
          %s789 = scalar_select %p788, %s785, 3
          %s790 = smul.addr %s787, 4
          %s791 = sadd.s32 %s789, %s790
          %s792 = smul.addr %s791, 4
          %s793 = scalar_lea.vmem %s4, %s792
        $region94: #{fwd.37} parent=89 // pred_fallthru
          _
      $region90: #{fwd.37} parent=5 // pred_fallthru
        _
    $region6: #{fwd.37} parent=1 // loop_footer
      %s14 = sadd.s32 1, %s10
    $region7: #{fwd.37} parent=1 // loop_footer_branch
      %9 = sbr.rel target = $region3
    $region8: #{fwd.37} parent=1 // loop_exit
      _

// kernel: fwd.38
$region0: #{fwd.38}
  #allocation0 [shape = 'u32[]', space=smem, size = 0x4, offset = 0x4, fixed_abs, tag = 'smem constant byte address 0x4 - core index']
  #allocation1 [shape = 'u32[144,128]{1,0:T(1,128)}', space=vmem, size = 0x12000, scoped, tag = 'internal scratch']
  #allocation2 [shape = 'f32[8,256]{1,0:T(8,128)}', space=vmem, size = 0x2000, scoped, tag = 'scratch operand']
  %s0 = inlined_call_operand.vmem [shape: bf16[8,1536], index: 0, kind: input, shape index: {}]
  %s1 = inlined_call_operand.vmem [shape: bf16[1536,512], index: 1, kind: input, shape index: {}]
  %s2 = inlined_call_operand.vmem [shape: f32[1,512], index: 2, kind: input, shape index: {}]
  %s3 = inlined_call_operand.vmem [shape: f32[1,512], index: 3, kind: input, shape index: {}]
  %s4 = inlined_call_operand.vmem [shape: bf16[8,512], index: 4, kind: input, shape index: {}]
  %s5 = inlined_call_operand.vmem [shape: bf16[8,512], index: 5, kind: output, shape index: {}]
  %s6 = sld [smem:[#allocation0]]
  $region99: #{fwd.38} parent=0
    _
  %s8 = ssub.s32 1, %s6
  %s9 = scalar_select 0, %s8, %s6
  $region1: #{fwd.38} parent=0
    #allocation3 [shape = 'u8[524288]{0}', space=vmem, size = 0x80000, scoped, tag = 'input window, operand 1']
    loop: start=0, step=1, limit=8
    $region2: #{fwd.38} parent=1 // loop_pre_header
      _
    $region3: #{fwd.38} parent=1 // loop_header
      %s11 = sphi 0, %s15
      %p12 = scmp.ge.s32.totalorder %s11, 8
      %s18 = sphi 0, %s37
      %s19 = sphi 0, %s33
      %s20 = sphi 0, %s29
      %s21 = sphi 0, %s18
      %s22 = sphi 0, %s19
      %s23 = sphi 0, %s20
      %s24 = sphi 0, %s21
      %s25 = sphi 0, %s22
      %s26 = sphi 0, %s23
      %s42 = sphi 0, %s44
      %s45 = sphi 0, %s42
      %s46 = sphi 0, %s45
      %s62 = sphi 0, %s46
      %s70 = sphi 0, %s72
      %s73 = sphi 0, %s70
      %s74 = sphi 0, %s73
      %s90 = sphi 0, %s74
      %s96 = sphi 0, %s98
      %s99 = sphi 0, %s96
      %s100 = sphi 0, %s99
      %s116 = sphi 0, %s100
      %s122 = sphi 0, %s124
      %s125 = sphi 0, %s122
      %s126 = sphi 0, %s125
      %s142 = sphi 0, %s126
      %s150 = sphi 0, %s152
      %s153 = sphi 0, %s150
      %s154 = sphi 0, %s153
      %s170 = sphi 0, %s154
      %s178 = sphi 0, %s180
      %s181 = sphi 0, %s178
      %s182 = sphi 0, %s181
      %s198 = sphi 0, %s182
    $region4: #{fwd.38} parent=1 // loop_header_branch
      %14 = sbr.rel (%p12) target = $region8
    $region5: #{fwd.38} parent=1 // loop_body
      %s16 = ssub.s32 %s11, 1
      %s17 = ssub.s32 %s11, 2
      %s27 = sadd.s32 1, %s20
      %p28 = scmp.ge.s32.totalorder %s27, 3
      %s29 = scalar_select %p28, 0, %s27
      %s30 = sadd.s32 1, %s19
      %s31 = scalar_select %p28, %s30, %s19
      %p32 = scmp.ge.s32.totalorder %s31, 2
      %s33 = scalar_select %p32, 0, %s31
      %s34 = sadd.s32 1, %s18
      %s35 = scalar_select %p32, %s34, %s18
      %p36 = scmp.ge.s32.totalorder %s35, 1
      %s37 = scalar_select %p36, 0, %s35
      %s38 = ssub.s32 %s18, %s37
      %s39 = ssub.s32 %s20, %s29
      %s40 = sor.u32 %s38, %s39
      %p41 = scmp.eq.s32.totalorder %s40, 0
      %s43 = sadd.s32 %s42, 1
      %s44 = scalar_select %p41, %s42, %s43
      %p47 = pneg %p41
      %p48 = scmp.eq.s32.totalorder %s11, 5
      %p49 = por %p47, %p48
      %p50 = scmp.ne.s32.totalorder %s42, %s45
      %p51 = scmp.eq.s32.totalorder %s11, 0
      %p52 = por %p50, %p51
      %p53 = scmp.ne.s32.totalorder %s42, %s45
      %p54 = scmp.eq.s32.totalorder %s16, 5
      %p55 = por %p53, %p54
      %p56 = scmp.ne.s32.totalorder %s45, %s46
      %p57 = scmp.eq.s32.totalorder %s16, 0
      %p58 = por %p56, %p57
      %p59 = scmp.ne.s32.totalorder %s45, %s46
      %p60 = scmp.eq.s32.totalorder %s17, 5
      %p61 = por %p59, %p60
      %p63 = scmp.ne.s32.totalorder %s46, %s62
      %p64 = scmp.eq.s32.totalorder %s17, 0
      %p65 = por %p63, %p64
      %s66 = ssub.s32 %s20, %s29
      %s67 = ssub.s32 %s19, %s33
      %s68 = sor.u32 %s66, %s67
      %p69 = scmp.eq.s32.totalorder %s68, 0
      %s71 = sadd.s32 %s70, 1
      %s72 = scalar_select %p69, %s70, %s71
      %p75 = pneg %p69
      %p76 = scmp.eq.s32.totalorder %s11, 5
      %p77 = por %p75, %p76
      %p78 = scmp.ne.s32.totalorder %s70, %s73
      %p79 = scmp.eq.s32.totalorder %s11, 0
      %p80 = por %p78, %p79
      %p81 = scmp.ne.s32.totalorder %s70, %s73
      %p82 = scmp.eq.s32.totalorder %s16, 5
      %p83 = por %p81, %p82
      %p84 = scmp.ne.s32.totalorder %s73, %s74
      %p85 = scmp.eq.s32.totalorder %s16, 0
      %p86 = por %p84, %p85
      %p87 = scmp.ne.s32.totalorder %s73, %s74
      %p88 = scmp.eq.s32.totalorder %s17, 5
      %p89 = por %p87, %p88
      %p91 = scmp.ne.s32.totalorder %s74, %s90
      %p92 = scmp.eq.s32.totalorder %s17, 0
      %p93 = por %p91, %p92
      %s94 = ssub.s32 %s19, %s33
      %p95 = scmp.eq.s32.totalorder %s94, 0
      %s97 = sadd.s32 %s96, 1
      %s98 = scalar_select %p95, %s96, %s97
      %p101 = pneg %p95
      %p102 = scmp.eq.s32.totalorder %s11, 5
      %p103 = por %p101, %p102
      %p104 = scmp.ne.s32.totalorder %s96, %s99
      %p105 = scmp.eq.s32.totalorder %s11, 0
      %p106 = por %p104, %p105
      %p107 = scmp.ne.s32.totalorder %s96, %s99
      %p108 = scmp.eq.s32.totalorder %s16, 5
      %p109 = por %p107, %p108
      %p110 = scmp.ne.s32.totalorder %s99, %s100
      %p111 = scmp.eq.s32.totalorder %s16, 0
      %p112 = por %p110, %p111
      %p113 = scmp.ne.s32.totalorder %s99, %s100
      %p114 = scmp.eq.s32.totalorder %s17, 5
      %p115 = por %p113, %p114
      %p117 = scmp.ne.s32.totalorder %s100, %s116
      %p118 = scmp.eq.s32.totalorder %s17, 0
      %p119 = por %p117, %p118
      %s120 = ssub.s32 %s19, %s33
      %p121 = scmp.eq.s32.totalorder %s120, 0
      %s123 = sadd.s32 %s122, 1
      %s124 = scalar_select %p121, %s122, %s123
      %p127 = pneg %p121
      %p128 = scmp.eq.s32.totalorder %s11, 5
      %p129 = por %p127, %p128
      %p130 = scmp.ne.s32.totalorder %s122, %s125
      %p131 = scmp.eq.s32.totalorder %s11, 0
      %p132 = por %p130, %p131
      %p133 = scmp.ne.s32.totalorder %s122, %s125
      %p134 = scmp.eq.s32.totalorder %s16, 5
      %p135 = por %p133, %p134
      %p136 = scmp.ne.s32.totalorder %s125, %s126
      %p137 = scmp.eq.s32.totalorder %s16, 0
      %p138 = por %p136, %p137
      %p139 = scmp.ne.s32.totalorder %s125, %s126
      %p140 = scmp.eq.s32.totalorder %s17, 5
      %p141 = por %p139, %p140
      %p143 = scmp.ne.s32.totalorder %s126, %s142
      %p144 = scmp.eq.s32.totalorder %s17, 0
      %p145 = por %p143, %p144
      %s146 = ssub.s32 %s18, %s37
      %s147 = ssub.s32 %s19, %s33
      %s148 = sor.u32 %s146, %s147
      %p149 = scmp.eq.s32.totalorder %s148, 0
      %s151 = sadd.s32 %s150, 1
      %s152 = scalar_select %p149, %s150, %s151
      %p155 = pneg %p149
      %p156 = scmp.eq.s32.totalorder %s11, 5
      %p157 = por %p155, %p156
      %p158 = scmp.ne.s32.totalorder %s150, %s153
      %p159 = scmp.eq.s32.totalorder %s11, 0
      %p160 = por %p158, %p159
      %p161 = scmp.ne.s32.totalorder %s150, %s153
      %p162 = scmp.eq.s32.totalorder %s16, 5
      %p163 = por %p161, %p162
      %p164 = scmp.ne.s32.totalorder %s153, %s154
      %p165 = scmp.eq.s32.totalorder %s16, 0
      %p166 = por %p164, %p165
      %p167 = scmp.ne.s32.totalorder %s153, %s154
      %p168 = scmp.eq.s32.totalorder %s17, 5
      %p169 = por %p167, %p168
      %p171 = scmp.ne.s32.totalorder %s154, %s170
      %p172 = scmp.eq.s32.totalorder %s17, 0
      %p173 = por %p171, %p172
      %s174 = ssub.s32 %s18, %s37
      %s175 = ssub.s32 %s19, %s33
      %s176 = sor.u32 %s174, %s175
      %p177 = scmp.eq.s32.totalorder %s176, 0
      %s179 = sadd.s32 %s178, 1
      %s180 = scalar_select %p177, %s178, %s179
      %p183 = pneg %p177
      %p184 = scmp.eq.s32.totalorder %s11, 5
      %p185 = por %p183, %p184
      %p186 = scmp.ne.s32.totalorder %s178, %s181
      %p187 = scmp.eq.s32.totalorder %s11, 0
      %p188 = por %p186, %p187
      %p189 = scmp.ne.s32.totalorder %s178, %s181
      %p190 = scmp.eq.s32.totalorder %s16, 5
      %p191 = por %p189, %p190
      %p192 = scmp.ne.s32.totalorder %s181, %s182
      %p193 = scmp.eq.s32.totalorder %s16, 0
      %p194 = por %p192, %p193
      %p195 = scmp.ne.s32.totalorder %s181, %s182
      %p196 = scmp.eq.s32.totalorder %s17, 5
      %p197 = por %p195, %p196
      %p199 = scmp.ne.s32.totalorder %s182, %s198
      %p200 = scmp.eq.s32.totalorder %s17, 0
      %p201 = por %p199, %p200
      %p202 = scmp.le.s32.totalorder 1, %s11
      %p203 = scmp.lt.s32.totalorder %s11, 7
      %p204 = pnand %p202, %p203
      %p205 = pneg %p204
      // Predicated region
      $region9: #{fwd.38} parent=5 // pred_check
        _
      $region10: #{fwd.38} parent=5 // pred_check_branch
        %207 = sbr.rel (%p204) target = $region12
      $region11: #{fwd.38} parent=5 // pred_region
        %s208 = ssub.s32 %s11, 1
      $region12: #{fwd.38} parent=5 // pred_fallthru
        _
      %p209 = scmp.lt.s32.totalorder %s11, 6
      // Predicated region
      $region13: #{fwd.38} parent=5 // pred_check
        %p210 = pneg %p209
      $region14: #{fwd.38} parent=5 // pred_check_branch
        %212 = sbr.rel (%p210) target = $region16
      $region15: #{fwd.38} parent=5 // pred_region
        // Predicated region
        $region17: #{fwd.38} parent=15 // pred_check
          %p213 = pneg %p52
        $region18: #{fwd.38} parent=15 // pred_check_branch
          %215 = sbr.rel (%p213) target = $region20
        $region19: #{fwd.38} parent=15 // pred_region
          %s216 = smul.u32 4, %s20
          %p217 = scmp.lt.s32.totalorder %s18, 0
          %s218 = scalar_select %p217, %s18, 0
          %p219 = scmp.lt.s32.totalorder %s216, 11
          %s220 = scalar_select %p219, %s216, 11
          %s221 = smul.addr %s218, 12
          %s222 = sadd.s32 %s220, %s221
          %s223 = smul.addr %s222, 4
          %s224 = scalar_lea.vmem %s0, %s223
          %s225 = smul.u32 4, %s20
        $region20: #{fwd.38} parent=15 // pred_fallthru
          _
        // Predicated region
        $region21: #{fwd.38} parent=15 // pred_check
          %p226 = pneg %p80
        $region22: #{fwd.38} parent=15 // pred_check_branch
          %228 = sbr.rel (%p226) target = $region24
        $region23: #{fwd.38} parent=15 // pred_region
          %s229 = sand.u32 %s70, 1
          %s230 = sand.u32 %s70, 1
          %s231 = smul.addr %s230, 512
          %s232 = scalar_lea.vmem [#allocation3], %s231
          %s233 = smul.u32 64, %s20
          %s234 = smul.u32 2, %s19
          %s235 = smul.addr %s233, 4
          %s236 = sadd.s32 %s234, %s235
          %s237 = smul.addr %s236, 4
          %s238 = scalar_lea.vmem %s1, %s237
          // Predicated region
          $region25: #{fwd.38} parent=23 // pred_check
            _
          $region26: #{fwd.38} parent=23 // pred_check_branch
            %240 = sbr.rel (0) target = $region28
          $region27: #{fwd.38} parent=23 // pred_region
            // Predicated region
            $region29: #{fwd.38} parent=27 // pred_check
              _
            $region30: #{fwd.38} parent=27 // pred_check_branch
              %242 = sbr.rel (0) target = $region32
            $region31: #{fwd.38} parent=27 // pred_region
              // Predicated region
              $region44: #{fwd.38} parent=31 // pred_check
                _
              $region45: #{fwd.38} parent=31 // pred_check_branch
                %384 = sbr.rel (0) target = $region47
              $region46: #{fwd.38} parent=31 // pred_region
                loop: start=0, step=1, limit=1
                $region48: #{fwd.38} parent=46 // loop_pre_header
                  _
                $region49: #{fwd.38} parent=46 // loop_header
                  %s386 = sphi 0, %s390
                  %p387 = scmp.ge.s32.totalorder %s386, 1
                  %s391 = sphi %s238, %s238
                  %s392 = sphi %s232, %s232
                $region50: #{fwd.38} parent=46 // loop_header_branch
                  %389 = sbr.rel (%p387) target = $region54
                $region51: #{fwd.38} parent=46 // loop_body
                  %v393 = vld [vmem:[%s391] sm:$0xff]
                  %394 = vst [vmem:[%s392] sm:$0xff] %v393
                  %v395 = vld [vmem:[%s391 + $0x10] sm:$0xff]
                  %396 = vst [vmem:[%s392 + $0x8] sm:$0xff] %v395
                  %v397 = vld [vmem:[%s391 + $0x20] sm:$0xff]
                  %398 = vst [vmem:[%s392 + $0x10] sm:$0xff] %v397
                  %v399 = vld [vmem:[%s391 + $0x30] sm:$0xff]
                  %400 = vst [vmem:[%s392 + $0x18] sm:$0xff] %v399
                  %v401 = vld [vmem:[%s391 + $0x40] sm:$0xff]
                  %402 = vst [vmem:[%s392 + $0x20] sm:$0xff] %v401
                  %v403 = vld [vmem:[%s391 + $0x50] sm:$0xff]
                  %404 = vst [vmem:[%s392 + $0x28] sm:$0xff] %v403
                  %v405 = vld [vmem:[%s391 + $0x60] sm:$0xff]
                  %406 = vst [vmem:[%s392 + $0x30] sm:$0xff] %v405
                  %v407 = vld [vmem:[%s391 + $0x70] sm:$0xff]
                  %408 = vst [vmem:[%s392 + $0x38] sm:$0xff] %v407
                  %v409 = vld [vmem:[%s391 + $0x80] sm:$0xff]
                  %410 = vst [vmem:[%s392 + $0x40] sm:$0xff] %v409
                  %v411 = vld [vmem:[%s391 + $0x90] sm:$0xff]
                  %412 = vst [vmem:[%s392 + $0x48] sm:$0xff] %v411
                  %v413 = vld [vmem:[%s391 + $0xa0] sm:$0xff]
                  %414 = vst [vmem:[%s392 + $0x50] sm:$0xff] %v413
                  %v415 = vld [vmem:[%s391 + $0xb0] sm:$0xff]
                  %416 = vst [vmem:[%s392 + $0x58] sm:$0xff] %v415
                  %v417 = vld [vmem:[%s391 + $0xc0] sm:$0xff]
                  %418 = vst [vmem:[%s392 + $0x60] sm:$0xff] %v417
                  %v419 = vld [vmem:[%s391 + $0xd0] sm:$0xff]
                  %420 = vst [vmem:[%s392 + $0x68] sm:$0xff] %v419
                  %v421 = vld [vmem:[%s391 + $0xe0] sm:$0xff]
                  %422 = vst [vmem:[%s392 + $0x70] sm:$0xff] %v421
                  %v423 = vld [vmem:[%s391 + $0xf0] sm:$0xff]
                  %424 = vst [vmem:[%s392 + $0x78] sm:$0xff] %v423
                  %v425 = vld [vmem:[%s391 + $0x100] sm:$0xff]
                  %426 = vst [vmem:[%s392 + $0x80] sm:$0xff] %v425
                  %v427 = vld [vmem:[%s391 + $0x110] sm:$0xff]
                  %428 = vst [vmem:[%s392 + $0x88] sm:$0xff] %v427
                  %v429 = vld [vmem:[%s391 + $0x120] sm:$0xff]
                  %430 = vst [vmem:[%s392 + $0x90] sm:$0xff] %v429
                  %v431 = vld [vmem:[%s391 + $0x130] sm:$0xff]
                  %432 = vst [vmem:[%s392 + $0x98] sm:$0xff] %v431
                  %v433 = vld [vmem:[%s391 + $0x140] sm:$0xff]
                  %434 = vst [vmem:[%s392 + $0xa0] sm:$0xff] %v433
                  %v435 = vld [vmem:[%s391 + $0x150] sm:$0xff]
                  %436 = vst [vmem:[%s392 + $0xa8] sm:$0xff] %v435
                  %v437 = vld [vmem:[%s391 + $0x160] sm:$0xff]
                  %438 = vst [vmem:[%s392 + $0xb0] sm:$0xff] %v437
                  %v439 = vld [vmem:[%s391 + $0x170] sm:$0xff]
                  %440 = vst [vmem:[%s392 + $0xb8] sm:$0xff] %v439
                  %v441 = vld [vmem:[%s391 + $0x180] sm:$0xff]
                  %442 = vst [vmem:[%s392 + $0xc0] sm:$0xff] %v441
                  %v443 = vld [vmem:[%s391 + $0x190] sm:$0xff]
                  %444 = vst [vmem:[%s392 + $0xc8] sm:$0xff] %v443
                  %v445 = vld [vmem:[%s391 + $0x1a0] sm:$0xff]
                  %446 = vst [vmem:[%s392 + $0xd0] sm:$0xff] %v445
                  %v447 = vld [vmem:[%s391 + $0x1b0] sm:$0xff]
                  %448 = vst [vmem:[%s392 + $0xd8] sm:$0xff] %v447
                  %v449 = vld [vmem:[%s391 + $0x1c0] sm:$0xff]
                  %450 = vst [vmem:[%s392 + $0xe0] sm:$0xff] %v449
                  %v451 = vld [vmem:[%s391 + $0x1d0] sm:$0xff]
                  %452 = vst [vmem:[%s392 + $0xe8] sm:$0xff] %v451
                  %v453 = vld [vmem:[%s391 + $0x1e0] sm:$0xff]
                  %454 = vst [vmem:[%s392 + $0xf0] sm:$0xff] %v453
                  %v455 = vld [vmem:[%s391 + $0x1f0] sm:$0xff]
                  %456 = vst [vmem:[%s392 + $0xf8] sm:$0xff] %v455
                  %v457 = vld [vmem:[%s391 + $0x200] sm:$0xff]
                  %458 = vst [vmem:[%s392 + $0x100] sm:$0xff] %v457
                  %v459 = vld [vmem:[%s391 + $0x210] sm:$0xff]
                  %460 = vst [vmem:[%s392 + $0x108] sm:$0xff] %v459
                  %v461 = vld [vmem:[%s391 + $0x220] sm:$0xff]
                  %462 = vst [vmem:[%s392 + $0x110] sm:$0xff] %v461
                  %v463 = vld [vmem:[%s391 + $0x230] sm:$0xff]
                  %464 = vst [vmem:[%s392 + $0x118] sm:$0xff] %v463
                  %v465 = vld [vmem:[%s391 + $0x240] sm:$0xff]
                  %466 = vst [vmem:[%s392 + $0x120] sm:$0xff] %v465
                  %v467 = vld [vmem:[%s391 + $0x250] sm:$0xff]
                  %468 = vst [vmem:[%s392 + $0x128] sm:$0xff] %v467
                  %v469 = vld [vmem:[%s391 + $0x260] sm:$0xff]
                  %470 = vst [vmem:[%s392 + $0x130] sm:$0xff] %v469
                  %v471 = vld [vmem:[%s391 + $0x270] sm:$0xff]
                  %472 = vst [vmem:[%s392 + $0x138] sm:$0xff] %v471
                  %v473 = vld [vmem:[%s391 + $0x280] sm:$0xff]
                  %474 = vst [vmem:[%s392 + $0x140] sm:$0xff] %v473
                  %v475 = vld [vmem:[%s391 + $0x290] sm:$0xff]
                  %476 = vst [vmem:[%s392 + $0x148] sm:$0xff] %v475
                  %v477 = vld [vmem:[%s391 + $0x2a0] sm:$0xff]
                  %478 = vst [vmem:[%s392 + $0x150] sm:$0xff] %v477
                  %v479 = vld [vmem:[%s391 + $0x2b0] sm:$0xff]
                  %480 = vst [vmem:[%s392 + $0x158] sm:$0xff] %v479
                  %v481 = vld [vmem:[%s391 + $0x2c0] sm:$0xff]
                  %482 = vst [vmem:[%s392 + $0x160] sm:$0xff] %v481
                  %v483 = vld [vmem:[%s391 + $0x2d0] sm:$0xff]
                  %484 = vst [vmem:[%s392 + $0x168] sm:$0xff] %v483
                  %v485 = vld [vmem:[%s391 + $0x2e0] sm:$0xff]
                  %486 = vst [vmem:[%s392 + $0x170] sm:$0xff] %v485
                  %v487 = vld [vmem:[%s391 + $0x2f0] sm:$0xff]
                  %488 = vst [vmem:[%s392 + $0x178] sm:$0xff] %v487
                  %v489 = vld [vmem:[%s391 + $0x300] sm:$0xff]
                  %490 = vst [vmem:[%s392 + $0x180] sm:$0xff] %v489
                  %v491 = vld [vmem:[%s391 + $0x310] sm:$0xff]
                  %492 = vst [vmem:[%s392 + $0x188] sm:$0xff] %v491
                  %v493 = vld [vmem:[%s391 + $0x320] sm:$0xff]
                  %494 = vst [vmem:[%s392 + $0x190] sm:$0xff] %v493
                  %v495 = vld [vmem:[%s391 + $0x330] sm:$0xff]
                  %496 = vst [vmem:[%s392 + $0x198] sm:$0xff] %v495
                  %v497 = vld [vmem:[%s391 + $0x340] sm:$0xff]
                  %498 = vst [vmem:[%s392 + $0x1a0] sm:$0xff] %v497
                  %v499 = vld [vmem:[%s391 + $0x350] sm:$0xff]
                  %500 = vst [vmem:[%s392 + $0x1a8] sm:$0xff] %v499
                  %v501 = vld [vmem:[%s391 + $0x360] sm:$0xff]
                  %502 = vst [vmem:[%s392 + $0x1b0] sm:$0xff] %v501
                  %v503 = vld [vmem:[%s391 + $0x370] sm:$0xff]
                  %504 = vst [vmem:[%s392 + $0x1b8] sm:$0xff] %v503
                  %v505 = vld [vmem:[%s391 + $0x380] sm:$0xff]
                  %506 = vst [vmem:[%s392 + $0x1c0] sm:$0xff] %v505
                  %v507 = vld [vmem:[%s391 + $0x390] sm:$0xff]
                  %508 = vst [vmem:[%s392 + $0x1c8] sm:$0xff] %v507
                  %v509 = vld [vmem:[%s391 + $0x3a0] sm:$0xff]
                  %510 = vst [vmem:[%s392 + $0x1d0] sm:$0xff] %v509
                  %v511 = vld [vmem:[%s391 + $0x3b0] sm:$0xff]
                  %512 = vst [vmem:[%s392 + $0x1d8] sm:$0xff] %v511
                  %v513 = vld [vmem:[%s391 + $0x3c0] sm:$0xff]
                  %514 = vst [vmem:[%s392 + $0x1e0] sm:$0xff] %v513
                  %v515 = vld [vmem:[%s391 + $0x3d0] sm:$0xff]
                  %516 = vst [vmem:[%s392 + $0x1e8] sm:$0xff] %v515
                  %v517 = vld [vmem:[%s391 + $0x3e0] sm:$0xff]
                  %518 = vst [vmem:[%s392 + $0x1f0] sm:$0xff] %v517
                  %v519 = vld [vmem:[%s391 + $0x3f0] sm:$0xff]
                  %520 = vst [vmem:[%s392 + $0x1f8] sm:$0xff] %v519
                $region52: #{fwd.38} parent=46 // loop_footer
                  %s390 = sadd.s32 1, %s386
                $region53: #{fwd.38} parent=46 // loop_footer_branch
                  %385 = sbr.rel target = $region49
                $region54: #{fwd.38} parent=46 // loop_exit
                  _
              $region47: #{fwd.38} parent=31 // pred_fallthru
                _
              // Predicated region
              $region55: #{fwd.38} parent=31 // pred_check
                _
              $region56: #{fwd.38} parent=31 // pred_check_branch
                %522 = sbr.rel target = $region58
              $region57: #{fwd.38} parent=31 // pred_region
                _
              $region58: #{fwd.38} parent=31 // pred_fallthru
                _
            $region32: #{fwd.38} parent=27 // pred_fallthru
              _
            // Predicated region
            $region33: #{fwd.38} parent=27 // pred_check
              _
            $region34: #{fwd.38} parent=27 // pred_check_branch
              %244 = sbr.rel target = $region36
            $region35: #{fwd.38} parent=27 // pred_region
              %s246 = ssub.s32 256, 1
              loop: start=0, step=1, limit=1
              $region37: #{fwd.38} parent=35 // loop_pre_header
                _
              $region38: #{fwd.38} parent=35 // loop_header
                %s248 = sphi 0, %s252
                %p249 = scmp.ge.s32.totalorder %s248, 1
                %s253 = sphi %s238, %s238
                %s254 = sphi %s232, %s232
              $region39: #{fwd.38} parent=35 // loop_header_branch
                %251 = sbr.rel (%p249) target = $region43
              $region40: #{fwd.38} parent=35 // loop_body
                %v255 = vld [vmem:[%s253] sm:%s246]
                %256 = vst [vmem:[%s254] sm:%s246] %v255
                %v257 = vld [vmem:[%s253 + $0x10] sm:%s246]
                %258 = vst [vmem:[%s254 + $0x8] sm:%s246] %v257
                %v259 = vld [vmem:[%s253 + $0x20] sm:%s246]
                %260 = vst [vmem:[%s254 + $0x10] sm:%s246] %v259
                %v261 = vld [vmem:[%s253 + $0x30] sm:%s246]
                %262 = vst [vmem:[%s254 + $0x18] sm:%s246] %v261
                %v263 = vld [vmem:[%s253 + $0x40] sm:%s246]
                %264 = vst [vmem:[%s254 + $0x20] sm:%s246] %v263
                %v265 = vld [vmem:[%s253 + $0x50] sm:%s246]
                %266 = vst [vmem:[%s254 + $0x28] sm:%s246] %v265
                %v267 = vld [vmem:[%s253 + $0x60] sm:%s246]
                %268 = vst [vmem:[%s254 + $0x30] sm:%s246] %v267
                %v269 = vld [vmem:[%s253 + $0x70] sm:%s246]
                %270 = vst [vmem:[%s254 + $0x38] sm:%s246] %v269
                %v271 = vld [vmem:[%s253 + $0x80] sm:%s246]
                %272 = vst [vmem:[%s254 + $0x40] sm:%s246] %v271
                %v273 = vld [vmem:[%s253 + $0x90] sm:%s246]
                %274 = vst [vmem:[%s254 + $0x48] sm:%s246] %v273
                %v275 = vld [vmem:[%s253 + $0xa0] sm:%s246]
                %276 = vst [vmem:[%s254 + $0x50] sm:%s246] %v275
                %v277 = vld [vmem:[%s253 + $0xb0] sm:%s246]
                %278 = vst [vmem:[%s254 + $0x58] sm:%s246] %v277
                %v279 = vld [vmem:[%s253 + $0xc0] sm:%s246]
                %280 = vst [vmem:[%s254 + $0x60] sm:%s246] %v279
                %v281 = vld [vmem:[%s253 + $0xd0] sm:%s246]
                %282 = vst [vmem:[%s254 + $0x68] sm:%s246] %v281
                %v283 = vld [vmem:[%s253 + $0xe0] sm:%s246]
                %284 = vst [vmem:[%s254 + $0x70] sm:%s246] %v283
                %v285 = vld [vmem:[%s253 + $0xf0] sm:%s246]
                %286 = vst [vmem:[%s254 + $0x78] sm:%s246] %v285
                %v287 = vld [vmem:[%s253 + $0x100] sm:%s246]
                %288 = vst [vmem:[%s254 + $0x80] sm:%s246] %v287
                %v289 = vld [vmem:[%s253 + $0x110] sm:%s246]
                %290 = vst [vmem:[%s254 + $0x88] sm:%s246] %v289
                %v291 = vld [vmem:[%s253 + $0x120] sm:%s246]
                %292 = vst [vmem:[%s254 + $0x90] sm:%s246] %v291
                %v293 = vld [vmem:[%s253 + $0x130] sm:%s246]
                %294 = vst [vmem:[%s254 + $0x98] sm:%s246] %v293
                %v295 = vld [vmem:[%s253 + $0x140] sm:%s246]
                %296 = vst [vmem:[%s254 + $0xa0] sm:%s246] %v295
                %v297 = vld [vmem:[%s253 + $0x150] sm:%s246]
                %298 = vst [vmem:[%s254 + $0xa8] sm:%s246] %v297
                %v299 = vld [vmem:[%s253 + $0x160] sm:%s246]
                %300 = vst [vmem:[%s254 + $0xb0] sm:%s246] %v299
                %v301 = vld [vmem:[%s253 + $0x170] sm:%s246]
                %302 = vst [vmem:[%s254 + $0xb8] sm:%s246] %v301
                %v303 = vld [vmem:[%s253 + $0x180] sm:%s246]
                %304 = vst [vmem:[%s254 + $0xc0] sm:%s246] %v303
                %v305 = vld [vmem:[%s253 + $0x190] sm:%s246]
                %306 = vst [vmem:[%s254 + $0xc8] sm:%s246] %v305
                %v307 = vld [vmem:[%s253 + $0x1a0] sm:%s246]
                %308 = vst [vmem:[%s254 + $0xd0] sm:%s246] %v307
                %v309 = vld [vmem:[%s253 + $0x1b0] sm:%s246]
                %310 = vst [vmem:[%s254 + $0xd8] sm:%s246] %v309
                %v311 = vld [vmem:[%s253 + $0x1c0] sm:%s246]
                %312 = vst [vmem:[%s254 + $0xe0] sm:%s246] %v311
                %v313 = vld [vmem:[%s253 + $0x1d0] sm:%s246]
                %314 = vst [vmem:[%s254 + $0xe8] sm:%s246] %v313
                %v315 = vld [vmem:[%s253 + $0x1e0] sm:%s246]
                %316 = vst [vmem:[%s254 + $0xf0] sm:%s246] %v315
                %v317 = vld [vmem:[%s253 + $0x1f0] sm:%s246]
                %318 = vst [vmem:[%s254 + $0xf8] sm:%s246] %v317
                %v319 = vld [vmem:[%s253 + $0x200] sm:%s246]
                %320 = vst [vmem:[%s254 + $0x100] sm:%s246] %v319
                %v321 = vld [vmem:[%s253 + $0x210] sm:%s246]
                %322 = vst [vmem:[%s254 + $0x108] sm:%s246] %v321
                %v323 = vld [vmem:[%s253 + $0x220] sm:%s246]
                %324 = vst [vmem:[%s254 + $0x110] sm:%s246] %v323
                %v325 = vld [vmem:[%s253 + $0x230] sm:%s246]
                %326 = vst [vmem:[%s254 + $0x118] sm:%s246] %v325
                %v327 = vld [vmem:[%s253 + $0x240] sm:%s246]
                %328 = vst [vmem:[%s254 + $0x120] sm:%s246] %v327
                %v329 = vld [vmem:[%s253 + $0x250] sm:%s246]
                %330 = vst [vmem:[%s254 + $0x128] sm:%s246] %v329
                %v331 = vld [vmem:[%s253 + $0x260] sm:%s246]
                %332 = vst [vmem:[%s254 + $0x130] sm:%s246] %v331
                %v333 = vld [vmem:[%s253 + $0x270] sm:%s246]
                %334 = vst [vmem:[%s254 + $0x138] sm:%s246] %v333
                %v335 = vld [vmem:[%s253 + $0x280] sm:%s246]
                %336 = vst [vmem:[%s254 + $0x140] sm:%s246] %v335
                %v337 = vld [vmem:[%s253 + $0x290] sm:%s246]
                %338 = vst [vmem:[%s254 + $0x148] sm:%s246] %v337
                %v339 = vld [vmem:[%s253 + $0x2a0] sm:%s246]
                %340 = vst [vmem:[%s254 + $0x150] sm:%s246] %v339
                %v341 = vld [vmem:[%s253 + $0x2b0] sm:%s246]
                %342 = vst [vmem:[%s254 + $0x158] sm:%s246] %v341
                %v343 = vld [vmem:[%s253 + $0x2c0] sm:%s246]
                %344 = vst [vmem:[%s254 + $0x160] sm:%s246] %v343
                %v345 = vld [vmem:[%s253 + $0x2d0] sm:%s246]
                %346 = vst [vmem:[%s254 + $0x168] sm:%s246] %v345
                %v347 = vld [vmem:[%s253 + $0x2e0] sm:%s246]
                %348 = vst [vmem:[%s254 + $0x170] sm:%s246] %v347
                %v349 = vld [vmem:[%s253 + $0x2f0] sm:%s246]
                %350 = vst [vmem:[%s254 + $0x178] sm:%s246] %v349
                %v351 = vld [vmem:[%s253 + $0x300] sm:%s246]
                %352 = vst [vmem:[%s254 + $0x180] sm:%s246] %v351
                %v353 = vld [vmem:[%s253 + $0x310] sm:%s246]
                %354 = vst [vmem:[%s254 + $0x188] sm:%s246] %v353
                %v355 = vld [vmem:[%s253 + $0x320] sm:%s246]
                %356 = vst [vmem:[%s254 + $0x190] sm:%s246] %v355
                %v357 = vld [vmem:[%s253 + $0x330] sm:%s246]
                %358 = vst [vmem:[%s254 + $0x198] sm:%s246] %v357
                %v359 = vld [vmem:[%s253 + $0x340] sm:%s246]
                %360 = vst [vmem:[%s254 + $0x1a0] sm:%s246] %v359
                %v361 = vld [vmem:[%s253 + $0x350] sm:%s246]
                %362 = vst [vmem:[%s254 + $0x1a8] sm:%s246] %v361
                %v363 = vld [vmem:[%s253 + $0x360] sm:%s246]
                %364 = vst [vmem:[%s254 + $0x1b0] sm:%s246] %v363
                %v365 = vld [vmem:[%s253 + $0x370] sm:%s246]
                %366 = vst [vmem:[%s254 + $0x1b8] sm:%s246] %v365
                %v367 = vld [vmem:[%s253 + $0x380] sm:%s246]
                %368 = vst [vmem:[%s254 + $0x1c0] sm:%s246] %v367
                %v369 = vld [vmem:[%s253 + $0x390] sm:%s246]
                %370 = vst [vmem:[%s254 + $0x1c8] sm:%s246] %v369
                %v371 = vld [vmem:[%s253 + $0x3a0] sm:%s246]
                %372 = vst [vmem:[%s254 + $0x1d0] sm:%s246] %v371
                %v373 = vld [vmem:[%s253 + $0x3b0] sm:%s246]
                %374 = vst [vmem:[%s254 + $0x1d8] sm:%s246] %v373
                %v375 = vld [vmem:[%s253 + $0x3c0] sm:%s246]
                %376 = vst [vmem:[%s254 + $0x1e0] sm:%s246] %v375
                %v377 = vld [vmem:[%s253 + $0x3d0] sm:%s246]
                %378 = vst [vmem:[%s254 + $0x1e8] sm:%s246] %v377
                %v379 = vld [vmem:[%s253 + $0x3e0] sm:%s246]
                %380 = vst [vmem:[%s254 + $0x1f0] sm:%s246] %v379
                %v381 = vld [vmem:[%s253 + $0x3f0] sm:%s246]
                %382 = vst [vmem:[%s254 + $0x1f8] sm:%s246] %v381
              $region41: #{fwd.38} parent=35 // loop_footer
                %s252 = sadd.s32 1, %s248
              $region42: #{fwd.38} parent=35 // loop_footer_branch
                %247 = sbr.rel target = $region38
              $region43: #{fwd.38} parent=35 // loop_exit
                _
            $region36: #{fwd.38} parent=27 // pred_fallthru
              _
          $region28: #{fwd.38} parent=23 // pred_fallthru
            _
          %523 = vnop
        $region24: #{fwd.38} parent=15 // pred_fallthru
          _
        // Predicated region
        $region59: #{fwd.38} parent=15 // pred_check
          %p524 = pneg %p106
        $region60: #{fwd.38} parent=15 // pred_check_branch
          %526 = sbr.rel (%p524) target = $region62
        $region61: #{fwd.38} parent=15 // pred_region
          %s527 = smul.u32 2, %s19
          %p528 = scmp.lt.s32.totalorder %s527, 3
          %s529 = scalar_select %p528, %s527, 3
          %s530 = scalar_lea.vmem %s2, %s529
          %s531 = smul.u32 2, %s19
        $region62: #{fwd.38} parent=15 // pred_fallthru
          _
        // Predicated region
        $region63: #{fwd.38} parent=15 // pred_check
          %p532 = pneg %p132
        $region64: #{fwd.38} parent=15 // pred_check_branch
          %534 = sbr.rel (%p532) target = $region66
        $region65: #{fwd.38} parent=15 // pred_region
          %s535 = smul.u32 2, %s19
          %p536 = scmp.lt.s32.totalorder %s535, 3
          %s537 = scalar_select %p536, %s535, 3
          %s538 = scalar_lea.vmem %s3, %s537
          %s539 = smul.u32 2, %s19
        $region66: #{fwd.38} parent=15 // pred_fallthru
          _
        // Predicated region
        $region67: #{fwd.38} parent=15 // pred_check
          %p540 = pneg %p160
        $region68: #{fwd.38} parent=15 // pred_check_branch
          %542 = sbr.rel (%p540) target = $region70
        $region69: #{fwd.38} parent=15 // pred_region
          %s543 = smul.u32 2, %s19
          %p544 = scmp.lt.s32.totalorder %s18, 0
          %s545 = scalar_select %p544, %s18, 0
          %p546 = scmp.lt.s32.totalorder %s543, 3
          %s547 = scalar_select %p546, %s543, 3
          %s548 = smul.addr %s545, 4
          %s549 = sadd.s32 %s547, %s548
          %s550 = smul.addr %s549, 4
          %s551 = scalar_lea.vmem %s4, %s550
          %s552 = smul.u32 2, %s19
        $region70: #{fwd.38} parent=15 // pred_fallthru
          _
      $region16: #{fwd.38} parent=5 // pred_fallthru
        _
      %p553 = scmp.le.s32.totalorder 1, %s11
      %p554 = scmp.lt.s32.totalorder %s11, 7
      %p555 = pnand %p553, %p554
      %p556 = pneg %p555
      // Predicated region
      $region71: #{fwd.38} parent=5 // pred_check
        _
      $region72: #{fwd.38} parent=5 // pred_check_branch
        %558 = sbr.rel (%p555) target = $region74
      $region73: #{fwd.38} parent=5 // pred_region
        %s559 = ssub.s32 %s11, 1
        %s560 = sand.u32 %s73, 1
        %s561 = sand.u32 %s73, 1
        %s562 = smul.addr %s561, 512
        %s563 = scalar_lea.vmem [#allocation3], %s562
        // Predicated region
        $region75: #{fwd.38} parent=73 // pred_check
          %p564 = pneg %p86
        $region76: #{fwd.38} parent=73 // pred_check_branch
          %566 = sbr.rel (%p564) target = $region78
        $region77: #{fwd.38} parent=73 // pred_region
          _
        $region78: #{fwd.38} parent=73 // pred_fallthru
          _
        %s567 = smul.u32 4, %s23
        %p568 = scmp.lt.s32.totalorder %s21, 0
        %s569 = scalar_select %p568, %s21, 0
        %p570 = scmp.lt.s32.totalorder %s567, 11
        %s571 = scalar_select %p570, %s567, 11
        %s572 = smul.addr %s569, 12
        %s573 = sadd.s32 %s571, %s572
        %s574 = smul.addr %s573, 4
        %s575 = scalar_lea.vmem %s0, %s574
        %p576 = pneg %p58
        %p577 = pneg %p55
        %s578 = sand.u32 %s73, 1
        %s579 = sand.u32 %s73, 1
        %s580 = smul.addr %s579, 512
        %s581 = scalar_lea.vmem [#allocation3], %s580
        %p582 = pneg %p86
        %p583 = pneg %p83
        %s584 = smul.u32 2, %s22
        %p585 = scmp.lt.s32.totalorder %s584, 3
        %s586 = scalar_select %p585, %s584, 3
        %s587 = scalar_lea.vmem %s2, %s586
        %p588 = pneg %p112
        %p589 = pneg %p109
        %s590 = smul.u32 2, %s22
        %p591 = scmp.lt.s32.totalorder %s590, 3
        %s592 = scalar_select %p591, %s590, 3
        %s593 = scalar_lea.vmem %s3, %s592
        %p594 = pneg %p138
        %p595 = pneg %p135
        %s596 = smul.u32 2, %s22
        %p597 = scmp.lt.s32.totalorder %s21, 0
        %s598 = scalar_select %p597, %s21, 0
        %p599 = scmp.lt.s32.totalorder %s596, 3
        %s600 = scalar_select %p599, %s596, 3
        %s601 = smul.addr %s598, 4
        %s602 = sadd.s32 %s600, %s601
        %s603 = smul.addr %s602, 4
        %s604 = scalar_lea.vmem %s4, %s603
        %p605 = pneg %p166
        %p606 = pneg %p163
        %p607 = pneg %p194
        %p608 = pneg %p191
        %s609 = smul.u32 2, %s22
        %p610 = scmp.lt.s32.totalorder %s21, 0
        %s611 = scalar_select %p610, %s21, 0
        %p612 = scmp.lt.s32.totalorder %s609, 3
        %s613 = scalar_select %p612, %s609, 3
        %s614 = smul.addr %s611, 4
        %s615 = sadd.s32 %s613, %s614
        %s616 = smul.addr %s615, 4
        %s617 = scalar_lea.vmem %s5, %s616
        %s618 = smul.u32 4, %s23
        %p619 = scmp.lt.s32.totalorder %s21, 0
        %s620 = scalar_select %p619, %s21, 0
        %p621 = scmp.lt.s32.totalorder %s618, 11
        %s622 = scalar_select %p621, %s618, 11
        %s623 = smul.addr %s620, 12
        %s624 = sadd.s32 %s622, %s623
        %s625 = smul.addr %s624, 4
        %s626 = scalar_lea.vmem %s0, %s625
        %s627 = smul.u32 4, %s23
        %s628 = smul.u32 64, %s23
        %s629 = smul.u32 2, %s22
        %s630 = smul.u32 2, %s22
        %p631 = scmp.lt.s32.totalorder %s630, 3
        %s632 = scalar_select %p631, %s630, 3
        %s633 = scalar_lea.vmem %s2, %s632
        %s634 = smul.u32 2, %s22
        %s635 = smul.u32 2, %s22
        %p636 = scmp.lt.s32.totalorder %s635, 3
        %s637 = scalar_select %p636, %s635, 3
        %s638 = scalar_lea.vmem %s3, %s637
        %s639 = smul.u32 2, %s22
        %s640 = smul.u32 2, %s22
        %p641 = scmp.lt.s32.totalorder %s21, 0
        %s642 = scalar_select %p641, %s21, 0
        %p643 = scmp.lt.s32.totalorder %s640, 3
        %s644 = scalar_select %p643, %s640, 3
        %s645 = smul.addr %s642, 4
        %s646 = sadd.s32 %s644, %s645
        %s647 = smul.addr %s646, 4
        %s648 = scalar_lea.vmem %s4, %s647
        %s649 = smul.u32 2, %s22
        %s650 = smul.u32 2, %s22
        %p651 = scmp.lt.s32.totalorder %s21, 0
        %s652 = scalar_select %p651, %s21, 0
        %p653 = scmp.lt.s32.totalorder %s650, 3
        %s654 = scalar_select %p653, %s650, 3
        %s655 = smul.addr %s652, 4
        %s656 = sadd.s32 %s654, %s655
        %s657 = smul.addr %s656, 4
        %s658 = scalar_lea.vmem %s5, %s657
        %s659 = smul.u32 2, %s22
        %p660 = scmp.eq.s32.totalorder %s23, 0
        // Predicated region
        $region79: #{fwd.38} parent=73 // pred_check
          %p661 = pneg %p660
        $region80: #{fwd.38} parent=73 // pred_check_branch
          %663 = sbr.rel (%p661) target = $region82
        $region81: #{fwd.38} parent=73 // pred_region
          %664 = vst [vmem:[#allocation2] sm:$0xff] 0.0
          %665 = vst [vmem:[#allocation2 + $0x8] sm:$0xff] 0.0
        $region82: #{fwd.38} parent=73 // pred_fallthru
          _
        %v666 = vld [vmem:[#allocation2] sm:$0xff]
        %v667 = vld [vmem:[#allocation2 + $0x8] sm:$0xff]
        %v668 = vld [vmem:[%s626] sm:$0xff]
        %v669 = vld [vmem:[%s626 + $0x8] sm:$0xff]
        %v670 = vld [vmem:[%s563] sm:$0xff]
        %v671 = vld [vmem:[%s563 + $0x8] sm:$0xff]
        %v672 = vld [vmem:[%s563 + $0x10] sm:$0xff]
        %v673 = vld [vmem:[%s563 + $0x18] sm:$0xff]
        %v674 = vld [vmem:[%s563 + $0x20] sm:$0xff]
        %v675 = vld [vmem:[%s563 + $0x28] sm:$0xff]
        %v676 = vld [vmem:[%s563 + $0x30] sm:$0xff]
        %v677 = vld [vmem:[%s563 + $0x38] sm:$0xff]
        %v678 = vld [vmem:[%s563 + $0x40] sm:$0xff]
        %v679 = vld [vmem:[%s563 + $0x48] sm:$0xff]
        %v680 = vld [vmem:[%s563 + $0x50] sm:$0xff]
        %v681 = vld [vmem:[%s563 + $0x58] sm:$0xff]
        %v682 = vld [vmem:[%s563 + $0x60] sm:$0xff]
        %v683 = vld [vmem:[%s563 + $0x68] sm:$0xff]
        %v684 = vld [vmem:[%s563 + $0x70] sm:$0xff]
        %v685 = vld [vmem:[%s563 + $0x78] sm:$0xff]
        %v686 = vld [vmem:[%s563 + $0x80] sm:$0xff]
        %v687 = vld [vmem:[%s563 + $0x88] sm:$0xff]
        %v688 = vld [vmem:[%s563 + $0x90] sm:$0xff]
        %v689 = vld [vmem:[%s563 + $0x98] sm:$0xff]
        %v690 = vld [vmem:[%s563 + $0xa0] sm:$0xff]
        %v691 = vld [vmem:[%s563 + $0xa8] sm:$0xff]
        %v692 = vld [vmem:[%s563 + $0xb0] sm:$0xff]
        %v693 = vld [vmem:[%s563 + $0xb8] sm:$0xff]
        %v694 = vld [vmem:[%s563 + $0xc0] sm:$0xff]
        %v695 = vld [vmem:[%s563 + $0xc8] sm:$0xff]
        %v696 = vld [vmem:[%s563 + $0xd0] sm:$0xff]
        %v697 = vld [vmem:[%s563 + $0xd8] sm:$0xff]
        %v698 = vld [vmem:[%s563 + $0xe0] sm:$0xff]
        %v699 = vld [vmem:[%s563 + $0xe8] sm:$0xff]
        %v700 = vld [vmem:[%s563 + $0xf0] sm:$0xff]
        %v701 = vld [vmem:[%s563 + $0xf8] sm:$0xff]
        %v702 = vld [vmem:[%s563 + $0x100] sm:$0xff]
        %v703 = vld [vmem:[%s563 + $0x108] sm:$0xff]
        %v704 = vld [vmem:[%s563 + $0x110] sm:$0xff]
        %v705 = vld [vmem:[%s563 + $0x118] sm:$0xff]
        %v706 = vld [vmem:[%s563 + $0x120] sm:$0xff]
        %v707 = vld [vmem:[%s563 + $0x128] sm:$0xff]
        %v708 = vld [vmem:[%s563 + $0x130] sm:$0xff]
        %v709 = vld [vmem:[%s563 + $0x138] sm:$0xff]
        %v710 = vld [vmem:[%s563 + $0x140] sm:$0xff]
        %v711 = vld [vmem:[%s563 + $0x148] sm:$0xff]
        %v712 = vld [vmem:[%s563 + $0x150] sm:$0xff]
        %v713 = vld [vmem:[%s563 + $0x158] sm:$0xff]
        %v714 = vld [vmem:[%s563 + $0x160] sm:$0xff]
        %v715 = vld [vmem:[%s563 + $0x168] sm:$0xff]
        %v716 = vld [vmem:[%s563 + $0x170] sm:$0xff]
        %v717 = vld [vmem:[%s563 + $0x178] sm:$0xff]
        %v718 = vld [vmem:[%s563 + $0x180] sm:$0xff]
        %v719 = vld [vmem:[%s563 + $0x188] sm:$0xff]
        %v720 = vld [vmem:[%s563 + $0x190] sm:$0xff]
        %v721 = vld [vmem:[%s563 + $0x198] sm:$0xff]
        %v722 = vld [vmem:[%s563 + $0x1a0] sm:$0xff]
        %v723 = vld [vmem:[%s563 + $0x1a8] sm:$0xff]
        %v724 = vld [vmem:[%s563 + $0x1b0] sm:$0xff]
        %v725 = vld [vmem:[%s563 + $0x1b8] sm:$0xff]
        %v726 = vld [vmem:[%s563 + $0x1c0] sm:$0xff]
        %v727 = vld [vmem:[%s563 + $0x1c8] sm:$0xff]
        %v728 = vld [vmem:[%s563 + $0x1d0] sm:$0xff]
        %v729 = vld [vmem:[%s563 + $0x1d8] sm:$0xff]
        %v730 = vld [vmem:[%s563 + $0x1e0] sm:$0xff]
        %v731 = vld [vmem:[%s563 + $0x1e8] sm:$0xff]
        %v732 = vld [vmem:[%s563 + $0x1f0] sm:$0xff]
        %v733 = vld [vmem:[%s563 + $0x1f8] sm:$0xff]
        %v736 = vunpack.c.l.b16 %v668
        %v737 = vunpack.c.h.b16 %v668
        %v738 = vunpack.c.l.b16 %v669
        %v739 = vunpack.c.h.b16 %v669
        %v740 = vpack.c.b16 %v736, %v736
        %v741 = vpack.c.b16 %v737, %v737
        %v742 = vpack.c.b16 %v738, %v738
        %v743 = vpack.c.b16 %v739, %v739
        %v812 = vunpack.c.l.b16 %v670
        %v813 = vunpack.c.h.b16 %v670
        %v814 = vunpack.c.l.b16 %v671
        %v815 = vunpack.c.h.b16 %v671
        %v816 = vunpack.c.l.b16 %v672
        %v817 = vunpack.c.h.b16 %v672
        %v818 = vunpack.c.l.b16 %v673
        %v819 = vunpack.c.h.b16 %v673
        %v820 = vunpack.c.l.b16 %v674
        %v821 = vunpack.c.h.b16 %v674
        %v822 = vunpack.c.l.b16 %v675
        %v823 = vunpack.c.h.b16 %v675
        %v824 = vunpack.c.l.b16 %v676
        %v825 = vunpack.c.h.b16 %v676
        %v826 = vunpack.c.l.b16 %v677
        %v827 = vunpack.c.h.b16 %v677
        %v828 = vunpack.c.l.b16 %v678
        %v829 = vunpack.c.h.b16 %v678
        %v830 = vunpack.c.l.b16 %v679
        %v831 = vunpack.c.h.b16 %v679
        %v832 = vunpack.c.l.b16 %v680
        %v833 = vunpack.c.h.b16 %v680
        %v834 = vunpack.c.l.b16 %v681
        %v835 = vunpack.c.h.b16 %v681
        %v836 = vunpack.c.l.b16 %v682
        %v837 = vunpack.c.h.b16 %v682
        %v838 = vunpack.c.l.b16 %v683
        %v839 = vunpack.c.h.b16 %v683
        %v840 = vunpack.c.l.b16 %v684
        %v841 = vunpack.c.h.b16 %v684
        %v842 = vunpack.c.l.b16 %v685
        %v843 = vunpack.c.h.b16 %v685
        %v844 = vunpack.c.l.b16 %v686
        %v845 = vunpack.c.h.b16 %v686
        %v846 = vunpack.c.l.b16 %v687
        %v847 = vunpack.c.h.b16 %v687
        %v848 = vunpack.c.l.b16 %v688
        %v849 = vunpack.c.h.b16 %v688
        %v850 = vunpack.c.l.b16 %v689
        %v851 = vunpack.c.h.b16 %v689
        %v852 = vunpack.c.l.b16 %v690
        %v853 = vunpack.c.h.b16 %v690
        %v854 = vunpack.c.l.b16 %v691
        %v855 = vunpack.c.h.b16 %v691
        %v856 = vunpack.c.l.b16 %v692
        %v857 = vunpack.c.h.b16 %v692
        %v858 = vunpack.c.l.b16 %v693
        %v859 = vunpack.c.h.b16 %v693
        %v860 = vunpack.c.l.b16 %v694
        %v861 = vunpack.c.h.b16 %v694
        %v862 = vunpack.c.l.b16 %v695
        %v863 = vunpack.c.h.b16 %v695
        %v864 = vunpack.c.l.b16 %v696
        %v865 = vunpack.c.h.b16 %v696
        %v866 = vunpack.c.l.b16 %v697
        %v867 = vunpack.c.h.b16 %v697
        %v868 = vunpack.c.l.b16 %v698
        %v869 = vunpack.c.h.b16 %v698
        %v870 = vunpack.c.l.b16 %v699
        %v871 = vunpack.c.h.b16 %v699
        %v872 = vunpack.c.l.b16 %v700
        %v873 = vunpack.c.h.b16 %v700
        %v874 = vunpack.c.l.b16 %v701
        %v875 = vunpack.c.h.b16 %v701
        %v876 = vunpack.c.l.b16 %v702
        %v877 = vunpack.c.h.b16 %v702
        %v878 = vunpack.c.l.b16 %v703
        %v879 = vunpack.c.h.b16 %v703
        %v880 = vunpack.c.l.b16 %v704
        %v881 = vunpack.c.h.b16 %v704
        %v882 = vunpack.c.l.b16 %v705
        %v883 = vunpack.c.h.b16 %v705
        %v884 = vunpack.c.l.b16 %v706
        %v885 = vunpack.c.h.b16 %v706
        %v886 = vunpack.c.l.b16 %v707
        %v887 = vunpack.c.h.b16 %v707
        %v888 = vunpack.c.l.b16 %v708
        %v889 = vunpack.c.h.b16 %v708
        %v890 = vunpack.c.l.b16 %v709
        %v891 = vunpack.c.h.b16 %v709
        %v892 = vunpack.c.l.b16 %v710
        %v893 = vunpack.c.h.b16 %v710
        %v894 = vunpack.c.l.b16 %v711
        %v895 = vunpack.c.h.b16 %v711
        %v896 = vunpack.c.l.b16 %v712
        %v897 = vunpack.c.h.b16 %v712
        %v898 = vunpack.c.l.b16 %v713
        %v899 = vunpack.c.h.b16 %v713
        %v900 = vunpack.c.l.b16 %v714
        %v901 = vunpack.c.h.b16 %v714
        %v902 = vunpack.c.l.b16 %v715
        %v903 = vunpack.c.h.b16 %v715
        %v904 = vunpack.c.l.b16 %v716
        %v905 = vunpack.c.h.b16 %v716
        %v906 = vunpack.c.l.b16 %v717
        %v907 = vunpack.c.h.b16 %v717
        %v908 = vunpack.c.l.b16 %v718
        %v909 = vunpack.c.h.b16 %v718
        %v910 = vunpack.c.l.b16 %v719
        %v911 = vunpack.c.h.b16 %v719
        %v912 = vunpack.c.l.b16 %v720
        %v913 = vunpack.c.h.b16 %v720
        %v914 = vunpack.c.l.b16 %v721
        %v915 = vunpack.c.h.b16 %v721
        %v916 = vunpack.c.l.b16 %v722
        %v917 = vunpack.c.h.b16 %v722
        %v918 = vunpack.c.l.b16 %v723
        %v919 = vunpack.c.h.b16 %v723
        %v920 = vunpack.c.l.b16 %v724
        %v921 = vunpack.c.h.b16 %v724
        %v922 = vunpack.c.l.b16 %v725
        %v923 = vunpack.c.h.b16 %v725
        %v924 = vunpack.c.l.b16 %v726
        %v925 = vunpack.c.h.b16 %v726
        %v926 = vunpack.c.l.b16 %v727
        %v927 = vunpack.c.h.b16 %v727
        %v928 = vunpack.c.l.b16 %v728
        %v929 = vunpack.c.h.b16 %v728
        %v930 = vunpack.c.l.b16 %v729
        %v931 = vunpack.c.h.b16 %v729
        %v932 = vunpack.c.l.b16 %v730
        %v933 = vunpack.c.h.b16 %v730
        %v934 = vunpack.c.l.b16 %v731
        %v935 = vunpack.c.h.b16 %v731
        %v936 = vunpack.c.l.b16 %v732
        %v937 = vunpack.c.h.b16 %v732
        %v938 = vunpack.c.l.b16 %v733
        %v939 = vunpack.c.h.b16 %v733
        %v940 = vpack.c.b16 %v814, %v812
        %v941 = vpack.c.b16 %v815, %v813
        %v942 = vpack.c.b16 %v818, %v816
        %v943 = vpack.c.b16 %v819, %v817
        %v944 = vpack.c.b16 %v822, %v820
        %v945 = vpack.c.b16 %v823, %v821
        %v946 = vpack.c.b16 %v826, %v824
        %v947 = vpack.c.b16 %v827, %v825
        %v948 = vpack.c.b16 %v830, %v828
        %v949 = vpack.c.b16 %v831, %v829
        %v950 = vpack.c.b16 %v834, %v832
        %v951 = vpack.c.b16 %v835, %v833
        %v952 = vpack.c.b16 %v838, %v836
        %v953 = vpack.c.b16 %v839, %v837
        %v954 = vpack.c.b16 %v842, %v840
        %v955 = vpack.c.b16 %v843, %v841
        %v956 = vpack.c.b16 %v846, %v844
        %v957 = vpack.c.b16 %v847, %v845
        %v958 = vpack.c.b16 %v850, %v848
        %v959 = vpack.c.b16 %v851, %v849
        %v960 = vpack.c.b16 %v854, %v852
        %v961 = vpack.c.b16 %v855, %v853
        %v962 = vpack.c.b16 %v858, %v856
        %v963 = vpack.c.b16 %v859, %v857
        %v964 = vpack.c.b16 %v862, %v860
        %v965 = vpack.c.b16 %v863, %v861
        %v966 = vpack.c.b16 %v866, %v864
        %v967 = vpack.c.b16 %v867, %v865
        %v968 = vpack.c.b16 %v870, %v868
        %v969 = vpack.c.b16 %v871, %v869
        %v970 = vpack.c.b16 %v874, %v872
        %v971 = vpack.c.b16 %v875, %v873
        %v972 = vpack.c.b16 %v878, %v876
        %v973 = vpack.c.b16 %v879, %v877
        %v974 = vpack.c.b16 %v882, %v880
        %v975 = vpack.c.b16 %v883, %v881
        %v976 = vpack.c.b16 %v886, %v884
        %v977 = vpack.c.b16 %v887, %v885
        %v978 = vpack.c.b16 %v890, %v888
        %v979 = vpack.c.b16 %v891, %v889
        %v980 = vpack.c.b16 %v894, %v892
        %v981 = vpack.c.b16 %v895, %v893
        %v982 = vpack.c.b16 %v898, %v896
        %v983 = vpack.c.b16 %v899, %v897
        %v984 = vpack.c.b16 %v902, %v900
        %v985 = vpack.c.b16 %v903, %v901
        %v986 = vpack.c.b16 %v906, %v904
        %v987 = vpack.c.b16 %v907, %v905
        %v988 = vpack.c.b16 %v910, %v908
        %v989 = vpack.c.b16 %v911, %v909
        %v990 = vpack.c.b16 %v914, %v912
        %v991 = vpack.c.b16 %v915, %v913
        %v992 = vpack.c.b16 %v918, %v916
        %v993 = vpack.c.b16 %v919, %v917
        %v994 = vpack.c.b16 %v922, %v920
        %v995 = vpack.c.b16 %v923, %v921
        %v996 = vpack.c.b16 %v926, %v924
        %v997 = vpack.c.b16 %v927, %v925
        %v998 = vpack.c.b16 %v930, %v928
        %v999 = vpack.c.b16 %v931, %v929
        %v1000 = vpack.c.b16 %v934, %v932
        %v1001 = vpack.c.b16 %v935, %v933
        %v1002 = vpack.c.b16 %v938, %v936
        %v1003 = vpack.c.b16 %v939, %v937
        %1068 = vmatprep.subr.bf16.mxu0 %v955
        %1069 = vmatpush1.bf16.msra.mxu0 %v954
        %1070 = vmatprep.subr.bf16.mxu0 %v953
        %1071 = vmatpush1.bf16.msra.mxu0 %v952
        %1072 = vmatprep.subr.bf16.mxu0 %v951
        %1073 = vmatpush1.bf16.msra.mxu0 %v950
        %1074 = vmatprep.subr.bf16.mxu0 %v949
        %1075 = vmatpush1.bf16.msra.mxu0 %v948
        %1076 = vmatprep.subr.bf16.mxu0 %v947
        %1077 = vmatpush1.bf16.msra.mxu0 %v946
        %1078 = vmatprep.subr.bf16.mxu0 %v945
        %1079 = vmatpush1.bf16.msra.mxu0 %v944
        %1080 = vmatprep.subr.bf16.mxu0 %v943
        %1081 = vmatpush1.bf16.msra.mxu0 %v942
        %1082 = vmatprep.subr.bf16.mxu0 %v941
        %1083 = vmatpush1.bf16.msra.mxu0 %v940
        %1084 = vmatprep.subr.bf16.mxu0 %v971
        %1085 = vmatpush2.bf16.msra.mxu0 %v970
        %1086 = vmatprep.subr.bf16.mxu0 %v969
        %1087 = vmatpush2.bf16.msra.mxu0 %v968
        %1088 = vmatprep.subr.bf16.mxu0 %v967
        %1089 = vmatpush2.bf16.msra.mxu0 %v966
        %1090 = vmatprep.subr.bf16.mxu0 %v965
        %1091 = vmatpush2.bf16.msra.mxu0 %v964
        %1092 = vmatprep.subr.bf16.mxu0 %v963
        %1093 = vmatpush2.bf16.msra.mxu0 %v962
        %1094 = vmatprep.subr.bf16.mxu0 %v961
        %1095 = vmatpush2.bf16.msra.mxu0 %v960
        %1096 = vmatprep.subr.bf16.mxu0 %v959
        %1097 = vmatpush2.bf16.msra.mxu0 %v958
        %1098 = vmatprep.subr.bf16.mxu0 %v957
        %1099 = vmatpush2.bf16.msra.mxu0 %v956
        %1100 = vmatprep.mubr.bf16.mxu0 %v741
        %1101 = vmatmul.mubr.bf16.gmra.mxu0 %v740
        %v1102 = vpop.f32.mrf.mxu0
        %v1103 = vadd.f32 0.0, %v1102
        %v1104 = vpop.f32.mrf.mxu0
        %v1105 = vadd.f32 0.0, %v1104
        %v1106 = vpop.f32.mrf.mxu0
        %v1107 = vpop.f32.mrf.mxu0
        %1108 = vdwg.mxu0
        %1109 = vmatprep.subr.bf16.mxu0 %v987
        %1110 = vmatpush1.bf16.msra.mxu0 %v986
        %1111 = vmatprep.subr.bf16.mxu0 %v985
        %1112 = vmatpush1.bf16.msra.mxu0 %v984
        %1113 = vmatprep.subr.bf16.mxu0 %v983
        %1114 = vmatpush1.bf16.msra.mxu0 %v982
        %1115 = vmatprep.subr.bf16.mxu0 %v981
        %1116 = vmatpush1.bf16.msra.mxu0 %v980
        %1117 = vmatprep.subr.bf16.mxu0 %v979
        %1118 = vmatpush1.bf16.msra.mxu0 %v978
        %1119 = vmatprep.subr.bf16.mxu0 %v977
        %1120 = vmatpush1.bf16.msra.mxu0 %v976
        %1121 = vmatprep.subr.bf16.mxu0 %v975
        %1122 = vmatpush1.bf16.msra.mxu0 %v974
        %1123 = vmatprep.subr.bf16.mxu0 %v973
        %1124 = vmatpush1.bf16.msra.mxu0 %v972
        %1125 = vmatprep.subr.bf16.mxu0 %v1003
        %1126 = vmatpush2.bf16.msra.mxu0 %v1002
        %1127 = vmatprep.subr.bf16.mxu0 %v1001
        %1128 = vmatpush2.bf16.msra.mxu0 %v1000
        %1129 = vmatprep.subr.bf16.mxu0 %v999
        %1130 = vmatpush2.bf16.msra.mxu0 %v998
        %1131 = vmatprep.subr.bf16.mxu0 %v997
        %1132 = vmatpush2.bf16.msra.mxu0 %v996
        %1133 = vmatprep.subr.bf16.mxu0 %v995
        %1134 = vmatpush2.bf16.msra.mxu0 %v994
        %1135 = vmatprep.subr.bf16.mxu0 %v993
        %1136 = vmatpush2.bf16.msra.mxu0 %v992
        %1137 = vmatprep.subr.bf16.mxu0 %v991
        %1138 = vmatpush2.bf16.msra.mxu0 %v990
        %1139 = vmatprep.subr.bf16.mxu0 %v989
        %1140 = vmatpush2.bf16.msra.mxu0 %v988
        %1141 = vmatprep.mubr.bf16.mxu0 %v743
        %1142 = vmatmul.mubr.bf16.gmra.mxu0 %v742
        %v1143 = vpop.f32.mrf.mxu0
        %v1144 = vadd.f32 %v1103, %v1143
        %v1145 = vpop.f32.mrf.mxu0
        %v1146 = vadd.f32 %v1105, %v1145
        %v1147 = vpop.f32.mrf.mxu0
        %v1148 = vpop.f32.mrf.mxu0
        %1149 = vdwg.mxu0
        %v1150 = vadd.f32 %v666, %v1144
        %v1151 = vadd.f32 %v667, %v1146
        %1152 = vst [vmem:[#allocation2] sm:$0xff] %v1150
        %1153 = vst [vmem:[#allocation2 + $0x8] sm:$0xff] %v1151
        %p1154 = scmp.eq.s32.totalorder %s23, 2
        // Predicated region
        $region83: #{fwd.38} parent=73 // pred_check
          %p1155 = pneg %p1154
        $region84: #{fwd.38} parent=73 // pred_check_branch
          %1157 = sbr.rel (%p1155) target = $region86
        $region85: #{fwd.38} parent=73 // pred_region
          %v1158 = vld [vmem:[#allocation2] sm:$0xff]
          %v1159 = vld [vmem:[#allocation2 + $0x8] sm:$0xff]
          %v1160 = vld [vmem:[%s633] sm:$0x3]
          %v1162 = vlaneseq
          %v1163 = vshrl.u32 %v1162, 7
          %v1164 = vsub.s32 0, %v1163
          %v1165 = vrot.slane %v1160, %v1164
          %v1166 = vlaneseq
          %v1167 = vshrl.u32 %v1166, 7
          %v1168 = vsub.s32 1, %v1167
          %v1169 = vrot.slane %v1160, %v1168
          %v1172 = vmul.f32 %v1158, %v1165
          %v1173 = vmul.f32 %v1159, %v1169
          %v1174 = vld [vmem:[%s638] sm:$0x3]
          %v1176 = vlaneseq
          %v1177 = vshrl.u32 %v1176, 7
          %v1178 = vsub.s32 0, %v1177
          %v1179 = vrot.slane %v1174, %v1178
          %v1180 = vlaneseq
          %v1181 = vshrl.u32 %v1180, 7
          %v1182 = vsub.s32 1, %v1181
          %v1183 = vrot.slane %v1174, %v1182
          %v1186 = vadd.f32 %v1172, %v1179
          %v1187 = vadd.f32 %v1173, %v1183
          %v1188 = vld [vmem:[%s648] sm:$0xff]
          %v1189 = vunpack.c.l.bf16 %v1188
          %v1190 = vunpack.c.h.bf16 %v1188
          %v1191 = vadd.f32 %v1186, %v1189
          %v1192 = vadd.f32 %v1187, %v1190
          %v1193 = vmax.f32 %v1191, 0.0
          %v1194 = vmax.f32 %v1192, 0.0
          %v1195 = vpack.c.bf16 %v1193, %v1193
          %v1196 = vpack.c.bf16 %v1194, %v1194
          %v1199 = vunpack.c.l.b16 %v1195
          %v1200 = vunpack.c.l.b16 %v1196
          %v1201 = vpack.c.b16 %v1200, %v1199
          %1203 = vst [vmem:[%s658] sm:$0xff] %v1201
        $region86: #{fwd.38} parent=73 // pred_fallthru
          _
        %s1204 = smul.u32 2, %s22
        %p1205 = scmp.lt.s32.totalorder %s21, 0
        %s1206 = scalar_select %p1205, %s21, 0
        %p1207 = scmp.lt.s32.totalorder %s1204, 3
        %s1208 = scalar_select %p1207, %s1204, 3
        %s1209 = smul.addr %s1206, 4
        %s1210 = sadd.s32 %s1208, %s1209
        %s1211 = smul.addr %s1210, 4
        %s1212 = scalar_lea.vmem %s5, %s1211
        // Predicated region
        $region87: #{fwd.38} parent=73 // pred_check
          %p1213 = pneg %p191
        $region88: #{fwd.38} parent=73 // pred_check_branch
          %1215 = sbr.rel (%p1213) target = $region90
        $region89: #{fwd.38} parent=73 // pred_region
          %s1216 = smul.u32 2, %s22
        $region90: #{fwd.38} parent=73 // pred_fallthru
          _
      $region74: #{fwd.38} parent=5 // pred_fallthru
        _
      %p1217 = scmp.le.s32.totalorder 2, %s11
      // Predicated region
      $region91: #{fwd.38} parent=5 // pred_check
        %p1218 = pneg %p1217
      $region92: #{fwd.38} parent=5 // pred_check_branch
        %1220 = sbr.rel (%p1218) target = $region94
      $region93: #{fwd.38} parent=5 // pred_region
        %s1221 = ssub.s32 %s11, 2
        // Predicated region
        $region95: #{fwd.38} parent=93 // pred_check
          %p1222 = pneg %p197
        $region96: #{fwd.38} parent=93 // pred_check_branch
          %1224 = sbr.rel (%p1222) target = $region98
        $region97: #{fwd.38} parent=93 // pred_region
          %s1225 = smul.u32 2, %s25
          %p1226 = scmp.lt.s32.totalorder %s24, 0
          %s1227 = scalar_select %p1226, %s24, 0
          %p1228 = scmp.lt.s32.totalorder %s1225, 3
          %s1229 = scalar_select %p1228, %s1225, 3
          %s1230 = smul.addr %s1227, 4
          %s1231 = sadd.s32 %s1229, %s1230
          %s1232 = smul.addr %s1231, 4
          %s1233 = scalar_lea.vmem %s5, %s1232
        $region98: #{fwd.38} parent=93 // pred_fallthru
          _
      $region94: #{fwd.38} parent=5 // pred_fallthru
        _
    $region6: #{fwd.38} parent=1 // loop_footer
      %s15 = sadd.s32 1, %s11
    $region7: #{fwd.38} parent=1 // loop_footer_branch
      %10 = sbr.rel target = $region3
    $region8: #{fwd.38} parent=1 // loop_exit
      _

// kernel: fwd.39
$region0: #{fwd.39}
  #allocation0 [shape = 'u32[]', space=smem, size = 0x4, offset = 0x4, fixed_abs, tag = 'smem constant byte address 0x4 - core index']
  #allocation1 [shape = 'u32[144,128]{1,0:T(1,128)}', space=vmem, size = 0x12000, scoped, tag = 'internal scratch']
  #allocation2 [shape = 'f32[8,256]{1,0:T(8,128)}', space=vmem, size = 0x2000, scoped, tag = 'scratch operand']
  %s0 = inlined_call_operand.vmem [shape: bf16[8,1536], index: 0, kind: input, shape index: {}]
  %s1 = inlined_call_operand.vmem [shape: bf16[1536,512], index: 1, kind: input, shape index: {}]
  %s2 = inlined_call_operand.vmem [shape: f32[1,512], index: 2, kind: input, shape index: {}]
  %s3 = inlined_call_operand.vmem [shape: f32[1,512], index: 3, kind: input, shape index: {}]
  %s4 = inlined_call_operand.vmem [shape: bf16[8,512], index: 4, kind: output, shape index: {}]
  %s5 = sld [smem:[#allocation0]]
  $region95: #{fwd.39} parent=0
    _
  %s7 = ssub.s32 1, %s5
  %s8 = scalar_select 0, %s7, %s5
  $region1: #{fwd.39} parent=0
    #allocation3 [shape = 'u8[524288]{0}', space=vmem, size = 0x80000, scoped, tag = 'input window, operand 1']
    loop: start=0, step=1, limit=8
    $region2: #{fwd.39} parent=1 // loop_pre_header
      _
    $region3: #{fwd.39} parent=1 // loop_header
      %s10 = sphi 0, %s14
      %p11 = scmp.ge.s32.totalorder %s10, 8
      %s17 = sphi 0, %s36
      %s18 = sphi 0, %s32
      %s19 = sphi 0, %s28
      %s20 = sphi 0, %s17
      %s21 = sphi 0, %s18
      %s22 = sphi 0, %s19
      %s23 = sphi 0, %s20
      %s24 = sphi 0, %s21
      %s25 = sphi 0, %s22
      %s41 = sphi 0, %s43
      %s44 = sphi 0, %s41
      %s45 = sphi 0, %s44
      %s61 = sphi 0, %s45
      %s69 = sphi 0, %s71
      %s72 = sphi 0, %s69
      %s73 = sphi 0, %s72
      %s89 = sphi 0, %s73
      %s95 = sphi 0, %s97
      %s98 = sphi 0, %s95
      %s99 = sphi 0, %s98
      %s115 = sphi 0, %s99
      %s121 = sphi 0, %s123
      %s124 = sphi 0, %s121
      %s125 = sphi 0, %s124
      %s141 = sphi 0, %s125
      %s149 = sphi 0, %s151
      %s152 = sphi 0, %s149
      %s153 = sphi 0, %s152
      %s169 = sphi 0, %s153
    $region4: #{fwd.39} parent=1 // loop_header_branch
      %13 = sbr.rel (%p11) target = $region8
    $region5: #{fwd.39} parent=1 // loop_body
      %s15 = ssub.s32 %s10, 1
      %s16 = ssub.s32 %s10, 2
      %s26 = sadd.s32 1, %s19
      %p27 = scmp.ge.s32.totalorder %s26, 3
      %s28 = scalar_select %p27, 0, %s26
      %s29 = sadd.s32 1, %s18
      %s30 = scalar_select %p27, %s29, %s18
      %p31 = scmp.ge.s32.totalorder %s30, 2
      %s32 = scalar_select %p31, 0, %s30
      %s33 = sadd.s32 1, %s17
      %s34 = scalar_select %p31, %s33, %s17
      %p35 = scmp.ge.s32.totalorder %s34, 1
      %s36 = scalar_select %p35, 0, %s34
      %s37 = ssub.s32 %s17, %s36
      %s38 = ssub.s32 %s19, %s28
      %s39 = sor.u32 %s37, %s38
      %p40 = scmp.eq.s32.totalorder %s39, 0
      %s42 = sadd.s32 %s41, 1
      %s43 = scalar_select %p40, %s41, %s42
      %p46 = pneg %p40
      %p47 = scmp.eq.s32.totalorder %s10, 5
      %p48 = por %p46, %p47
      %p49 = scmp.ne.s32.totalorder %s41, %s44
      %p50 = scmp.eq.s32.totalorder %s10, 0
      %p51 = por %p49, %p50
      %p52 = scmp.ne.s32.totalorder %s41, %s44
      %p53 = scmp.eq.s32.totalorder %s15, 5
      %p54 = por %p52, %p53
      %p55 = scmp.ne.s32.totalorder %s44, %s45
      %p56 = scmp.eq.s32.totalorder %s15, 0
      %p57 = por %p55, %p56
      %p58 = scmp.ne.s32.totalorder %s44, %s45
      %p59 = scmp.eq.s32.totalorder %s16, 5
      %p60 = por %p58, %p59
      %p62 = scmp.ne.s32.totalorder %s45, %s61
      %p63 = scmp.eq.s32.totalorder %s16, 0
      %p64 = por %p62, %p63
      %s65 = ssub.s32 %s19, %s28
      %s66 = ssub.s32 %s18, %s32
      %s67 = sor.u32 %s65, %s66
      %p68 = scmp.eq.s32.totalorder %s67, 0
      %s70 = sadd.s32 %s69, 1
      %s71 = scalar_select %p68, %s69, %s70
      %p74 = pneg %p68
      %p75 = scmp.eq.s32.totalorder %s10, 5
      %p76 = por %p74, %p75
      %p77 = scmp.ne.s32.totalorder %s69, %s72
      %p78 = scmp.eq.s32.totalorder %s10, 0
      %p79 = por %p77, %p78
      %p80 = scmp.ne.s32.totalorder %s69, %s72
      %p81 = scmp.eq.s32.totalorder %s15, 5
      %p82 = por %p80, %p81
      %p83 = scmp.ne.s32.totalorder %s72, %s73
      %p84 = scmp.eq.s32.totalorder %s15, 0
      %p85 = por %p83, %p84
      %p86 = scmp.ne.s32.totalorder %s72, %s73
      %p87 = scmp.eq.s32.totalorder %s16, 5
      %p88 = por %p86, %p87
      %p90 = scmp.ne.s32.totalorder %s73, %s89
      %p91 = scmp.eq.s32.totalorder %s16, 0
      %p92 = por %p90, %p91
      %s93 = ssub.s32 %s18, %s32
      %p94 = scmp.eq.s32.totalorder %s93, 0
      %s96 = sadd.s32 %s95, 1
      %s97 = scalar_select %p94, %s95, %s96
      %p100 = pneg %p94
      %p101 = scmp.eq.s32.totalorder %s10, 5
      %p102 = por %p100, %p101
      %p103 = scmp.ne.s32.totalorder %s95, %s98
      %p104 = scmp.eq.s32.totalorder %s10, 0
      %p105 = por %p103, %p104
      %p106 = scmp.ne.s32.totalorder %s95, %s98
      %p107 = scmp.eq.s32.totalorder %s15, 5
      %p108 = por %p106, %p107
      %p109 = scmp.ne.s32.totalorder %s98, %s99
      %p110 = scmp.eq.s32.totalorder %s15, 0
      %p111 = por %p109, %p110
      %p112 = scmp.ne.s32.totalorder %s98, %s99
      %p113 = scmp.eq.s32.totalorder %s16, 5
      %p114 = por %p112, %p113
      %p116 = scmp.ne.s32.totalorder %s99, %s115
      %p117 = scmp.eq.s32.totalorder %s16, 0
      %p118 = por %p116, %p117
      %s119 = ssub.s32 %s18, %s32
      %p120 = scmp.eq.s32.totalorder %s119, 0
      %s122 = sadd.s32 %s121, 1
      %s123 = scalar_select %p120, %s121, %s122
      %p126 = pneg %p120
      %p127 = scmp.eq.s32.totalorder %s10, 5
      %p128 = por %p126, %p127
      %p129 = scmp.ne.s32.totalorder %s121, %s124
      %p130 = scmp.eq.s32.totalorder %s10, 0
      %p131 = por %p129, %p130
      %p132 = scmp.ne.s32.totalorder %s121, %s124
      %p133 = scmp.eq.s32.totalorder %s15, 5
      %p134 = por %p132, %p133
      %p135 = scmp.ne.s32.totalorder %s124, %s125
      %p136 = scmp.eq.s32.totalorder %s15, 0
      %p137 = por %p135, %p136
      %p138 = scmp.ne.s32.totalorder %s124, %s125
      %p139 = scmp.eq.s32.totalorder %s16, 5
      %p140 = por %p138, %p139
      %p142 = scmp.ne.s32.totalorder %s125, %s141
      %p143 = scmp.eq.s32.totalorder %s16, 0
      %p144 = por %p142, %p143
      %s145 = ssub.s32 %s17, %s36
      %s146 = ssub.s32 %s18, %s32
      %s147 = sor.u32 %s145, %s146
      %p148 = scmp.eq.s32.totalorder %s147, 0
      %s150 = sadd.s32 %s149, 1
      %s151 = scalar_select %p148, %s149, %s150
      %p154 = pneg %p148
      %p155 = scmp.eq.s32.totalorder %s10, 5
      %p156 = por %p154, %p155
      %p157 = scmp.ne.s32.totalorder %s149, %s152
      %p158 = scmp.eq.s32.totalorder %s10, 0
      %p159 = por %p157, %p158
      %p160 = scmp.ne.s32.totalorder %s149, %s152
      %p161 = scmp.eq.s32.totalorder %s15, 5
      %p162 = por %p160, %p161
      %p163 = scmp.ne.s32.totalorder %s152, %s153
      %p164 = scmp.eq.s32.totalorder %s15, 0
      %p165 = por %p163, %p164
      %p166 = scmp.ne.s32.totalorder %s152, %s153
      %p167 = scmp.eq.s32.totalorder %s16, 5
      %p168 = por %p166, %p167
      %p170 = scmp.ne.s32.totalorder %s153, %s169
      %p171 = scmp.eq.s32.totalorder %s16, 0
      %p172 = por %p170, %p171
      %p173 = scmp.le.s32.totalorder 1, %s10
      %p174 = scmp.lt.s32.totalorder %s10, 7
      %p175 = pnand %p173, %p174
      %p176 = pneg %p175
      // Predicated region
      $region9: #{fwd.39} parent=5 // pred_check
        _
      $region10: #{fwd.39} parent=5 // pred_check_branch
        %178 = sbr.rel (%p175) target = $region12
      $region11: #{fwd.39} parent=5 // pred_region
        %s179 = ssub.s32 %s10, 1
      $region12: #{fwd.39} parent=5 // pred_fallthru
        _
      %p180 = scmp.lt.s32.totalorder %s10, 6
      // Predicated region
      $region13: #{fwd.39} parent=5 // pred_check
        %p181 = pneg %p180
      $region14: #{fwd.39} parent=5 // pred_check_branch
        %183 = sbr.rel (%p181) target = $region16
      $region15: #{fwd.39} parent=5 // pred_region
        // Predicated region
        $region17: #{fwd.39} parent=15 // pred_check
          %p184 = pneg %p51
        $region18: #{fwd.39} parent=15 // pred_check_branch
          %186 = sbr.rel (%p184) target = $region20
        $region19: #{fwd.39} parent=15 // pred_region
          %s187 = smul.u32 4, %s19
          %p188 = scmp.lt.s32.totalorder %s17, 0
          %s189 = scalar_select %p188, %s17, 0
          %p190 = scmp.lt.s32.totalorder %s187, 11
          %s191 = scalar_select %p190, %s187, 11
          %s192 = smul.addr %s189, 12
          %s193 = sadd.s32 %s191, %s192
          %s194 = smul.addr %s193, 4
          %s195 = scalar_lea.vmem %s0, %s194
          %s196 = smul.u32 4, %s19
        $region20: #{fwd.39} parent=15 // pred_fallthru
          _
        // Predicated region
        $region21: #{fwd.39} parent=15 // pred_check
          %p197 = pneg %p79
        $region22: #{fwd.39} parent=15 // pred_check_branch
          %199 = sbr.rel (%p197) target = $region24
        $region23: #{fwd.39} parent=15 // pred_region
          %s200 = sand.u32 %s69, 1
          %s201 = sand.u32 %s69, 1
          %s202 = smul.addr %s201, 512
          %s203 = scalar_lea.vmem [#allocation3], %s202
          %s204 = smul.u32 64, %s19
          %s205 = smul.u32 2, %s18
          %s206 = smul.addr %s204, 4
          %s207 = sadd.s32 %s205, %s206
          %s208 = smul.addr %s207, 4
          %s209 = scalar_lea.vmem %s1, %s208
          // Predicated region
          $region25: #{fwd.39} parent=23 // pred_check
            _
          $region26: #{fwd.39} parent=23 // pred_check_branch
            %211 = sbr.rel (0) target = $region28
          $region27: #{fwd.39} parent=23 // pred_region
            // Predicated region
            $region29: #{fwd.39} parent=27 // pred_check
              _
            $region30: #{fwd.39} parent=27 // pred_check_branch
              %213 = sbr.rel (0) target = $region32
            $region31: #{fwd.39} parent=27 // pred_region
              // Predicated region
              $region44: #{fwd.39} parent=31 // pred_check
                _
              $region45: #{fwd.39} parent=31 // pred_check_branch
                %355 = sbr.rel (0) target = $region47
              $region46: #{fwd.39} parent=31 // pred_region
                loop: start=0, step=1, limit=1
                $region48: #{fwd.39} parent=46 // loop_pre_header
                  _
                $region49: #{fwd.39} parent=46 // loop_header
                  %s357 = sphi 0, %s361
                  %p358 = scmp.ge.s32.totalorder %s357, 1
                  %s362 = sphi %s209, %s209
                  %s363 = sphi %s203, %s203
                $region50: #{fwd.39} parent=46 // loop_header_branch
                  %360 = sbr.rel (%p358) target = $region54
                $region51: #{fwd.39} parent=46 // loop_body
                  %v364 = vld [vmem:[%s362] sm:$0xff]
                  %365 = vst [vmem:[%s363] sm:$0xff] %v364
                  %v366 = vld [vmem:[%s362 + $0x10] sm:$0xff]
                  %367 = vst [vmem:[%s363 + $0x8] sm:$0xff] %v366
                  %v368 = vld [vmem:[%s362 + $0x20] sm:$0xff]
                  %369 = vst [vmem:[%s363 + $0x10] sm:$0xff] %v368
                  %v370 = vld [vmem:[%s362 + $0x30] sm:$0xff]
                  %371 = vst [vmem:[%s363 + $0x18] sm:$0xff] %v370
                  %v372 = vld [vmem:[%s362 + $0x40] sm:$0xff]
                  %373 = vst [vmem:[%s363 + $0x20] sm:$0xff] %v372
                  %v374 = vld [vmem:[%s362 + $0x50] sm:$0xff]
                  %375 = vst [vmem:[%s363 + $0x28] sm:$0xff] %v374
                  %v376 = vld [vmem:[%s362 + $0x60] sm:$0xff]
                  %377 = vst [vmem:[%s363 + $0x30] sm:$0xff] %v376
                  %v378 = vld [vmem:[%s362 + $0x70] sm:$0xff]
                  %379 = vst [vmem:[%s363 + $0x38] sm:$0xff] %v378
                  %v380 = vld [vmem:[%s362 + $0x80] sm:$0xff]
                  %381 = vst [vmem:[%s363 + $0x40] sm:$0xff] %v380
                  %v382 = vld [vmem:[%s362 + $0x90] sm:$0xff]
                  %383 = vst [vmem:[%s363 + $0x48] sm:$0xff] %v382
                  %v384 = vld [vmem:[%s362 + $0xa0] sm:$0xff]
                  %385 = vst [vmem:[%s363 + $0x50] sm:$0xff] %v384
                  %v386 = vld [vmem:[%s362 + $0xb0] sm:$0xff]
                  %387 = vst [vmem:[%s363 + $0x58] sm:$0xff] %v386
                  %v388 = vld [vmem:[%s362 + $0xc0] sm:$0xff]
                  %389 = vst [vmem:[%s363 + $0x60] sm:$0xff] %v388
                  %v390 = vld [vmem:[%s362 + $0xd0] sm:$0xff]
                  %391 = vst [vmem:[%s363 + $0x68] sm:$0xff] %v390
                  %v392 = vld [vmem:[%s362 + $0xe0] sm:$0xff]
                  %393 = vst [vmem:[%s363 + $0x70] sm:$0xff] %v392
                  %v394 = vld [vmem:[%s362 + $0xf0] sm:$0xff]
                  %395 = vst [vmem:[%s363 + $0x78] sm:$0xff] %v394
                  %v396 = vld [vmem:[%s362 + $0x100] sm:$0xff]
                  %397 = vst [vmem:[%s363 + $0x80] sm:$0xff] %v396
                  %v398 = vld [vmem:[%s362 + $0x110] sm:$0xff]
                  %399 = vst [vmem:[%s363 + $0x88] sm:$0xff] %v398
                  %v400 = vld [vmem:[%s362 + $0x120] sm:$0xff]
                  %401 = vst [vmem:[%s363 + $0x90] sm:$0xff] %v400
                  %v402 = vld [vmem:[%s362 + $0x130] sm:$0xff]
                  %403 = vst [vmem:[%s363 + $0x98] sm:$0xff] %v402
                  %v404 = vld [vmem:[%s362 + $0x140] sm:$0xff]
                  %405 = vst [vmem:[%s363 + $0xa0] sm:$0xff] %v404
                  %v406 = vld [vmem:[%s362 + $0x150] sm:$0xff]
                  %407 = vst [vmem:[%s363 + $0xa8] sm:$0xff] %v406
                  %v408 = vld [vmem:[%s362 + $0x160] sm:$0xff]
                  %409 = vst [vmem:[%s363 + $0xb0] sm:$0xff] %v408
                  %v410 = vld [vmem:[%s362 + $0x170] sm:$0xff]
                  %411 = vst [vmem:[%s363 + $0xb8] sm:$0xff] %v410
                  %v412 = vld [vmem:[%s362 + $0x180] sm:$0xff]
                  %413 = vst [vmem:[%s363 + $0xc0] sm:$0xff] %v412
                  %v414 = vld [vmem:[%s362 + $0x190] sm:$0xff]
                  %415 = vst [vmem:[%s363 + $0xc8] sm:$0xff] %v414
                  %v416 = vld [vmem:[%s362 + $0x1a0] sm:$0xff]
                  %417 = vst [vmem:[%s363 + $0xd0] sm:$0xff] %v416
                  %v418 = vld [vmem:[%s362 + $0x1b0] sm:$0xff]
                  %419 = vst [vmem:[%s363 + $0xd8] sm:$0xff] %v418
                  %v420 = vld [vmem:[%s362 + $0x1c0] sm:$0xff]
                  %421 = vst [vmem:[%s363 + $0xe0] sm:$0xff] %v420
                  %v422 = vld [vmem:[%s362 + $0x1d0] sm:$0xff]
                  %423 = vst [vmem:[%s363 + $0xe8] sm:$0xff] %v422
                  %v424 = vld [vmem:[%s362 + $0x1e0] sm:$0xff]
                  %425 = vst [vmem:[%s363 + $0xf0] sm:$0xff] %v424
                  %v426 = vld [vmem:[%s362 + $0x1f0] sm:$0xff]
                  %427 = vst [vmem:[%s363 + $0xf8] sm:$0xff] %v426
                  %v428 = vld [vmem:[%s362 + $0x200] sm:$0xff]
                  %429 = vst [vmem:[%s363 + $0x100] sm:$0xff] %v428
                  %v430 = vld [vmem:[%s362 + $0x210] sm:$0xff]
                  %431 = vst [vmem:[%s363 + $0x108] sm:$0xff] %v430
                  %v432 = vld [vmem:[%s362 + $0x220] sm:$0xff]
                  %433 = vst [vmem:[%s363 + $0x110] sm:$0xff] %v432
                  %v434 = vld [vmem:[%s362 + $0x230] sm:$0xff]
                  %435 = vst [vmem:[%s363 + $0x118] sm:$0xff] %v434
                  %v436 = vld [vmem:[%s362 + $0x240] sm:$0xff]
                  %437 = vst [vmem:[%s363 + $0x120] sm:$0xff] %v436
                  %v438 = vld [vmem:[%s362 + $0x250] sm:$0xff]
                  %439 = vst [vmem:[%s363 + $0x128] sm:$0xff] %v438
                  %v440 = vld [vmem:[%s362 + $0x260] sm:$0xff]
                  %441 = vst [vmem:[%s363 + $0x130] sm:$0xff] %v440
                  %v442 = vld [vmem:[%s362 + $0x270] sm:$0xff]
                  %443 = vst [vmem:[%s363 + $0x138] sm:$0xff] %v442
                  %v444 = vld [vmem:[%s362 + $0x280] sm:$0xff]
                  %445 = vst [vmem:[%s363 + $0x140] sm:$0xff] %v444
                  %v446 = vld [vmem:[%s362 + $0x290] sm:$0xff]
                  %447 = vst [vmem:[%s363 + $0x148] sm:$0xff] %v446
                  %v448 = vld [vmem:[%s362 + $0x2a0] sm:$0xff]
                  %449 = vst [vmem:[%s363 + $0x150] sm:$0xff] %v448
                  %v450 = vld [vmem:[%s362 + $0x2b0] sm:$0xff]
                  %451 = vst [vmem:[%s363 + $0x158] sm:$0xff] %v450
                  %v452 = vld [vmem:[%s362 + $0x2c0] sm:$0xff]
                  %453 = vst [vmem:[%s363 + $0x160] sm:$0xff] %v452
                  %v454 = vld [vmem:[%s362 + $0x2d0] sm:$0xff]
                  %455 = vst [vmem:[%s363 + $0x168] sm:$0xff] %v454
                  %v456 = vld [vmem:[%s362 + $0x2e0] sm:$0xff]
                  %457 = vst [vmem:[%s363 + $0x170] sm:$0xff] %v456
                  %v458 = vld [vmem:[%s362 + $0x2f0] sm:$0xff]
                  %459 = vst [vmem:[%s363 + $0x178] sm:$0xff] %v458
                  %v460 = vld [vmem:[%s362 + $0x300] sm:$0xff]
                  %461 = vst [vmem:[%s363 + $0x180] sm:$0xff] %v460
                  %v462 = vld [vmem:[%s362 + $0x310] sm:$0xff]
                  %463 = vst [vmem:[%s363 + $0x188] sm:$0xff] %v462
                  %v464 = vld [vmem:[%s362 + $0x320] sm:$0xff]
                  %465 = vst [vmem:[%s363 + $0x190] sm:$0xff] %v464
                  %v466 = vld [vmem:[%s362 + $0x330] sm:$0xff]
                  %467 = vst [vmem:[%s363 + $0x198] sm:$0xff] %v466
                  %v468 = vld [vmem:[%s362 + $0x340] sm:$0xff]
                  %469 = vst [vmem:[%s363 + $0x1a0] sm:$0xff] %v468
                  %v470 = vld [vmem:[%s362 + $0x350] sm:$0xff]
                  %471 = vst [vmem:[%s363 + $0x1a8] sm:$0xff] %v470
                  %v472 = vld [vmem:[%s362 + $0x360] sm:$0xff]
                  %473 = vst [vmem:[%s363 + $0x1b0] sm:$0xff] %v472
                  %v474 = vld [vmem:[%s362 + $0x370] sm:$0xff]
                  %475 = vst [vmem:[%s363 + $0x1b8] sm:$0xff] %v474
                  %v476 = vld [vmem:[%s362 + $0x380] sm:$0xff]
                  %477 = vst [vmem:[%s363 + $0x1c0] sm:$0xff] %v476
                  %v478 = vld [vmem:[%s362 + $0x390] sm:$0xff]
                  %479 = vst [vmem:[%s363 + $0x1c8] sm:$0xff] %v478
                  %v480 = vld [vmem:[%s362 + $0x3a0] sm:$0xff]
                  %481 = vst [vmem:[%s363 + $0x1d0] sm:$0xff] %v480
                  %v482 = vld [vmem:[%s362 + $0x3b0] sm:$0xff]
                  %483 = vst [vmem:[%s363 + $0x1d8] sm:$0xff] %v482
                  %v484 = vld [vmem:[%s362 + $0x3c0] sm:$0xff]
                  %485 = vst [vmem:[%s363 + $0x1e0] sm:$0xff] %v484
                  %v486 = vld [vmem:[%s362 + $0x3d0] sm:$0xff]
                  %487 = vst [vmem:[%s363 + $0x1e8] sm:$0xff] %v486
                  %v488 = vld [vmem:[%s362 + $0x3e0] sm:$0xff]
                  %489 = vst [vmem:[%s363 + $0x1f0] sm:$0xff] %v488
                  %v490 = vld [vmem:[%s362 + $0x3f0] sm:$0xff]
                  %491 = vst [vmem:[%s363 + $0x1f8] sm:$0xff] %v490
                $region52: #{fwd.39} parent=46 // loop_footer
                  %s361 = sadd.s32 1, %s357
                $region53: #{fwd.39} parent=46 // loop_footer_branch
                  %356 = sbr.rel target = $region49
                $region54: #{fwd.39} parent=46 // loop_exit
                  _
              $region47: #{fwd.39} parent=31 // pred_fallthru
                _
              // Predicated region
              $region55: #{fwd.39} parent=31 // pred_check
                _
              $region56: #{fwd.39} parent=31 // pred_check_branch
                %493 = sbr.rel target = $region58
              $region57: #{fwd.39} parent=31 // pred_region
                _
              $region58: #{fwd.39} parent=31 // pred_fallthru
                _
            $region32: #{fwd.39} parent=27 // pred_fallthru
              _
            // Predicated region
            $region33: #{fwd.39} parent=27 // pred_check
              _
            $region34: #{fwd.39} parent=27 // pred_check_branch
              %215 = sbr.rel target = $region36
            $region35: #{fwd.39} parent=27 // pred_region
              %s217 = ssub.s32 256, 1
              loop: start=0, step=1, limit=1
              $region37: #{fwd.39} parent=35 // loop_pre_header
                _
              $region38: #{fwd.39} parent=35 // loop_header
                %s219 = sphi 0, %s223
                %p220 = scmp.ge.s32.totalorder %s219, 1
                %s224 = sphi %s209, %s209
                %s225 = sphi %s203, %s203
              $region39: #{fwd.39} parent=35 // loop_header_branch
                %222 = sbr.rel (%p220) target = $region43
              $region40: #{fwd.39} parent=35 // loop_body
                %v226 = vld [vmem:[%s224] sm:%s217]
                %227 = vst [vmem:[%s225] sm:%s217] %v226
                %v228 = vld [vmem:[%s224 + $0x10] sm:%s217]
                %229 = vst [vmem:[%s225 + $0x8] sm:%s217] %v228
                %v230 = vld [vmem:[%s224 + $0x20] sm:%s217]
                %231 = vst [vmem:[%s225 + $0x10] sm:%s217] %v230
                %v232 = vld [vmem:[%s224 + $0x30] sm:%s217]
                %233 = vst [vmem:[%s225 + $0x18] sm:%s217] %v232
                %v234 = vld [vmem:[%s224 + $0x40] sm:%s217]
                %235 = vst [vmem:[%s225 + $0x20] sm:%s217] %v234
                %v236 = vld [vmem:[%s224 + $0x50] sm:%s217]
                %237 = vst [vmem:[%s225 + $0x28] sm:%s217] %v236
                %v238 = vld [vmem:[%s224 + $0x60] sm:%s217]
                %239 = vst [vmem:[%s225 + $0x30] sm:%s217] %v238
                %v240 = vld [vmem:[%s224 + $0x70] sm:%s217]
                %241 = vst [vmem:[%s225 + $0x38] sm:%s217] %v240
                %v242 = vld [vmem:[%s224 + $0x80] sm:%s217]
                %243 = vst [vmem:[%s225 + $0x40] sm:%s217] %v242
                %v244 = vld [vmem:[%s224 + $0x90] sm:%s217]
                %245 = vst [vmem:[%s225 + $0x48] sm:%s217] %v244
                %v246 = vld [vmem:[%s224 + $0xa0] sm:%s217]
                %247 = vst [vmem:[%s225 + $0x50] sm:%s217] %v246
                %v248 = vld [vmem:[%s224 + $0xb0] sm:%s217]
                %249 = vst [vmem:[%s225 + $0x58] sm:%s217] %v248
                %v250 = vld [vmem:[%s224 + $0xc0] sm:%s217]
                %251 = vst [vmem:[%s225 + $0x60] sm:%s217] %v250
                %v252 = vld [vmem:[%s224 + $0xd0] sm:%s217]
                %253 = vst [vmem:[%s225 + $0x68] sm:%s217] %v252
                %v254 = vld [vmem:[%s224 + $0xe0] sm:%s217]
                %255 = vst [vmem:[%s225 + $0x70] sm:%s217] %v254
                %v256 = vld [vmem:[%s224 + $0xf0] sm:%s217]
                %257 = vst [vmem:[%s225 + $0x78] sm:%s217] %v256
                %v258 = vld [vmem:[%s224 + $0x100] sm:%s217]
                %259 = vst [vmem:[%s225 + $0x80] sm:%s217] %v258
                %v260 = vld [vmem:[%s224 + $0x110] sm:%s217]
                %261 = vst [vmem:[%s225 + $0x88] sm:%s217] %v260
                %v262 = vld [vmem:[%s224 + $0x120] sm:%s217]
                %263 = vst [vmem:[%s225 + $0x90] sm:%s217] %v262
                %v264 = vld [vmem:[%s224 + $0x130] sm:%s217]
                %265 = vst [vmem:[%s225 + $0x98] sm:%s217] %v264
                %v266 = vld [vmem:[%s224 + $0x140] sm:%s217]
                %267 = vst [vmem:[%s225 + $0xa0] sm:%s217] %v266
                %v268 = vld [vmem:[%s224 + $0x150] sm:%s217]
                %269 = vst [vmem:[%s225 + $0xa8] sm:%s217] %v268
                %v270 = vld [vmem:[%s224 + $0x160] sm:%s217]
                %271 = vst [vmem:[%s225 + $0xb0] sm:%s217] %v270
                %v272 = vld [vmem:[%s224 + $0x170] sm:%s217]
                %273 = vst [vmem:[%s225 + $0xb8] sm:%s217] %v272
                %v274 = vld [vmem:[%s224 + $0x180] sm:%s217]
                %275 = vst [vmem:[%s225 + $0xc0] sm:%s217] %v274
                %v276 = vld [vmem:[%s224 + $0x190] sm:%s217]
                %277 = vst [vmem:[%s225 + $0xc8] sm:%s217] %v276
                %v278 = vld [vmem:[%s224 + $0x1a0] sm:%s217]
                %279 = vst [vmem:[%s225 + $0xd0] sm:%s217] %v278
                %v280 = vld [vmem:[%s224 + $0x1b0] sm:%s217]
                %281 = vst [vmem:[%s225 + $0xd8] sm:%s217] %v280
                %v282 = vld [vmem:[%s224 + $0x1c0] sm:%s217]
                %283 = vst [vmem:[%s225 + $0xe0] sm:%s217] %v282
                %v284 = vld [vmem:[%s224 + $0x1d0] sm:%s217]
                %285 = vst [vmem:[%s225 + $0xe8] sm:%s217] %v284
                %v286 = vld [vmem:[%s224 + $0x1e0] sm:%s217]
                %287 = vst [vmem:[%s225 + $0xf0] sm:%s217] %v286
                %v288 = vld [vmem:[%s224 + $0x1f0] sm:%s217]
                %289 = vst [vmem:[%s225 + $0xf8] sm:%s217] %v288
                %v290 = vld [vmem:[%s224 + $0x200] sm:%s217]
                %291 = vst [vmem:[%s225 + $0x100] sm:%s217] %v290
                %v292 = vld [vmem:[%s224 + $0x210] sm:%s217]
                %293 = vst [vmem:[%s225 + $0x108] sm:%s217] %v292
                %v294 = vld [vmem:[%s224 + $0x220] sm:%s217]
                %295 = vst [vmem:[%s225 + $0x110] sm:%s217] %v294
                %v296 = vld [vmem:[%s224 + $0x230] sm:%s217]
                %297 = vst [vmem:[%s225 + $0x118] sm:%s217] %v296
                %v298 = vld [vmem:[%s224 + $0x240] sm:%s217]
                %299 = vst [vmem:[%s225 + $0x120] sm:%s217] %v298
                %v300 = vld [vmem:[%s224 + $0x250] sm:%s217]
                %301 = vst [vmem:[%s225 + $0x128] sm:%s217] %v300
                %v302 = vld [vmem:[%s224 + $0x260] sm:%s217]
                %303 = vst [vmem:[%s225 + $0x130] sm:%s217] %v302
                %v304 = vld [vmem:[%s224 + $0x270] sm:%s217]
                %305 = vst [vmem:[%s225 + $0x138] sm:%s217] %v304
                %v306 = vld [vmem:[%s224 + $0x280] sm:%s217]
                %307 = vst [vmem:[%s225 + $0x140] sm:%s217] %v306
                %v308 = vld [vmem:[%s224 + $0x290] sm:%s217]
                %309 = vst [vmem:[%s225 + $0x148] sm:%s217] %v308
                %v310 = vld [vmem:[%s224 + $0x2a0] sm:%s217]
                %311 = vst [vmem:[%s225 + $0x150] sm:%s217] %v310
                %v312 = vld [vmem:[%s224 + $0x2b0] sm:%s217]
                %313 = vst [vmem:[%s225 + $0x158] sm:%s217] %v312
                %v314 = vld [vmem:[%s224 + $0x2c0] sm:%s217]
                %315 = vst [vmem:[%s225 + $0x160] sm:%s217] %v314
                %v316 = vld [vmem:[%s224 + $0x2d0] sm:%s217]
                %317 = vst [vmem:[%s225 + $0x168] sm:%s217] %v316
                %v318 = vld [vmem:[%s224 + $0x2e0] sm:%s217]
                %319 = vst [vmem:[%s225 + $0x170] sm:%s217] %v318
                %v320 = vld [vmem:[%s224 + $0x2f0] sm:%s217]
                %321 = vst [vmem:[%s225 + $0x178] sm:%s217] %v320
                %v322 = vld [vmem:[%s224 + $0x300] sm:%s217]
                %323 = vst [vmem:[%s225 + $0x180] sm:%s217] %v322
                %v324 = vld [vmem:[%s224 + $0x310] sm:%s217]
                %325 = vst [vmem:[%s225 + $0x188] sm:%s217] %v324
                %v326 = vld [vmem:[%s224 + $0x320] sm:%s217]
                %327 = vst [vmem:[%s225 + $0x190] sm:%s217] %v326
                %v328 = vld [vmem:[%s224 + $0x330] sm:%s217]
                %329 = vst [vmem:[%s225 + $0x198] sm:%s217] %v328
                %v330 = vld [vmem:[%s224 + $0x340] sm:%s217]
                %331 = vst [vmem:[%s225 + $0x1a0] sm:%s217] %v330
                %v332 = vld [vmem:[%s224 + $0x350] sm:%s217]
                %333 = vst [vmem:[%s225 + $0x1a8] sm:%s217] %v332
                %v334 = vld [vmem:[%s224 + $0x360] sm:%s217]
                %335 = vst [vmem:[%s225 + $0x1b0] sm:%s217] %v334
                %v336 = vld [vmem:[%s224 + $0x370] sm:%s217]
                %337 = vst [vmem:[%s225 + $0x1b8] sm:%s217] %v336
                %v338 = vld [vmem:[%s224 + $0x380] sm:%s217]
                %339 = vst [vmem:[%s225 + $0x1c0] sm:%s217] %v338
                %v340 = vld [vmem:[%s224 + $0x390] sm:%s217]
                %341 = vst [vmem:[%s225 + $0x1c8] sm:%s217] %v340
                %v342 = vld [vmem:[%s224 + $0x3a0] sm:%s217]
                %343 = vst [vmem:[%s225 + $0x1d0] sm:%s217] %v342
                %v344 = vld [vmem:[%s224 + $0x3b0] sm:%s217]
                %345 = vst [vmem:[%s225 + $0x1d8] sm:%s217] %v344
                %v346 = vld [vmem:[%s224 + $0x3c0] sm:%s217]
                %347 = vst [vmem:[%s225 + $0x1e0] sm:%s217] %v346
                %v348 = vld [vmem:[%s224 + $0x3d0] sm:%s217]
                %349 = vst [vmem:[%s225 + $0x1e8] sm:%s217] %v348
                %v350 = vld [vmem:[%s224 + $0x3e0] sm:%s217]
                %351 = vst [vmem:[%s225 + $0x1f0] sm:%s217] %v350
                %v352 = vld [vmem:[%s224 + $0x3f0] sm:%s217]
                %353 = vst [vmem:[%s225 + $0x1f8] sm:%s217] %v352
              $region41: #{fwd.39} parent=35 // loop_footer
                %s223 = sadd.s32 1, %s219
              $region42: #{fwd.39} parent=35 // loop_footer_branch
                %218 = sbr.rel target = $region38
              $region43: #{fwd.39} parent=35 // loop_exit
                _
            $region36: #{fwd.39} parent=27 // pred_fallthru
              _
          $region28: #{fwd.39} parent=23 // pred_fallthru
            _
          %494 = vnop
        $region24: #{fwd.39} parent=15 // pred_fallthru
          _
        // Predicated region
        $region59: #{fwd.39} parent=15 // pred_check
          %p495 = pneg %p105
        $region60: #{fwd.39} parent=15 // pred_check_branch
          %497 = sbr.rel (%p495) target = $region62
        $region61: #{fwd.39} parent=15 // pred_region
          %s498 = smul.u32 2, %s18
          %p499 = scmp.lt.s32.totalorder %s498, 3
          %s500 = scalar_select %p499, %s498, 3
          %s501 = scalar_lea.vmem %s2, %s500
          %s502 = smul.u32 2, %s18
        $region62: #{fwd.39} parent=15 // pred_fallthru
          _
        // Predicated region
        $region63: #{fwd.39} parent=15 // pred_check
          %p503 = pneg %p131
        $region64: #{fwd.39} parent=15 // pred_check_branch
          %505 = sbr.rel (%p503) target = $region66
        $region65: #{fwd.39} parent=15 // pred_region
          %s506 = smul.u32 2, %s18
          %p507 = scmp.lt.s32.totalorder %s506, 3
          %s508 = scalar_select %p507, %s506, 3
          %s509 = scalar_lea.vmem %s3, %s508
          %s510 = smul.u32 2, %s18
        $region66: #{fwd.39} parent=15 // pred_fallthru
          _
      $region16: #{fwd.39} parent=5 // pred_fallthru
        _
      %p511 = scmp.le.s32.totalorder 1, %s10
      %p512 = scmp.lt.s32.totalorder %s10, 7
      %p513 = pnand %p511, %p512
      %p514 = pneg %p513
      // Predicated region
      $region67: #{fwd.39} parent=5 // pred_check
        _
      $region68: #{fwd.39} parent=5 // pred_check_branch
        %516 = sbr.rel (%p513) target = $region70
      $region69: #{fwd.39} parent=5 // pred_region
        %s517 = ssub.s32 %s10, 1
        %s518 = sand.u32 %s72, 1
        %s519 = sand.u32 %s72, 1
        %s520 = smul.addr %s519, 512
        %s521 = scalar_lea.vmem [#allocation3], %s520
        // Predicated region
        $region71: #{fwd.39} parent=69 // pred_check
          %p522 = pneg %p85
        $region72: #{fwd.39} parent=69 // pred_check_branch
          %524 = sbr.rel (%p522) target = $region74
        $region73: #{fwd.39} parent=69 // pred_region
          _
        $region74: #{fwd.39} parent=69 // pred_fallthru
          _
        %s525 = smul.u32 4, %s22
        %p526 = scmp.lt.s32.totalorder %s20, 0
        %s527 = scalar_select %p526, %s20, 0
        %p528 = scmp.lt.s32.totalorder %s525, 11
        %s529 = scalar_select %p528, %s525, 11
        %s530 = smul.addr %s527, 12
        %s531 = sadd.s32 %s529, %s530
        %s532 = smul.addr %s531, 4
        %s533 = scalar_lea.vmem %s0, %s532
        %p534 = pneg %p57
        %p535 = pneg %p54
        %s536 = sand.u32 %s72, 1
        %s537 = sand.u32 %s72, 1
        %s538 = smul.addr %s537, 512
        %s539 = scalar_lea.vmem [#allocation3], %s538
        %p540 = pneg %p85
        %p541 = pneg %p82
        %s542 = smul.u32 2, %s21
        %p543 = scmp.lt.s32.totalorder %s542, 3
        %s544 = scalar_select %p543, %s542, 3
        %s545 = scalar_lea.vmem %s2, %s544
        %p546 = pneg %p111
        %p547 = pneg %p108
        %s548 = smul.u32 2, %s21
        %p549 = scmp.lt.s32.totalorder %s548, 3
        %s550 = scalar_select %p549, %s548, 3
        %s551 = scalar_lea.vmem %s3, %s550
        %p552 = pneg %p137
        %p553 = pneg %p134
        %p554 = pneg %p165
        %p555 = pneg %p162
        %s556 = smul.u32 2, %s21
        %p557 = scmp.lt.s32.totalorder %s20, 0
        %s558 = scalar_select %p557, %s20, 0
        %p559 = scmp.lt.s32.totalorder %s556, 3
        %s560 = scalar_select %p559, %s556, 3
        %s561 = smul.addr %s558, 4
        %s562 = sadd.s32 %s560, %s561
        %s563 = smul.addr %s562, 4
        %s564 = scalar_lea.vmem %s4, %s563
        %s565 = smul.u32 4, %s22
        %p566 = scmp.lt.s32.totalorder %s20, 0
        %s567 = scalar_select %p566, %s20, 0
        %p568 = scmp.lt.s32.totalorder %s565, 11
        %s569 = scalar_select %p568, %s565, 11
        %s570 = smul.addr %s567, 12
        %s571 = sadd.s32 %s569, %s570
        %s572 = smul.addr %s571, 4
        %s573 = scalar_lea.vmem %s0, %s572
        %s574 = smul.u32 4, %s22
        %s575 = smul.u32 64, %s22
        %s576 = smul.u32 2, %s21
        %s577 = smul.u32 2, %s21
        %p578 = scmp.lt.s32.totalorder %s577, 3
        %s579 = scalar_select %p578, %s577, 3
        %s580 = scalar_lea.vmem %s2, %s579
        %s581 = smul.u32 2, %s21
        %s582 = smul.u32 2, %s21
        %p583 = scmp.lt.s32.totalorder %s582, 3
        %s584 = scalar_select %p583, %s582, 3
        %s585 = scalar_lea.vmem %s3, %s584
        %s586 = smul.u32 2, %s21
        %s587 = smul.u32 2, %s21
        %p588 = scmp.lt.s32.totalorder %s20, 0
        %s589 = scalar_select %p588, %s20, 0
        %p590 = scmp.lt.s32.totalorder %s587, 3
        %s591 = scalar_select %p590, %s587, 3
        %s592 = smul.addr %s589, 4
        %s593 = sadd.s32 %s591, %s592
        %s594 = smul.addr %s593, 4
        %s595 = scalar_lea.vmem %s4, %s594
        %s596 = smul.u32 2, %s21
        %p597 = scmp.eq.s32.totalorder %s22, 0
        // Predicated region
        $region75: #{fwd.39} parent=69 // pred_check
          %p598 = pneg %p597
        $region76: #{fwd.39} parent=69 // pred_check_branch
          %600 = sbr.rel (%p598) target = $region78
        $region77: #{fwd.39} parent=69 // pred_region
          %601 = vst [vmem:[#allocation2] sm:$0xff] 0.0
          %602 = vst [vmem:[#allocation2 + $0x8] sm:$0xff] 0.0
        $region78: #{fwd.39} parent=69 // pred_fallthru
          _
        %v603 = vld [vmem:[#allocation2] sm:$0xff]
        %v604 = vld [vmem:[#allocation2 + $0x8] sm:$0xff]
        %v605 = vld [vmem:[%s573] sm:$0xff]
        %v606 = vld [vmem:[%s573 + $0x8] sm:$0xff]
        %v607 = vld [vmem:[%s521] sm:$0xff]
        %v608 = vld [vmem:[%s521 + $0x8] sm:$0xff]
        %v609 = vld [vmem:[%s521 + $0x10] sm:$0xff]
        %v610 = vld [vmem:[%s521 + $0x18] sm:$0xff]
        %v611 = vld [vmem:[%s521 + $0x20] sm:$0xff]
        %v612 = vld [vmem:[%s521 + $0x28] sm:$0xff]
        %v613 = vld [vmem:[%s521 + $0x30] sm:$0xff]
        %v614 = vld [vmem:[%s521 + $0x38] sm:$0xff]
        %v615 = vld [vmem:[%s521 + $0x40] sm:$0xff]
        %v616 = vld [vmem:[%s521 + $0x48] sm:$0xff]
        %v617 = vld [vmem:[%s521 + $0x50] sm:$0xff]
        %v618 = vld [vmem:[%s521 + $0x58] sm:$0xff]
        %v619 = vld [vmem:[%s521 + $0x60] sm:$0xff]
        %v620 = vld [vmem:[%s521 + $0x68] sm:$0xff]
        %v621 = vld [vmem:[%s521 + $0x70] sm:$0xff]
        %v622 = vld [vmem:[%s521 + $0x78] sm:$0xff]
        %v623 = vld [vmem:[%s521 + $0x80] sm:$0xff]
        %v624 = vld [vmem:[%s521 + $0x88] sm:$0xff]
        %v625 = vld [vmem:[%s521 + $0x90] sm:$0xff]
        %v626 = vld [vmem:[%s521 + $0x98] sm:$0xff]
        %v627 = vld [vmem:[%s521 + $0xa0] sm:$0xff]
        %v628 = vld [vmem:[%s521 + $0xa8] sm:$0xff]
        %v629 = vld [vmem:[%s521 + $0xb0] sm:$0xff]
        %v630 = vld [vmem:[%s521 + $0xb8] sm:$0xff]
        %v631 = vld [vmem:[%s521 + $0xc0] sm:$0xff]
        %v632 = vld [vmem:[%s521 + $0xc8] sm:$0xff]
        %v633 = vld [vmem:[%s521 + $0xd0] sm:$0xff]
        %v634 = vld [vmem:[%s521 + $0xd8] sm:$0xff]
        %v635 = vld [vmem:[%s521 + $0xe0] sm:$0xff]
        %v636 = vld [vmem:[%s521 + $0xe8] sm:$0xff]
        %v637 = vld [vmem:[%s521 + $0xf0] sm:$0xff]
        %v638 = vld [vmem:[%s521 + $0xf8] sm:$0xff]
        %v639 = vld [vmem:[%s521 + $0x100] sm:$0xff]
        %v640 = vld [vmem:[%s521 + $0x108] sm:$0xff]
        %v641 = vld [vmem:[%s521 + $0x110] sm:$0xff]
        %v642 = vld [vmem:[%s521 + $0x118] sm:$0xff]
        %v643 = vld [vmem:[%s521 + $0x120] sm:$0xff]
        %v644 = vld [vmem:[%s521 + $0x128] sm:$0xff]
        %v645 = vld [vmem:[%s521 + $0x130] sm:$0xff]
        %v646 = vld [vmem:[%s521 + $0x138] sm:$0xff]
        %v647 = vld [vmem:[%s521 + $0x140] sm:$0xff]
        %v648 = vld [vmem:[%s521 + $0x148] sm:$0xff]
        %v649 = vld [vmem:[%s521 + $0x150] sm:$0xff]
        %v650 = vld [vmem:[%s521 + $0x158] sm:$0xff]
        %v651 = vld [vmem:[%s521 + $0x160] sm:$0xff]
        %v652 = vld [vmem:[%s521 + $0x168] sm:$0xff]
        %v653 = vld [vmem:[%s521 + $0x170] sm:$0xff]
        %v654 = vld [vmem:[%s521 + $0x178] sm:$0xff]
        %v655 = vld [vmem:[%s521 + $0x180] sm:$0xff]
        %v656 = vld [vmem:[%s521 + $0x188] sm:$0xff]
        %v657 = vld [vmem:[%s521 + $0x190] sm:$0xff]
        %v658 = vld [vmem:[%s521 + $0x198] sm:$0xff]
        %v659 = vld [vmem:[%s521 + $0x1a0] sm:$0xff]
        %v660 = vld [vmem:[%s521 + $0x1a8] sm:$0xff]
        %v661 = vld [vmem:[%s521 + $0x1b0] sm:$0xff]
        %v662 = vld [vmem:[%s521 + $0x1b8] sm:$0xff]
        %v663 = vld [vmem:[%s521 + $0x1c0] sm:$0xff]
        %v664 = vld [vmem:[%s521 + $0x1c8] sm:$0xff]
        %v665 = vld [vmem:[%s521 + $0x1d0] sm:$0xff]
        %v666 = vld [vmem:[%s521 + $0x1d8] sm:$0xff]
        %v667 = vld [vmem:[%s521 + $0x1e0] sm:$0xff]
        %v668 = vld [vmem:[%s521 + $0x1e8] sm:$0xff]
        %v669 = vld [vmem:[%s521 + $0x1f0] sm:$0xff]
        %v670 = vld [vmem:[%s521 + $0x1f8] sm:$0xff]
        %v673 = vunpack.c.l.b16 %v605
        %v674 = vunpack.c.h.b16 %v605
        %v675 = vunpack.c.l.b16 %v606
        %v676 = vunpack.c.h.b16 %v606
        %v677 = vpack.c.b16 %v673, %v673
        %v678 = vpack.c.b16 %v674, %v674
        %v679 = vpack.c.b16 %v675, %v675
        %v680 = vpack.c.b16 %v676, %v676
        %v749 = vunpack.c.l.b16 %v607
        %v750 = vunpack.c.h.b16 %v607
        %v751 = vunpack.c.l.b16 %v608
        %v752 = vunpack.c.h.b16 %v608
        %v753 = vunpack.c.l.b16 %v609
        %v754 = vunpack.c.h.b16 %v609
        %v755 = vunpack.c.l.b16 %v610
        %v756 = vunpack.c.h.b16 %v610
        %v757 = vunpack.c.l.b16 %v611
        %v758 = vunpack.c.h.b16 %v611
        %v759 = vunpack.c.l.b16 %v612
        %v760 = vunpack.c.h.b16 %v612
        %v761 = vunpack.c.l.b16 %v613
        %v762 = vunpack.c.h.b16 %v613
        %v763 = vunpack.c.l.b16 %v614
        %v764 = vunpack.c.h.b16 %v614
        %v765 = vunpack.c.l.b16 %v615
        %v766 = vunpack.c.h.b16 %v615
        %v767 = vunpack.c.l.b16 %v616
        %v768 = vunpack.c.h.b16 %v616
        %v769 = vunpack.c.l.b16 %v617
        %v770 = vunpack.c.h.b16 %v617
        %v771 = vunpack.c.l.b16 %v618
        %v772 = vunpack.c.h.b16 %v618
        %v773 = vunpack.c.l.b16 %v619
        %v774 = vunpack.c.h.b16 %v619
        %v775 = vunpack.c.l.b16 %v620
        %v776 = vunpack.c.h.b16 %v620
        %v777 = vunpack.c.l.b16 %v621
        %v778 = vunpack.c.h.b16 %v621
        %v779 = vunpack.c.l.b16 %v622
        %v780 = vunpack.c.h.b16 %v622
        %v781 = vunpack.c.l.b16 %v623
        %v782 = vunpack.c.h.b16 %v623
        %v783 = vunpack.c.l.b16 %v624
        %v784 = vunpack.c.h.b16 %v624
        %v785 = vunpack.c.l.b16 %v625
        %v786 = vunpack.c.h.b16 %v625
        %v787 = vunpack.c.l.b16 %v626
        %v788 = vunpack.c.h.b16 %v626
        %v789 = vunpack.c.l.b16 %v627
        %v790 = vunpack.c.h.b16 %v627
        %v791 = vunpack.c.l.b16 %v628
        %v792 = vunpack.c.h.b16 %v628
        %v793 = vunpack.c.l.b16 %v629
        %v794 = vunpack.c.h.b16 %v629
        %v795 = vunpack.c.l.b16 %v630
        %v796 = vunpack.c.h.b16 %v630
        %v797 = vunpack.c.l.b16 %v631
        %v798 = vunpack.c.h.b16 %v631
        %v799 = vunpack.c.l.b16 %v632
        %v800 = vunpack.c.h.b16 %v632
        %v801 = vunpack.c.l.b16 %v633
        %v802 = vunpack.c.h.b16 %v633
        %v803 = vunpack.c.l.b16 %v634
        %v804 = vunpack.c.h.b16 %v634
        %v805 = vunpack.c.l.b16 %v635
        %v806 = vunpack.c.h.b16 %v635
        %v807 = vunpack.c.l.b16 %v636
        %v808 = vunpack.c.h.b16 %v636
        %v809 = vunpack.c.l.b16 %v637
        %v810 = vunpack.c.h.b16 %v637
        %v811 = vunpack.c.l.b16 %v638
        %v812 = vunpack.c.h.b16 %v638
        %v813 = vunpack.c.l.b16 %v639
        %v814 = vunpack.c.h.b16 %v639
        %v815 = vunpack.c.l.b16 %v640
        %v816 = vunpack.c.h.b16 %v640
        %v817 = vunpack.c.l.b16 %v641
        %v818 = vunpack.c.h.b16 %v641
        %v819 = vunpack.c.l.b16 %v642
        %v820 = vunpack.c.h.b16 %v642
        %v821 = vunpack.c.l.b16 %v643
        %v822 = vunpack.c.h.b16 %v643
        %v823 = vunpack.c.l.b16 %v644
        %v824 = vunpack.c.h.b16 %v644
        %v825 = vunpack.c.l.b16 %v645
        %v826 = vunpack.c.h.b16 %v645
        %v827 = vunpack.c.l.b16 %v646
        %v828 = vunpack.c.h.b16 %v646
        %v829 = vunpack.c.l.b16 %v647
        %v830 = vunpack.c.h.b16 %v647
        %v831 = vunpack.c.l.b16 %v648
        %v832 = vunpack.c.h.b16 %v648
        %v833 = vunpack.c.l.b16 %v649
        %v834 = vunpack.c.h.b16 %v649
        %v835 = vunpack.c.l.b16 %v650
        %v836 = vunpack.c.h.b16 %v650
        %v837 = vunpack.c.l.b16 %v651
        %v838 = vunpack.c.h.b16 %v651
        %v839 = vunpack.c.l.b16 %v652
        %v840 = vunpack.c.h.b16 %v652
        %v841 = vunpack.c.l.b16 %v653
        %v842 = vunpack.c.h.b16 %v653
        %v843 = vunpack.c.l.b16 %v654
        %v844 = vunpack.c.h.b16 %v654
        %v845 = vunpack.c.l.b16 %v655
        %v846 = vunpack.c.h.b16 %v655
        %v847 = vunpack.c.l.b16 %v656
        %v848 = vunpack.c.h.b16 %v656
        %v849 = vunpack.c.l.b16 %v657
        %v850 = vunpack.c.h.b16 %v657
        %v851 = vunpack.c.l.b16 %v658
        %v852 = vunpack.c.h.b16 %v658
        %v853 = vunpack.c.l.b16 %v659
        %v854 = vunpack.c.h.b16 %v659
        %v855 = vunpack.c.l.b16 %v660
        %v856 = vunpack.c.h.b16 %v660
        %v857 = vunpack.c.l.b16 %v661
        %v858 = vunpack.c.h.b16 %v661
        %v859 = vunpack.c.l.b16 %v662
        %v860 = vunpack.c.h.b16 %v662
        %v861 = vunpack.c.l.b16 %v663
        %v862 = vunpack.c.h.b16 %v663
        %v863 = vunpack.c.l.b16 %v664
        %v864 = vunpack.c.h.b16 %v664
        %v865 = vunpack.c.l.b16 %v665
        %v866 = vunpack.c.h.b16 %v665
        %v867 = vunpack.c.l.b16 %v666
        %v868 = vunpack.c.h.b16 %v666
        %v869 = vunpack.c.l.b16 %v667
        %v870 = vunpack.c.h.b16 %v667
        %v871 = vunpack.c.l.b16 %v668
        %v872 = vunpack.c.h.b16 %v668
        %v873 = vunpack.c.l.b16 %v669
        %v874 = vunpack.c.h.b16 %v669
        %v875 = vunpack.c.l.b16 %v670
        %v876 = vunpack.c.h.b16 %v670
        %v877 = vpack.c.b16 %v751, %v749
        %v878 = vpack.c.b16 %v752, %v750
        %v879 = vpack.c.b16 %v755, %v753
        %v880 = vpack.c.b16 %v756, %v754
        %v881 = vpack.c.b16 %v759, %v757
        %v882 = vpack.c.b16 %v760, %v758
        %v883 = vpack.c.b16 %v763, %v761
        %v884 = vpack.c.b16 %v764, %v762
        %v885 = vpack.c.b16 %v767, %v765
        %v886 = vpack.c.b16 %v768, %v766
        %v887 = vpack.c.b16 %v771, %v769
        %v888 = vpack.c.b16 %v772, %v770
        %v889 = vpack.c.b16 %v775, %v773
        %v890 = vpack.c.b16 %v776, %v774
        %v891 = vpack.c.b16 %v779, %v777
        %v892 = vpack.c.b16 %v780, %v778
        %v893 = vpack.c.b16 %v783, %v781
        %v894 = vpack.c.b16 %v784, %v782
        %v895 = vpack.c.b16 %v787, %v785
        %v896 = vpack.c.b16 %v788, %v786
        %v897 = vpack.c.b16 %v791, %v789
        %v898 = vpack.c.b16 %v792, %v790
        %v899 = vpack.c.b16 %v795, %v793
        %v900 = vpack.c.b16 %v796, %v794
        %v901 = vpack.c.b16 %v799, %v797
        %v902 = vpack.c.b16 %v800, %v798
        %v903 = vpack.c.b16 %v803, %v801
        %v904 = vpack.c.b16 %v804, %v802
        %v905 = vpack.c.b16 %v807, %v805
        %v906 = vpack.c.b16 %v808, %v806
        %v907 = vpack.c.b16 %v811, %v809
        %v908 = vpack.c.b16 %v812, %v810
        %v909 = vpack.c.b16 %v815, %v813
        %v910 = vpack.c.b16 %v816, %v814
        %v911 = vpack.c.b16 %v819, %v817
        %v912 = vpack.c.b16 %v820, %v818
        %v913 = vpack.c.b16 %v823, %v821
        %v914 = vpack.c.b16 %v824, %v822
        %v915 = vpack.c.b16 %v827, %v825
        %v916 = vpack.c.b16 %v828, %v826
        %v917 = vpack.c.b16 %v831, %v829
        %v918 = vpack.c.b16 %v832, %v830
        %v919 = vpack.c.b16 %v835, %v833
        %v920 = vpack.c.b16 %v836, %v834
        %v921 = vpack.c.b16 %v839, %v837
        %v922 = vpack.c.b16 %v840, %v838
        %v923 = vpack.c.b16 %v843, %v841
        %v924 = vpack.c.b16 %v844, %v842
        %v925 = vpack.c.b16 %v847, %v845
        %v926 = vpack.c.b16 %v848, %v846
        %v927 = vpack.c.b16 %v851, %v849
        %v928 = vpack.c.b16 %v852, %v850
        %v929 = vpack.c.b16 %v855, %v853
        %v930 = vpack.c.b16 %v856, %v854
        %v931 = vpack.c.b16 %v859, %v857
        %v932 = vpack.c.b16 %v860, %v858
        %v933 = vpack.c.b16 %v863, %v861
        %v934 = vpack.c.b16 %v864, %v862
        %v935 = vpack.c.b16 %v867, %v865
        %v936 = vpack.c.b16 %v868, %v866
        %v937 = vpack.c.b16 %v871, %v869
        %v938 = vpack.c.b16 %v872, %v870
        %v939 = vpack.c.b16 %v875, %v873
        %v940 = vpack.c.b16 %v876, %v874
        %1005 = vmatprep.subr.bf16.mxu0 %v892
        %1006 = vmatpush1.bf16.msra.mxu0 %v891
        %1007 = vmatprep.subr.bf16.mxu0 %v890
        %1008 = vmatpush1.bf16.msra.mxu0 %v889
        %1009 = vmatprep.subr.bf16.mxu0 %v888
        %1010 = vmatpush1.bf16.msra.mxu0 %v887
        %1011 = vmatprep.subr.bf16.mxu0 %v886
        %1012 = vmatpush1.bf16.msra.mxu0 %v885
        %1013 = vmatprep.subr.bf16.mxu0 %v884
        %1014 = vmatpush1.bf16.msra.mxu0 %v883
        %1015 = vmatprep.subr.bf16.mxu0 %v882
        %1016 = vmatpush1.bf16.msra.mxu0 %v881
        %1017 = vmatprep.subr.bf16.mxu0 %v880
        %1018 = vmatpush1.bf16.msra.mxu0 %v879
        %1019 = vmatprep.subr.bf16.mxu0 %v878
        %1020 = vmatpush1.bf16.msra.mxu0 %v877
        %1021 = vmatprep.subr.bf16.mxu0 %v908
        %1022 = vmatpush2.bf16.msra.mxu0 %v907
        %1023 = vmatprep.subr.bf16.mxu0 %v906
        %1024 = vmatpush2.bf16.msra.mxu0 %v905
        %1025 = vmatprep.subr.bf16.mxu0 %v904
        %1026 = vmatpush2.bf16.msra.mxu0 %v903
        %1027 = vmatprep.subr.bf16.mxu0 %v902
        %1028 = vmatpush2.bf16.msra.mxu0 %v901
        %1029 = vmatprep.subr.bf16.mxu0 %v900
        %1030 = vmatpush2.bf16.msra.mxu0 %v899
        %1031 = vmatprep.subr.bf16.mxu0 %v898
        %1032 = vmatpush2.bf16.msra.mxu0 %v897
        %1033 = vmatprep.subr.bf16.mxu0 %v896
        %1034 = vmatpush2.bf16.msra.mxu0 %v895
        %1035 = vmatprep.subr.bf16.mxu0 %v894
        %1036 = vmatpush2.bf16.msra.mxu0 %v893
        %1037 = vmatprep.mubr.bf16.mxu0 %v678
        %1038 = vmatmul.mubr.bf16.gmra.mxu0 %v677
        %v1039 = vpop.f32.mrf.mxu0
        %v1040 = vadd.f32 0.0, %v1039
        %v1041 = vpop.f32.mrf.mxu0
        %v1042 = vadd.f32 0.0, %v1041
        %v1043 = vpop.f32.mrf.mxu0
        %v1044 = vpop.f32.mrf.mxu0
        %1045 = vdwg.mxu0
        %1046 = vmatprep.subr.bf16.mxu0 %v924
        %1047 = vmatpush1.bf16.msra.mxu0 %v923
        %1048 = vmatprep.subr.bf16.mxu0 %v922
        %1049 = vmatpush1.bf16.msra.mxu0 %v921
        %1050 = vmatprep.subr.bf16.mxu0 %v920
        %1051 = vmatpush1.bf16.msra.mxu0 %v919
        %1052 = vmatprep.subr.bf16.mxu0 %v918
        %1053 = vmatpush1.bf16.msra.mxu0 %v917
        %1054 = vmatprep.subr.bf16.mxu0 %v916
        %1055 = vmatpush1.bf16.msra.mxu0 %v915
        %1056 = vmatprep.subr.bf16.mxu0 %v914
        %1057 = vmatpush1.bf16.msra.mxu0 %v913
        %1058 = vmatprep.subr.bf16.mxu0 %v912
        %1059 = vmatpush1.bf16.msra.mxu0 %v911
        %1060 = vmatprep.subr.bf16.mxu0 %v910
        %1061 = vmatpush1.bf16.msra.mxu0 %v909
        %1062 = vmatprep.subr.bf16.mxu0 %v940
        %1063 = vmatpush2.bf16.msra.mxu0 %v939
        %1064 = vmatprep.subr.bf16.mxu0 %v938
        %1065 = vmatpush2.bf16.msra.mxu0 %v937
        %1066 = vmatprep.subr.bf16.mxu0 %v936
        %1067 = vmatpush2.bf16.msra.mxu0 %v935
        %1068 = vmatprep.subr.bf16.mxu0 %v934
        %1069 = vmatpush2.bf16.msra.mxu0 %v933
        %1070 = vmatprep.subr.bf16.mxu0 %v932
        %1071 = vmatpush2.bf16.msra.mxu0 %v931
        %1072 = vmatprep.subr.bf16.mxu0 %v930
        %1073 = vmatpush2.bf16.msra.mxu0 %v929
        %1074 = vmatprep.subr.bf16.mxu0 %v928
        %1075 = vmatpush2.bf16.msra.mxu0 %v927
        %1076 = vmatprep.subr.bf16.mxu0 %v926
        %1077 = vmatpush2.bf16.msra.mxu0 %v925
        %1078 = vmatprep.mubr.bf16.mxu0 %v680
        %1079 = vmatmul.mubr.bf16.gmra.mxu0 %v679
        %v1080 = vpop.f32.mrf.mxu0
        %v1081 = vadd.f32 %v1040, %v1080
        %v1082 = vpop.f32.mrf.mxu0
        %v1083 = vadd.f32 %v1042, %v1082
        %v1084 = vpop.f32.mrf.mxu0
        %v1085 = vpop.f32.mrf.mxu0
        %1086 = vdwg.mxu0
        %v1087 = vadd.f32 %v603, %v1081
        %v1088 = vadd.f32 %v604, %v1083
        %1089 = vst [vmem:[#allocation2] sm:$0xff] %v1087
        %1090 = vst [vmem:[#allocation2 + $0x8] sm:$0xff] %v1088
        %p1091 = scmp.eq.s32.totalorder %s22, 2
        // Predicated region
        $region79: #{fwd.39} parent=69 // pred_check
          %p1092 = pneg %p1091
        $region80: #{fwd.39} parent=69 // pred_check_branch
          %1094 = sbr.rel (%p1092) target = $region82
        $region81: #{fwd.39} parent=69 // pred_region
          %v1095 = vld [vmem:[#allocation2] sm:$0xff]
          %v1096 = vld [vmem:[#allocation2 + $0x8] sm:$0xff]
          %v1097 = vld [vmem:[%s580] sm:$0x3]
          %v1099 = vlaneseq
          %v1100 = vshrl.u32 %v1099, 7
          %v1101 = vsub.s32 0, %v1100
          %v1102 = vrot.slane %v1097, %v1101
          %v1103 = vlaneseq
          %v1104 = vshrl.u32 %v1103, 7
          %v1105 = vsub.s32 1, %v1104
          %v1106 = vrot.slane %v1097, %v1105
          %v1109 = vmul.f32 %v1095, %v1102
          %v1110 = vmul.f32 %v1096, %v1106
          %v1111 = vld [vmem:[%s585] sm:$0x3]
          %v1113 = vlaneseq
          %v1114 = vshrl.u32 %v1113, 7
          %v1115 = vsub.s32 0, %v1114
          %v1116 = vrot.slane %v1111, %v1115
          %v1117 = vlaneseq
          %v1118 = vshrl.u32 %v1117, 7
          %v1119 = vsub.s32 1, %v1118
          %v1120 = vrot.slane %v1111, %v1119
          %v1123 = vadd.f32 %v1109, %v1116
          %v1124 = vadd.f32 %v1110, %v1120
          %v1125 = vmax.f32 %v1123, 0.0
          %v1126 = vmax.f32 %v1124, 0.0
          %v1127 = vpack.c.bf16 %v1125, %v1125
          %v1128 = vpack.c.bf16 %v1126, %v1126
          %v1131 = vunpack.c.l.b16 %v1127
          %v1132 = vunpack.c.l.b16 %v1128
          %v1133 = vpack.c.b16 %v1132, %v1131
          %1135 = vst [vmem:[%s595] sm:$0xff] %v1133
        $region82: #{fwd.39} parent=69 // pred_fallthru
          _
        %s1136 = smul.u32 2, %s21
        %p1137 = scmp.lt.s32.totalorder %s20, 0
        %s1138 = scalar_select %p1137, %s20, 0
        %p1139 = scmp.lt.s32.totalorder %s1136, 3
        %s1140 = scalar_select %p1139, %s1136, 3
        %s1141 = smul.addr %s1138, 4
        %s1142 = sadd.s32 %s1140, %s1141
        %s1143 = smul.addr %s1142, 4
        %s1144 = scalar_lea.vmem %s4, %s1143
        // Predicated region
        $region83: #{fwd.39} parent=69 // pred_check
          %p1145 = pneg %p162
        $region84: #{fwd.39} parent=69 // pred_check_branch
          %1147 = sbr.rel (%p1145) target = $region86
        $region85: #{fwd.39} parent=69 // pred_region
          %s1148 = smul.u32 2, %s21
        $region86: #{fwd.39} parent=69 // pred_fallthru
          _
      $region70: #{fwd.39} parent=5 // pred_fallthru
        _
      %p1149 = scmp.le.s32.totalorder 2, %s10
      // Predicated region
      $region87: #{fwd.39} parent=5 // pred_check
        %p1150 = pneg %p1149
      $region88: #{fwd.39} parent=5 // pred_check_branch
        %1152 = sbr.rel (%p1150) target = $region90
      $region89: #{fwd.39} parent=5 // pred_region
        %s1153 = ssub.s32 %s10, 2
        // Predicated region
        $region91: #{fwd.39} parent=89 // pred_check
          %p1154 = pneg %p168
        $region92: #{fwd.39} parent=89 // pred_check_branch
          %1156 = sbr.rel (%p1154) target = $region94
        $region93: #{fwd.39} parent=89 // pred_region
          %s1157 = smul.u32 2, %s24
          %p1158 = scmp.lt.s32.totalorder %s23, 0
          %s1159 = scalar_select %p1158, %s23, 0
          %p1160 = scmp.lt.s32.totalorder %s1157, 3
          %s1161 = scalar_select %p1160, %s1157, 3
          %s1162 = smul.addr %s1159, 4
          %s1163 = sadd.s32 %s1161, %s1162
          %s1164 = smul.addr %s1163, 4
          %s1165 = scalar_lea.vmem %s4, %s1164
        $region94: #{fwd.39} parent=89 // pred_fallthru
          _
      $region90: #{fwd.39} parent=5 // pred_fallthru
        _
    $region6: #{fwd.39} parent=1 // loop_footer
      %s14 = sadd.s32 1, %s10
    $region7: #{fwd.39} parent=1 // loop_footer_branch
      %9 = sbr.rel target = $region3
    $region8: #{fwd.39} parent=1 // loop_exit
      _

// kernel: fwd.41
$region0: #{fwd.41}
  #allocation0 [shape = 'u32[]', space=smem, size = 0x4, offset = 0x4, fixed_abs, tag = 'smem constant byte address 0x4 - core index']
  #allocation1 [shape = 'u32[144,128]{1,0:T(1,128)}', space=vmem, size = 0x12000, scoped, tag = 'internal scratch']
  #allocation2 [shape = 'f32[8,128]{1,0:T(8,128)}', space=vmem, size = 0x1000, scoped, tag = 'scratch operand']
  %s0 = inlined_call_operand.vmem [shape: bf16[8,512], index: 0, kind: input, shape index: {}]
  %s1 = inlined_call_operand.vmem [shape: bf16[512,128], index: 1, kind: input, shape index: {}]
  %s2 = inlined_call_operand.vmem [shape: f32[1,128], index: 2, kind: input, shape index: {}]
  %s3 = inlined_call_operand.vmem [shape: f32[1,128], index: 3, kind: input, shape index: {}]
  %s4 = inlined_call_operand.vmem [shape: f32[8,128], index: 4, kind: output, shape index: {}]
  %s5 = sld [smem:[#allocation0]]
  $region34: #{fwd.41} parent=0
    _
  %s7 = ssub.s32 1, %s5
  %s8 = scalar_select 0, %s7, %s5
  // Predicated region
  $region2: #{fwd.41} parent=0 // pred_check
    _
  $region3: #{fwd.41} parent=0 // pred_check_branch
    %10 = sbr.rel (0) target = $region5
  $region4: #{fwd.41} parent=0 // pred_region
    _
  $region5: #{fwd.41} parent=0 // pred_fallthru
    _
  // Predicated region
  $region6: #{fwd.41} parent=0 // pred_check
    _
  $region7: #{fwd.41} parent=0 // pred_check_branch
    %12 = sbr.rel (0) target = $region9
  $region8: #{fwd.41} parent=0 // pred_region
    _
  $region9: #{fwd.41} parent=0 // pred_fallthru
    _
  // Predicated region
  $region10: #{fwd.41} parent=0 // pred_check
    _
  $region11: #{fwd.41} parent=0 // pred_check_branch
    %14 = sbr.rel (0) target = $region13
  $region12: #{fwd.41} parent=0 // pred_region
    _
  $region13: #{fwd.41} parent=0 // pred_fallthru
    _
  // Predicated region
  $region14: #{fwd.41} parent=0 // pred_check
    _
  $region15: #{fwd.41} parent=0 // pred_check_branch
    %16 = sbr.rel (0) target = $region17
  $region16: #{fwd.41} parent=0 // pred_region
    _
  $region17: #{fwd.41} parent=0 // pred_fallthru
    _
  %p18 = scmp.eq.s32.totalorder 0, 0
  // Predicated region
  $region18: #{fwd.41} parent=0 // pred_check
    %p19 = pneg %p18
  $region19: #{fwd.41} parent=0 // pred_check_branch
    %21 = sbr.rel (%p19) target = $region21
  $region20: #{fwd.41} parent=0 // pred_region
    %22 = vst [vmem:[#allocation2] sm:$0xff] 0.0
  $region21: #{fwd.41} parent=0 // pred_fallthru
    _
  %v23 = vld [vmem:[#allocation2] sm:$0xff]
  %v24 = vld [vmem:[%s0] sm:$0xff]
  %v25 = vld [vmem:[%s0 + $0x8] sm:$0xff]
  %v26 = vld [vmem:[%s1] sm:$0xf]
  %v27 = vld [vmem:[%s1 + $0x4] sm:$0xf]
  %v28 = vld [vmem:[%s1 + $0x8] sm:$0xf]
  %v29 = vld [vmem:[%s1 + $0xc] sm:$0xf]
  %v30 = vld [vmem:[%s1 + $0x10] sm:$0xf]
  %v31 = vld [vmem:[%s1 + $0x14] sm:$0xf]
  %v32 = vld [vmem:[%s1 + $0x18] sm:$0xf]
  %v33 = vld [vmem:[%s1 + $0x1c] sm:$0xf]
  %v34 = vld [vmem:[%s1 + $0x20] sm:$0xf]
  %v35 = vld [vmem:[%s1 + $0x24] sm:$0xf]
  %v36 = vld [vmem:[%s1 + $0x28] sm:$0xf]
  %v37 = vld [vmem:[%s1 + $0x2c] sm:$0xf]
  %v38 = vld [vmem:[%s1 + $0x30] sm:$0xf]
  %v39 = vld [vmem:[%s1 + $0x34] sm:$0xf]
  %v40 = vld [vmem:[%s1 + $0x38] sm:$0xf]
  %v41 = vld [vmem:[%s1 + $0x3c] sm:$0xf]
  %v42 = vld [vmem:[%s1 + $0x40] sm:$0xf]
  %v43 = vld [vmem:[%s1 + $0x44] sm:$0xf]
  %v44 = vld [vmem:[%s1 + $0x48] sm:$0xf]
  %v45 = vld [vmem:[%s1 + $0x4c] sm:$0xf]
  %v46 = vld [vmem:[%s1 + $0x50] sm:$0xf]
  %v47 = vld [vmem:[%s1 + $0x54] sm:$0xf]
  %v48 = vld [vmem:[%s1 + $0x58] sm:$0xf]
  %v49 = vld [vmem:[%s1 + $0x5c] sm:$0xf]
  %v50 = vld [vmem:[%s1 + $0x60] sm:$0xf]
  %v51 = vld [vmem:[%s1 + $0x64] sm:$0xf]
  %v52 = vld [vmem:[%s1 + $0x68] sm:$0xf]
  %v53 = vld [vmem:[%s1 + $0x6c] sm:$0xf]
  %v54 = vld [vmem:[%s1 + $0x70] sm:$0xf]
  %v55 = vld [vmem:[%s1 + $0x74] sm:$0xf]
  %v56 = vld [vmem:[%s1 + $0x78] sm:$0xf]
  %v57 = vld [vmem:[%s1 + $0x7c] sm:$0xf]
  %v58 = vld [vmem:[%s1 + $0x80] sm:$0xf]
  %v59 = vld [vmem:[%s1 + $0x84] sm:$0xf]
  %v60 = vld [vmem:[%s1 + $0x88] sm:$0xf]
  %v61 = vld [vmem:[%s1 + $0x8c] sm:$0xf]
  %v62 = vld [vmem:[%s1 + $0x90] sm:$0xf]
  %v63 = vld [vmem:[%s1 + $0x94] sm:$0xf]
  %v64 = vld [vmem:[%s1 + $0x98] sm:$0xf]
  %v65 = vld [vmem:[%s1 + $0x9c] sm:$0xf]
  %v66 = vld [vmem:[%s1 + $0xa0] sm:$0xf]
  %v67 = vld [vmem:[%s1 + $0xa4] sm:$0xf]
  %v68 = vld [vmem:[%s1 + $0xa8] sm:$0xf]
  %v69 = vld [vmem:[%s1 + $0xac] sm:$0xf]
  %v70 = vld [vmem:[%s1 + $0xb0] sm:$0xf]
  %v71 = vld [vmem:[%s1 + $0xb4] sm:$0xf]
  %v72 = vld [vmem:[%s1 + $0xb8] sm:$0xf]
  %v73 = vld [vmem:[%s1 + $0xbc] sm:$0xf]
  %v74 = vld [vmem:[%s1 + $0xc0] sm:$0xf]
  %v75 = vld [vmem:[%s1 + $0xc4] sm:$0xf]
  %v76 = vld [vmem:[%s1 + $0xc8] sm:$0xf]
  %v77 = vld [vmem:[%s1 + $0xcc] sm:$0xf]
  %v78 = vld [vmem:[%s1 + $0xd0] sm:$0xf]
  %v79 = vld [vmem:[%s1 + $0xd4] sm:$0xf]
  %v80 = vld [vmem:[%s1 + $0xd8] sm:$0xf]
  %v81 = vld [vmem:[%s1 + $0xdc] sm:$0xf]
  %v82 = vld [vmem:[%s1 + $0xe0] sm:$0xf]
  %v83 = vld [vmem:[%s1 + $0xe4] sm:$0xf]
  %v84 = vld [vmem:[%s1 + $0xe8] sm:$0xf]
  %v85 = vld [vmem:[%s1 + $0xec] sm:$0xf]
  %v86 = vld [vmem:[%s1 + $0xf0] sm:$0xf]
  %v87 = vld [vmem:[%s1 + $0xf4] sm:$0xf]
  %v88 = vld [vmem:[%s1 + $0xf8] sm:$0xf]
  %v89 = vld [vmem:[%s1 + $0xfc] sm:$0xf]
  %v92 = vunpack.c.l.b16 %v24
  %v93 = vunpack.c.h.b16 %v24
  %v94 = vunpack.c.l.b16 %v25
  %v95 = vunpack.c.h.b16 %v25
  %v96 = vpack.c.b16 %v92, %v92
  %v97 = vpack.c.b16 %v93, %v93
  %v98 = vpack.c.b16 %v94, %v94
  %v99 = vpack.c.b16 %v95, %v95
  %v168 = vunpack.c.l.b16 %v26
  %v169 = vunpack.c.l.b16 %v27
  %v170 = vunpack.c.l.b16 %v28
  %v171 = vunpack.c.l.b16 %v29
  %v172 = vunpack.c.l.b16 %v30
  %v173 = vunpack.c.l.b16 %v31
  %v174 = vunpack.c.l.b16 %v32
  %v175 = vunpack.c.l.b16 %v33
  %v176 = vunpack.c.l.b16 %v34
  %v177 = vunpack.c.l.b16 %v35
  %v178 = vunpack.c.l.b16 %v36
  %v179 = vunpack.c.l.b16 %v37
  %v180 = vunpack.c.l.b16 %v38
  %v181 = vunpack.c.l.b16 %v39
  %v182 = vunpack.c.l.b16 %v40
  %v183 = vunpack.c.l.b16 %v41
  %v184 = vunpack.c.l.b16 %v42
  %v185 = vunpack.c.l.b16 %v43
  %v186 = vunpack.c.l.b16 %v44
  %v187 = vunpack.c.l.b16 %v45
  %v188 = vunpack.c.l.b16 %v46
  %v189 = vunpack.c.l.b16 %v47
  %v190 = vunpack.c.l.b16 %v48
  %v191 = vunpack.c.l.b16 %v49
  %v192 = vunpack.c.l.b16 %v50
  %v193 = vunpack.c.l.b16 %v51
  %v194 = vunpack.c.l.b16 %v52
  %v195 = vunpack.c.l.b16 %v53
  %v196 = vunpack.c.l.b16 %v54
  %v197 = vunpack.c.l.b16 %v55
  %v198 = vunpack.c.l.b16 %v56
  %v199 = vunpack.c.l.b16 %v57
  %v200 = vunpack.c.l.b16 %v58
  %v201 = vunpack.c.l.b16 %v59
  %v202 = vunpack.c.l.b16 %v60
  %v203 = vunpack.c.l.b16 %v61
  %v204 = vunpack.c.l.b16 %v62
  %v205 = vunpack.c.l.b16 %v63
  %v206 = vunpack.c.l.b16 %v64
  %v207 = vunpack.c.l.b16 %v65
  %v208 = vunpack.c.l.b16 %v66
  %v209 = vunpack.c.l.b16 %v67
  %v210 = vunpack.c.l.b16 %v68
  %v211 = vunpack.c.l.b16 %v69
  %v212 = vunpack.c.l.b16 %v70
  %v213 = vunpack.c.l.b16 %v71
  %v214 = vunpack.c.l.b16 %v72
  %v215 = vunpack.c.l.b16 %v73
  %v216 = vunpack.c.l.b16 %v74
  %v217 = vunpack.c.l.b16 %v75
  %v218 = vunpack.c.l.b16 %v76
  %v219 = vunpack.c.l.b16 %v77
  %v220 = vunpack.c.l.b16 %v78
  %v221 = vunpack.c.l.b16 %v79
  %v222 = vunpack.c.l.b16 %v80
  %v223 = vunpack.c.l.b16 %v81
  %v224 = vunpack.c.l.b16 %v82
  %v225 = vunpack.c.l.b16 %v83
  %v226 = vunpack.c.l.b16 %v84
  %v227 = vunpack.c.l.b16 %v85
  %v228 = vunpack.c.l.b16 %v86
  %v229 = vunpack.c.l.b16 %v87
  %v230 = vunpack.c.l.b16 %v88
  %v231 = vunpack.c.l.b16 %v89
  %v232 = vpack.c.b16 %v169, %v168
  %v233 = vpack.c.b16 %v171, %v170
  %v234 = vpack.c.b16 %v173, %v172
  %v235 = vpack.c.b16 %v175, %v174
  %v236 = vpack.c.b16 %v177, %v176
  %v237 = vpack.c.b16 %v179, %v178
  %v238 = vpack.c.b16 %v181, %v180
  %v239 = vpack.c.b16 %v183, %v182
  %v240 = vpack.c.b16 %v185, %v184
  %v241 = vpack.c.b16 %v187, %v186
  %v242 = vpack.c.b16 %v189, %v188
  %v243 = vpack.c.b16 %v191, %v190
  %v244 = vpack.c.b16 %v193, %v192
  %v245 = vpack.c.b16 %v195, %v194
  %v246 = vpack.c.b16 %v197, %v196
  %v247 = vpack.c.b16 %v199, %v198
  %v248 = vpack.c.b16 %v201, %v200
  %v249 = vpack.c.b16 %v203, %v202
  %v250 = vpack.c.b16 %v205, %v204
  %v251 = vpack.c.b16 %v207, %v206
  %v252 = vpack.c.b16 %v209, %v208
  %v253 = vpack.c.b16 %v211, %v210
  %v254 = vpack.c.b16 %v213, %v212
  %v255 = vpack.c.b16 %v215, %v214
  %v256 = vpack.c.b16 %v217, %v216
  %v257 = vpack.c.b16 %v219, %v218
  %v258 = vpack.c.b16 %v221, %v220
  %v259 = vpack.c.b16 %v223, %v222
  %v260 = vpack.c.b16 %v225, %v224
  %v261 = vpack.c.b16 %v227, %v226
  %v262 = vpack.c.b16 %v229, %v228
  %v263 = vpack.c.b16 %v231, %v230
  %296 = vmatprep.subr.bf16.mxu0 0
  %297 = vmatpush1.bf16.msra.mxu0 %v239
  %298 = vmatprep.subr.bf16.mxu0 0
  %299 = vmatpush1.bf16.msra.mxu0 %v238
  %300 = vmatprep.subr.bf16.mxu0 0
  %301 = vmatpush1.bf16.msra.mxu0 %v237
  %302 = vmatprep.subr.bf16.mxu0 0
  %303 = vmatpush1.bf16.msra.mxu0 %v236
  %304 = vmatprep.subr.bf16.mxu0 0
  %305 = vmatpush1.bf16.msra.mxu0 %v235
  %306 = vmatprep.subr.bf16.mxu0 0
  %307 = vmatpush1.bf16.msra.mxu0 %v234
  %308 = vmatprep.subr.bf16.mxu0 0
  %309 = vmatpush1.bf16.msra.mxu0 %v233
  %310 = vmatprep.subr.bf16.mxu0 0
  %311 = vmatpush1.bf16.msra.mxu0 %v232
  %312 = vmatprep.subr.bf16.mxu0 0
  %313 = vmatpush2.bf16.msra.mxu0 %v247
  %314 = vmatprep.subr.bf16.mxu0 0
  %315 = vmatpush2.bf16.msra.mxu0 %v246
  %316 = vmatprep.subr.bf16.mxu0 0
  %317 = vmatpush2.bf16.msra.mxu0 %v245
  %318 = vmatprep.subr.bf16.mxu0 0
  %319 = vmatpush2.bf16.msra.mxu0 %v244
  %320 = vmatprep.subr.bf16.mxu0 0
  %321 = vmatpush2.bf16.msra.mxu0 %v243
  %322 = vmatprep.subr.bf16.mxu0 0
  %323 = vmatpush2.bf16.msra.mxu0 %v242
  %324 = vmatprep.subr.bf16.mxu0 0
  %325 = vmatpush2.bf16.msra.mxu0 %v241
  %326 = vmatprep.subr.bf16.mxu0 0
  %327 = vmatpush2.bf16.msra.mxu0 %v240
  %328 = vmatprep.mubr.bf16.mxu0 %v97
  %329 = vmatmul.mubr.bf16.gmra.mxu0 %v96
  %v330 = vpop.f32.mrf.mxu0
  %v331 = vadd.f32 0.0, %v330
  %v332 = vpop.f32.mrf.mxu0
  %v333 = vpop.f32.mrf.mxu0
  %v334 = vpop.f32.mrf.mxu0
  %335 = vdwg.mxu0
  %336 = vmatprep.subr.bf16.mxu0 0
  %337 = vmatpush1.bf16.msra.mxu0 %v255
  %338 = vmatprep.subr.bf16.mxu0 0
  %339 = vmatpush1.bf16.msra.mxu0 %v254
  %340 = vmatprep.subr.bf16.mxu0 0
  %341 = vmatpush1.bf16.msra.mxu0 %v253
  %342 = vmatprep.subr.bf16.mxu0 0
  %343 = vmatpush1.bf16.msra.mxu0 %v252
  %344 = vmatprep.subr.bf16.mxu0 0
  %345 = vmatpush1.bf16.msra.mxu0 %v251
  %346 = vmatprep.subr.bf16.mxu0 0
  %347 = vmatpush1.bf16.msra.mxu0 %v250
  %348 = vmatprep.subr.bf16.mxu0 0
  %349 = vmatpush1.bf16.msra.mxu0 %v249
  %350 = vmatprep.subr.bf16.mxu0 0
  %351 = vmatpush1.bf16.msra.mxu0 %v248
  %352 = vmatprep.subr.bf16.mxu0 0
  %353 = vmatpush2.bf16.msra.mxu0 %v263
  %354 = vmatprep.subr.bf16.mxu0 0
  %355 = vmatpush2.bf16.msra.mxu0 %v262
  %356 = vmatprep.subr.bf16.mxu0 0
  %357 = vmatpush2.bf16.msra.mxu0 %v261
  %358 = vmatprep.subr.bf16.mxu0 0
  %359 = vmatpush2.bf16.msra.mxu0 %v260
  %360 = vmatprep.subr.bf16.mxu0 0
  %361 = vmatpush2.bf16.msra.mxu0 %v259
  %362 = vmatprep.subr.bf16.mxu0 0
  %363 = vmatpush2.bf16.msra.mxu0 %v258
  %364 = vmatprep.subr.bf16.mxu0 0
  %365 = vmatpush2.bf16.msra.mxu0 %v257
  %366 = vmatprep.subr.bf16.mxu0 0
  %367 = vmatpush2.bf16.msra.mxu0 %v256
  %368 = vmatprep.mubr.bf16.mxu0 %v99
  %369 = vmatmul.mubr.bf16.gmra.mxu0 %v98
  %v370 = vpop.f32.mrf.mxu0
  %v371 = vadd.f32 %v331, %v370
  %v372 = vpop.f32.mrf.mxu0
  %v373 = vpop.f32.mrf.mxu0
  %v374 = vpop.f32.mrf.mxu0
  %375 = vdwg.mxu0
  %v376 = vadd.f32 %v23, %v371
  %377 = vst [vmem:[#allocation2] sm:$0xff] %v376
  // Predicated region
  $region22: #{fwd.41} parent=0 // pred_check
    %p378 = pneg %p18
  $region23: #{fwd.41} parent=0 // pred_check_branch
    %380 = sbr.rel (%p378) target = $region25
  $region24: #{fwd.41} parent=0 // pred_region
    %v381 = vld [vmem:[#allocation2] sm:$0xff]
    %v382 = vld [vmem:[%s2] sm:$0x1]
    %v384 = vlaneseq
    %v385 = vshrl.u32 %v384, 7
    %v386 = vsub.s32 0, %v385
    %v387 = vrot.slane %v382, %v386
    %v389 = vmul.f32 %v381, %v387
    %v390 = vld [vmem:[%s3] sm:$0x1]
    %v392 = vlaneseq
    %v393 = vshrl.u32 %v392, 7
    %v394 = vsub.s32 0, %v393
    %v395 = vrot.slane %v390, %v394
    %v397 = vadd.f32 %v389, %v395
    %398 = vst [vmem:[%s4] sm:$0xff] %v397
  $region25: #{fwd.41} parent=0 // pred_fallthru
    _
  // Predicated region
  $region26: #{fwd.41} parent=0 // pred_check
    _
  $region27: #{fwd.41} parent=0 // pred_check_branch
    %400 = sbr.rel (0) target = $region29
  $region28: #{fwd.41} parent=0 // pred_region
    _
  $region29: #{fwd.41} parent=0 // pred_fallthru
    _
  // Predicated region
  $region30: #{fwd.41} parent=0 // pred_check
    _
  $region31: #{fwd.41} parent=0 // pred_check_branch
    %402 = sbr.rel (0) target = $region33
  $region32: #{fwd.41} parent=0 // pred_region
    _
  $region33: #{fwd.41} parent=0 // pred_fallthru
    _

</llo_original>
